<compile_context>
chip_gen: v5e
topology: v5e:2x2
jax: 0.10.0
libtpu: 0.0.40
codegen_flags: <defaults>
</compile_context>

<pallas_src>
import functools

import jax
import jax.numpy as jnp
from jax.experimental import pallas as pl
from jax.experimental.pallas import tpu as pltpu

BN_EPS = 1e-5
VMEM_LIMIT = 48 * 1024 * 1024  # safe on v5e/v6e (128 MiB) and v7x (64 MiB)


# ----------------------------- small helpers --------------------------------

def _round_up(x, m):
    return (x + m - 1) // m * m


def _choose_tm(M, cap=512):
    """M-tile: big (MXU-friendly, mult. of 8), capped so VMEM stays bounded."""
    return cap if M > cap else _round_up(M, 8)


def _choose_tk(K, cap=1536):
    """K-tile: full K when small, else the largest 128-multiple divisor <= cap."""
    if K <= cap or K % 128 != 0:
        return K
    for tk in range(cap - cap % 128, 127, -128):
        if K % tk == 0:
            return tk
    return K


# ---------------------------- Pallas kernel 1 --------------------------------
# y = relu6?( (x @ w) * scale + bias ), tiled (M x K) grid, f32 accumulation.

def _matmul_bn_kernel(x_ref, w_ref, sb_ref, o_ref, acc_ref, *, relu6):
    @pl.when(pl.program_id(1) == 0)
    def _():
        acc_ref[...] = jnp.zeros_like(acc_ref)

    acc_ref[...] += jnp.dot(x_ref[...], w_ref[...],
                            preferred_element_type=jnp.float32)

    @pl.when(pl.program_id(1) == pl.num_programs(1) - 1)
    def _():
        y = acc_ref[...] * sb_ref[0:1, :] + sb_ref[1:2, :]
        if relu6:
            y = jnp.clip(y, 0.0, 6.0)
        o_ref[...] = y.astype(o_ref.dtype)


def pallas_matmul_bn(x, w, scale, bias, *, relu6, out_dtype=jnp.bfloat16):
    M, K = x.shape
    K2, N = w.shape
    assert K == K2
    TM = _choose_tm(M)
    Mp = _round_up(M, TM)
    if Mp != M:
        x = jnp.pad(x, ((0, Mp - M), (0, 0)))
    TK = _choose_tk(K)
    sb = jnp.stack([scale, bias]).astype(jnp.float32)  # (2, N)

    kern = functools.partial(_matmul_bn_kernel, relu6=relu6)
    out = pl.pallas_call(
        kern,
        out_shape=jax.ShapeDtypeStruct((Mp, N), out_dtype),
        grid=(Mp // TM, K // TK),
        in_specs=[
            pl.BlockSpec((TM, TK), lambda i, k: (i, k)),
            pl.BlockSpec((TK, N), lambda i, k: (k, 0)),
            pl.BlockSpec((2, N), lambda i, k: (0, 0)),
        ],
        out_specs=pl.BlockSpec((TM, N), lambda i, k: (i, 0)),
        scratch_shapes=[pltpu.VMEM((TM, N), jnp.float32)],
        compiler_params=pltpu.CompilerParams(
            dimension_semantics=("parallel", "arbitrary"),
            vmem_limit_bytes=VMEM_LIMIT),
    )(x, w, sb)
    return out[:M]


# ---------------------------- Pallas kernel 2 --------------------------------
# Fused: three weight_level 1x1 convs (+BN+ReLU6) -> 48->3 logits conv ->
# channel softmax -> weighted sum of the three resized feature maps.

def _asff_fuse_kernel(f0_ref, f1_ref, f2_ref, wa_ref, wsc_ref, wbi_ref,
                      wl_ref, bl_ref, o_ref):
    fs = [f0_ref[...], f1_ref[...], f2_ref[...]]          # (TM, C) bf16 each

    logits = bl_ref[...]                                   # (1, 3) -> bcast
    for i in range(3):
        v = jnp.dot(fs[i], wa_ref[i], preferred_element_type=jnp.float32)
        v = v * wsc_ref[i:i + 1, :] + wbi_ref[i:i + 1, :]
        v = jnp.clip(v, 0.0, 6.0)                          # (TM, 16)
        logits = logits + jnp.dot(v, wl_ref[i],
                                  preferred_element_type=jnp.float32)

    m = jnp.max(logits, axis=-1, keepdims=True)
    e = jnp.exp(logits - m)
    inv = pl.reciprocal(jnp.sum(e, axis=-1, keepdims=True), approx=True)
    wgt = e * inv                                          # (TM, 3) softmax

    acc = fs[0].astype(jnp.float32) * wgt[:, 0:1]
    acc = acc + fs[1].astype(jnp.float32) * wgt[:, 1:2]
    acc = acc + fs[2].astype(jnp.float32) * wgt[:, 2:3]
    o_ref[...] = acc.astype(o_ref.dtype)


def pallas_asff_fuse(f0, f1, f2, wa, wsc, wbi, wl, bl):
    M, C = f0.shape
    CC = wa.shape[2]
    TM = _choose_tm(M)
    Mp = _round_up(M, TM)
    if Mp != M:
        pad = ((0, Mp - M), (0, 0))
        f0, f1, f2 = (jnp.pad(t, pad) for t in (f0, f1, f2))

    out = pl.pallas_call(
        _asff_fuse_kernel,
        out_shape=jax.ShapeDtypeStruct((Mp, C), jnp.bfloat16),
        grid=(Mp // TM,),
        in_specs=[
            pl.BlockSpec((TM, C), lambda i: (i, 0)),
            pl.BlockSpec((TM, C), lambda i: (i, 0)),
            pl.BlockSpec((TM, C), lambda i: (i, 0)),
            pl.BlockSpec((3, C, CC), lambda i: (0, 0, 0)),
            pl.BlockSpec((3, CC), lambda i: (0, 0)),
            pl.BlockSpec((3, CC), lambda i: (0, 0)),
            pl.BlockSpec((3, CC, 3), lambda i: (0, 0, 0)),
            pl.BlockSpec((1, 3), lambda i: (0, 0)),
        ],
        out_specs=pl.BlockSpec((TM, C), lambda i: (i, 0)),
        compiler_params=pltpu.CompilerParams(
            dimension_semantics=("parallel",),
            vmem_limit_bytes=VMEM_LIMIT),
    )(f0, f1, f2, wa, wsc, wbi, wl, bl)
    return out[:M]


# ------------------------------ JAX glue -------------------------------------

def fold_bn(p):
    scale = p["gamma"] * jax.lax.rsqrt(p["var"] + BN_EPS)
    bias = p["beta"] - p["mean"] * scale
    return scale, bias


def im2col(x_nhwc, kh, kw, stride, pad):
    # TODO(synk): replace with an in-kernel 9-tap accumulation (Element-offset
    # BlockSpecs / manual DMA) to avoid the kh*kw x HBM blow-up at large H,W.
    B, H, W, C = x_nhwc.shape
    xp = jnp.pad(x_nhwc, ((0, 0), (pad, pad), (pad, pad), (0, 0)))
    Ho = (H + 2 * pad - kh) // stride + 1
    Wo = (W + 2 * pad - kw) // stride + 1
    cols = []
    for i in range(kh):
        for j in range(kw):
            cols.append(xp[:, i:i + stride * Ho:stride, j:j + stride * Wo:stride, :])
    patches = jnp.concatenate(cols, axis=-1)  # (B, Ho, Wo, kh*kw*C)
    return patches.reshape(B * Ho * Wo, kh * kw * C), (B, Ho, Wo)


def conv_bn_relu6(x_nhwc, p, k, stride, pad, out_dtype=jnp.bfloat16):
    """conv (no bias) + BatchNorm (eval) + ReLU6, matmul done in Pallas (bf16)."""
    w = p["w"]  # (k, k, Cin, Cout)
    scale, bias = fold_bn(p)
    if k == 1 and stride == 1 and pad == 0:
        B, H, W, C = x_nhwc.shape
        patches = x_nhwc.reshape(B * H * W, C).astype(jnp.bfloat16)
        Ho, Wo = H, W
    else:
        patches, (B, Ho, Wo) = im2col(x_nhwc.astype(jnp.bfloat16), k, k, stride, pad)
    wm = w.reshape(-1, w.shape[3]).astype(jnp.bfloat16)
    y = pallas_matmul_bn(patches, wm, scale, bias, relu6=True, out_dtype=out_dtype)
    return y.reshape(B, Ho, Wo, w.shape[3])


def upsample_nearest_2x(x_nhwc):
    # TODO(synk): fold the 2x nearest upsample into the fused kernel's index_map
    # instead of materializing the 4x larger tensor in HBM.
    return jnp.repeat(jnp.repeat(x_nhwc, 2, axis=1), 2, axis=2)


# ----------------------------- parameters ------------------------------------

def init_conv_bn(key, cin, cout, k):
    k1, k2, k3, k4, k5 = jax.random.split(key, 5)
    return dict(
        w=0.05 * jax.random.normal(k1, (k, k, cin, cout), jnp.float32),
        gamma=1.0 + 0.1 * jax.random.normal(k2, (cout,), jnp.float32),
        beta=0.1 * jax.random.normal(k3, (cout,), jnp.float32),
        mean=0.1 * jax.random.normal(k4, (cout,), jnp.float32),
        var=1.0 + 0.1 * jnp.abs(jax.random.normal(k5, (cout,), jnp.float32)),
    )


def init_asff_level1_params(key):
    # level=1, dim=[512,256,128] -> inter_dim=256, compress_c=16 (rfb=False)
    ks = jax.random.split(key, 8)
    return dict(
        compress_level_0=init_conv_bn(ks[0], 512, 256, 1),
        stride_level_2=init_conv_bn(ks[1], 128, 256, 3),
        expand=init_conv_bn(ks[2], 256, 256, 3),
        weight_level_0=init_conv_bn(ks[3], 256, 16, 1),
        weight_level_1=init_conv_bn(ks[4], 256, 16, 1),
        weight_level_2=init_conv_bn(ks[5], 256, 16, 1),
        weight_levels=dict(
            w=0.05 * jax.random.normal(ks[6], (1, 1, 48, 3), jnp.float32),
            b=0.1 * jax.random.normal(ks[7], (3,), jnp.float32),
        ),
    )


# ----------------------------- ASFF forward ----------------------------------

def asff_forward(params, x_level_0, x_level_1, x_level_2):
    """level=1, vis=False.  Inputs NCHW, output NCHW (f32)."""
    x0 = jnp.transpose(x_level_0, (0, 2, 3, 1)).astype(jnp.float32)
    x1 = jnp.transpose(x_level_1, (0, 2, 3, 1)).astype(jnp.float32)
    x2 = jnp.transpose(x_level_2, (0, 2, 3, 1)).astype(jnp.float32)

    l0c = conv_bn_relu6(x0, params["compress_level_0"], 1, 1, 0)         # bf16
    level_0_resized = upsample_nearest_2x(l0c)                           # bf16
    level_1_resized = x1.astype(jnp.bfloat16)
    level_2_resized = conv_bn_relu6(x2, params["stride_level_2"], 3, 2, 1)

    B, H, W, C = level_1_resized.shape
    M = B * H * W
    CC = params["weight_level_0"]["w"].shape[3]

    # Pack the small per-level weight-conv / logits-conv parameters.
    wa = jnp.stack([params[f"weight_level_{i}"]["w"].reshape(C, CC)
                    for i in range(3)]).astype(jnp.bfloat16)             # (3,C,16)
    scs, bis = [], []
    for i in range(3):
        s, b = fold_bn(params[f"weight_level_{i}"])
        scs.append(s)
        bis.append(b)
    wsc = jnp.stack(scs).astype(jnp.float32)                             # (3,16)
    wbi = jnp.stack(bis).astype(jnp.float32)                             # (3,16)
    wl = params["weight_levels"]["w"].reshape(3, CC, 3).astype(jnp.float32)
    bl = params["weight_levels"]["b"].reshape(1, 3).astype(jnp.float32)

    fused = pallas_asff_fuse(
        level_0_resized.reshape(M, C),
        level_1_resized.reshape(M, C),
        level_2_resized.reshape(M, C),
        wa, wsc, wbi, wl, bl,
    ).reshape(B, H, W, C)                                                # bf16

    out = conv_bn_relu6(fused, params["expand"], 3, 1, 1, out_dtype=jnp.float32)
    return jnp.transpose(out, (0, 3, 1, 2))  # back to NCHW


# ----------------------- pure-JAX f32 reference (for checking) ---------------

def _ref_conv_bn(x, p, stride, pad):
    y = jax.lax.conv_general_dilated(
        x, p["w"], (stride, stride), [(pad, pad), (pad, pad)],
        dimension_numbers=("NHWC", "HWIO", "NHWC"))
    scale, bias = fold_bn(p)
    return jnp.clip(y * scale + bias, 0.0, 6.0)


def asff_forward_ref(params, x_level_0, x_level_1, x_level_2):
    x0 = jnp.transpose(x_level_0, (0, 2, 3, 1)).astype(jnp.float32)
    x1 = jnp.transpose(x_level_1, (0, 2, 3, 1)).astype(jnp.float32)
    x2 = jnp.transpose(x_level_2, (0, 2, 3, 1)).astype(jnp.float32)

    l0 = upsample_nearest_2x(_ref_conv_bn(x0, params["compress_level_0"], 1, 0))
    l1 = x1
    l2 = _ref_conv_bn(x2, params["stride_level_2"], 2, 1)

    cat = jnp.concatenate([
        _ref_conv_bn(l0, params["weight_level_0"], 1, 0),
        _ref_conv_bn(l1, params["weight_level_1"], 1, 0),
        _ref_conv_bn(l2, params["weight_level_2"], 1, 0),
    ], axis=-1)
    logits = jax.lax.conv_general_dilated(
        cat, params["weight_levels"]["w"], (1, 1), [(0, 0), (0, 0)],
        dimension_numbers=("NHWC", "HWIO", "NHWC")) + params["weight_levels"]["b"]
    w = jax.nn.softmax(logits, axis=-1)
    fused = (l0 * w[..., 0:1] + l1 * w[..., 1:2] + l2 * w[..., 2:3])
    out = _ref_conv_bn(fused, params["expand"], 1, 1)
    return jnp.transpose(out, (0, 3, 1, 2))


# --------------------------------- main ---------------------------------------

if __name__ == "__main__":
    key = jax.random.PRNGKey(0)
    kp, k0, k1, k2 = jax.random.split(key, 4)
    params = init_asff_level1_params(kp)

    B = 2
    # level=1: x_level_0 is half the spatial size of x_level_1, x_level_2 is 2x.
    x_level_0 = jax.random.normal(k0, (B, 512, 4, 4), jnp.float32)
    x_level_1 = jax.random.normal(k1, (B, 256, 8, 8), jnp.float32)
    x_level_2 = jax.random.normal(k2, (B, 128, 16, 16), jnp.float32)

    fwd = jax.jit(asff_forward)
    out = jax.block_until_ready(fwd(params, x_level_0, x_level_1, x_level_2))
    assert out.shape == (B, 256, 8, 8), out.shape

    ref = jax.block_until_ready(
        asff_forward_ref(params, x_level_0, x_level_1, x_level_2))
    diff = jnp.abs(out - ref)
    max_err = float(jnp.max(diff))
    rel_err = float(jnp.linalg.norm(out - ref) / (jnp.linalg.norm(ref) + 1e-6))
    # Tolerance loosened vs. the pure-f32 version: matmul inputs and
    # inter-kernel activations are bf16 (full-rate MXU, half the HBM traffic).
    assert max_err < 0.35 and rel_err < 0.05, (max_err, rel_err)

    print("KERNEL_OK")
</pallas_src>

<mosaic_0001>
module attributes {stable_mosaic.version = 11 : i64} {
  func.func @_matmul_bn_kernel(%arg0: i32, %arg1: i32, %arg2: memref<32x512xbf16, #tpu.memory_space<vmem>>, %arg3: memref<512x256xbf16, #tpu.memory_space<vmem>>, %arg4: memref<2x256xf32, #tpu.memory_space<vmem>>, %arg5: memref<32x256xbf16, #tpu.memory_space<vmem>>, %arg6: memref<32x256xf32, #tpu.memory_space<vmem>>) attributes {dimension_semantics = [#tpu.dimension_semantics<parallel>, #tpu.dimension_semantics<arbitrary>], iteration_bounds = array<i64: 1, 1>, scalar_prefetch = 0 : i64, scratch_operands = 1 : i64, tpu.core_type = #tpu.core_type<tc>, window_params = [{transform_indices = @transform_0, window_bounds = array<i64: 32, 512>}, {transform_indices = @transform_1, window_bounds = array<i64: 512, 256>}, {pipeline_mode = #tpu.pipeline_mode<synchronous>, transform_indices = @transform_2, window_bounds = array<i64: 2, 256>}, {transform_indices = @transform_3, window_bounds = array<i64: 32, 256>}]} {
    %c0_i32 = arith.constant 0 : i32
    %0 = arith.cmpi eq, %arg1, %c0_i32 : i32
    %1 = arith.extui %0 : i1 to i32
    %c0_i32_0 = arith.constant 0 : i32
    %2 = arith.cmpi ne, %1, %c0_i32_0 : i32
    scf.if %2 {
      %cst_10 = arith.constant 0.000000e+00 : f32
      %12 = vector.broadcast %cst_10 : f32 to vector<32x256xf32>
      %c0_11 = arith.constant 0 : index
      %c0_12 = arith.constant 0 : index
      %13 = vector.load %arg6[%c0_11, %c0_12] : memref<32x256xf32, #tpu.memory_space<vmem>>, vector<32x256xf32>
      tpu.vector_store %arg6[%c0_11, %c0_12], %12 {strides = array<i32>} : memref<32x256xf32, #tpu.memory_space<vmem>>, vector<32x256xf32>,
    } else {
    }
    %c0 = arith.constant 0 : index
    %c0_1 = arith.constant 0 : index
    %3 = vector.load %arg6[%c0, %c0_1] : memref<32x256xf32, #tpu.memory_space<vmem>>, vector<32x256xf32>
    %c0_2 = arith.constant 0 : index
    %c0_3 = arith.constant 0 : index
    %4 = vector.load %arg2[%c0_2, %c0_3] : memref<32x512xbf16, #tpu.memory_space<vmem>>, vector<32x512xbf16>
    %c0_4 = arith.constant 0 : index
    %c0_5 = arith.constant 0 : index
    %5 = vector.load %arg3[%c0_4, %c0_5] : memref<512x256xbf16, #tpu.memory_space<vmem>>, vector<512x256xbf16>
    %cst = arith.constant dense<0.000000e+00> : vector<32x256xf32>
    %6 = tpu.matmul %4, %5, %cst {dimension_numbers = #tpu.dot_dimension_numbers<[1], [0], [0], [1], [0, 0, 1, 1], [], []>} : vector<32x512xbf16>, vector<512x256xbf16>, vector<32x256xf32> -> vector<32x256xf32>
    %7 = arith.addf %3, %6 : vector<32x256xf32>
    %c0_6 = arith.constant 0 : index
    %c0_7 = arith.constant 0 : index
    %8 = vector.load %arg6[%c0_6, %c0_7] : memref<32x256xf32, #tpu.memory_space<vmem>>, vector<32x256xf32>
    tpu.vector_store %arg6[%c0_6, %c0_7], %7 {strides = array<i32>} : memref<32x256xf32, #tpu.memory_space<vmem>>, vector<32x256xf32>,
    %c0_i32_8 = arith.constant 0 : i32
    %9 = arith.cmpi eq, %arg1, %c0_i32_8 : i32
    %10 = arith.extui %9 : i1 to i32
    %c0_i32_9 = arith.constant 0 : i32
    %11 = arith.cmpi ne, %10, %c0_i32_9 : i32
    scf.if %11 {
      %c0_10 = arith.constant 0 : index
      %c0_11 = arith.constant 0 : index
      %12 = vector.load %arg6[%c0_10, %c0_11] : memref<32x256xf32, #tpu.memory_space<vmem>>, vector<32x256xf32>
      %c0_12 = arith.constant 0 : index
      %c0_13 = arith.constant 0 : index
      %13 = vector.load %arg4[%c0_12, %c0_13] : memref<2x256xf32, #tpu.memory_space<vmem>>, vector<1x256xf32>
      %14 = vector.broadcast %13 : vector<1x256xf32> to vector<32x256xf32>
      %15 = arith.mulf %12, %14 : vector<32x256xf32>
      %c1 = arith.constant 1 : index
      %c0_14 = arith.constant 0 : index
      %16 = vector.load %arg4[%c1, %c0_14] : memref<2x256xf32, #tpu.memory_space<vmem>>, vector<1x256xf32>
      %17 = vector.broadcast %16 : vector<1x256xf32> to vector<32x256xf32>
      %18 = arith.addf %15, %17 : vector<32x256xf32>
      %cst_15 = arith.constant 0.000000e+00 : f32
      %cst_16 = arith.constant 6.000000e+00 : f32
      %19 = vector.broadcast %cst_15 : f32 to vector<32x256xf32>
      %20 = arith.maximumf %19, %18 : vector<32x256xf32>
      %21 = vector.broadcast %cst_16 : f32 to vector<32x256xf32>
      %22 = arith.minimumf %21, %20 : vector<32x256xf32>
      %23 = arith.truncf %22 : vector<32x256xf32> to vector<32x256xbf16>
      %c0_17 = arith.constant 0 : index
      %c0_18 = arith.constant 0 : index
      %24 = vector.load %arg5[%c0_17, %c0_18] : memref<32x256xbf16, #tpu.memory_space<vmem>>, vector<32x256xbf16>
      tpu.vector_store %arg5[%c0_17, %c0_18], %23 {strides = array<i32>} : memref<32x256xbf16, #tpu.memory_space<vmem>>, vector<32x256xbf16>,
    } else {
    }
    return
  }
  func.func @transform_0(%arg0: i32, %arg1: i32) -> (i32, i32) {
    %c0_i32 = arith.constant 0 : i32
    return %arg0, %arg1 : i32, i32
  }
  func.func @transform_1(%arg0: i32, %arg1: i32) -> (i32, i32) {
    %c0_i32 = arith.constant 0 : i32
    %c0_i32_0 = arith.constant 0 : i32
    return %arg1, %c0_i32 : i32, i32
  }
  func.func @transform_2(%arg0: i32, %arg1: i32) -> (i32, i32) {
    %c0_i32 = arith.constant 0 : i32
    %c0_i32_0 = arith.constant 0 : i32
    %c0_i32_1 = arith.constant 0 : i32
    return %c0_i32, %c0_i32_0 : i32, i32
  }
  func.func @transform_3(%arg0: i32, %arg1: i32) -> (i32, i32) {
    %c0_i32 = arith.constant 0 : i32
    %c0_i32_0 = arith.constant 0 : i32
    return %arg0, %c0_i32 : i32, i32
  }
}

module attributes {stable_mosaic.version = 11 : i64} {
  func.func @_matmul_bn_kernel(%arg0: i32, %arg1: i32, %arg2: memref<128x1152xbf16, #tpu.memory_space<vmem>>, %arg3: memref<1152x256xbf16, #tpu.memory_space<vmem>>, %arg4: memref<2x256xf32, #tpu.memory_space<vmem>>, %arg5: memref<128x256xbf16, #tpu.memory_space<vmem>>, %arg6: memref<128x256xf32, #tpu.memory_space<vmem>>) attributes {dimension_semantics = [#tpu.dimension_semantics<parallel>, #tpu.dimension_semantics<arbitrary>], iteration_bounds = array<i64: 1, 1>, scalar_prefetch = 0 : i64, scratch_operands = 1 : i64, tpu.core_type = #tpu.core_type<tc>, window_params = [{transform_indices = @transform_0, window_bounds = array<i64: 128, 1152>}, {transform_indices = @transform_1, window_bounds = array<i64: 1152, 256>}, {pipeline_mode = #tpu.pipeline_mode<synchronous>, transform_indices = @transform_2, window_bounds = array<i64: 2, 256>}, {transform_indices = @transform_3, window_bounds = array<i64: 128, 256>}]} {
    %c0_i32 = arith.constant 0 : i32
    %0 = arith.cmpi eq, %arg1, %c0_i32 : i32
    %1 = arith.extui %0 : i1 to i32
    %c0_i32_0 = arith.constant 0 : i32
    %2 = arith.cmpi ne, %1, %c0_i32_0 : i32
    scf.if %2 {
      %cst_10 = arith.constant 0.000000e+00 : f32
      %12 = vector.broadcast %cst_10 : f32 to vector<128x256xf32>
      %c0_11 = arith.constant 0 : index
      %c0_12 = arith.constant 0 : index
      %13 = vector.load %arg6[%c0_11, %c0_12] : memref<128x256xf32, #tpu.memory_space<vmem>>, vector<128x256xf32>
      tpu.vector_store %arg6[%c0_11, %c0_12], %12 {strides = array<i32>} : memref<128x256xf32, #tpu.memory_space<vmem>>, vector<128x256xf32>,
    } else {
    }
    %c0 = arith.constant 0 : index
    %c0_1 = arith.constant 0 : index
    %3 = vector.load %arg6[%c0, %c0_1] : memref<128x256xf32, #tpu.memory_space<vmem>>, vector<128x256xf32>
    %c0_2 = arith.constant 0 : index
    %c0_3 = arith.constant 0 : index
    %4 = vector.load %arg2[%c0_2, %c0_3] : memref<128x1152xbf16, #tpu.memory_space<vmem>>, vector<128x1152xbf16>
    %c0_4 = arith.constant 0 : index
    %c0_5 = arith.constant 0 : index
    %5 = vector.load %arg3[%c0_4, %c0_5] : memref<1152x256xbf16, #tpu.memory_space<vmem>>, vector<1152x256xbf16>
    %cst = arith.constant dense<0.000000e+00> : vector<128x256xf32>
    %6 = tpu.matmul %4, %5, %cst {dimension_numbers = #tpu.dot_dimension_numbers<[1], [0], [0], [1], [0, 0, 1, 1], [], []>} : vector<128x1152xbf16>, vector<1152x256xbf16>, vector<128x256xf32> -> vector<128x256xf32>
    %7 = arith.addf %3, %6 : vector<128x256xf32>
    %c0_6 = arith.constant 0 : index
    %c0_7 = arith.constant 0 : index
    %8 = vector.load %arg6[%c0_6, %c0_7] : memref<128x256xf32, #tpu.memory_space<vmem>>, vector<128x256xf32>
    tpu.vector_store %arg6[%c0_6, %c0_7], %7 {strides = array<i32>} : memref<128x256xf32, #tpu.memory_space<vmem>>, vector<128x256xf32>,
    %c0_i32_8 = arith.constant 0 : i32
    %9 = arith.cmpi eq, %arg1, %c0_i32_8 : i32
    %10 = arith.extui %9 : i1 to i32
    %c0_i32_9 = arith.constant 0 : i32
    %11 = arith.cmpi ne, %10, %c0_i32_9 : i32
    scf.if %11 {
      %c0_10 = arith.constant 0 : index
      %c0_11 = arith.constant 0 : index
      %12 = vector.load %arg6[%c0_10, %c0_11] : memref<128x256xf32, #tpu.memory_space<vmem>>, vector<128x256xf32>
      %c0_12 = arith.constant 0 : index
      %c0_13 = arith.constant 0 : index
      %13 = vector.load %arg4[%c0_12, %c0_13] : memref<2x256xf32, #tpu.memory_space<vmem>>, vector<1x256xf32>
      %14 = vector.broadcast %13 : vector<1x256xf32> to vector<128x256xf32>
      %15 = arith.mulf %12, %14 : vector<128x256xf32>
      %c1 = arith.constant 1 : index
      %c0_14 = arith.constant 0 : index
      %16 = vector.load %arg4[%c1, %c0_14] : memref<2x256xf32, #tpu.memory_space<vmem>>, vector<1x256xf32>
      %17 = vector.broadcast %16 : vector<1x256xf32> to vector<128x256xf32>
      %18 = arith.addf %15, %17 : vector<128x256xf32>
      %cst_15 = arith.constant 0.000000e+00 : f32
      %cst_16 = arith.constant 6.000000e+00 : f32
      %19 = vector.broadcast %cst_15 : f32 to vector<128x256xf32>
      %20 = arith.maximumf %19, %18 : vector<128x256xf32>
      %21 = vector.broadcast %cst_16 : f32 to vector<128x256xf32>
      %22 = arith.minimumf %21, %20 : vector<128x256xf32>
      %23 = arith.truncf %22 : vector<128x256xf32> to vector<128x256xbf16>
      %c0_17 = arith.constant 0 : index
      %c0_18 = arith.constant 0 : index
      %24 = vector.load %arg5[%c0_17, %c0_18] : memref<128x256xbf16, #tpu.memory_space<vmem>>, vector<128x256xbf16>
      tpu.vector_store %arg5[%c0_17, %c0_18], %23 {strides = array<i32>} : memref<128x256xbf16, #tpu.memory_space<vmem>>, vector<128x256xbf16>,
    } else {
    }
    return
  }
  func.func @transform_0(%arg0: i32, %arg1: i32) -> (i32, i32) {
    %c0_i32 = arith.constant 0 : i32
    return %arg0, %arg1 : i32, i32
  }
  func.func @transform_1(%arg0: i32, %arg1: i32) -> (i32, i32) {
    %c0_i32 = arith.constant 0 : i32
    %c0_i32_0 = arith.constant 0 : i32
    return %arg1, %c0_i32 : i32, i32
  }
  func.func @transform_2(%arg0: i32, %arg1: i32) -> (i32, i32) {
    %c0_i32 = arith.constant 0 : i32
    %c0_i32_0 = arith.constant 0 : i32
    %c0_i32_1 = arith.constant 0 : i32
    return %c0_i32, %c0_i32_0 : i32, i32
  }
  func.func @transform_3(%arg0: i32, %arg1: i32) -> (i32, i32) {
    %c0_i32 = arith.constant 0 : i32
    %c0_i32_0 = arith.constant 0 : i32
    return %arg0, %c0_i32 : i32, i32
  }
}

module attributes {stable_mosaic.version = 11 : i64} {
  func.func @_asff_fuse_kernel(%arg0: i32, %arg1: memref<128x256xbf16, #tpu.memory_space<vmem>>, %arg2: memref<128x256xbf16, #tpu.memory_space<vmem>>, %arg3: memref<128x256xbf16, #tpu.memory_space<vmem>>, %arg4: memref<3x256x16xbf16, #tpu.memory_space<vmem>>, %arg5: memref<3x16xf32, #tpu.memory_space<vmem>>, %arg6: memref<3x16xf32, #tpu.memory_space<vmem>>, %arg7: memref<3x16x3xf32, #tpu.memory_space<vmem>>, %arg8: memref<1x3xf32, #tpu.memory_space<vmem>>, %arg9: memref<128x256xbf16, #tpu.memory_space<vmem>>) attributes {dimension_semantics = [#tpu.dimension_semantics<parallel>], iteration_bounds = array<i64: 1>, scalar_prefetch = 0 : i64, scratch_operands = 0 : i64, tpu.core_type = #tpu.core_type<tc>, window_params = [{transform_indices = @transform_0, window_bounds = array<i64: 128, 256>}, {transform_indices = @transform_1, window_bounds = array<i64: 128, 256>}, {transform_indices = @transform_2, window_bounds = array<i64: 128, 256>}, {pipeline_mode = #tpu.pipeline_mode<synchronous>, transform_indices = @transform_3, window_bounds = array<i64: 3, 256, 16>}, {pipeline_mode = #tpu.pipeline_mode<synchronous>, transform_indices = @transform_4, window_bounds = array<i64: 3, 16>}, {pipeline_mode = #tpu.pipeline_mode<synchronous>, transform_indices = @transform_5, window_bounds = array<i64: 3, 16>}, {pipeline_mode = #tpu.pipeline_mode<synchronous>, transform_indices = @transform_6, window_bounds = array<i64: 3, 16, 3>}, {pipeline_mode = #tpu.pipeline_mode<synchronous>, transform_indices = @transform_7, window_bounds = array<i64: 1, 3>}, {transform_indices = @transform_8, window_bounds = array<i64: 128, 256>}]} {
    %c0 = arith.constant 0 : index
    %c0_0 = arith.constant 0 : index
    %0 = vector.load %arg1[%c0, %c0_0] : memref<128x256xbf16, #tpu.memory_space<vmem>>, vector<128x256xbf16>
    %c0_1 = arith.constant 0 : index
    %c0_2 = arith.constant 0 : index
    %1 = vector.load %arg2[%c0_1, %c0_2] : memref<128x256xbf16, #tpu.memory_space<vmem>>, vector<128x256xbf16>
    %c0_3 = arith.constant 0 : index
    %c0_4 = arith.constant 0 : index
    %2 = vector.load %arg3[%c0_3, %c0_4] : memref<128x256xbf16, #tpu.memory_space<vmem>>, vector<128x256xbf16>
    %c0_5 = arith.constant 0 : index
    %c0_6 = arith.constant 0 : index
    %3 = vector.load %arg8[%c0_5, %c0_6] : memref<1x3xf32, #tpu.memory_space<vmem>>, vector<1x3xf32>
    %c0_7 = arith.constant 0 : index
    %c0_8 = arith.constant 0 : index
    %c0_9 = arith.constant 0 : index
    %4 = vector.load %arg4[%c0_7, %c0_8, %c0_9] : memref<3x256x16xbf16, #tpu.memory_space<vmem>>, vector<1x256x16xbf16>
    %5 = vector.shape_cast %4 : vector<1x256x16xbf16> to vector<256x16xbf16>
    %cst = arith.constant dense<0.000000e+00> : vector<128x16xf32>
    %6 = tpu.matmul %0, %5, %cst {dimension_numbers = #tpu.dot_dimension_numbers<[1], [0], [0], [1], [0, 0, 1, 1], [], []>} : vector<128x256xbf16>, vector<256x16xbf16>, vector<128x16xf32> -> vector<128x16xf32>
    %c0_10 = arith.constant 0 : index
    %c0_11 = arith.constant 0 : index
    %7 = vector.load %arg5[%c0_10, %c0_11] : memref<3x16xf32, #tpu.memory_space<vmem>>, vector<1x16xf32>
    %8 = vector.broadcast %7 : vector<1x16xf32> to vector<128x16xf32>
    %9 = arith.mulf %6, %8 : vector<128x16xf32>
    %c0_12 = arith.constant 0 : index
    %c0_13 = arith.constant 0 : index
    %10 = vector.load %arg6[%c0_12, %c0_13] : memref<3x16xf32, #tpu.memory_space<vmem>>, vector<1x16xf32>
    %11 = vector.broadcast %10 : vector<1x16xf32> to vector<128x16xf32>
    %12 = arith.addf %9, %11 : vector<128x16xf32>
    %cst_14 = arith.constant 0.000000e+00 : f32
    %cst_15 = arith.constant 6.000000e+00 : f32
    %13 = vector.broadcast %cst_14 : f32 to vector<128x16xf32>
    %14 = arith.maximumf %13, %12 : vector<128x16xf32>
    %15 = vector.broadcast %cst_15 : f32 to vector<128x16xf32>
    %16 = arith.minimumf %15, %14 : vector<128x16xf32>
    %c0_16 = arith.constant 0 : index
    %c0_17 = arith.constant 0 : index
    %c0_18 = arith.constant 0 : index
    %17 = vector.load %arg7[%c0_16, %c0_17, %c0_18] : memref<3x16x3xf32, #tpu.memory_space<vmem>>, vector<1x16x3xf32>
    %18 = vector.shape_cast %17 : vector<1x16x3xf32> to vector<16x3xf32>
    %cst_19 = arith.constant dense<0.000000e+00> : vector<128x3xf32>
    %19 = tpu.matmul %16, %18, %cst_19 {dimension_numbers = #tpu.dot_dimension_numbers<[1], [0], [0], [1], [0, 0, 1, 1], [], []>} : vector<128x16xf32>, vector<16x3xf32>, vector<128x3xf32> -> vector<128x3xf32>
    %20 = vector.broadcast %3 : vector<1x3xf32> to vector<128x3xf32>
    %21 = arith.addf %20, %19 : vector<128x3xf32>
    %c1 = arith.constant 1 : index
    %c0_20 = arith.constant 0 : index
    %c0_21 = arith.constant 0 : index
    %22 = vector.load %arg4[%c1, %c0_20, %c0_21] : memref<3x256x16xbf16, #tpu.memory_space<vmem>>, vector<1x256x16xbf16>
    %23 = vector.shape_cast %22 : vector<1x256x16xbf16> to vector<256x16xbf16>
    %cst_22 = arith.constant dense<0.000000e+00> : vector<128x16xf32>
    %24 = tpu.matmul %1, %23, %cst_22 {dimension_numbers = #tpu.dot_dimension_numbers<[1], [0], [0], [1], [0, 0, 1, 1], [], []>} : vector<128x256xbf16>, vector<256x16xbf16>, vector<128x16xf32> -> vector<128x16xf32>
    %c1_23 = arith.constant 1 : index
    %c0_24 = arith.constant 0 : index
    %25 = vector.load %arg5[%c1_23, %c0_24] : memref<3x16xf32, #tpu.memory_space<vmem>>, vector<1x16xf32>
    %26 = vector.broadcast %25 : vector<1x16xf32> to vector<128x16xf32>
    %27 = arith.mulf %24, %26 : vector<128x16xf32>
    %c1_25 = arith.constant 1 : index
    %c0_26 = arith.constant 0 : index
    %28 = vector.load %arg6[%c1_25, %c0_26] : memref<3x16xf32, #tpu.memory_space<vmem>>, vector<1x16xf32>
    %29 = vector.broadcast %28 : vector<1x16xf32> to vector<128x16xf32>
    %30 = arith.addf %27, %29 : vector<128x16xf32>
    %cst_27 = arith.constant 0.000000e+00 : f32
    %cst_28 = arith.constant 6.000000e+00 : f32
    %31 = vector.broadcast %cst_27 : f32 to vector<128x16xf32>
    %32 = arith.maximumf %31, %30 : vector<128x16xf32>
    %33 = vector.broadcast %cst_28 : f32 to vector<128x16xf32>
    %34 = arith.minimumf %33, %32 : vector<128x16xf32>
    %c1_29 = arith.constant 1 : index
    %c0_30 = arith.constant 0 : index
    %c0_31 = arith.constant 0 : index
    %35 = vector.load %arg7[%c1_29, %c0_30, %c0_31] : memref<3x16x3xf32, #tpu.memory_space<vmem>>, vector<1x16x3xf32>
    %36 = vector.shape_cast %35 : vector<1x16x3xf32> to vector<16x3xf32>
    %cst_32 = arith.constant dense<0.000000e+00> : vector<128x3xf32>
    %37 = tpu.matmul %34, %36, %cst_32 {dimension_numbers = #tpu.dot_dimension_numbers<[1], [0], [0], [1], [0, 0, 1, 1], [], []>} : vector<128x16xf32>, vector<16x3xf32>, vector<128x3xf32> -> vector<128x3xf32>
    %38 = arith.addf %21, %37 : vector<128x3xf32>
    %c2 = arith.constant 2 : index
    %c0_33 = arith.constant 0 : index
    %c0_34 = arith.constant 0 : index
    %39 = vector.load %arg4[%c2, %c0_33, %c0_34] : memref<3x256x16xbf16, #tpu.memory_space<vmem>>, vector<1x256x16xbf16>
    %40 = vector.shape_cast %39 : vector<1x256x16xbf16> to vector<256x16xbf16>
    %cst_35 = arith.constant dense<0.000000e+00> : vector<128x16xf32>
    %41 = tpu.matmul %2, %40, %cst_35 {dimension_numbers = #tpu.dot_dimension_numbers<[1], [0], [0], [1], [0, 0, 1, 1], [], []>} : vector<128x256xbf16>, vector<256x16xbf16>, vector<128x16xf32> -> vector<128x16xf32>
    %c2_36 = arith.constant 2 : index
    %c0_37 = arith.constant 0 : index
    %42 = vector.load %arg5[%c2_36, %c0_37] : memref<3x16xf32, #tpu.memory_space<vmem>>, vector<1x16xf32>
    %43 = vector.broadcast %42 : vector<1x16xf32> to vector<128x16xf32>
    %44 = arith.mulf %41, %43 : vector<128x16xf32>
    %c2_38 = arith.constant 2 : index
    %c0_39 = arith.constant 0 : index
    %45 = vector.load %arg6[%c2_38, %c0_39] : memref<3x16xf32, #tpu.memory_space<vmem>>, vector<1x16xf32>
    %46 = vector.broadcast %45 : vector<1x16xf32> to vector<128x16xf32>
    %47 = arith.addf %44, %46 : vector<128x16xf32>
    %cst_40 = arith.constant 0.000000e+00 : f32
    %cst_41 = arith.constant 6.000000e+00 : f32
    %48 = vector.broadcast %cst_40 : f32 to vector<128x16xf32>
    %49 = arith.maximumf %48, %47 : vector<128x16xf32>
    %50 = vector.broadcast %cst_41 : f32 to vector<128x16xf32>
    %51 = arith.minimumf %50, %49 : vector<128x16xf32>
    %c2_42 = arith.constant 2 : index
    %c0_43 = arith.constant 0 : index
    %c0_44 = arith.constant 0 : index
    %52 = vector.load %arg7[%c2_42, %c0_43, %c0_44] : memref<3x16x3xf32, #tpu.memory_space<vmem>>, vector<1x16x3xf32>
    %53 = vector.shape_cast %52 : vector<1x16x3xf32> to vector<16x3xf32>
    %cst_45 = arith.constant dense<0.000000e+00> : vector<128x3xf32>
    %54 = tpu.matmul %51, %53, %cst_45 {dimension_numbers = #tpu.dot_dimension_numbers<[1], [0], [0], [1], [0, 0, 1, 1], [], []>} : vector<128x16xf32>, vector<16x3xf32>, vector<128x3xf32> -> vector<128x3xf32>
    %55 = arith.addf %38, %54 : vector<128x3xf32>
    %cst_46 = arith.constant dense<0xFF800000> : vector<128xf32>
    %56 = vector.multi_reduction <maximumf>, %55, %cst_46 [1] : vector<128x3xf32> to vector<128xf32>
    %57 = vector.shape_cast %56 : vector<128xf32> to vector<128x1xf32>
    %58 = vector.broadcast %57 : vector<128x1xf32> to vector<128x3xf32>
    %59 = arith.subf %55, %58 : vector<128x3xf32>
    %60 = math.exp %59 : vector<128x3xf32>
    %cst_47 = arith.constant dense<0.000000e+00> : vector<128xf32>
    %61 = vector.multi_reduction <add>, %60, %cst_47 [1] : vector<128x3xf32> to vector<128xf32>
    %62 = vector.shape_cast %61 : vector<128xf32> to vector<128x1xf32>
    %63 = tpu.reciprocal %62 {approx = true} : vector<128x1xf32> -> vector<128x1xf32>
    %64 = vector.broadcast %63 : vector<128x1xf32> to vector<128x3xf32>
    %65 = arith.mulf %60, %64 : vector<128x3xf32>
    %66 = arith.extf %0 : vector<128x256xbf16> to vector<128x256xf32>
    %67 = vector.extract_strided_slice %65 {offsets = [0, 0], sizes = [128, 1], strides = [1, 1]} : vector<128x3xf32> to vector<128x1xf32>
    %68 = vector.broadcast %67 : vector<128x1xf32> to vector<128x256xf32>
    %69 = arith.mulf %66, %68 : vector<128x256xf32>
    %70 = arith.extf %1 : vector<128x256xbf16> to vector<128x256xf32>
    %71 = vector.extract_strided_slice %65 {offsets = [0, 1], sizes = [128, 1], strides = [1, 1]} : vector<128x3xf32> to vector<128x1xf32>
    %72 = vector.broadcast %71 : vector<128x1xf32> to vector<128x256xf32>
    %73 = arith.mulf %70, %72 : vector<128x256xf32>
    %74 = arith.addf %69, %73 : vector<128x256xf32>
    %75 = arith.extf %2 : vector<128x256xbf16> to vector<128x256xf32>
    %76 = vector.extract_strided_slice %65 {offsets = [0, 2], sizes = [128, 1], strides = [1, 1]} : vector<128x3xf32> to vector<128x1xf32>
    %77 = vector.broadcast %76 : vector<128x1xf32> to vector<128x256xf32>
    %78 = arith.mulf %75, %77 : vector<128x256xf32>
    %79 = arith.addf %74, %78 : vector<128x256xf32>
    %80 = arith.truncf %79 : vector<128x256xf32> to vector<128x256xbf16>
    %c0_48 = arith.constant 0 : index
    %c0_49 = arith.constant 0 : index
    %81 = vector.load %arg9[%c0_48, %c0_49] : memref<128x256xbf16, #tpu.memory_space<vmem>>, vector<128x256xbf16>
    tpu.vector_store %arg9[%c0_48, %c0_49], %80 {strides = array<i32>} : memref<128x256xbf16, #tpu.memory_space<vmem>>, vector<128x256xbf16>,
    return
  }
  func.func @transform_0(%arg0: i32) -> (i32, i32) {
    %c0_i32 = arith.constant 0 : i32
    %c0_i32_0 = arith.constant 0 : i32
    return %arg0, %c0_i32 : i32, i32
  }
  func.func @transform_1(%arg0: i32) -> (i32, i32) {
    %c0_i32 = arith.constant 0 : i32
    %c0_i32_0 = arith.constant 0 : i32
    return %arg0, %c0_i32 : i32, i32
  }
  func.func @transform_2(%arg0: i32) -> (i32, i32) {
    %c0_i32 = arith.constant 0 : i32
    %c0_i32_0 = arith.constant 0 : i32
    return %arg0, %c0_i32 : i32, i32
  }
  func.func @transform_3(%arg0: i32) -> (i32, i32, i32) {
    %c0_i32 = arith.constant 0 : i32
    %c0_i32_0 = arith.constant 0 : i32
    %c0_i32_1 = arith.constant 0 : i32
    %c0_i32_2 = arith.constant 0 : i32
    return %c0_i32, %c0_i32_0, %c0_i32_1 : i32, i32, i32
  }
  func.func @transform_4(%arg0: i32) -> (i32, i32) {
    %c0_i32 = arith.constant 0 : i32
    %c0_i32_0 = arith.constant 0 : i32
    %c0_i32_1 = arith.constant 0 : i32
    return %c0_i32, %c0_i32_0 : i32, i32
  }
  func.func @transform_5(%arg0: i32) -> (i32, i32) {
    %c0_i32 = arith.constant 0 : i32
    %c0_i32_0 = arith.constant 0 : i32
    %c0_i32_1 = arith.constant 0 : i32
    return %c0_i32, %c0_i32_0 : i32, i32
  }
  func.func @transform_6(%arg0: i32) -> (i32, i32, i32) {
    %c0_i32 = arith.constant 0 : i32
    %c0_i32_0 = arith.constant 0 : i32
    %c0_i32_1 = arith.constant 0 : i32
    %c0_i32_2 = arith.constant 0 : i32
    return %c0_i32, %c0_i32_0, %c0_i32_1 : i32, i32, i32
  }
  func.func @transform_7(%arg0: i32) -> (i32, i32) {
    %c0_i32 = arith.constant 0 : i32
    %c0_i32_0 = arith.constant 0 : i32
    %c0_i32_1 = arith.constant 0 : i32
    return %c0_i32, %c0_i32_0 : i32, i32
  }
  func.func @transform_8(%arg0: i32) -> (i32, i32) {
    %c0_i32 = arith.constant 0 : i32
    %c0_i32_0 = arith.constant 0 : i32
    return %arg0, %c0_i32 : i32, i32
  }
}

module attributes {stable_mosaic.version = 11 : i64} {
  func.func @_matmul_bn_kernel(%arg0: i32, %arg1: i32, %arg2: memref<128x1152xbf16, #tpu.memory_space<vmem>>, %arg3: memref<1152x256xbf16, #tpu.memory_space<vmem>>, %arg4: memref<2x256xf32, #tpu.memory_space<vmem>>, %arg5: memref<128x256xf32, #tpu.memory_space<vmem>>, %arg6: memref<128x256xf32, #tpu.memory_space<vmem>>) attributes {dimension_semantics = [#tpu.dimension_semantics<parallel>, #tpu.dimension_semantics<arbitrary>], iteration_bounds = array<i64: 1, 2>, scalar_prefetch = 0 : i64, scratch_operands = 1 : i64, tpu.core_type = #tpu.core_type<tc>, window_params = [{transform_indices = @transform_0, window_bounds = array<i64: 128, 1152>}, {transform_indices = @transform_1, window_bounds = array<i64: 1152, 256>}, {pipeline_mode = #tpu.pipeline_mode<synchronous>, transform_indices = @transform_2, window_bounds = array<i64: 2, 256>}, {transform_indices = @transform_3, window_bounds = array<i64: 128, 256>}]} {
    %c0_i32 = arith.constant 0 : i32
    %0 = arith.cmpi eq, %arg1, %c0_i32 : i32
    %1 = arith.extui %0 : i1 to i32
    %c0_i32_0 = arith.constant 0 : i32
    %2 = arith.cmpi ne, %1, %c0_i32_0 : i32
    scf.if %2 {
      %cst_9 = arith.constant 0.000000e+00 : f32
      %12 = vector.broadcast %cst_9 : f32 to vector<128x256xf32>
      %c0_10 = arith.constant 0 : index
      %c0_11 = arith.constant 0 : index
      %13 = vector.load %arg6[%c0_10, %c0_11] : memref<128x256xf32, #tpu.memory_space<vmem>>, vector<128x256xf32>
      tpu.vector_store %arg6[%c0_10, %c0_11], %12 {strides = array<i32>} : memref<128x256xf32, #tpu.memory_space<vmem>>, vector<128x256xf32>,
    } else {
    }
    %c0 = arith.constant 0 : index
    %c0_1 = arith.constant 0 : index
    %3 = vector.load %arg6[%c0, %c0_1] : memref<128x256xf32, #tpu.memory_space<vmem>>, vector<128x256xf32>
    %c0_2 = arith.constant 0 : index
    %c0_3 = arith.constant 0 : index
    %4 = vector.load %arg2[%c0_2, %c0_3] : memref<128x1152xbf16, #tpu.memory_space<vmem>>, vector<128x1152xbf16>
    %c0_4 = arith.constant 0 : index
    %c0_5 = arith.constant 0 : index
    %5 = vector.load %arg3[%c0_4, %c0_5] : memref<1152x256xbf16, #tpu.memory_space<vmem>>, vector<1152x256xbf16>
    %cst = arith.constant dense<0.000000e+00> : vector<128x256xf32>
    %6 = tpu.matmul %4, %5, %cst {dimension_numbers = #tpu.dot_dimension_numbers<[1], [0], [0], [1], [0, 0, 1, 1], [], []>} : vector<128x1152xbf16>, vector<1152x256xbf16>, vector<128x256xf32> -> vector<128x256xf32>
    %7 = arith.addf %3, %6 : vector<128x256xf32>
    %c0_6 = arith.constant 0 : index
    %c0_7 = arith.constant 0 : index
    %8 = vector.load %arg6[%c0_6, %c0_7] : memref<128x256xf32, #tpu.memory_space<vmem>>, vector<128x256xf32>
    tpu.vector_store %arg6[%c0_6, %c0_7], %7 {strides = array<i32>} : memref<128x256xf32, #tpu.memory_space<vmem>>, vector<128x256xf32>,
    %c1_i32 = arith.constant 1 : i32
    %9 = arith.cmpi eq, %arg1, %c1_i32 : i32
    %10 = arith.extui %9 : i1 to i32
    %c0_i32_8 = arith.constant 0 : i32
    %11 = arith.cmpi ne, %10, %c0_i32_8 : i32
    scf.if %11 {
      %c0_9 = arith.constant 0 : index
      %c0_10 = arith.constant 0 : index
      %12 = vector.load %arg6[%c0_9, %c0_10] : memref<128x256xf32, #tpu.memory_space<vmem>>, vector<128x256xf32>
      %c0_11 = arith.constant 0 : index
      %c0_12 = arith.constant 0 : index
      %13 = vector.load %arg4[%c0_11, %c0_12] : memref<2x256xf32, #tpu.memory_space<vmem>>, vector<1x256xf32>
      %14 = vector.broadcast %13 : vector<1x256xf32> to vector<128x256xf32>
      %15 = arith.mulf %12, %14 : vector<128x256xf32>
      %c1 = arith.constant 1 : index
      %c0_13 = arith.constant 0 : index
      %16 = vector.load %arg4[%c1, %c0_13] : memref<2x256xf32, #tpu.memory_space<vmem>>, vector<1x256xf32>
      %17 = vector.broadcast %16 : vector<1x256xf32> to vector<128x256xf32>
      %18 = arith.addf %15, %17 : vector<128x256xf32>
      %cst_14 = arith.constant 0.000000e+00 : f32
      %cst_15 = arith.constant 6.000000e+00 : f32
      %19 = vector.broadcast %cst_14 : f32 to vector<128x256xf32>
      %20 = arith.maximumf %19, %18 : vector<128x256xf32>
      %21 = vector.broadcast %cst_15 : f32 to vector<128x256xf32>
      %22 = arith.minimumf %21, %20 : vector<128x256xf32>
      %c0_16 = arith.constant 0 : index
      %c0_17 = arith.constant 0 : index
      %23 = vector.load %arg5[%c0_16, %c0_17] : memref<128x256xf32, #tpu.memory_space<vmem>>, vector<128x256xf32>
      tpu.vector_store %arg5[%c0_16, %c0_17], %22 {strides = array<i32>} : memref<128x256xf32, #tpu.memory_space<vmem>>, vector<128x256xf32>,
    } else {
    }
    return
  }
  func.func @transform_0(%arg0: i32, %arg1: i32) -> (i32, i32) {
    %c0_i32 = arith.constant 0 : i32
    return %arg0, %arg1 : i32, i32
  }
  func.func @transform_1(%arg0: i32, %arg1: i32) -> (i32, i32) {
    %c0_i32 = arith.constant 0 : i32
    %c0_i32_0 = arith.constant 0 : i32
    return %arg1, %c0_i32 : i32, i32
  }
  func.func @transform_2(%arg0: i32, %arg1: i32) -> (i32, i32) {
    %c0_i32 = arith.constant 0 : i32
    %c0_i32_0 = arith.constant 0 : i32
    %c0_i32_1 = arith.constant 0 : i32
    return %c0_i32, %c0_i32_0 : i32, i32
  }
  func.func @transform_3(%arg0: i32, %arg1: i32) -> (i32, i32) {
    %c0_i32 = arith.constant 0 : i32
    %c0_i32_0 = arith.constant 0 : i32
    return %arg0, %c0_i32 : i32, i32
  }
}

</mosaic_0001>

<llo_original>
// kernel: asff_forward.4
$region0: #{asff_forward.4}
  #allocation0 [shape = 'u32[]', space=smem, size = 0x4, offset = 0x4, fixed_abs, tag = 'smem constant byte address 0x4 - core index']
  #allocation1 [shape = 'u32[72,128]{1,0:T(1,128)}', space=vmem, size = 0x9000, scoped, tag = 'internal scratch']
  #allocation2 [shape = 'f32[32,256]{1,0:T(8,128)}', space=vmem, size = 0x8000, scoped, tag = 'scratch operand']
  %s0 = inlined_call_operand.vmem [shape: bf16[32,512], index: 0, kind: input, shape index: {}]
  %s1 = inlined_call_operand.vmem [shape: bf16[512,256], index: 1, kind: input, shape index: {}]
  %s2 = inlined_call_operand.vmem [shape: f32[2,256], index: 2, kind: input, shape index: {}]
  %s3 = inlined_call_operand.vmem [shape: bf16[32,256], index: 3, kind: output, shape index: {}]
  %s4 = sld [smem:[#allocation0]]
  $region30: #{asff_forward.4} parent=0
    _
  %s6 = ssub.s32 1, %s4
  %s7 = scalar_select 0, %s6, %s4
  // Predicated region
  $region2: #{asff_forward.4} parent=0 // pred_check
    _
  $region3: #{asff_forward.4} parent=0 // pred_check_branch
    %9 = sbr.rel (0) target = $region5
  $region4: #{asff_forward.4} parent=0 // pred_region
    _
  $region5: #{asff_forward.4} parent=0 // pred_fallthru
    _
  // Predicated region
  $region6: #{asff_forward.4} parent=0 // pred_check
    _
  $region7: #{asff_forward.4} parent=0 // pred_check_branch
    %11 = sbr.rel (0) target = $region9
  $region8: #{asff_forward.4} parent=0 // pred_region
    _
  $region9: #{asff_forward.4} parent=0 // pred_fallthru
    _
  // Predicated region
  $region10: #{asff_forward.4} parent=0 // pred_check
    _
  $region11: #{asff_forward.4} parent=0 // pred_check_branch
    %13 = sbr.rel (0) target = $region13
  $region12: #{asff_forward.4} parent=0 // pred_region
    _
  $region13: #{asff_forward.4} parent=0 // pred_fallthru
    _
  %p14 = scmp.eq.s32.totalorder 0, 0
  // Predicated region
  $region14: #{asff_forward.4} parent=0 // pred_check
    %p15 = pneg %p14
  $region15: #{asff_forward.4} parent=0 // pred_check_branch
    %17 = sbr.rel (%p15) target = $region17
  $region16: #{asff_forward.4} parent=0 // pred_region
    %18 = vst [vmem:[#allocation2] sm:$0xff] 0.0
    %19 = vst [vmem:[#allocation2 + $0x8] sm:$0xff] 0.0
    %20 = vst [vmem:[#allocation2 + $0x10] sm:$0xff] 0.0
    %21 = vst [vmem:[#allocation2 + $0x18] sm:$0xff] 0.0
    %22 = vst [vmem:[#allocation2 + $0x20] sm:$0xff] 0.0
    %23 = vst [vmem:[#allocation2 + $0x28] sm:$0xff] 0.0
    %24 = vst [vmem:[#allocation2 + $0x30] sm:$0xff] 0.0
    %25 = vst [vmem:[#allocation2 + $0x38] sm:$0xff] 0.0
  $region17: #{asff_forward.4} parent=0 // pred_fallthru
    _
  %v26 = vld [vmem:[#allocation2] sm:$0xff]
  %v27 = vld [vmem:[#allocation2 + $0x8] sm:$0xff]
  %v28 = vld [vmem:[#allocation2 + $0x10] sm:$0xff]
  %v29 = vld [vmem:[#allocation2 + $0x18] sm:$0xff]
  %v30 = vld [vmem:[#allocation2 + $0x20] sm:$0xff]
  %v31 = vld [vmem:[#allocation2 + $0x28] sm:$0xff]
  %v32 = vld [vmem:[#allocation2 + $0x30] sm:$0xff]
  %v33 = vld [vmem:[#allocation2 + $0x38] sm:$0xff]
  %v34 = vld [vmem:[%s0] sm:$0xff]
  %v35 = vld [vmem:[%s0 + $0x8] sm:$0xff]
  %v36 = vld [vmem:[%s0 + $0x10] sm:$0xff]
  %v37 = vld [vmem:[%s0 + $0x18] sm:$0xff]
  %v38 = vld [vmem:[%s0 + $0x20] sm:$0xff]
  %v39 = vld [vmem:[%s0 + $0x28] sm:$0xff]
  %v40 = vld [vmem:[%s0 + $0x30] sm:$0xff]
  %v41 = vld [vmem:[%s0 + $0x38] sm:$0xff]
  %v42 = vld [vmem:[%s1] sm:$0xff]
  %v43 = vld [vmem:[%s1 + $0x8] sm:$0xff]
  %v44 = vld [vmem:[%s1 + $0x10] sm:$0xff]
  %v45 = vld [vmem:[%s1 + $0x18] sm:$0xff]
  %v46 = vld [vmem:[%s1 + $0x20] sm:$0xff]
  %v47 = vld [vmem:[%s1 + $0x28] sm:$0xff]
  %v48 = vld [vmem:[%s1 + $0x30] sm:$0xff]
  %v49 = vld [vmem:[%s1 + $0x38] sm:$0xff]
  %v50 = vld [vmem:[%s1 + $0x40] sm:$0xff]
  %v51 = vld [vmem:[%s1 + $0x48] sm:$0xff]
  %v52 = vld [vmem:[%s1 + $0x50] sm:$0xff]
  %v53 = vld [vmem:[%s1 + $0x58] sm:$0xff]
  %v54 = vld [vmem:[%s1 + $0x60] sm:$0xff]
  %v55 = vld [vmem:[%s1 + $0x68] sm:$0xff]
  %v56 = vld [vmem:[%s1 + $0x70] sm:$0xff]
  %v57 = vld [vmem:[%s1 + $0x78] sm:$0xff]
  %v58 = vld [vmem:[%s1 + $0x80] sm:$0xff]
  %v59 = vld [vmem:[%s1 + $0x88] sm:$0xff]
  %v60 = vld [vmem:[%s1 + $0x90] sm:$0xff]
  %v61 = vld [vmem:[%s1 + $0x98] sm:$0xff]
  %v62 = vld [vmem:[%s1 + $0xa0] sm:$0xff]
  %v63 = vld [vmem:[%s1 + $0xa8] sm:$0xff]
  %v64 = vld [vmem:[%s1 + $0xb0] sm:$0xff]
  %v65 = vld [vmem:[%s1 + $0xb8] sm:$0xff]
  %v66 = vld [vmem:[%s1 + $0xc0] sm:$0xff]
  %v67 = vld [vmem:[%s1 + $0xc8] sm:$0xff]
  %v68 = vld [vmem:[%s1 + $0xd0] sm:$0xff]
  %v69 = vld [vmem:[%s1 + $0xd8] sm:$0xff]
  %v70 = vld [vmem:[%s1 + $0xe0] sm:$0xff]
  %v71 = vld [vmem:[%s1 + $0xe8] sm:$0xff]
  %v72 = vld [vmem:[%s1 + $0xf0] sm:$0xff]
  %v73 = vld [vmem:[%s1 + $0xf8] sm:$0xff]
  %v74 = vld [vmem:[%s1 + $0x100] sm:$0xff]
  %v75 = vld [vmem:[%s1 + $0x108] sm:$0xff]
  %v76 = vld [vmem:[%s1 + $0x110] sm:$0xff]
  %v77 = vld [vmem:[%s1 + $0x118] sm:$0xff]
  %v78 = vld [vmem:[%s1 + $0x120] sm:$0xff]
  %v79 = vld [vmem:[%s1 + $0x128] sm:$0xff]
  %v80 = vld [vmem:[%s1 + $0x130] sm:$0xff]
  %v81 = vld [vmem:[%s1 + $0x138] sm:$0xff]
  %v82 = vld [vmem:[%s1 + $0x140] sm:$0xff]
  %v83 = vld [vmem:[%s1 + $0x148] sm:$0xff]
  %v84 = vld [vmem:[%s1 + $0x150] sm:$0xff]
  %v85 = vld [vmem:[%s1 + $0x158] sm:$0xff]
  %v86 = vld [vmem:[%s1 + $0x160] sm:$0xff]
  %v87 = vld [vmem:[%s1 + $0x168] sm:$0xff]
  %v88 = vld [vmem:[%s1 + $0x170] sm:$0xff]
  %v89 = vld [vmem:[%s1 + $0x178] sm:$0xff]
  %v90 = vld [vmem:[%s1 + $0x180] sm:$0xff]
  %v91 = vld [vmem:[%s1 + $0x188] sm:$0xff]
  %v92 = vld [vmem:[%s1 + $0x190] sm:$0xff]
  %v93 = vld [vmem:[%s1 + $0x198] sm:$0xff]
  %v94 = vld [vmem:[%s1 + $0x1a0] sm:$0xff]
  %v95 = vld [vmem:[%s1 + $0x1a8] sm:$0xff]
  %v96 = vld [vmem:[%s1 + $0x1b0] sm:$0xff]
  %v97 = vld [vmem:[%s1 + $0x1b8] sm:$0xff]
  %v98 = vld [vmem:[%s1 + $0x1c0] sm:$0xff]
  %v99 = vld [vmem:[%s1 + $0x1c8] sm:$0xff]
  %v100 = vld [vmem:[%s1 + $0x1d0] sm:$0xff]
  %v101 = vld [vmem:[%s1 + $0x1d8] sm:$0xff]
  %v102 = vld [vmem:[%s1 + $0x1e0] sm:$0xff]
  %v103 = vld [vmem:[%s1 + $0x1e8] sm:$0xff]
  %v104 = vld [vmem:[%s1 + $0x1f0] sm:$0xff]
  %v105 = vld [vmem:[%s1 + $0x1f8] sm:$0xff]
  %v114 = vunpack.c.l.b16 %v34
  %v115 = vunpack.c.h.b16 %v34
  %v116 = vunpack.c.l.b16 %v35
  %v117 = vunpack.c.h.b16 %v35
  %v118 = vunpack.c.l.b16 %v36
  %v119 = vunpack.c.h.b16 %v36
  %v120 = vunpack.c.l.b16 %v37
  %v121 = vunpack.c.h.b16 %v37
  %v122 = vunpack.c.l.b16 %v38
  %v123 = vunpack.c.h.b16 %v38
  %v124 = vunpack.c.l.b16 %v39
  %v125 = vunpack.c.h.b16 %v39
  %v126 = vunpack.c.l.b16 %v40
  %v127 = vunpack.c.h.b16 %v40
  %v128 = vunpack.c.l.b16 %v41
  %v129 = vunpack.c.h.b16 %v41
  %v130 = vpack.c.b16 %v118, %v114
  %v131 = vpack.c.b16 %v119, %v115
  %v132 = vpack.c.b16 %v120, %v116
  %v133 = vpack.c.b16 %v121, %v117
  %v134 = vpack.c.b16 %v126, %v122
  %v135 = vpack.c.b16 %v127, %v123
  %v136 = vpack.c.b16 %v128, %v124
  %v137 = vpack.c.b16 %v129, %v125
  %v210 = vunpack.c.l.b16 %v42
  %v211 = vunpack.c.h.b16 %v42
  %v212 = vunpack.c.l.b16 %v43
  %v213 = vunpack.c.h.b16 %v43
  %v214 = vunpack.c.l.b16 %v44
  %v215 = vunpack.c.h.b16 %v44
  %v216 = vunpack.c.l.b16 %v45
  %v217 = vunpack.c.h.b16 %v45
  %v218 = vunpack.c.l.b16 %v46
  %v219 = vunpack.c.h.b16 %v46
  %v220 = vunpack.c.l.b16 %v47
  %v221 = vunpack.c.h.b16 %v47
  %v222 = vunpack.c.l.b16 %v48
  %v223 = vunpack.c.h.b16 %v48
  %v224 = vunpack.c.l.b16 %v49
  %v225 = vunpack.c.h.b16 %v49
  %v226 = vunpack.c.l.b16 %v50
  %v227 = vunpack.c.h.b16 %v50
  %v228 = vunpack.c.l.b16 %v51
  %v229 = vunpack.c.h.b16 %v51
  %v230 = vunpack.c.l.b16 %v52
  %v231 = vunpack.c.h.b16 %v52
  %v232 = vunpack.c.l.b16 %v53
  %v233 = vunpack.c.h.b16 %v53
  %v234 = vunpack.c.l.b16 %v54
  %v235 = vunpack.c.h.b16 %v54
  %v236 = vunpack.c.l.b16 %v55
  %v237 = vunpack.c.h.b16 %v55
  %v238 = vunpack.c.l.b16 %v56
  %v239 = vunpack.c.h.b16 %v56
  %v240 = vunpack.c.l.b16 %v57
  %v241 = vunpack.c.h.b16 %v57
  %v242 = vunpack.c.l.b16 %v58
  %v243 = vunpack.c.h.b16 %v58
  %v244 = vunpack.c.l.b16 %v59
  %v245 = vunpack.c.h.b16 %v59
  %v246 = vunpack.c.l.b16 %v60
  %v247 = vunpack.c.h.b16 %v60
  %v248 = vunpack.c.l.b16 %v61
  %v249 = vunpack.c.h.b16 %v61
  %v250 = vunpack.c.l.b16 %v62
  %v251 = vunpack.c.h.b16 %v62
  %v252 = vunpack.c.l.b16 %v63
  %v253 = vunpack.c.h.b16 %v63
  %v254 = vunpack.c.l.b16 %v64
  %v255 = vunpack.c.h.b16 %v64
  %v256 = vunpack.c.l.b16 %v65
  %v257 = vunpack.c.h.b16 %v65
  %v258 = vunpack.c.l.b16 %v66
  %v259 = vunpack.c.h.b16 %v66
  %v260 = vunpack.c.l.b16 %v67
  %v261 = vunpack.c.h.b16 %v67
  %v262 = vunpack.c.l.b16 %v68
  %v263 = vunpack.c.h.b16 %v68
  %v264 = vunpack.c.l.b16 %v69
  %v265 = vunpack.c.h.b16 %v69
  %v266 = vunpack.c.l.b16 %v70
  %v267 = vunpack.c.h.b16 %v70
  %v268 = vunpack.c.l.b16 %v71
  %v269 = vunpack.c.h.b16 %v71
  %v270 = vunpack.c.l.b16 %v72
  %v271 = vunpack.c.h.b16 %v72
  %v272 = vunpack.c.l.b16 %v73
  %v273 = vunpack.c.h.b16 %v73
  %v274 = vunpack.c.l.b16 %v74
  %v275 = vunpack.c.h.b16 %v74
  %v276 = vunpack.c.l.b16 %v75
  %v277 = vunpack.c.h.b16 %v75
  %v278 = vunpack.c.l.b16 %v76
  %v279 = vunpack.c.h.b16 %v76
  %v280 = vunpack.c.l.b16 %v77
  %v281 = vunpack.c.h.b16 %v77
  %v282 = vunpack.c.l.b16 %v78
  %v283 = vunpack.c.h.b16 %v78
  %v284 = vunpack.c.l.b16 %v79
  %v285 = vunpack.c.h.b16 %v79
  %v286 = vunpack.c.l.b16 %v80
  %v287 = vunpack.c.h.b16 %v80
  %v288 = vunpack.c.l.b16 %v81
  %v289 = vunpack.c.h.b16 %v81
  %v290 = vunpack.c.l.b16 %v82
  %v291 = vunpack.c.h.b16 %v82
  %v292 = vunpack.c.l.b16 %v83
  %v293 = vunpack.c.h.b16 %v83
  %v294 = vunpack.c.l.b16 %v84
  %v295 = vunpack.c.h.b16 %v84
  %v296 = vunpack.c.l.b16 %v85
  %v297 = vunpack.c.h.b16 %v85
  %v298 = vunpack.c.l.b16 %v86
  %v299 = vunpack.c.h.b16 %v86
  %v300 = vunpack.c.l.b16 %v87
  %v301 = vunpack.c.h.b16 %v87
  %v302 = vunpack.c.l.b16 %v88
  %v303 = vunpack.c.h.b16 %v88
  %v304 = vunpack.c.l.b16 %v89
  %v305 = vunpack.c.h.b16 %v89
  %v306 = vunpack.c.l.b16 %v90
  %v307 = vunpack.c.h.b16 %v90
  %v308 = vunpack.c.l.b16 %v91
  %v309 = vunpack.c.h.b16 %v91
  %v310 = vunpack.c.l.b16 %v92
  %v311 = vunpack.c.h.b16 %v92
  %v312 = vunpack.c.l.b16 %v93
  %v313 = vunpack.c.h.b16 %v93
  %v314 = vunpack.c.l.b16 %v94
  %v315 = vunpack.c.h.b16 %v94
  %v316 = vunpack.c.l.b16 %v95
  %v317 = vunpack.c.h.b16 %v95
  %v318 = vunpack.c.l.b16 %v96
  %v319 = vunpack.c.h.b16 %v96
  %v320 = vunpack.c.l.b16 %v97
  %v321 = vunpack.c.h.b16 %v97
  %v322 = vunpack.c.l.b16 %v98
  %v323 = vunpack.c.h.b16 %v98
  %v324 = vunpack.c.l.b16 %v99
  %v325 = vunpack.c.h.b16 %v99
  %v326 = vunpack.c.l.b16 %v100
  %v327 = vunpack.c.h.b16 %v100
  %v328 = vunpack.c.l.b16 %v101
  %v329 = vunpack.c.h.b16 %v101
  %v330 = vunpack.c.l.b16 %v102
  %v331 = vunpack.c.h.b16 %v102
  %v332 = vunpack.c.l.b16 %v103
  %v333 = vunpack.c.h.b16 %v103
  %v334 = vunpack.c.l.b16 %v104
  %v335 = vunpack.c.h.b16 %v104
  %v336 = vunpack.c.l.b16 %v105
  %v337 = vunpack.c.h.b16 %v105
  %v338 = vpack.c.b16 %v212, %v210
  %v339 = vpack.c.b16 %v213, %v211
  %v340 = vpack.c.b16 %v216, %v214
  %v341 = vpack.c.b16 %v217, %v215
  %v342 = vpack.c.b16 %v220, %v218
  %v343 = vpack.c.b16 %v221, %v219
  %v344 = vpack.c.b16 %v224, %v222
  %v345 = vpack.c.b16 %v225, %v223
  %v346 = vpack.c.b16 %v228, %v226
  %v347 = vpack.c.b16 %v229, %v227
  %v348 = vpack.c.b16 %v232, %v230
  %v349 = vpack.c.b16 %v233, %v231
  %v350 = vpack.c.b16 %v236, %v234
  %v351 = vpack.c.b16 %v237, %v235
  %v352 = vpack.c.b16 %v240, %v238
  %v353 = vpack.c.b16 %v241, %v239
  %v354 = vpack.c.b16 %v244, %v242
  %v355 = vpack.c.b16 %v245, %v243
  %v356 = vpack.c.b16 %v248, %v246
  %v357 = vpack.c.b16 %v249, %v247
  %v358 = vpack.c.b16 %v252, %v250
  %v359 = vpack.c.b16 %v253, %v251
  %v360 = vpack.c.b16 %v256, %v254
  %v361 = vpack.c.b16 %v257, %v255
  %v362 = vpack.c.b16 %v260, %v258
  %v363 = vpack.c.b16 %v261, %v259
  %v364 = vpack.c.b16 %v264, %v262
  %v365 = vpack.c.b16 %v265, %v263
  %v366 = vpack.c.b16 %v268, %v266
  %v367 = vpack.c.b16 %v269, %v267
  %v368 = vpack.c.b16 %v272, %v270
  %v369 = vpack.c.b16 %v273, %v271
  %v370 = vpack.c.b16 %v276, %v274
  %v371 = vpack.c.b16 %v277, %v275
  %v372 = vpack.c.b16 %v280, %v278
  %v373 = vpack.c.b16 %v281, %v279
  %v374 = vpack.c.b16 %v284, %v282
  %v375 = vpack.c.b16 %v285, %v283
  %v376 = vpack.c.b16 %v288, %v286
  %v377 = vpack.c.b16 %v289, %v287
  %v378 = vpack.c.b16 %v292, %v290
  %v379 = vpack.c.b16 %v293, %v291
  %v380 = vpack.c.b16 %v296, %v294
  %v381 = vpack.c.b16 %v297, %v295
  %v382 = vpack.c.b16 %v300, %v298
  %v383 = vpack.c.b16 %v301, %v299
  %v384 = vpack.c.b16 %v304, %v302
  %v385 = vpack.c.b16 %v305, %v303
  %v386 = vpack.c.b16 %v308, %v306
  %v387 = vpack.c.b16 %v309, %v307
  %v388 = vpack.c.b16 %v312, %v310
  %v389 = vpack.c.b16 %v313, %v311
  %v390 = vpack.c.b16 %v316, %v314
  %v391 = vpack.c.b16 %v317, %v315
  %v392 = vpack.c.b16 %v320, %v318
  %v393 = vpack.c.b16 %v321, %v319
  %v394 = vpack.c.b16 %v324, %v322
  %v395 = vpack.c.b16 %v325, %v323
  %v396 = vpack.c.b16 %v328, %v326
  %v397 = vpack.c.b16 %v329, %v327
  %v398 = vpack.c.b16 %v332, %v330
  %v399 = vpack.c.b16 %v333, %v331
  %v400 = vpack.c.b16 %v336, %v334
  %v401 = vpack.c.b16 %v337, %v335
  %466 = vmatpush.bf16.msra.mxu0 %v352
  %467 = vmatpush.bf16.msra.mxu0 %v350
  %468 = vmatpush.bf16.msra.mxu0 %v348
  %469 = vmatpush.bf16.msra.mxu0 %v346
  %470 = vmatpush.bf16.msra.mxu0 %v344
  %471 = vmatpush.bf16.msra.mxu0 %v342
  %472 = vmatpush.bf16.msra.mxu0 %v340
  %473 = vmatpush.bf16.msra.mxu0 %v338
  %474 = vmatmul.bf16.gmra.mxu0 %v130
  %v475 = vpop.f32.mrf.mxu0
  %v476 = vadd.f32 0.0, %v475
  %v477 = vpop.f32.mrf.mxu0
  %v478 = vadd.f32 0.0, %v477
  %479 = vmatmul.bf16.gmra.mxu0 %v134
  %v480 = vpop.f32.mrf.mxu0
  %v481 = vadd.f32 0.0, %v480
  %v482 = vpop.f32.mrf.mxu0
  %v483 = vadd.f32 0.0, %v482
  %484 = vdwg.mxu0
  %485 = vmatpush.bf16.msra.mxu0 %v368
  %486 = vmatpush.bf16.msra.mxu0 %v366
  %487 = vmatpush.bf16.msra.mxu0 %v364
  %488 = vmatpush.bf16.msra.mxu0 %v362
  %489 = vmatpush.bf16.msra.mxu0 %v360
  %490 = vmatpush.bf16.msra.mxu0 %v358
  %491 = vmatpush.bf16.msra.mxu0 %v356
  %492 = vmatpush.bf16.msra.mxu0 %v354
  %493 = vmatmul.bf16.gmra.mxu0 %v131
  %v494 = vpop.f32.mrf.mxu0
  %v495 = vadd.f32 %v476, %v494
  %v496 = vpop.f32.mrf.mxu0
  %v497 = vadd.f32 %v478, %v496
  %498 = vmatmul.bf16.gmra.mxu0 %v135
  %v499 = vpop.f32.mrf.mxu0
  %v500 = vadd.f32 %v481, %v499
  %v501 = vpop.f32.mrf.mxu0
  %v502 = vadd.f32 %v483, %v501
  %503 = vdwg.mxu0
  %504 = vmatpush.bf16.msra.mxu0 %v384
  %505 = vmatpush.bf16.msra.mxu0 %v382
  %506 = vmatpush.bf16.msra.mxu0 %v380
  %507 = vmatpush.bf16.msra.mxu0 %v378
  %508 = vmatpush.bf16.msra.mxu0 %v376
  %509 = vmatpush.bf16.msra.mxu0 %v374
  %510 = vmatpush.bf16.msra.mxu0 %v372
  %511 = vmatpush.bf16.msra.mxu0 %v370
  %512 = vmatmul.bf16.gmra.mxu0 %v132
  %v513 = vpop.f32.mrf.mxu0
  %v514 = vadd.f32 %v495, %v513
  %v515 = vpop.f32.mrf.mxu0
  %v516 = vadd.f32 %v497, %v515
  %517 = vmatmul.bf16.gmra.mxu0 %v136
  %v518 = vpop.f32.mrf.mxu0
  %v519 = vadd.f32 %v500, %v518
  %v520 = vpop.f32.mrf.mxu0
  %v521 = vadd.f32 %v502, %v520
  %522 = vdwg.mxu0
  %523 = vmatpush.bf16.msra.mxu0 %v400
  %524 = vmatpush.bf16.msra.mxu0 %v398
  %525 = vmatpush.bf16.msra.mxu0 %v396
  %526 = vmatpush.bf16.msra.mxu0 %v394
  %527 = vmatpush.bf16.msra.mxu0 %v392
  %528 = vmatpush.bf16.msra.mxu0 %v390
  %529 = vmatpush.bf16.msra.mxu0 %v388
  %530 = vmatpush.bf16.msra.mxu0 %v386
  %531 = vmatmul.bf16.gmra.mxu0 %v133
  %v532 = vpop.f32.mrf.mxu0
  %v533 = vadd.f32 %v514, %v532
  %v534 = vpop.f32.mrf.mxu0
  %v535 = vadd.f32 %v516, %v534
  %536 = vmatmul.bf16.gmra.mxu0 %v137
  %v537 = vpop.f32.mrf.mxu0
  %v538 = vadd.f32 %v519, %v537
  %v539 = vpop.f32.mrf.mxu0
  %v540 = vadd.f32 %v521, %v539
  %541 = vdwg.mxu0
  %542 = vmatpush.bf16.msra.mxu0 %v353
  %543 = vmatpush.bf16.msra.mxu0 %v351
  %544 = vmatpush.bf16.msra.mxu0 %v349
  %545 = vmatpush.bf16.msra.mxu0 %v347
  %546 = vmatpush.bf16.msra.mxu0 %v345
  %547 = vmatpush.bf16.msra.mxu0 %v343
  %548 = vmatpush.bf16.msra.mxu0 %v341
  %549 = vmatpush.bf16.msra.mxu0 %v339
  %550 = vmatmul.bf16.gmra.mxu0 %v130
  %v551 = vpop.f32.mrf.mxu0
  %v552 = vadd.f32 0.0, %v551
  %v553 = vpop.f32.mrf.mxu0
  %v554 = vadd.f32 0.0, %v553
  %555 = vmatmul.bf16.gmra.mxu0 %v134
  %v556 = vpop.f32.mrf.mxu0
  %v557 = vadd.f32 0.0, %v556
  %v558 = vpop.f32.mrf.mxu0
  %v559 = vadd.f32 0.0, %v558
  %560 = vdwg.mxu0
  %561 = vmatpush.bf16.msra.mxu0 %v369
  %562 = vmatpush.bf16.msra.mxu0 %v367
  %563 = vmatpush.bf16.msra.mxu0 %v365
  %564 = vmatpush.bf16.msra.mxu0 %v363
  %565 = vmatpush.bf16.msra.mxu0 %v361
  %566 = vmatpush.bf16.msra.mxu0 %v359
  %567 = vmatpush.bf16.msra.mxu0 %v357
  %568 = vmatpush.bf16.msra.mxu0 %v355
  %569 = vmatmul.bf16.gmra.mxu0 %v131
  %v570 = vpop.f32.mrf.mxu0
  %v571 = vadd.f32 %v552, %v570
  %v572 = vpop.f32.mrf.mxu0
  %v573 = vadd.f32 %v554, %v572
  %574 = vmatmul.bf16.gmra.mxu0 %v135
  %v575 = vpop.f32.mrf.mxu0
  %v576 = vadd.f32 %v557, %v575
  %v577 = vpop.f32.mrf.mxu0
  %v578 = vadd.f32 %v559, %v577
  %579 = vdwg.mxu0
  %580 = vmatpush.bf16.msra.mxu0 %v385
  %581 = vmatpush.bf16.msra.mxu0 %v383
  %582 = vmatpush.bf16.msra.mxu0 %v381
  %583 = vmatpush.bf16.msra.mxu0 %v379
  %584 = vmatpush.bf16.msra.mxu0 %v377
  %585 = vmatpush.bf16.msra.mxu0 %v375
  %586 = vmatpush.bf16.msra.mxu0 %v373
  %587 = vmatpush.bf16.msra.mxu0 %v371
  %588 = vmatmul.bf16.gmra.mxu0 %v132
  %v589 = vpop.f32.mrf.mxu0
  %v590 = vadd.f32 %v571, %v589
  %v591 = vpop.f32.mrf.mxu0
  %v592 = vadd.f32 %v573, %v591
  %593 = vmatmul.bf16.gmra.mxu0 %v136
  %v594 = vpop.f32.mrf.mxu0
  %v595 = vadd.f32 %v576, %v594
  %v596 = vpop.f32.mrf.mxu0
  %v597 = vadd.f32 %v578, %v596
  %598 = vdwg.mxu0
  %599 = vmatpush.bf16.msra.mxu0 %v401
  %600 = vmatpush.bf16.msra.mxu0 %v399
  %601 = vmatpush.bf16.msra.mxu0 %v397
  %602 = vmatpush.bf16.msra.mxu0 %v395
  %603 = vmatpush.bf16.msra.mxu0 %v393
  %604 = vmatpush.bf16.msra.mxu0 %v391
  %605 = vmatpush.bf16.msra.mxu0 %v389
  %606 = vmatpush.bf16.msra.mxu0 %v387
  %607 = vmatmul.bf16.gmra.mxu0 %v133
  %v608 = vpop.f32.mrf.mxu0
  %v609 = vadd.f32 %v590, %v608
  %v610 = vpop.f32.mrf.mxu0
  %v611 = vadd.f32 %v592, %v610
  %612 = vmatmul.bf16.gmra.mxu0 %v137
  %v613 = vpop.f32.mrf.mxu0
  %v614 = vadd.f32 %v595, %v613
  %v615 = vpop.f32.mrf.mxu0
  %v616 = vadd.f32 %v597, %v615
  %617 = vdwg.mxu0
  %v618 = vadd.f32 %v26, %v533
  %v619 = vadd.f32 %v27, %v609
  %v620 = vadd.f32 %v28, %v535
  %v621 = vadd.f32 %v29, %v611
  %v622 = vadd.f32 %v30, %v538
  %v623 = vadd.f32 %v31, %v614
  %v624 = vadd.f32 %v32, %v540
  %v625 = vadd.f32 %v33, %v616
  %626 = vst [vmem:[#allocation2] sm:$0xff] %v618
  %627 = vst [vmem:[#allocation2 + $0x8] sm:$0xff] %v619
  %628 = vst [vmem:[#allocation2 + $0x10] sm:$0xff] %v620
  %629 = vst [vmem:[#allocation2 + $0x18] sm:$0xff] %v621
  %630 = vst [vmem:[#allocation2 + $0x20] sm:$0xff] %v622
  %631 = vst [vmem:[#allocation2 + $0x28] sm:$0xff] %v623
  %632 = vst [vmem:[#allocation2 + $0x30] sm:$0xff] %v624
  %633 = vst [vmem:[#allocation2 + $0x38] sm:$0xff] %v625
  // Predicated region
  $region18: #{asff_forward.4} parent=0 // pred_check
    %p634 = pneg %p14
  $region19: #{asff_forward.4} parent=0 // pred_check_branch
    %636 = sbr.rel (%p634) target = $region21
  $region20: #{asff_forward.4} parent=0 // pred_region
    %v637 = vld [vmem:[#allocation2] sm:$0xff]
    %v638 = vld [vmem:[#allocation2 + $0x8] sm:$0xff]
    %v639 = vld [vmem:[#allocation2 + $0x10] sm:$0xff]
    %v640 = vld [vmem:[#allocation2 + $0x18] sm:$0xff]
    %v641 = vld [vmem:[#allocation2 + $0x20] sm:$0xff]
    %v642 = vld [vmem:[#allocation2 + $0x28] sm:$0xff]
    %v643 = vld [vmem:[#allocation2 + $0x30] sm:$0xff]
    %v644 = vld [vmem:[#allocation2 + $0x38] sm:$0xff]
    %v645 = vld [vmem:[%s2] ss:$2 sm:$0x3]
    %v647 = vperm.slane %v645, 0
    %v648 = vperm.slane %v645, 1
    %v651 = vmul.f32 %v637, %v647
    %v652 = vmul.f32 %v638, %v648
    %v653 = vmul.f32 %v639, %v647
    %v654 = vmul.f32 %v640, %v648
    %v655 = vmul.f32 %v641, %v647
    %v656 = vmul.f32 %v642, %v648
    %v657 = vmul.f32 %v643, %v647
    %v658 = vmul.f32 %v644, %v648
    %s659 = scalar_lea.vmem %s2, 1
    %v660 = vld [vmem:[%s659] ss:$2 sm:$0x3]
    %v662 = vperm.slane %v660, 0
    %v663 = vperm.slane %v660, 1
    %v666 = vadd.f32 %v651, %v662
    %v667 = vadd.f32 %v652, %v663
    %v668 = vadd.f32 %v653, %v662
    %v669 = vadd.f32 %v654, %v663
    %v670 = vadd.f32 %v655, %v662
    %v671 = vadd.f32 %v656, %v663
    %v672 = vadd.f32 %v657, %v662
    %v673 = vadd.f32 %v658, %v663
    %v674 = vmax.f32 %v666, 0.0
    %v675 = vmax.f32 %v667, 0.0
    %v676 = vmax.f32 %v668, 0.0
    %v677 = vmax.f32 %v669, 0.0
    %v678 = vmax.f32 %v670, 0.0
    %v679 = vmax.f32 %v671, 0.0
    %v680 = vmax.f32 %v672, 0.0
    %v681 = vmax.f32 %v673, 0.0
    %v682 = vmin.f32 %v674, 6.0
    %v683 = vmin.f32 %v675, 6.0
    %v684 = vmin.f32 %v676, 6.0
    %v685 = vmin.f32 %v677, 6.0
    %v686 = vmin.f32 %v678, 6.0
    %v687 = vmin.f32 %v679, 6.0
    %v688 = vmin.f32 %v680, 6.0
    %v689 = vmin.f32 %v681, 6.0
    %v690 = vpack.c.bf16 %v683, %v682
    %v691 = vpack.c.bf16 %v685, %v684
    %v692 = vpack.c.bf16 %v687, %v686
    %v693 = vpack.c.bf16 %v689, %v688
    %694 = vst [vmem:[%s3] sm:$0xff] %v690
    %695 = vst [vmem:[%s3 + $0x8] sm:$0xff] %v691
    %696 = vst [vmem:[%s3 + $0x10] sm:$0xff] %v692
    %697 = vst [vmem:[%s3 + $0x18] sm:$0xff] %v693
  $region21: #{asff_forward.4} parent=0 // pred_fallthru
    _
  // Predicated region
  $region22: #{asff_forward.4} parent=0 // pred_check
    _
  $region23: #{asff_forward.4} parent=0 // pred_check_branch
    %699 = sbr.rel (0) target = $region25
  $region24: #{asff_forward.4} parent=0 // pred_region
    _
  $region25: #{asff_forward.4} parent=0 // pred_fallthru
    _
  // Predicated region
  $region26: #{asff_forward.4} parent=0 // pred_check
    _
  $region27: #{asff_forward.4} parent=0 // pred_check_branch
    %701 = sbr.rel (0) target = $region29
  $region28: #{asff_forward.4} parent=0 // pred_region
    _
  $region29: #{asff_forward.4} parent=0 // pred_fallthru
    _

// kernel: asff_forward.5
$region0: #{asff_forward.5}
  #allocation0 [shape = 'u32[]', space=smem, size = 0x4, offset = 0x4, fixed_abs, tag = 'smem constant byte address 0x4 - core index']
  #allocation1 [shape = 'u32[72,128]{1,0:T(1,128)}', space=vmem, size = 0x9000, scoped, tag = 'internal scratch']
  #allocation2 [shape = 'f32[128,256]{1,0:T(8,128)}', space=vmem, size = 0x20000, scoped, tag = 'scratch operand']
  %s0 = inlined_call_operand.vmem [shape: bf16[128,1152], index: 0, kind: input, shape index: {}]
  %s1 = inlined_call_operand.vmem [shape: bf16[1152,256], index: 1, kind: input, shape index: {}]
  %s2 = inlined_call_operand.vmem [shape: f32[2,256], index: 2, kind: input, shape index: {}]
  %s3 = inlined_call_operand.vmem [shape: bf16[128,256], index: 3, kind: output, shape index: {}]
  %s4 = sld [smem:[#allocation0]]
  $region30: #{asff_forward.5} parent=0
    _
  %s6 = ssub.s32 1, %s4
  %s7 = scalar_select 0, %s6, %s4
  // Predicated region
  $region2: #{asff_forward.5} parent=0 // pred_check
    _
  $region3: #{asff_forward.5} parent=0 // pred_check_branch
    %9 = sbr.rel (0) target = $region5
  $region4: #{asff_forward.5} parent=0 // pred_region
    _
  $region5: #{asff_forward.5} parent=0 // pred_fallthru
    _
  // Predicated region
  $region6: #{asff_forward.5} parent=0 // pred_check
    _
  $region7: #{asff_forward.5} parent=0 // pred_check_branch
    %11 = sbr.rel (0) target = $region9
  $region8: #{asff_forward.5} parent=0 // pred_region
    _
  $region9: #{asff_forward.5} parent=0 // pred_fallthru
    _
  // Predicated region
  $region10: #{asff_forward.5} parent=0 // pred_check
    _
  $region11: #{asff_forward.5} parent=0 // pred_check_branch
    %13 = sbr.rel (0) target = $region13
  $region12: #{asff_forward.5} parent=0 // pred_region
    _
  $region13: #{asff_forward.5} parent=0 // pred_fallthru
    _
  %p14 = scmp.eq.s32.totalorder 0, 0
  // Predicated region
  $region14: #{asff_forward.5} parent=0 // pred_check
    %p15 = pneg %p14
  $region15: #{asff_forward.5} parent=0 // pred_check_branch
    %17 = sbr.rel (%p15) target = $region17
  $region16: #{asff_forward.5} parent=0 // pred_region
    %18 = vst [vmem:[#allocation2] sm:$0xff] 0.0
    %19 = vst [vmem:[#allocation2 + $0x8] sm:$0xff] 0.0
    %20 = vst [vmem:[#allocation2 + $0x10] sm:$0xff] 0.0
    %21 = vst [vmem:[#allocation2 + $0x18] sm:$0xff] 0.0
    %22 = vst [vmem:[#allocation2 + $0x20] sm:$0xff] 0.0
    %23 = vst [vmem:[#allocation2 + $0x28] sm:$0xff] 0.0
    %24 = vst [vmem:[#allocation2 + $0x30] sm:$0xff] 0.0
    %25 = vst [vmem:[#allocation2 + $0x38] sm:$0xff] 0.0
    %26 = vst [vmem:[#allocation2 + $0x40] sm:$0xff] 0.0
    %27 = vst [vmem:[#allocation2 + $0x48] sm:$0xff] 0.0
    %28 = vst [vmem:[#allocation2 + $0x50] sm:$0xff] 0.0
    %29 = vst [vmem:[#allocation2 + $0x58] sm:$0xff] 0.0
    %30 = vst [vmem:[#allocation2 + $0x60] sm:$0xff] 0.0
    %31 = vst [vmem:[#allocation2 + $0x68] sm:$0xff] 0.0
    %32 = vst [vmem:[#allocation2 + $0x70] sm:$0xff] 0.0
    %33 = vst [vmem:[#allocation2 + $0x78] sm:$0xff] 0.0
    %34 = vst [vmem:[#allocation2 + $0x80] sm:$0xff] 0.0
    %35 = vst [vmem:[#allocation2 + $0x88] sm:$0xff] 0.0
    %36 = vst [vmem:[#allocation2 + $0x90] sm:$0xff] 0.0
    %37 = vst [vmem:[#allocation2 + $0x98] sm:$0xff] 0.0
    %38 = vst [vmem:[#allocation2 + $0xa0] sm:$0xff] 0.0
    %39 = vst [vmem:[#allocation2 + $0xa8] sm:$0xff] 0.0
    %40 = vst [vmem:[#allocation2 + $0xb0] sm:$0xff] 0.0
    %41 = vst [vmem:[#allocation2 + $0xb8] sm:$0xff] 0.0
    %42 = vst [vmem:[#allocation2 + $0xc0] sm:$0xff] 0.0
    %43 = vst [vmem:[#allocation2 + $0xc8] sm:$0xff] 0.0
    %44 = vst [vmem:[#allocation2 + $0xd0] sm:$0xff] 0.0
    %45 = vst [vmem:[#allocation2 + $0xd8] sm:$0xff] 0.0
    %46 = vst [vmem:[#allocation2 + $0xe0] sm:$0xff] 0.0
    %47 = vst [vmem:[#allocation2 + $0xe8] sm:$0xff] 0.0
    %48 = vst [vmem:[#allocation2 + $0xf0] sm:$0xff] 0.0
    %49 = vst [vmem:[#allocation2 + $0xf8] sm:$0xff] 0.0
  $region17: #{asff_forward.5} parent=0 // pred_fallthru
    _
  %v50 = vld [vmem:[#allocation2] sm:$0xff]
  %v51 = vld [vmem:[#allocation2 + $0x8] sm:$0xff]
  %v52 = vld [vmem:[#allocation2 + $0x10] sm:$0xff]
  %v53 = vld [vmem:[#allocation2 + $0x18] sm:$0xff]
  %v54 = vld [vmem:[#allocation2 + $0x20] sm:$0xff]
  %v55 = vld [vmem:[#allocation2 + $0x28] sm:$0xff]
  %v56 = vld [vmem:[#allocation2 + $0x30] sm:$0xff]
  %v57 = vld [vmem:[#allocation2 + $0x38] sm:$0xff]
  %v58 = vld [vmem:[#allocation2 + $0x40] sm:$0xff]
  %v59 = vld [vmem:[#allocation2 + $0x48] sm:$0xff]
  %v60 = vld [vmem:[#allocation2 + $0x50] sm:$0xff]
  %v61 = vld [vmem:[#allocation2 + $0x58] sm:$0xff]
  %v62 = vld [vmem:[#allocation2 + $0x60] sm:$0xff]
  %v63 = vld [vmem:[#allocation2 + $0x68] sm:$0xff]
  %v64 = vld [vmem:[#allocation2 + $0x70] sm:$0xff]
  %v65 = vld [vmem:[#allocation2 + $0x78] sm:$0xff]
  %v66 = vld [vmem:[#allocation2 + $0x80] sm:$0xff]
  %v67 = vld [vmem:[#allocation2 + $0x88] sm:$0xff]
  %v68 = vld [vmem:[#allocation2 + $0x90] sm:$0xff]
  %v69 = vld [vmem:[#allocation2 + $0x98] sm:$0xff]
  %v70 = vld [vmem:[#allocation2 + $0xa0] sm:$0xff]
  %v71 = vld [vmem:[#allocation2 + $0xa8] sm:$0xff]
  %v72 = vld [vmem:[#allocation2 + $0xb0] sm:$0xff]
  %v73 = vld [vmem:[#allocation2 + $0xb8] sm:$0xff]
  %v74 = vld [vmem:[#allocation2 + $0xc0] sm:$0xff]
  %v75 = vld [vmem:[#allocation2 + $0xc8] sm:$0xff]
  %v76 = vld [vmem:[#allocation2 + $0xd0] sm:$0xff]
  %v77 = vld [vmem:[#allocation2 + $0xd8] sm:$0xff]
  %v78 = vld [vmem:[#allocation2 + $0xe0] sm:$0xff]
  %v79 = vld [vmem:[#allocation2 + $0xe8] sm:$0xff]
  %v80 = vld [vmem:[#allocation2 + $0xf0] sm:$0xff]
  %v81 = vld [vmem:[#allocation2 + $0xf8] sm:$0xff]
  %v82 = vld [vmem:[%s0] sm:$0xff]
  %v83 = vld [vmem:[%s0 + $0x8] sm:$0xff]
  %v84 = vld [vmem:[%s0 + $0x10] sm:$0xff]
  %v85 = vld [vmem:[%s0 + $0x18] sm:$0xff]
  %v86 = vld [vmem:[%s0 + $0x20] sm:$0xf]
  %v87 = vld [vmem:[%s0 + $0x24] sm:$0xff]
  %v88 = vld [vmem:[%s0 + $0x2c] sm:$0xff]
  %v89 = vld [vmem:[%s0 + $0x34] sm:$0xff]
  %v90 = vld [vmem:[%s0 + $0x3c] sm:$0xff]
  %v91 = vld [vmem:[%s0 + $0x44] sm:$0xf]
  %v92 = vld [vmem:[%s0 + $0x48] sm:$0xff]
  %v93 = vld [vmem:[%s0 + $0x50] sm:$0xff]
  %v94 = vld [vmem:[%s0 + $0x58] sm:$0xff]
  %v95 = vld [vmem:[%s0 + $0x60] sm:$0xff]
  %v96 = vld [vmem:[%s0 + $0x68] sm:$0xf]
  %v97 = vld [vmem:[%s0 + $0x6c] sm:$0xff]
  %v98 = vld [vmem:[%s0 + $0x74] sm:$0xff]
  %v99 = vld [vmem:[%s0 + $0x7c] sm:$0xff]
  %v100 = vld [vmem:[%s0 + $0x84] sm:$0xff]
  %v101 = vld [vmem:[%s0 + $0x8c] sm:$0xf]
  %v102 = vld [vmem:[%s0 + $0x90] sm:$0xff]
  %v103 = vld [vmem:[%s0 + $0x98] sm:$0xff]
  %v104 = vld [vmem:[%s0 + $0xa0] sm:$0xff]
  %v105 = vld [vmem:[%s0 + $0xa8] sm:$0xff]
  %v106 = vld [vmem:[%s0 + $0xb0] sm:$0xf]
  %v107 = vld [vmem:[%s0 + $0xb4] sm:$0xff]
  %v108 = vld [vmem:[%s0 + $0xbc] sm:$0xff]
  %v109 = vld [vmem:[%s0 + $0xc4] sm:$0xff]
  %v110 = vld [vmem:[%s0 + $0xcc] sm:$0xff]
  %v111 = vld [vmem:[%s0 + $0xd4] sm:$0xf]
  %v112 = vld [vmem:[%s0 + $0xd8] sm:$0xff]
  %v113 = vld [vmem:[%s0 + $0xe0] sm:$0xff]
  %v114 = vld [vmem:[%s0 + $0xe8] sm:$0xff]
  %v115 = vld [vmem:[%s0 + $0xf0] sm:$0xff]
  %v116 = vld [vmem:[%s0 + $0xf8] sm:$0xf]
  %v117 = vld [vmem:[%s0 + $0xfc] sm:$0xff]
  %v118 = vld [vmem:[%s0 + $0x104] sm:$0xff]
  %v119 = vld [vmem:[%s0 + $0x10c] sm:$0xff]
  %v120 = vld [vmem:[%s0 + $0x114] sm:$0xff]
  %v121 = vld [vmem:[%s0 + $0x11c] sm:$0xf]
  %v122 = vld [vmem:[%s0 + $0x120] sm:$0xff]
  %v123 = vld [vmem:[%s0 + $0x128] sm:$0xff]
  %v124 = vld [vmem:[%s0 + $0x130] sm:$0xff]
  %v125 = vld [vmem:[%s0 + $0x138] sm:$0xff]
  %v126 = vld [vmem:[%s0 + $0x140] sm:$0xf]
  %v127 = vld [vmem:[%s0 + $0x144] sm:$0xff]
  %v128 = vld [vmem:[%s0 + $0x14c] sm:$0xff]
  %v129 = vld [vmem:[%s0 + $0x154] sm:$0xff]
  %v130 = vld [vmem:[%s0 + $0x15c] sm:$0xff]
  %v131 = vld [vmem:[%s0 + $0x164] sm:$0xf]
  %v132 = vld [vmem:[%s0 + $0x168] sm:$0xff]
  %v133 = vld [vmem:[%s0 + $0x170] sm:$0xff]
  %v134 = vld [vmem:[%s0 + $0x178] sm:$0xff]
  %v135 = vld [vmem:[%s0 + $0x180] sm:$0xff]
  %v136 = vld [vmem:[%s0 + $0x188] sm:$0xf]
  %v137 = vld [vmem:[%s0 + $0x18c] sm:$0xff]
  %v138 = vld [vmem:[%s0 + $0x194] sm:$0xff]
  %v139 = vld [vmem:[%s0 + $0x19c] sm:$0xff]
  %v140 = vld [vmem:[%s0 + $0x1a4] sm:$0xff]
  %v141 = vld [vmem:[%s0 + $0x1ac] sm:$0xf]
  %v142 = vld [vmem:[%s0 + $0x1b0] sm:$0xff]
  %v143 = vld [vmem:[%s0 + $0x1b8] sm:$0xff]
  %v144 = vld [vmem:[%s0 + $0x1c0] sm:$0xff]
  %v145 = vld [vmem:[%s0 + $0x1c8] sm:$0xff]
  %v146 = vld [vmem:[%s0 + $0x1d0] sm:$0xf]
  %v147 = vld [vmem:[%s0 + $0x1d4] sm:$0xff]
  %v148 = vld [vmem:[%s0 + $0x1dc] sm:$0xff]
  %v149 = vld [vmem:[%s0 + $0x1e4] sm:$0xff]
  %v150 = vld [vmem:[%s0 + $0x1ec] sm:$0xff]
  %v151 = vld [vmem:[%s0 + $0x1f4] sm:$0xf]
  %v152 = vld [vmem:[%s0 + $0x1f8] sm:$0xff]
  %v153 = vld [vmem:[%s0 + $0x200] sm:$0xff]
  %v154 = vld [vmem:[%s0 + $0x208] sm:$0xff]
  %v155 = vld [vmem:[%s0 + $0x210] sm:$0xff]
  %v156 = vld [vmem:[%s0 + $0x218] sm:$0xf]
  %v157 = vld [vmem:[%s0 + $0x21c] sm:$0xff]
  %v158 = vld [vmem:[%s0 + $0x224] sm:$0xff]
  %v159 = vld [vmem:[%s0 + $0x22c] sm:$0xff]
  %v160 = vld [vmem:[%s0 + $0x234] sm:$0xff]
  %v161 = vld [vmem:[%s0 + $0x23c] sm:$0xf]
  %v162 = vld [vmem:[%s1] sm:$0xff]
  %v163 = vld [vmem:[%s1 + $0x8] sm:$0xff]
  %v164 = vld [vmem:[%s1 + $0x10] sm:$0xff]
  %v165 = vld [vmem:[%s1 + $0x18] sm:$0xff]
  %v166 = vld [vmem:[%s1 + $0x20] sm:$0xff]
  %v167 = vld [vmem:[%s1 + $0x28] sm:$0xff]
  %v168 = vld [vmem:[%s1 + $0x30] sm:$0xff]
  %v169 = vld [vmem:[%s1 + $0x38] sm:$0xff]
  %v170 = vld [vmem:[%s1 + $0x40] sm:$0xff]
  %v171 = vld [vmem:[%s1 + $0x48] sm:$0xff]
  %v172 = vld [vmem:[%s1 + $0x50] sm:$0xff]
  %v173 = vld [vmem:[%s1 + $0x58] sm:$0xff]
  %v174 = vld [vmem:[%s1 + $0x60] sm:$0xff]
  %v175 = vld [vmem:[%s1 + $0x68] sm:$0xff]
  %v176 = vld [vmem:[%s1 + $0x70] sm:$0xff]
  %v177 = vld [vmem:[%s1 + $0x78] sm:$0xff]
  %v178 = vld [vmem:[%s1 + $0x80] sm:$0xff]
  %v179 = vld [vmem:[%s1 + $0x88] sm:$0xff]
  %v180 = vld [vmem:[%s1 + $0x90] sm:$0xff]
  %v181 = vld [vmem:[%s1 + $0x98] sm:$0xff]
  %v182 = vld [vmem:[%s1 + $0xa0] sm:$0xff]
  %v183 = vld [vmem:[%s1 + $0xa8] sm:$0xff]
  %v184 = vld [vmem:[%s1 + $0xb0] sm:$0xff]
  %v185 = vld [vmem:[%s1 + $0xb8] sm:$0xff]
  %v186 = vld [vmem:[%s1 + $0xc0] sm:$0xff]
  %v187 = vld [vmem:[%s1 + $0xc8] sm:$0xff]
  %v188 = vld [vmem:[%s1 + $0xd0] sm:$0xff]
  %v189 = vld [vmem:[%s1 + $0xd8] sm:$0xff]
  %v190 = vld [vmem:[%s1 + $0xe0] sm:$0xff]
  %v191 = vld [vmem:[%s1 + $0xe8] sm:$0xff]
  %v192 = vld [vmem:[%s1 + $0xf0] sm:$0xff]
  %v193 = vld [vmem:[%s1 + $0xf8] sm:$0xff]
  %v194 = vld [vmem:[%s1 + $0x100] sm:$0xff]
  %v195 = vld [vmem:[%s1 + $0x108] sm:$0xff]
  %v196 = vld [vmem:[%s1 + $0x110] sm:$0xff]
  %v197 = vld [vmem:[%s1 + $0x118] sm:$0xff]
  %v198 = vld [vmem:[%s1 + $0x120] sm:$0xff]
  %v199 = vld [vmem:[%s1 + $0x128] sm:$0xff]
  %v200 = vld [vmem:[%s1 + $0x130] sm:$0xff]
  %v201 = vld [vmem:[%s1 + $0x138] sm:$0xff]
  %v202 = vld [vmem:[%s1 + $0x140] sm:$0xff]
  %v203 = vld [vmem:[%s1 + $0x148] sm:$0xff]
  %v204 = vld [vmem:[%s1 + $0x150] sm:$0xff]
  %v205 = vld [vmem:[%s1 + $0x158] sm:$0xff]
  %v206 = vld [vmem:[%s1 + $0x160] sm:$0xff]
  %v207 = vld [vmem:[%s1 + $0x168] sm:$0xff]
  %v208 = vld [vmem:[%s1 + $0x170] sm:$0xff]
  %v209 = vld [vmem:[%s1 + $0x178] sm:$0xff]
  %v210 = vld [vmem:[%s1 + $0x180] sm:$0xff]
  %v211 = vld [vmem:[%s1 + $0x188] sm:$0xff]
  %v212 = vld [vmem:[%s1 + $0x190] sm:$0xff]
  %v213 = vld [vmem:[%s1 + $0x198] sm:$0xff]
  %v214 = vld [vmem:[%s1 + $0x1a0] sm:$0xff]
  %v215 = vld [vmem:[%s1 + $0x1a8] sm:$0xff]
  %v216 = vld [vmem:[%s1 + $0x1b0] sm:$0xff]
  %v217 = vld [vmem:[%s1 + $0x1b8] sm:$0xff]
  %v218 = vld [vmem:[%s1 + $0x1c0] sm:$0xff]
  %v219 = vld [vmem:[%s1 + $0x1c8] sm:$0xff]
  %v220 = vld [vmem:[%s1 + $0x1d0] sm:$0xff]
  %v221 = vld [vmem:[%s1 + $0x1d8] sm:$0xff]
  %v222 = vld [vmem:[%s1 + $0x1e0] sm:$0xff]
  %v223 = vld [vmem:[%s1 + $0x1e8] sm:$0xff]
  %v224 = vld [vmem:[%s1 + $0x1f0] sm:$0xff]
  %v225 = vld [vmem:[%s1 + $0x1f8] sm:$0xff]
  %v226 = vld [vmem:[%s1 + $0x200] sm:$0xff]
  %v227 = vld [vmem:[%s1 + $0x208] sm:$0xff]
  %v228 = vld [vmem:[%s1 + $0x210] sm:$0xff]
  %v229 = vld [vmem:[%s1 + $0x218] sm:$0xff]
  %v230 = vld [vmem:[%s1 + $0x220] sm:$0xff]
  %v231 = vld [vmem:[%s1 + $0x228] sm:$0xff]
  %v232 = vld [vmem:[%s1 + $0x230] sm:$0xff]
  %v233 = vld [vmem:[%s1 + $0x238] sm:$0xff]
  %v234 = vld [vmem:[%s1 + $0x240] sm:$0xff]
  %v235 = vld [vmem:[%s1 + $0x248] sm:$0xff]
  %v236 = vld [vmem:[%s1 + $0x250] sm:$0xff]
  %v237 = vld [vmem:[%s1 + $0x258] sm:$0xff]
  %v238 = vld [vmem:[%s1 + $0x260] sm:$0xff]
  %v239 = vld [vmem:[%s1 + $0x268] sm:$0xff]
  %v240 = vld [vmem:[%s1 + $0x270] sm:$0xff]
  %v241 = vld [vmem:[%s1 + $0x278] sm:$0xff]
  %v242 = vld [vmem:[%s1 + $0x280] sm:$0xff]
  %v243 = vld [vmem:[%s1 + $0x288] sm:$0xff]
  %v244 = vld [vmem:[%s1 + $0x290] sm:$0xff]
  %v245 = vld [vmem:[%s1 + $0x298] sm:$0xff]
  %v246 = vld [vmem:[%s1 + $0x2a0] sm:$0xff]
  %v247 = vld [vmem:[%s1 + $0x2a8] sm:$0xff]
  %v248 = vld [vmem:[%s1 + $0x2b0] sm:$0xff]
  %v249 = vld [vmem:[%s1 + $0x2b8] sm:$0xff]
  %v250 = vld [vmem:[%s1 + $0x2c0] sm:$0xff]
  %v251 = vld [vmem:[%s1 + $0x2c8] sm:$0xff]
  %v252 = vld [vmem:[%s1 + $0x2d0] sm:$0xff]
  %v253 = vld [vmem:[%s1 + $0x2d8] sm:$0xff]
  %v254 = vld [vmem:[%s1 + $0x2e0] sm:$0xff]
  %v255 = vld [vmem:[%s1 + $0x2e8] sm:$0xff]
  %v256 = vld [vmem:[%s1 + $0x2f0] sm:$0xff]
  %v257 = vld [vmem:[%s1 + $0x2f8] sm:$0xff]
  %v258 = vld [vmem:[%s1 + $0x300] sm:$0xff]
  %v259 = vld [vmem:[%s1 + $0x308] sm:$0xff]
  %v260 = vld [vmem:[%s1 + $0x310] sm:$0xff]
  %v261 = vld [vmem:[%s1 + $0x318] sm:$0xff]
  %v262 = vld [vmem:[%s1 + $0x320] sm:$0xff]
  %v263 = vld [vmem:[%s1 + $0x328] sm:$0xff]
  %v264 = vld [vmem:[%s1 + $0x330] sm:$0xff]
  %v265 = vld [vmem:[%s1 + $0x338] sm:$0xff]
  %v266 = vld [vmem:[%s1 + $0x340] sm:$0xff]
  %v267 = vld [vmem:[%s1 + $0x348] sm:$0xff]
  %v268 = vld [vmem:[%s1 + $0x350] sm:$0xff]
  %v269 = vld [vmem:[%s1 + $0x358] sm:$0xff]
  %v270 = vld [vmem:[%s1 + $0x360] sm:$0xff]
  %v271 = vld [vmem:[%s1 + $0x368] sm:$0xff]
  %v272 = vld [vmem:[%s1 + $0x370] sm:$0xff]
  %v273 = vld [vmem:[%s1 + $0x378] sm:$0xff]
  %v274 = vld [vmem:[%s1 + $0x380] sm:$0xff]
  %v275 = vld [vmem:[%s1 + $0x388] sm:$0xff]
  %v276 = vld [vmem:[%s1 + $0x390] sm:$0xff]
  %v277 = vld [vmem:[%s1 + $0x398] sm:$0xff]
  %v278 = vld [vmem:[%s1 + $0x3a0] sm:$0xff]
  %v279 = vld [vmem:[%s1 + $0x3a8] sm:$0xff]
  %v280 = vld [vmem:[%s1 + $0x3b0] sm:$0xff]
  %v281 = vld [vmem:[%s1 + $0x3b8] sm:$0xff]
  %v282 = vld [vmem:[%s1 + $0x3c0] sm:$0xff]
  %v283 = vld [vmem:[%s1 + $0x3c8] sm:$0xff]
  %v284 = vld [vmem:[%s1 + $0x3d0] sm:$0xff]
  %v285 = vld [vmem:[%s1 + $0x3d8] sm:$0xff]
  %v286 = vld [vmem:[%s1 + $0x3e0] sm:$0xff]
  %v287 = vld [vmem:[%s1 + $0x3e8] sm:$0xff]
  %v288 = vld [vmem:[%s1 + $0x3f0] sm:$0xff]
  %v289 = vld [vmem:[%s1 + $0x3f8] sm:$0xff]
  %v290 = vld [vmem:[%s1 + $0x400] sm:$0xff]
  %v291 = vld [vmem:[%s1 + $0x408] sm:$0xff]
  %v292 = vld [vmem:[%s1 + $0x410] sm:$0xff]
  %v293 = vld [vmem:[%s1 + $0x418] sm:$0xff]
  %v294 = vld [vmem:[%s1 + $0x420] sm:$0xff]
  %v295 = vld [vmem:[%s1 + $0x428] sm:$0xff]
  %v296 = vld [vmem:[%s1 + $0x430] sm:$0xff]
  %v297 = vld [vmem:[%s1 + $0x438] sm:$0xff]
  %v298 = vld [vmem:[%s1 + $0x440] sm:$0xff]
  %v299 = vld [vmem:[%s1 + $0x448] sm:$0xff]
  %v300 = vld [vmem:[%s1 + $0x450] sm:$0xff]
  %v301 = vld [vmem:[%s1 + $0x458] sm:$0xff]
  %v302 = vld [vmem:[%s1 + $0x460] sm:$0xff]
  %v303 = vld [vmem:[%s1 + $0x468] sm:$0xff]
  %v304 = vld [vmem:[%s1 + $0x470] sm:$0xff]
  %v305 = vld [vmem:[%s1 + $0x478] sm:$0xff]
  %v386 = vunpack.c.l.b16 %v82
  %v387 = vunpack.c.h.b16 %v82
  %v388 = vunpack.c.l.b16 %v83
  %v389 = vunpack.c.h.b16 %v83
  %v390 = vunpack.c.l.b16 %v84
  %v391 = vunpack.c.h.b16 %v84
  %v392 = vunpack.c.l.b16 %v85
  %v393 = vunpack.c.h.b16 %v85
  %v394 = vunpack.c.l.b16 %v86
  %v395 = vunpack.c.l.b16 %v87
  %v396 = vunpack.c.h.b16 %v87
  %v397 = vunpack.c.l.b16 %v88
  %v398 = vunpack.c.h.b16 %v88
  %v399 = vunpack.c.l.b16 %v89
  %v400 = vunpack.c.h.b16 %v89
  %v401 = vunpack.c.l.b16 %v90
  %v402 = vunpack.c.h.b16 %v90
  %v403 = vunpack.c.l.b16 %v91
  %v404 = vunpack.c.l.b16 %v92
  %v405 = vunpack.c.h.b16 %v92
  %v406 = vunpack.c.l.b16 %v93
  %v407 = vunpack.c.h.b16 %v93
  %v408 = vunpack.c.l.b16 %v94
  %v409 = vunpack.c.h.b16 %v94
  %v410 = vunpack.c.l.b16 %v95
  %v411 = vunpack.c.h.b16 %v95
  %v412 = vunpack.c.l.b16 %v96
  %v413 = vunpack.c.l.b16 %v97
  %v414 = vunpack.c.h.b16 %v97
  %v415 = vunpack.c.l.b16 %v98
  %v416 = vunpack.c.h.b16 %v98
  %v417 = vunpack.c.l.b16 %v99
  %v418 = vunpack.c.h.b16 %v99
  %v419 = vunpack.c.l.b16 %v100
  %v420 = vunpack.c.h.b16 %v100
  %v421 = vunpack.c.l.b16 %v101
  %v422 = vunpack.c.l.b16 %v102
  %v423 = vunpack.c.h.b16 %v102
  %v424 = vunpack.c.l.b16 %v103
  %v425 = vunpack.c.h.b16 %v103
  %v426 = vunpack.c.l.b16 %v104
  %v427 = vunpack.c.h.b16 %v104
  %v428 = vunpack.c.l.b16 %v105
  %v429 = vunpack.c.h.b16 %v105
  %v430 = vunpack.c.l.b16 %v106
  %v431 = vunpack.c.l.b16 %v107
  %v432 = vunpack.c.h.b16 %v107
  %v433 = vunpack.c.l.b16 %v108
  %v434 = vunpack.c.h.b16 %v108
  %v435 = vunpack.c.l.b16 %v109
  %v436 = vunpack.c.h.b16 %v109
  %v437 = vunpack.c.l.b16 %v110
  %v438 = vunpack.c.h.b16 %v110
  %v439 = vunpack.c.l.b16 %v111
  %v440 = vunpack.c.l.b16 %v112
  %v441 = vunpack.c.h.b16 %v112
  %v442 = vunpack.c.l.b16 %v113
  %v443 = vunpack.c.h.b16 %v113
  %v444 = vunpack.c.l.b16 %v114
  %v445 = vunpack.c.h.b16 %v114
  %v446 = vunpack.c.l.b16 %v115
  %v447 = vunpack.c.h.b16 %v115
  %v448 = vunpack.c.l.b16 %v116
  %v449 = vunpack.c.l.b16 %v117
  %v450 = vunpack.c.h.b16 %v117
  %v451 = vunpack.c.l.b16 %v118
  %v452 = vunpack.c.h.b16 %v118
  %v453 = vunpack.c.l.b16 %v119
  %v454 = vunpack.c.h.b16 %v119
  %v455 = vunpack.c.l.b16 %v120
  %v456 = vunpack.c.h.b16 %v120
  %v457 = vunpack.c.l.b16 %v121
  %v458 = vunpack.c.l.b16 %v122
  %v459 = vunpack.c.h.b16 %v122
  %v460 = vunpack.c.l.b16 %v123
  %v461 = vunpack.c.h.b16 %v123
  %v462 = vunpack.c.l.b16 %v124
  %v463 = vunpack.c.h.b16 %v124
  %v464 = vunpack.c.l.b16 %v125
  %v465 = vunpack.c.h.b16 %v125
  %v466 = vunpack.c.l.b16 %v126
  %v467 = vunpack.c.l.b16 %v127
  %v468 = vunpack.c.h.b16 %v127
  %v469 = vunpack.c.l.b16 %v128
  %v470 = vunpack.c.h.b16 %v128
  %v471 = vunpack.c.l.b16 %v129
  %v472 = vunpack.c.h.b16 %v129
  %v473 = vunpack.c.l.b16 %v130
  %v474 = vunpack.c.h.b16 %v130
  %v475 = vunpack.c.l.b16 %v131
  %v476 = vunpack.c.l.b16 %v132
  %v477 = vunpack.c.h.b16 %v132
  %v478 = vunpack.c.l.b16 %v133
  %v479 = vunpack.c.h.b16 %v133
  %v480 = vunpack.c.l.b16 %v134
  %v481 = vunpack.c.h.b16 %v134
  %v482 = vunpack.c.l.b16 %v135
  %v483 = vunpack.c.h.b16 %v135
  %v484 = vunpack.c.l.b16 %v136
  %v485 = vunpack.c.l.b16 %v137
  %v486 = vunpack.c.h.b16 %v137
  %v487 = vunpack.c.l.b16 %v138
  %v488 = vunpack.c.h.b16 %v138
  %v489 = vunpack.c.l.b16 %v139
  %v490 = vunpack.c.h.b16 %v139
  %v491 = vunpack.c.l.b16 %v140
  %v492 = vunpack.c.h.b16 %v140
  %v493 = vunpack.c.l.b16 %v141
  %v494 = vunpack.c.l.b16 %v142
  %v495 = vunpack.c.h.b16 %v142
  %v496 = vunpack.c.l.b16 %v143
  %v497 = vunpack.c.h.b16 %v143
  %v498 = vunpack.c.l.b16 %v144
  %v499 = vunpack.c.h.b16 %v144
  %v500 = vunpack.c.l.b16 %v145
  %v501 = vunpack.c.h.b16 %v145
  %v502 = vunpack.c.l.b16 %v146
  %v503 = vunpack.c.l.b16 %v147
  %v504 = vunpack.c.h.b16 %v147
  %v505 = vunpack.c.l.b16 %v148
  %v506 = vunpack.c.h.b16 %v148
  %v507 = vunpack.c.l.b16 %v149
  %v508 = vunpack.c.h.b16 %v149
  %v509 = vunpack.c.l.b16 %v150
  %v510 = vunpack.c.h.b16 %v150
  %v511 = vunpack.c.l.b16 %v151
  %v512 = vunpack.c.l.b16 %v152
  %v513 = vunpack.c.h.b16 %v152
  %v514 = vunpack.c.l.b16 %v153
  %v515 = vunpack.c.h.b16 %v153
  %v516 = vunpack.c.l.b16 %v154
  %v517 = vunpack.c.h.b16 %v154
  %v518 = vunpack.c.l.b16 %v155
  %v519 = vunpack.c.h.b16 %v155
  %v520 = vunpack.c.l.b16 %v156
  %v521 = vunpack.c.l.b16 %v157
  %v522 = vunpack.c.h.b16 %v157
  %v523 = vunpack.c.l.b16 %v158
  %v524 = vunpack.c.h.b16 %v158
  %v525 = vunpack.c.l.b16 %v159
  %v526 = vunpack.c.h.b16 %v159
  %v527 = vunpack.c.l.b16 %v160
  %v528 = vunpack.c.h.b16 %v160
  %v529 = vunpack.c.l.b16 %v161
  %v530 = vpack.c.b16 %v395, %v386
  %v531 = vpack.c.b16 %v396, %v387
  %v532 = vpack.c.b16 %v397, %v388
  %v533 = vpack.c.b16 %v398, %v389
  %v534 = vpack.c.b16 %v399, %v390
  %v535 = vpack.c.b16 %v400, %v391
  %v536 = vpack.c.b16 %v401, %v392
  %v537 = vpack.c.b16 %v402, %v393
  %v538 = vpack.c.b16 %v403, %v394
  %v539 = vpack.c.b16 %v413, %v404
  %v540 = vpack.c.b16 %v414, %v405
  %v541 = vpack.c.b16 %v415, %v406
  %v542 = vpack.c.b16 %v416, %v407
  %v543 = vpack.c.b16 %v417, %v408
  %v544 = vpack.c.b16 %v418, %v409
  %v545 = vpack.c.b16 %v419, %v410
  %v546 = vpack.c.b16 %v420, %v411
  %v547 = vpack.c.b16 %v421, %v412
  %v548 = vpack.c.b16 %v431, %v422
  %v549 = vpack.c.b16 %v432, %v423
  %v550 = vpack.c.b16 %v433, %v424
  %v551 = vpack.c.b16 %v434, %v425
  %v552 = vpack.c.b16 %v435, %v426
  %v553 = vpack.c.b16 %v436, %v427
  %v554 = vpack.c.b16 %v437, %v428
  %v555 = vpack.c.b16 %v438, %v429
  %v556 = vpack.c.b16 %v439, %v430
  %v557 = vpack.c.b16 %v449, %v440
  %v558 = vpack.c.b16 %v450, %v441
  %v559 = vpack.c.b16 %v451, %v442
  %v560 = vpack.c.b16 %v452, %v443
  %v561 = vpack.c.b16 %v453, %v444
  %v562 = vpack.c.b16 %v454, %v445
  %v563 = vpack.c.b16 %v455, %v446
  %v564 = vpack.c.b16 %v456, %v447
  %v565 = vpack.c.b16 %v457, %v448
  %v566 = vpack.c.b16 %v467, %v458
  %v567 = vpack.c.b16 %v468, %v459
  %v568 = vpack.c.b16 %v469, %v460
  %v569 = vpack.c.b16 %v470, %v461
  %v570 = vpack.c.b16 %v471, %v462
  %v571 = vpack.c.b16 %v472, %v463
  %v572 = vpack.c.b16 %v473, %v464
  %v573 = vpack.c.b16 %v474, %v465
  %v574 = vpack.c.b16 %v475, %v466
  %v575 = vpack.c.b16 %v485, %v476
  %v576 = vpack.c.b16 %v486, %v477
  %v577 = vpack.c.b16 %v487, %v478
  %v578 = vpack.c.b16 %v488, %v479
  %v579 = vpack.c.b16 %v489, %v480
  %v580 = vpack.c.b16 %v490, %v481
  %v581 = vpack.c.b16 %v491, %v482
  %v582 = vpack.c.b16 %v492, %v483
  %v583 = vpack.c.b16 %v493, %v484
  %v584 = vpack.c.b16 %v503, %v494
  %v585 = vpack.c.b16 %v504, %v495
  %v586 = vpack.c.b16 %v505, %v496
  %v587 = vpack.c.b16 %v506, %v497
  %v588 = vpack.c.b16 %v507, %v498
  %v589 = vpack.c.b16 %v508, %v499
  %v590 = vpack.c.b16 %v509, %v500
  %v591 = vpack.c.b16 %v510, %v501
  %v592 = vpack.c.b16 %v511, %v502
  %v593 = vpack.c.b16 %v521, %v512
  %v594 = vpack.c.b16 %v522, %v513
  %v595 = vpack.c.b16 %v523, %v514
  %v596 = vpack.c.b16 %v524, %v515
  %v597 = vpack.c.b16 %v525, %v516
  %v598 = vpack.c.b16 %v526, %v517
  %v599 = vpack.c.b16 %v527, %v518
  %v600 = vpack.c.b16 %v528, %v519
  %v601 = vpack.c.b16 %v529, %v520
  %v818 = vunpack.c.l.b16 %v162
  %v819 = vunpack.c.h.b16 %v162
  %v820 = vunpack.c.l.b16 %v163
  %v821 = vunpack.c.h.b16 %v163
  %v822 = vunpack.c.l.b16 %v164
  %v823 = vunpack.c.h.b16 %v164
  %v824 = vunpack.c.l.b16 %v165
  %v825 = vunpack.c.h.b16 %v165
  %v826 = vunpack.c.l.b16 %v166
  %v827 = vunpack.c.h.b16 %v166
  %v828 = vunpack.c.l.b16 %v167
  %v829 = vunpack.c.h.b16 %v167
  %v830 = vunpack.c.l.b16 %v168
  %v831 = vunpack.c.h.b16 %v168
  %v832 = vunpack.c.l.b16 %v169
  %v833 = vunpack.c.h.b16 %v169
  %v834 = vunpack.c.l.b16 %v170
  %v835 = vunpack.c.h.b16 %v170
  %v836 = vunpack.c.l.b16 %v171
  %v837 = vunpack.c.h.b16 %v171
  %v838 = vunpack.c.l.b16 %v172
  %v839 = vunpack.c.h.b16 %v172
  %v840 = vunpack.c.l.b16 %v173
  %v841 = vunpack.c.h.b16 %v173
  %v842 = vunpack.c.l.b16 %v174
  %v843 = vunpack.c.h.b16 %v174
  %v844 = vunpack.c.l.b16 %v175
  %v845 = vunpack.c.h.b16 %v175
  %v846 = vunpack.c.l.b16 %v176
  %v847 = vunpack.c.h.b16 %v176
  %v848 = vunpack.c.l.b16 %v177
  %v849 = vunpack.c.h.b16 %v177
  %v850 = vunpack.c.l.b16 %v178
  %v851 = vunpack.c.h.b16 %v178
  %v852 = vunpack.c.l.b16 %v179
  %v853 = vunpack.c.h.b16 %v179
  %v854 = vunpack.c.l.b16 %v180
  %v855 = vunpack.c.h.b16 %v180
  %v856 = vunpack.c.l.b16 %v181
  %v857 = vunpack.c.h.b16 %v181
  %v858 = vunpack.c.l.b16 %v182
  %v859 = vunpack.c.h.b16 %v182
  %v860 = vunpack.c.l.b16 %v183
  %v861 = vunpack.c.h.b16 %v183
  %v862 = vunpack.c.l.b16 %v184
  %v863 = vunpack.c.h.b16 %v184
  %v864 = vunpack.c.l.b16 %v185
  %v865 = vunpack.c.h.b16 %v185
  %v866 = vunpack.c.l.b16 %v186
  %v867 = vunpack.c.h.b16 %v186
  %v868 = vunpack.c.l.b16 %v187
  %v869 = vunpack.c.h.b16 %v187
  %v870 = vunpack.c.l.b16 %v188
  %v871 = vunpack.c.h.b16 %v188
  %v872 = vunpack.c.l.b16 %v189
  %v873 = vunpack.c.h.b16 %v189
  %v874 = vunpack.c.l.b16 %v190
  %v875 = vunpack.c.h.b16 %v190
  %v876 = vunpack.c.l.b16 %v191
  %v877 = vunpack.c.h.b16 %v191
  %v878 = vunpack.c.l.b16 %v192
  %v879 = vunpack.c.h.b16 %v192
  %v880 = vunpack.c.l.b16 %v193
  %v881 = vunpack.c.h.b16 %v193
  %v882 = vunpack.c.l.b16 %v194
  %v883 = vunpack.c.h.b16 %v194
  %v884 = vunpack.c.l.b16 %v195
  %v885 = vunpack.c.h.b16 %v195
  %v886 = vunpack.c.l.b16 %v196
  %v887 = vunpack.c.h.b16 %v196
  %v888 = vunpack.c.l.b16 %v197
  %v889 = vunpack.c.h.b16 %v197
  %v890 = vunpack.c.l.b16 %v198
  %v891 = vunpack.c.h.b16 %v198
  %v892 = vunpack.c.l.b16 %v199
  %v893 = vunpack.c.h.b16 %v199
  %v894 = vunpack.c.l.b16 %v200
  %v895 = vunpack.c.h.b16 %v200
  %v896 = vunpack.c.l.b16 %v201
  %v897 = vunpack.c.h.b16 %v201
  %v898 = vunpack.c.l.b16 %v202
  %v899 = vunpack.c.h.b16 %v202
  %v900 = vunpack.c.l.b16 %v203
  %v901 = vunpack.c.h.b16 %v203
  %v902 = vunpack.c.l.b16 %v204
  %v903 = vunpack.c.h.b16 %v204
  %v904 = vunpack.c.l.b16 %v205
  %v905 = vunpack.c.h.b16 %v205
  %v906 = vunpack.c.l.b16 %v206
  %v907 = vunpack.c.h.b16 %v206
  %v908 = vunpack.c.l.b16 %v207
  %v909 = vunpack.c.h.b16 %v207
  %v910 = vunpack.c.l.b16 %v208
  %v911 = vunpack.c.h.b16 %v208
  %v912 = vunpack.c.l.b16 %v209
  %v913 = vunpack.c.h.b16 %v209
  %v914 = vunpack.c.l.b16 %v210
  %v915 = vunpack.c.h.b16 %v210
  %v916 = vunpack.c.l.b16 %v211
  %v917 = vunpack.c.h.b16 %v211
  %v918 = vunpack.c.l.b16 %v212
  %v919 = vunpack.c.h.b16 %v212
  %v920 = vunpack.c.l.b16 %v213
  %v921 = vunpack.c.h.b16 %v213
  %v922 = vunpack.c.l.b16 %v214
  %v923 = vunpack.c.h.b16 %v214
  %v924 = vunpack.c.l.b16 %v215
  %v925 = vunpack.c.h.b16 %v215
  %v926 = vunpack.c.l.b16 %v216
  %v927 = vunpack.c.h.b16 %v216
  %v928 = vunpack.c.l.b16 %v217
  %v929 = vunpack.c.h.b16 %v217
  %v930 = vunpack.c.l.b16 %v218
  %v931 = vunpack.c.h.b16 %v218
  %v932 = vunpack.c.l.b16 %v219
  %v933 = vunpack.c.h.b16 %v219
  %v934 = vunpack.c.l.b16 %v220
  %v935 = vunpack.c.h.b16 %v220
  %v936 = vunpack.c.l.b16 %v221
  %v937 = vunpack.c.h.b16 %v221
  %v938 = vunpack.c.l.b16 %v222
  %v939 = vunpack.c.h.b16 %v222
  %v940 = vunpack.c.l.b16 %v223
  %v941 = vunpack.c.h.b16 %v223
  %v942 = vunpack.c.l.b16 %v224
  %v943 = vunpack.c.h.b16 %v224
  %v944 = vunpack.c.l.b16 %v225
  %v945 = vunpack.c.h.b16 %v225
  %v946 = vunpack.c.l.b16 %v226
  %v947 = vunpack.c.h.b16 %v226
  %v948 = vunpack.c.l.b16 %v227
  %v949 = vunpack.c.h.b16 %v227
  %v950 = vunpack.c.l.b16 %v228
  %v951 = vunpack.c.h.b16 %v228
  %v952 = vunpack.c.l.b16 %v229
  %v953 = vunpack.c.h.b16 %v229
  %v954 = vunpack.c.l.b16 %v230
  %v955 = vunpack.c.h.b16 %v230
  %v956 = vunpack.c.l.b16 %v231
  %v957 = vunpack.c.h.b16 %v231
  %v958 = vunpack.c.l.b16 %v232
  %v959 = vunpack.c.h.b16 %v232
  %v960 = vunpack.c.l.b16 %v233
  %v961 = vunpack.c.h.b16 %v233
  %v962 = vunpack.c.l.b16 %v234
  %v963 = vunpack.c.h.b16 %v234
  %v964 = vunpack.c.l.b16 %v235
  %v965 = vunpack.c.h.b16 %v235
  %v966 = vunpack.c.l.b16 %v236
  %v967 = vunpack.c.h.b16 %v236
  %v968 = vunpack.c.l.b16 %v237
  %v969 = vunpack.c.h.b16 %v237
  %v970 = vunpack.c.l.b16 %v238
  %v971 = vunpack.c.h.b16 %v238
  %v972 = vunpack.c.l.b16 %v239
  %v973 = vunpack.c.h.b16 %v239
  %v974 = vunpack.c.l.b16 %v240
  %v975 = vunpack.c.h.b16 %v240
  %v976 = vunpack.c.l.b16 %v241
  %v977 = vunpack.c.h.b16 %v241
  %v978 = vunpack.c.l.b16 %v242
  %v979 = vunpack.c.h.b16 %v242
  %v980 = vunpack.c.l.b16 %v243
  %v981 = vunpack.c.h.b16 %v243
  %v982 = vunpack.c.l.b16 %v244
  %v983 = vunpack.c.h.b16 %v244
  %v984 = vunpack.c.l.b16 %v245
  %v985 = vunpack.c.h.b16 %v245
  %v986 = vunpack.c.l.b16 %v246
  %v987 = vunpack.c.h.b16 %v246
  %v988 = vunpack.c.l.b16 %v247
  %v989 = vunpack.c.h.b16 %v247
  %v990 = vunpack.c.l.b16 %v248
  %v991 = vunpack.c.h.b16 %v248
  %v992 = vunpack.c.l.b16 %v249
  %v993 = vunpack.c.h.b16 %v249
  %v994 = vunpack.c.l.b16 %v250
  %v995 = vunpack.c.h.b16 %v250
  %v996 = vunpack.c.l.b16 %v251
  %v997 = vunpack.c.h.b16 %v251
  %v998 = vunpack.c.l.b16 %v252
  %v999 = vunpack.c.h.b16 %v252
  %v1000 = vunpack.c.l.b16 %v253
  %v1001 = vunpack.c.h.b16 %v253
  %v1002 = vunpack.c.l.b16 %v254
  %v1003 = vunpack.c.h.b16 %v254
  %v1004 = vunpack.c.l.b16 %v255
  %v1005 = vunpack.c.h.b16 %v255
  %v1006 = vunpack.c.l.b16 %v256
  %v1007 = vunpack.c.h.b16 %v256
  %v1008 = vunpack.c.l.b16 %v257
  %v1009 = vunpack.c.h.b16 %v257
  %v1010 = vunpack.c.l.b16 %v258
  %v1011 = vunpack.c.h.b16 %v258
  %v1012 = vunpack.c.l.b16 %v259
  %v1013 = vunpack.c.h.b16 %v259
  %v1014 = vunpack.c.l.b16 %v260
  %v1015 = vunpack.c.h.b16 %v260
  %v1016 = vunpack.c.l.b16 %v261
  %v1017 = vunpack.c.h.b16 %v261
  %v1018 = vunpack.c.l.b16 %v262
  %v1019 = vunpack.c.h.b16 %v262
  %v1020 = vunpack.c.l.b16 %v263
  %v1021 = vunpack.c.h.b16 %v263
  %v1022 = vunpack.c.l.b16 %v264
  %v1023 = vunpack.c.h.b16 %v264
  %v1024 = vunpack.c.l.b16 %v265
  %v1025 = vunpack.c.h.b16 %v265
  %v1026 = vunpack.c.l.b16 %v266
  %v1027 = vunpack.c.h.b16 %v266
  %v1028 = vunpack.c.l.b16 %v267
  %v1029 = vunpack.c.h.b16 %v267
  %v1030 = vunpack.c.l.b16 %v268
  %v1031 = vunpack.c.h.b16 %v268
  %v1032 = vunpack.c.l.b16 %v269
  %v1033 = vunpack.c.h.b16 %v269
  %v1034 = vunpack.c.l.b16 %v270
  %v1035 = vunpack.c.h.b16 %v270
  %v1036 = vunpack.c.l.b16 %v271
  %v1037 = vunpack.c.h.b16 %v271
  %v1038 = vunpack.c.l.b16 %v272
  %v1039 = vunpack.c.h.b16 %v272
  %v1040 = vunpack.c.l.b16 %v273
  %v1041 = vunpack.c.h.b16 %v273
  %v1042 = vunpack.c.l.b16 %v274
  %v1043 = vunpack.c.h.b16 %v274
  %v1044 = vunpack.c.l.b16 %v275
  %v1045 = vunpack.c.h.b16 %v275
  %v1046 = vunpack.c.l.b16 %v276
  %v1047 = vunpack.c.h.b16 %v276
  %v1048 = vunpack.c.l.b16 %v277
  %v1049 = vunpack.c.h.b16 %v277
  %v1050 = vunpack.c.l.b16 %v278
  %v1051 = vunpack.c.h.b16 %v278
  %v1052 = vunpack.c.l.b16 %v279
  %v1053 = vunpack.c.h.b16 %v279
  %v1054 = vunpack.c.l.b16 %v280
  %v1055 = vunpack.c.h.b16 %v280
  %v1056 = vunpack.c.l.b16 %v281
  %v1057 = vunpack.c.h.b16 %v281
  %v1058 = vunpack.c.l.b16 %v282
  %v1059 = vunpack.c.h.b16 %v282
  %v1060 = vunpack.c.l.b16 %v283
  %v1061 = vunpack.c.h.b16 %v283
  %v1062 = vunpack.c.l.b16 %v284
  %v1063 = vunpack.c.h.b16 %v284
  %v1064 = vunpack.c.l.b16 %v285
  %v1065 = vunpack.c.h.b16 %v285
  %v1066 = vunpack.c.l.b16 %v286
  %v1067 = vunpack.c.h.b16 %v286
  %v1068 = vunpack.c.l.b16 %v287
  %v1069 = vunpack.c.h.b16 %v287
  %v1070 = vunpack.c.l.b16 %v288
  %v1071 = vunpack.c.h.b16 %v288
  %v1072 = vunpack.c.l.b16 %v289
  %v1073 = vunpack.c.h.b16 %v289
  %v1074 = vunpack.c.l.b16 %v290
  %v1075 = vunpack.c.h.b16 %v290
  %v1076 = vunpack.c.l.b16 %v291
  %v1077 = vunpack.c.h.b16 %v291
  %v1078 = vunpack.c.l.b16 %v292
  %v1079 = vunpack.c.h.b16 %v292
  %v1080 = vunpack.c.l.b16 %v293
  %v1081 = vunpack.c.h.b16 %v293
  %v1082 = vunpack.c.l.b16 %v294
  %v1083 = vunpack.c.h.b16 %v294
  %v1084 = vunpack.c.l.b16 %v295
  %v1085 = vunpack.c.h.b16 %v295
  %v1086 = vunpack.c.l.b16 %v296
  %v1087 = vunpack.c.h.b16 %v296
  %v1088 = vunpack.c.l.b16 %v297
  %v1089 = vunpack.c.h.b16 %v297
  %v1090 = vunpack.c.l.b16 %v298
  %v1091 = vunpack.c.h.b16 %v298
  %v1092 = vunpack.c.l.b16 %v299
  %v1093 = vunpack.c.h.b16 %v299
  %v1094 = vunpack.c.l.b16 %v300
  %v1095 = vunpack.c.h.b16 %v300
  %v1096 = vunpack.c.l.b16 %v301
  %v1097 = vunpack.c.h.b16 %v301
  %v1098 = vunpack.c.l.b16 %v302
  %v1099 = vunpack.c.h.b16 %v302
  %v1100 = vunpack.c.l.b16 %v303
  %v1101 = vunpack.c.h.b16 %v303
  %v1102 = vunpack.c.l.b16 %v304
  %v1103 = vunpack.c.h.b16 %v304
  %v1104 = vunpack.c.l.b16 %v305
  %v1105 = vunpack.c.h.b16 %v305
  %v1106 = vpack.c.b16 %v820, %v818
  %v1107 = vpack.c.b16 %v821, %v819
  %v1108 = vpack.c.b16 %v824, %v822
  %v1109 = vpack.c.b16 %v825, %v823
  %v1110 = vpack.c.b16 %v828, %v826
  %v1111 = vpack.c.b16 %v829, %v827
  %v1112 = vpack.c.b16 %v832, %v830
  %v1113 = vpack.c.b16 %v833, %v831
  %v1114 = vpack.c.b16 %v836, %v834
  %v1115 = vpack.c.b16 %v837, %v835
  %v1116 = vpack.c.b16 %v840, %v838
  %v1117 = vpack.c.b16 %v841, %v839
  %v1118 = vpack.c.b16 %v844, %v842
  %v1119 = vpack.c.b16 %v845, %v843
  %v1120 = vpack.c.b16 %v848, %v846
  %v1121 = vpack.c.b16 %v849, %v847
  %v1122 = vpack.c.b16 %v852, %v850
  %v1123 = vpack.c.b16 %v853, %v851
  %v1124 = vpack.c.b16 %v856, %v854
  %v1125 = vpack.c.b16 %v857, %v855
  %v1126 = vpack.c.b16 %v860, %v858
  %v1127 = vpack.c.b16 %v861, %v859
  %v1128 = vpack.c.b16 %v864, %v862
  %v1129 = vpack.c.b16 %v865, %v863
  %v1130 = vpack.c.b16 %v868, %v866
  %v1131 = vpack.c.b16 %v869, %v867
  %v1132 = vpack.c.b16 %v872, %v870
  %v1133 = vpack.c.b16 %v873, %v871
  %v1134 = vpack.c.b16 %v876, %v874
  %v1135 = vpack.c.b16 %v877, %v875
  %v1136 = vpack.c.b16 %v880, %v878
  %v1137 = vpack.c.b16 %v881, %v879
  %v1138 = vpack.c.b16 %v884, %v882
  %v1139 = vpack.c.b16 %v885, %v883
  %v1140 = vpack.c.b16 %v888, %v886
  %v1141 = vpack.c.b16 %v889, %v887
  %v1142 = vpack.c.b16 %v892, %v890
  %v1143 = vpack.c.b16 %v893, %v891
  %v1144 = vpack.c.b16 %v896, %v894
  %v1145 = vpack.c.b16 %v897, %v895
  %v1146 = vpack.c.b16 %v900, %v898
  %v1147 = vpack.c.b16 %v901, %v899
  %v1148 = vpack.c.b16 %v904, %v902
  %v1149 = vpack.c.b16 %v905, %v903
  %v1150 = vpack.c.b16 %v908, %v906
  %v1151 = vpack.c.b16 %v909, %v907
  %v1152 = vpack.c.b16 %v912, %v910
  %v1153 = vpack.c.b16 %v913, %v911
  %v1154 = vpack.c.b16 %v916, %v914
  %v1155 = vpack.c.b16 %v917, %v915
  %v1156 = vpack.c.b16 %v920, %v918
  %v1157 = vpack.c.b16 %v921, %v919
  %v1158 = vpack.c.b16 %v924, %v922
  %v1159 = vpack.c.b16 %v925, %v923
  %v1160 = vpack.c.b16 %v928, %v926
  %v1161 = vpack.c.b16 %v929, %v927
  %v1162 = vpack.c.b16 %v932, %v930
  %v1163 = vpack.c.b16 %v933, %v931
  %v1164 = vpack.c.b16 %v936, %v934
  %v1165 = vpack.c.b16 %v937, %v935
  %v1166 = vpack.c.b16 %v940, %v938
  %v1167 = vpack.c.b16 %v941, %v939
  %v1168 = vpack.c.b16 %v944, %v942
  %v1169 = vpack.c.b16 %v945, %v943
  %v1170 = vpack.c.b16 %v948, %v946
  %v1171 = vpack.c.b16 %v949, %v947
  %v1172 = vpack.c.b16 %v952, %v950
  %v1173 = vpack.c.b16 %v953, %v951
  %v1174 = vpack.c.b16 %v956, %v954
  %v1175 = vpack.c.b16 %v957, %v955
  %v1176 = vpack.c.b16 %v960, %v958
  %v1177 = vpack.c.b16 %v961, %v959
  %v1178 = vpack.c.b16 %v964, %v962
  %v1179 = vpack.c.b16 %v965, %v963
  %v1180 = vpack.c.b16 %v968, %v966
  %v1181 = vpack.c.b16 %v969, %v967
  %v1182 = vpack.c.b16 %v972, %v970
  %v1183 = vpack.c.b16 %v973, %v971
  %v1184 = vpack.c.b16 %v976, %v974
  %v1185 = vpack.c.b16 %v977, %v975
  %v1186 = vpack.c.b16 %v980, %v978
  %v1187 = vpack.c.b16 %v981, %v979
  %v1188 = vpack.c.b16 %v984, %v982
  %v1189 = vpack.c.b16 %v985, %v983
  %v1190 = vpack.c.b16 %v988, %v986
  %v1191 = vpack.c.b16 %v989, %v987
  %v1192 = vpack.c.b16 %v992, %v990
  %v1193 = vpack.c.b16 %v993, %v991
  %v1194 = vpack.c.b16 %v996, %v994
  %v1195 = vpack.c.b16 %v997, %v995
  %v1196 = vpack.c.b16 %v1000, %v998
  %v1197 = vpack.c.b16 %v1001, %v999
  %v1198 = vpack.c.b16 %v1004, %v1002
  %v1199 = vpack.c.b16 %v1005, %v1003
  %v1200 = vpack.c.b16 %v1008, %v1006
  %v1201 = vpack.c.b16 %v1009, %v1007
  %v1202 = vpack.c.b16 %v1012, %v1010
  %v1203 = vpack.c.b16 %v1013, %v1011
  %v1204 = vpack.c.b16 %v1016, %v1014
  %v1205 = vpack.c.b16 %v1017, %v1015
  %v1206 = vpack.c.b16 %v1020, %v1018
  %v1207 = vpack.c.b16 %v1021, %v1019
  %v1208 = vpack.c.b16 %v1024, %v1022
  %v1209 = vpack.c.b16 %v1025, %v1023
  %v1210 = vpack.c.b16 %v1028, %v1026
  %v1211 = vpack.c.b16 %v1029, %v1027
  %v1212 = vpack.c.b16 %v1032, %v1030
  %v1213 = vpack.c.b16 %v1033, %v1031
  %v1214 = vpack.c.b16 %v1036, %v1034
  %v1215 = vpack.c.b16 %v1037, %v1035
  %v1216 = vpack.c.b16 %v1040, %v1038
  %v1217 = vpack.c.b16 %v1041, %v1039
  %v1218 = vpack.c.b16 %v1044, %v1042
  %v1219 = vpack.c.b16 %v1045, %v1043
  %v1220 = vpack.c.b16 %v1048, %v1046
  %v1221 = vpack.c.b16 %v1049, %v1047
  %v1222 = vpack.c.b16 %v1052, %v1050
  %v1223 = vpack.c.b16 %v1053, %v1051
  %v1224 = vpack.c.b16 %v1056, %v1054
  %v1225 = vpack.c.b16 %v1057, %v1055
  %v1226 = vpack.c.b16 %v1060, %v1058
  %v1227 = vpack.c.b16 %v1061, %v1059
  %v1228 = vpack.c.b16 %v1064, %v1062
  %v1229 = vpack.c.b16 %v1065, %v1063
  %v1230 = vpack.c.b16 %v1068, %v1066
  %v1231 = vpack.c.b16 %v1069, %v1067
  %v1232 = vpack.c.b16 %v1072, %v1070
  %v1233 = vpack.c.b16 %v1073, %v1071
  %v1234 = vpack.c.b16 %v1076, %v1074
  %v1235 = vpack.c.b16 %v1077, %v1075
  %v1236 = vpack.c.b16 %v1080, %v1078
  %v1237 = vpack.c.b16 %v1081, %v1079
  %v1238 = vpack.c.b16 %v1084, %v1082
  %v1239 = vpack.c.b16 %v1085, %v1083
  %v1240 = vpack.c.b16 %v1088, %v1086
  %v1241 = vpack.c.b16 %v1089, %v1087
  %v1242 = vpack.c.b16 %v1092, %v1090
  %v1243 = vpack.c.b16 %v1093, %v1091
  %v1244 = vpack.c.b16 %v1096, %v1094
  %v1245 = vpack.c.b16 %v1097, %v1095
  %v1246 = vpack.c.b16 %v1100, %v1098
  %v1247 = vpack.c.b16 %v1101, %v1099
  %v1248 = vpack.c.b16 %v1104, %v1102
  %v1249 = vpack.c.b16 %v1105, %v1103
  %1394 = vmatpush.bf16.msra.mxu0 %v1120
  %1395 = vmatpush.bf16.msra.mxu0 %v1118
  %1396 = vmatpush.bf16.msra.mxu0 %v1116
  %1397 = vmatpush.bf16.msra.mxu0 %v1114
  %1398 = vmatpush.bf16.msra.mxu0 %v1112
  %1399 = vmatpush.bf16.msra.mxu0 %v1110
  %1400 = vmatpush.bf16.msra.mxu0 %v1108
  %1401 = vmatpush.bf16.msra.mxu0 %v1106
  %1402 = vmatmul.bf16.gmra.mxu0 %v530
  %v1403 = vpop.f32.mrf.mxu0
  %v1404 = vadd.f32 0.0, %v1403
  %v1405 = vpop.f32.mrf.mxu0
  %v1406 = vadd.f32 0.0, %v1405
  %1407 = vmatmul.bf16.gmra.mxu0 %v539
  %v1408 = vpop.f32.mrf.mxu0
  %v1409 = vadd.f32 0.0, %v1408
  %v1410 = vpop.f32.mrf.mxu0
  %v1411 = vadd.f32 0.0, %v1410
  %1412 = vmatmul.bf16.gmra.mxu0 %v548
  %v1413 = vpop.f32.mrf.mxu0
  %v1414 = vadd.f32 0.0, %v1413
  %v1415 = vpop.f32.mrf.mxu0
  %v1416 = vadd.f32 0.0, %v1415
  %1417 = vmatmul.bf16.gmra.mxu0 %v557
  %v1418 = vpop.f32.mrf.mxu0
  %v1419 = vadd.f32 0.0, %v1418
  %v1420 = vpop.f32.mrf.mxu0
  %v1421 = vadd.f32 0.0, %v1420
  %1422 = vmatmul.bf16.gmra.mxu0 %v566
  %v1423 = vpop.f32.mrf.mxu0
  %v1424 = vadd.f32 0.0, %v1423
  %v1425 = vpop.f32.mrf.mxu0
  %v1426 = vadd.f32 0.0, %v1425
  %1427 = vmatmul.bf16.gmra.mxu0 %v575
  %v1428 = vpop.f32.mrf.mxu0
  %v1429 = vadd.f32 0.0, %v1428
  %v1430 = vpop.f32.mrf.mxu0
  %v1431 = vadd.f32 0.0, %v1430
  %1432 = vmatmul.bf16.gmra.mxu0 %v584
  %v1433 = vpop.f32.mrf.mxu0
  %v1434 = vadd.f32 0.0, %v1433
  %v1435 = vpop.f32.mrf.mxu0
  %v1436 = vadd.f32 0.0, %v1435
  %1437 = vmatmul.bf16.gmra.mxu0 %v593
  %v1438 = vpop.f32.mrf.mxu0
  %v1439 = vadd.f32 0.0, %v1438
  %v1440 = vpop.f32.mrf.mxu0
  %v1441 = vadd.f32 0.0, %v1440
  %1442 = vdwg.mxu0
  %1443 = vmatpush.bf16.msra.mxu0 %v1136
  %1444 = vmatpush.bf16.msra.mxu0 %v1134
  %1445 = vmatpush.bf16.msra.mxu0 %v1132
  %1446 = vmatpush.bf16.msra.mxu0 %v1130
  %1447 = vmatpush.bf16.msra.mxu0 %v1128
  %1448 = vmatpush.bf16.msra.mxu0 %v1126
  %1449 = vmatpush.bf16.msra.mxu0 %v1124
  %1450 = vmatpush.bf16.msra.mxu0 %v1122
  %1451 = vmatmul.bf16.gmra.mxu0 %v531
  %v1452 = vpop.f32.mrf.mxu0
  %v1453 = vadd.f32 %v1404, %v1452
  %v1454 = vpop.f32.mrf.mxu0
  %v1455 = vadd.f32 %v1406, %v1454
  %1456 = vmatmul.bf16.gmra.mxu0 %v540
  %v1457 = vpop.f32.mrf.mxu0
  %v1458 = vadd.f32 %v1409, %v1457
  %v1459 = vpop.f32.mrf.mxu0
  %v1460 = vadd.f32 %v1411, %v1459
  %1461 = vmatmul.bf16.gmra.mxu0 %v549
  %v1462 = vpop.f32.mrf.mxu0
  %v1463 = vadd.f32 %v1414, %v1462
  %v1464 = vpop.f32.mrf.mxu0
  %v1465 = vadd.f32 %v1416, %v1464
  %1466 = vmatmul.bf16.gmra.mxu0 %v558
  %v1467 = vpop.f32.mrf.mxu0
  %v1468 = vadd.f32 %v1419, %v1467
  %v1469 = vpop.f32.mrf.mxu0
  %v1470 = vadd.f32 %v1421, %v1469
  %1471 = vmatmul.bf16.gmra.mxu0 %v567
  %v1472 = vpop.f32.mrf.mxu0
  %v1473 = vadd.f32 %v1424, %v1472
  %v1474 = vpop.f32.mrf.mxu0
  %v1475 = vadd.f32 %v1426, %v1474
  %1476 = vmatmul.bf16.gmra.mxu0 %v576
  %v1477 = vpop.f32.mrf.mxu0
  %v1478 = vadd.f32 %v1429, %v1477
  %v1479 = vpop.f32.mrf.mxu0
  %v1480 = vadd.f32 %v1431, %v1479
  %1481 = vmatmul.bf16.gmra.mxu0 %v585
  %v1482 = vpop.f32.mrf.mxu0
  %v1483 = vadd.f32 %v1434, %v1482
  %v1484 = vpop.f32.mrf.mxu0
  %v1485 = vadd.f32 %v1436, %v1484
  %1486 = vmatmul.bf16.gmra.mxu0 %v594
  %v1487 = vpop.f32.mrf.mxu0
  %v1488 = vadd.f32 %v1439, %v1487
  %v1489 = vpop.f32.mrf.mxu0
  %v1490 = vadd.f32 %v1441, %v1489
  %1491 = vdwg.mxu0
  %1492 = vmatpush.bf16.msra.mxu0 %v1152
  %1493 = vmatpush.bf16.msra.mxu0 %v1150
  %1494 = vmatpush.bf16.msra.mxu0 %v1148
  %1495 = vmatpush.bf16.msra.mxu0 %v1146
  %1496 = vmatpush.bf16.msra.mxu0 %v1144
  %1497 = vmatpush.bf16.msra.mxu0 %v1142
  %1498 = vmatpush.bf16.msra.mxu0 %v1140
  %1499 = vmatpush.bf16.msra.mxu0 %v1138
  %1500 = vmatmul.bf16.gmra.mxu0 %v532
  %v1501 = vpop.f32.mrf.mxu0
  %v1502 = vadd.f32 %v1453, %v1501
  %v1503 = vpop.f32.mrf.mxu0
  %v1504 = vadd.f32 %v1455, %v1503
  %1505 = vmatmul.bf16.gmra.mxu0 %v541
  %v1506 = vpop.f32.mrf.mxu0
  %v1507 = vadd.f32 %v1458, %v1506
  %v1508 = vpop.f32.mrf.mxu0
  %v1509 = vadd.f32 %v1460, %v1508
  %1510 = vmatmul.bf16.gmra.mxu0 %v550
  %v1511 = vpop.f32.mrf.mxu0
  %v1512 = vadd.f32 %v1463, %v1511
  %v1513 = vpop.f32.mrf.mxu0
  %v1514 = vadd.f32 %v1465, %v1513
  %1515 = vmatmul.bf16.gmra.mxu0 %v559
  %v1516 = vpop.f32.mrf.mxu0
  %v1517 = vadd.f32 %v1468, %v1516
  %v1518 = vpop.f32.mrf.mxu0
  %v1519 = vadd.f32 %v1470, %v1518
  %1520 = vmatmul.bf16.gmra.mxu0 %v568
  %v1521 = vpop.f32.mrf.mxu0
  %v1522 = vadd.f32 %v1473, %v1521
  %v1523 = vpop.f32.mrf.mxu0
  %v1524 = vadd.f32 %v1475, %v1523
  %1525 = vmatmul.bf16.gmra.mxu0 %v577
  %v1526 = vpop.f32.mrf.mxu0
  %v1527 = vadd.f32 %v1478, %v1526
  %v1528 = vpop.f32.mrf.mxu0
  %v1529 = vadd.f32 %v1480, %v1528
  %1530 = vmatmul.bf16.gmra.mxu0 %v586
  %v1531 = vpop.f32.mrf.mxu0
  %v1532 = vadd.f32 %v1483, %v1531
  %v1533 = vpop.f32.mrf.mxu0
  %v1534 = vadd.f32 %v1485, %v1533
  %1535 = vmatmul.bf16.gmra.mxu0 %v595
  %v1536 = vpop.f32.mrf.mxu0
  %v1537 = vadd.f32 %v1488, %v1536
  %v1538 = vpop.f32.mrf.mxu0
  %v1539 = vadd.f32 %v1490, %v1538
  %1540 = vdwg.mxu0
  %1541 = vmatpush.bf16.msra.mxu0 %v1168
  %1542 = vmatpush.bf16.msra.mxu0 %v1166
  %1543 = vmatpush.bf16.msra.mxu0 %v1164
  %1544 = vmatpush.bf16.msra.mxu0 %v1162
  %1545 = vmatpush.bf16.msra.mxu0 %v1160
  %1546 = vmatpush.bf16.msra.mxu0 %v1158
  %1547 = vmatpush.bf16.msra.mxu0 %v1156
  %1548 = vmatpush.bf16.msra.mxu0 %v1154
  %1549 = vmatmul.bf16.gmra.mxu0 %v533
  %v1550 = vpop.f32.mrf.mxu0
  %v1551 = vadd.f32 %v1502, %v1550
  %v1552 = vpop.f32.mrf.mxu0
  %v1553 = vadd.f32 %v1504, %v1552
  %1554 = vmatmul.bf16.gmra.mxu0 %v542
  %v1555 = vpop.f32.mrf.mxu0
  %v1556 = vadd.f32 %v1507, %v1555
  %v1557 = vpop.f32.mrf.mxu0
  %v1558 = vadd.f32 %v1509, %v1557
  %1559 = vmatmul.bf16.gmra.mxu0 %v551
  %v1560 = vpop.f32.mrf.mxu0
  %v1561 = vadd.f32 %v1512, %v1560
  %v1562 = vpop.f32.mrf.mxu0
  %v1563 = vadd.f32 %v1514, %v1562
  %1564 = vmatmul.bf16.gmra.mxu0 %v560
  %v1565 = vpop.f32.mrf.mxu0
  %v1566 = vadd.f32 %v1517, %v1565
  %v1567 = vpop.f32.mrf.mxu0
  %v1568 = vadd.f32 %v1519, %v1567
  %1569 = vmatmul.bf16.gmra.mxu0 %v569
  %v1570 = vpop.f32.mrf.mxu0
  %v1571 = vadd.f32 %v1522, %v1570
  %v1572 = vpop.f32.mrf.mxu0
  %v1573 = vadd.f32 %v1524, %v1572
  %1574 = vmatmul.bf16.gmra.mxu0 %v578
  %v1575 = vpop.f32.mrf.mxu0
  %v1576 = vadd.f32 %v1527, %v1575
  %v1577 = vpop.f32.mrf.mxu0
  %v1578 = vadd.f32 %v1529, %v1577
  %1579 = vmatmul.bf16.gmra.mxu0 %v587
  %v1580 = vpop.f32.mrf.mxu0
  %v1581 = vadd.f32 %v1532, %v1580
  %v1582 = vpop.f32.mrf.mxu0
  %v1583 = vadd.f32 %v1534, %v1582
  %1584 = vmatmul.bf16.gmra.mxu0 %v596
  %v1585 = vpop.f32.mrf.mxu0
  %v1586 = vadd.f32 %v1537, %v1585
  %v1587 = vpop.f32.mrf.mxu0
  %v1588 = vadd.f32 %v1539, %v1587
  %1589 = vdwg.mxu0
  %1590 = vmatpush.bf16.msra.mxu0 %v1184
  %1591 = vmatpush.bf16.msra.mxu0 %v1182
  %1592 = vmatpush.bf16.msra.mxu0 %v1180
  %1593 = vmatpush.bf16.msra.mxu0 %v1178
  %1594 = vmatpush.bf16.msra.mxu0 %v1176
  %1595 = vmatpush.bf16.msra.mxu0 %v1174
  %1596 = vmatpush.bf16.msra.mxu0 %v1172
  %1597 = vmatpush.bf16.msra.mxu0 %v1170
  %1598 = vmatmul.bf16.gmra.mxu0 %v534
  %v1599 = vpop.f32.mrf.mxu0
  %v1600 = vadd.f32 %v1551, %v1599
  %v1601 = vpop.f32.mrf.mxu0
  %v1602 = vadd.f32 %v1553, %v1601
  %1603 = vmatmul.bf16.gmra.mxu0 %v543
  %v1604 = vpop.f32.mrf.mxu0
  %v1605 = vadd.f32 %v1556, %v1604
  %v1606 = vpop.f32.mrf.mxu0
  %v1607 = vadd.f32 %v1558, %v1606
  %1608 = vmatmul.bf16.gmra.mxu0 %v552
  %v1609 = vpop.f32.mrf.mxu0
  %v1610 = vadd.f32 %v1561, %v1609
  %v1611 = vpop.f32.mrf.mxu0
  %v1612 = vadd.f32 %v1563, %v1611
  %1613 = vmatmul.bf16.gmra.mxu0 %v561
  %v1614 = vpop.f32.mrf.mxu0
  %v1615 = vadd.f32 %v1566, %v1614
  %v1616 = vpop.f32.mrf.mxu0
  %v1617 = vadd.f32 %v1568, %v1616
  %1618 = vmatmul.bf16.gmra.mxu0 %v570
  %v1619 = vpop.f32.mrf.mxu0
  %v1620 = vadd.f32 %v1571, %v1619
  %v1621 = vpop.f32.mrf.mxu0
  %v1622 = vadd.f32 %v1573, %v1621
  %1623 = vmatmul.bf16.gmra.mxu0 %v579
  %v1624 = vpop.f32.mrf.mxu0
  %v1625 = vadd.f32 %v1576, %v1624
  %v1626 = vpop.f32.mrf.mxu0
  %v1627 = vadd.f32 %v1578, %v1626
  %1628 = vmatmul.bf16.gmra.mxu0 %v588
  %v1629 = vpop.f32.mrf.mxu0
  %v1630 = vadd.f32 %v1581, %v1629
  %v1631 = vpop.f32.mrf.mxu0
  %v1632 = vadd.f32 %v1583, %v1631
  %1633 = vmatmul.bf16.gmra.mxu0 %v597
  %v1634 = vpop.f32.mrf.mxu0
  %v1635 = vadd.f32 %v1586, %v1634
  %v1636 = vpop.f32.mrf.mxu0
  %v1637 = vadd.f32 %v1588, %v1636
  %1638 = vdwg.mxu0
  %1639 = vmatpush.bf16.msra.mxu0 %v1200
  %1640 = vmatpush.bf16.msra.mxu0 %v1198
  %1641 = vmatpush.bf16.msra.mxu0 %v1196
  %1642 = vmatpush.bf16.msra.mxu0 %v1194
  %1643 = vmatpush.bf16.msra.mxu0 %v1192
  %1644 = vmatpush.bf16.msra.mxu0 %v1190
  %1645 = vmatpush.bf16.msra.mxu0 %v1188
  %1646 = vmatpush.bf16.msra.mxu0 %v1186
  %1647 = vmatmul.bf16.gmra.mxu0 %v535
  %v1648 = vpop.f32.mrf.mxu0
  %v1649 = vadd.f32 %v1600, %v1648
  %v1650 = vpop.f32.mrf.mxu0
  %v1651 = vadd.f32 %v1602, %v1650
  %1652 = vmatmul.bf16.gmra.mxu0 %v544
  %v1653 = vpop.f32.mrf.mxu0
  %v1654 = vadd.f32 %v1605, %v1653
  %v1655 = vpop.f32.mrf.mxu0
  %v1656 = vadd.f32 %v1607, %v1655
  %1657 = vmatmul.bf16.gmra.mxu0 %v553
  %v1658 = vpop.f32.mrf.mxu0
  %v1659 = vadd.f32 %v1610, %v1658
  %v1660 = vpop.f32.mrf.mxu0
  %v1661 = vadd.f32 %v1612, %v1660
  %1662 = vmatmul.bf16.gmra.mxu0 %v562
  %v1663 = vpop.f32.mrf.mxu0
  %v1664 = vadd.f32 %v1615, %v1663
  %v1665 = vpop.f32.mrf.mxu0
  %v1666 = vadd.f32 %v1617, %v1665
  %1667 = vmatmul.bf16.gmra.mxu0 %v571
  %v1668 = vpop.f32.mrf.mxu0
  %v1669 = vadd.f32 %v1620, %v1668
  %v1670 = vpop.f32.mrf.mxu0
  %v1671 = vadd.f32 %v1622, %v1670
  %1672 = vmatmul.bf16.gmra.mxu0 %v580
  %v1673 = vpop.f32.mrf.mxu0
  %v1674 = vadd.f32 %v1625, %v1673
  %v1675 = vpop.f32.mrf.mxu0
  %v1676 = vadd.f32 %v1627, %v1675
  %1677 = vmatmul.bf16.gmra.mxu0 %v589
  %v1678 = vpop.f32.mrf.mxu0
  %v1679 = vadd.f32 %v1630, %v1678
  %v1680 = vpop.f32.mrf.mxu0
  %v1681 = vadd.f32 %v1632, %v1680
  %1682 = vmatmul.bf16.gmra.mxu0 %v598
  %v1683 = vpop.f32.mrf.mxu0
  %v1684 = vadd.f32 %v1635, %v1683
  %v1685 = vpop.f32.mrf.mxu0
  %v1686 = vadd.f32 %v1637, %v1685
  %1687 = vdwg.mxu0
  %1688 = vmatpush.bf16.msra.mxu0 %v1216
  %1689 = vmatpush.bf16.msra.mxu0 %v1214
  %1690 = vmatpush.bf16.msra.mxu0 %v1212
  %1691 = vmatpush.bf16.msra.mxu0 %v1210
  %1692 = vmatpush.bf16.msra.mxu0 %v1208
  %1693 = vmatpush.bf16.msra.mxu0 %v1206
  %1694 = vmatpush.bf16.msra.mxu0 %v1204
  %1695 = vmatpush.bf16.msra.mxu0 %v1202
  %1696 = vmatmul.bf16.gmra.mxu0 %v536
  %v1697 = vpop.f32.mrf.mxu0
  %v1698 = vadd.f32 %v1649, %v1697
  %v1699 = vpop.f32.mrf.mxu0
  %v1700 = vadd.f32 %v1651, %v1699
  %1701 = vmatmul.bf16.gmra.mxu0 %v545
  %v1702 = vpop.f32.mrf.mxu0
  %v1703 = vadd.f32 %v1654, %v1702
  %v1704 = vpop.f32.mrf.mxu0
  %v1705 = vadd.f32 %v1656, %v1704
  %1706 = vmatmul.bf16.gmra.mxu0 %v554
  %v1707 = vpop.f32.mrf.mxu0
  %v1708 = vadd.f32 %v1659, %v1707
  %v1709 = vpop.f32.mrf.mxu0
  %v1710 = vadd.f32 %v1661, %v1709
  %1711 = vmatmul.bf16.gmra.mxu0 %v563
  %v1712 = vpop.f32.mrf.mxu0
  %v1713 = vadd.f32 %v1664, %v1712
  %v1714 = vpop.f32.mrf.mxu0
  %v1715 = vadd.f32 %v1666, %v1714
  %1716 = vmatmul.bf16.gmra.mxu0 %v572
  %v1717 = vpop.f32.mrf.mxu0
  %v1718 = vadd.f32 %v1669, %v1717
  %v1719 = vpop.f32.mrf.mxu0
  %v1720 = vadd.f32 %v1671, %v1719
  %1721 = vmatmul.bf16.gmra.mxu0 %v581
  %v1722 = vpop.f32.mrf.mxu0
  %v1723 = vadd.f32 %v1674, %v1722
  %v1724 = vpop.f32.mrf.mxu0
  %v1725 = vadd.f32 %v1676, %v1724
  %1726 = vmatmul.bf16.gmra.mxu0 %v590
  %v1727 = vpop.f32.mrf.mxu0
  %v1728 = vadd.f32 %v1679, %v1727
  %v1729 = vpop.f32.mrf.mxu0
  %v1730 = vadd.f32 %v1681, %v1729
  %1731 = vmatmul.bf16.gmra.mxu0 %v599
  %v1732 = vpop.f32.mrf.mxu0
  %v1733 = vadd.f32 %v1684, %v1732
  %v1734 = vpop.f32.mrf.mxu0
  %v1735 = vadd.f32 %v1686, %v1734
  %1736 = vdwg.mxu0
  %1737 = vmatpush.bf16.msra.mxu0 %v1232
  %1738 = vmatpush.bf16.msra.mxu0 %v1230
  %1739 = vmatpush.bf16.msra.mxu0 %v1228
  %1740 = vmatpush.bf16.msra.mxu0 %v1226
  %1741 = vmatpush.bf16.msra.mxu0 %v1224
  %1742 = vmatpush.bf16.msra.mxu0 %v1222
  %1743 = vmatpush.bf16.msra.mxu0 %v1220
  %1744 = vmatpush.bf16.msra.mxu0 %v1218
  %1745 = vmatmul.bf16.gmra.mxu0 %v537
  %v1746 = vpop.f32.mrf.mxu0
  %v1747 = vadd.f32 %v1698, %v1746
  %v1748 = vpop.f32.mrf.mxu0
  %v1749 = vadd.f32 %v1700, %v1748
  %1750 = vmatmul.bf16.gmra.mxu0 %v546
  %v1751 = vpop.f32.mrf.mxu0
  %v1752 = vadd.f32 %v1703, %v1751
  %v1753 = vpop.f32.mrf.mxu0
  %v1754 = vadd.f32 %v1705, %v1753
  %1755 = vmatmul.bf16.gmra.mxu0 %v555
  %v1756 = vpop.f32.mrf.mxu0
  %v1757 = vadd.f32 %v1708, %v1756
  %v1758 = vpop.f32.mrf.mxu0
  %v1759 = vadd.f32 %v1710, %v1758
  %1760 = vmatmul.bf16.gmra.mxu0 %v564
  %v1761 = vpop.f32.mrf.mxu0
  %v1762 = vadd.f32 %v1713, %v1761
  %v1763 = vpop.f32.mrf.mxu0
  %v1764 = vadd.f32 %v1715, %v1763
  %1765 = vmatmul.bf16.gmra.mxu0 %v573
  %v1766 = vpop.f32.mrf.mxu0
  %v1767 = vadd.f32 %v1718, %v1766
  %v1768 = vpop.f32.mrf.mxu0
  %v1769 = vadd.f32 %v1720, %v1768
  %1770 = vmatmul.bf16.gmra.mxu0 %v582
  %v1771 = vpop.f32.mrf.mxu0
  %v1772 = vadd.f32 %v1723, %v1771
  %v1773 = vpop.f32.mrf.mxu0
  %v1774 = vadd.f32 %v1725, %v1773
  %1775 = vmatmul.bf16.gmra.mxu0 %v591
  %v1776 = vpop.f32.mrf.mxu0
  %v1777 = vadd.f32 %v1728, %v1776
  %v1778 = vpop.f32.mrf.mxu0
  %v1779 = vadd.f32 %v1730, %v1778
  %1780 = vmatmul.bf16.gmra.mxu0 %v600
  %v1781 = vpop.f32.mrf.mxu0
  %v1782 = vadd.f32 %v1733, %v1781
  %v1783 = vpop.f32.mrf.mxu0
  %v1784 = vadd.f32 %v1735, %v1783
  %1785 = vdwg.mxu0
  %1786 = vmatpush.bf16.msra.mxu0 %v1248
  %1787 = vmatpush.bf16.msra.mxu0 %v1246
  %1788 = vmatpush.bf16.msra.mxu0 %v1244
  %1789 = vmatpush.bf16.msra.mxu0 %v1242
  %1790 = vmatpush.bf16.msra.mxu0 %v1240
  %1791 = vmatpush.bf16.msra.mxu0 %v1238
  %1792 = vmatpush.bf16.msra.mxu0 %v1236
  %1793 = vmatpush.bf16.msra.mxu0 %v1234
  %1794 = vmatmul.bf16.gmra.mxu0 %v538
  %v1795 = vpop.f32.mrf.mxu0
  %v1796 = vadd.f32 %v1747, %v1795
  %v1797 = vpop.f32.mrf.mxu0
  %v1798 = vadd.f32 %v1749, %v1797
  %1799 = vmatmul.bf16.gmra.mxu0 %v547
  %v1800 = vpop.f32.mrf.mxu0
  %v1801 = vadd.f32 %v1752, %v1800
  %v1802 = vpop.f32.mrf.mxu0
  %v1803 = vadd.f32 %v1754, %v1802
  %1804 = vmatmul.bf16.gmra.mxu0 %v556
  %v1805 = vpop.f32.mrf.mxu0
  %v1806 = vadd.f32 %v1757, %v1805
  %v1807 = vpop.f32.mrf.mxu0
  %v1808 = vadd.f32 %v1759, %v1807
  %1809 = vmatmul.bf16.gmra.mxu0 %v565
  %v1810 = vpop.f32.mrf.mxu0
  %v1811 = vadd.f32 %v1762, %v1810
  %v1812 = vpop.f32.mrf.mxu0
  %v1813 = vadd.f32 %v1764, %v1812
  %1814 = vmatmul.bf16.gmra.mxu0 %v574
  %v1815 = vpop.f32.mrf.mxu0
  %v1816 = vadd.f32 %v1767, %v1815
  %v1817 = vpop.f32.mrf.mxu0
  %v1818 = vadd.f32 %v1769, %v1817
  %1819 = vmatmul.bf16.gmra.mxu0 %v583
  %v1820 = vpop.f32.mrf.mxu0
  %v1821 = vadd.f32 %v1772, %v1820
  %v1822 = vpop.f32.mrf.mxu0
  %v1823 = vadd.f32 %v1774, %v1822
  %1824 = vmatmul.bf16.gmra.mxu0 %v592
  %v1825 = vpop.f32.mrf.mxu0
  %v1826 = vadd.f32 %v1777, %v1825
  %v1827 = vpop.f32.mrf.mxu0
  %v1828 = vadd.f32 %v1779, %v1827
  %1829 = vmatmul.bf16.gmra.mxu0 %v601
  %v1830 = vpop.f32.mrf.mxu0
  %v1831 = vadd.f32 %v1782, %v1830
  %v1832 = vpop.f32.mrf.mxu0
  %v1833 = vadd.f32 %v1784, %v1832
  %1834 = vdwg.mxu0
  %1835 = vmatpush.bf16.msra.mxu0 %v1121
  %1836 = vmatpush.bf16.msra.mxu0 %v1119
  %1837 = vmatpush.bf16.msra.mxu0 %v1117
  %1838 = vmatpush.bf16.msra.mxu0 %v1115
  %1839 = vmatpush.bf16.msra.mxu0 %v1113
  %1840 = vmatpush.bf16.msra.mxu0 %v1111
  %1841 = vmatpush.bf16.msra.mxu0 %v1109
  %1842 = vmatpush.bf16.msra.mxu0 %v1107
  %1843 = vmatmul.bf16.gmra.mxu0 %v530
  %v1844 = vpop.f32.mrf.mxu0
  %v1845 = vadd.f32 0.0, %v1844
  %v1846 = vpop.f32.mrf.mxu0
  %v1847 = vadd.f32 0.0, %v1846
  %1848 = vmatmul.bf16.gmra.mxu0 %v539
  %v1849 = vpop.f32.mrf.mxu0
  %v1850 = vadd.f32 0.0, %v1849
  %v1851 = vpop.f32.mrf.mxu0
  %v1852 = vadd.f32 0.0, %v1851
  %1853 = vmatmul.bf16.gmra.mxu0 %v548
  %v1854 = vpop.f32.mrf.mxu0
  %v1855 = vadd.f32 0.0, %v1854
  %v1856 = vpop.f32.mrf.mxu0
  %v1857 = vadd.f32 0.0, %v1856
  %1858 = vmatmul.bf16.gmra.mxu0 %v557
  %v1859 = vpop.f32.mrf.mxu0
  %v1860 = vadd.f32 0.0, %v1859
  %v1861 = vpop.f32.mrf.mxu0
  %v1862 = vadd.f32 0.0, %v1861
  %1863 = vmatmul.bf16.gmra.mxu0 %v566
  %v1864 = vpop.f32.mrf.mxu0
  %v1865 = vadd.f32 0.0, %v1864
  %v1866 = vpop.f32.mrf.mxu0
  %v1867 = vadd.f32 0.0, %v1866
  %1868 = vmatmul.bf16.gmra.mxu0 %v575
  %v1869 = vpop.f32.mrf.mxu0
  %v1870 = vadd.f32 0.0, %v1869
  %v1871 = vpop.f32.mrf.mxu0
  %v1872 = vadd.f32 0.0, %v1871
  %1873 = vmatmul.bf16.gmra.mxu0 %v584
  %v1874 = vpop.f32.mrf.mxu0
  %v1875 = vadd.f32 0.0, %v1874
  %v1876 = vpop.f32.mrf.mxu0
  %v1877 = vadd.f32 0.0, %v1876
  %1878 = vmatmul.bf16.gmra.mxu0 %v593
  %v1879 = vpop.f32.mrf.mxu0
  %v1880 = vadd.f32 0.0, %v1879
  %v1881 = vpop.f32.mrf.mxu0
  %v1882 = vadd.f32 0.0, %v1881
  %1883 = vdwg.mxu0
  %1884 = vmatpush.bf16.msra.mxu0 %v1137
  %1885 = vmatpush.bf16.msra.mxu0 %v1135
  %1886 = vmatpush.bf16.msra.mxu0 %v1133
  %1887 = vmatpush.bf16.msra.mxu0 %v1131
  %1888 = vmatpush.bf16.msra.mxu0 %v1129
  %1889 = vmatpush.bf16.msra.mxu0 %v1127
  %1890 = vmatpush.bf16.msra.mxu0 %v1125
  %1891 = vmatpush.bf16.msra.mxu0 %v1123
  %1892 = vmatmul.bf16.gmra.mxu0 %v531
  %v1893 = vpop.f32.mrf.mxu0
  %v1894 = vadd.f32 %v1845, %v1893
  %v1895 = vpop.f32.mrf.mxu0
  %v1896 = vadd.f32 %v1847, %v1895
  %1897 = vmatmul.bf16.gmra.mxu0 %v540
  %v1898 = vpop.f32.mrf.mxu0
  %v1899 = vadd.f32 %v1850, %v1898
  %v1900 = vpop.f32.mrf.mxu0
  %v1901 = vadd.f32 %v1852, %v1900
  %1902 = vmatmul.bf16.gmra.mxu0 %v549
  %v1903 = vpop.f32.mrf.mxu0
  %v1904 = vadd.f32 %v1855, %v1903
  %v1905 = vpop.f32.mrf.mxu0
  %v1906 = vadd.f32 %v1857, %v1905
  %1907 = vmatmul.bf16.gmra.mxu0 %v558
  %v1908 = vpop.f32.mrf.mxu0
  %v1909 = vadd.f32 %v1860, %v1908
  %v1910 = vpop.f32.mrf.mxu0
  %v1911 = vadd.f32 %v1862, %v1910
  %1912 = vmatmul.bf16.gmra.mxu0 %v567
  %v1913 = vpop.f32.mrf.mxu0
  %v1914 = vadd.f32 %v1865, %v1913
  %v1915 = vpop.f32.mrf.mxu0
  %v1916 = vadd.f32 %v1867, %v1915
  %1917 = vmatmul.bf16.gmra.mxu0 %v576
  %v1918 = vpop.f32.mrf.mxu0
  %v1919 = vadd.f32 %v1870, %v1918
  %v1920 = vpop.f32.mrf.mxu0
  %v1921 = vadd.f32 %v1872, %v1920
  %1922 = vmatmul.bf16.gmra.mxu0 %v585
  %v1923 = vpop.f32.mrf.mxu0
  %v1924 = vadd.f32 %v1875, %v1923
  %v1925 = vpop.f32.mrf.mxu0
  %v1926 = vadd.f32 %v1877, %v1925
  %1927 = vmatmul.bf16.gmra.mxu0 %v594
  %v1928 = vpop.f32.mrf.mxu0
  %v1929 = vadd.f32 %v1880, %v1928
  %v1930 = vpop.f32.mrf.mxu0
  %v1931 = vadd.f32 %v1882, %v1930
  %1932 = vdwg.mxu0
  %1933 = vmatpush.bf16.msra.mxu0 %v1153
  %1934 = vmatpush.bf16.msra.mxu0 %v1151
  %1935 = vmatpush.bf16.msra.mxu0 %v1149
  %1936 = vmatpush.bf16.msra.mxu0 %v1147
  %1937 = vmatpush.bf16.msra.mxu0 %v1145
  %1938 = vmatpush.bf16.msra.mxu0 %v1143
  %1939 = vmatpush.bf16.msra.mxu0 %v1141
  %1940 = vmatpush.bf16.msra.mxu0 %v1139
  %1941 = vmatmul.bf16.gmra.mxu0 %v532
  %v1942 = vpop.f32.mrf.mxu0
  %v1943 = vadd.f32 %v1894, %v1942
  %v1944 = vpop.f32.mrf.mxu0
  %v1945 = vadd.f32 %v1896, %v1944
  %1946 = vmatmul.bf16.gmra.mxu0 %v541
  %v1947 = vpop.f32.mrf.mxu0
  %v1948 = vadd.f32 %v1899, %v1947
  %v1949 = vpop.f32.mrf.mxu0
  %v1950 = vadd.f32 %v1901, %v1949
  %1951 = vmatmul.bf16.gmra.mxu0 %v550
  %v1952 = vpop.f32.mrf.mxu0
  %v1953 = vadd.f32 %v1904, %v1952
  %v1954 = vpop.f32.mrf.mxu0
  %v1955 = vadd.f32 %v1906, %v1954
  %1956 = vmatmul.bf16.gmra.mxu0 %v559
  %v1957 = vpop.f32.mrf.mxu0
  %v1958 = vadd.f32 %v1909, %v1957
  %v1959 = vpop.f32.mrf.mxu0
  %v1960 = vadd.f32 %v1911, %v1959
  %1961 = vmatmul.bf16.gmra.mxu0 %v568
  %v1962 = vpop.f32.mrf.mxu0
  %v1963 = vadd.f32 %v1914, %v1962
  %v1964 = vpop.f32.mrf.mxu0
  %v1965 = vadd.f32 %v1916, %v1964
  %1966 = vmatmul.bf16.gmra.mxu0 %v577
  %v1967 = vpop.f32.mrf.mxu0
  %v1968 = vadd.f32 %v1919, %v1967
  %v1969 = vpop.f32.mrf.mxu0
  %v1970 = vadd.f32 %v1921, %v1969
  %1971 = vmatmul.bf16.gmra.mxu0 %v586
  %v1972 = vpop.f32.mrf.mxu0
  %v1973 = vadd.f32 %v1924, %v1972
  %v1974 = vpop.f32.mrf.mxu0
  %v1975 = vadd.f32 %v1926, %v1974
  %1976 = vmatmul.bf16.gmra.mxu0 %v595
  %v1977 = vpop.f32.mrf.mxu0
  %v1978 = vadd.f32 %v1929, %v1977
  %v1979 = vpop.f32.mrf.mxu0
  %v1980 = vadd.f32 %v1931, %v1979
  %1981 = vdwg.mxu0
  %1982 = vmatpush.bf16.msra.mxu0 %v1169
  %1983 = vmatpush.bf16.msra.mxu0 %v1167
  %1984 = vmatpush.bf16.msra.mxu0 %v1165
  %1985 = vmatpush.bf16.msra.mxu0 %v1163
  %1986 = vmatpush.bf16.msra.mxu0 %v1161
  %1987 = vmatpush.bf16.msra.mxu0 %v1159
  %1988 = vmatpush.bf16.msra.mxu0 %v1157
  %1989 = vmatpush.bf16.msra.mxu0 %v1155
  %1990 = vmatmul.bf16.gmra.mxu0 %v533
  %v1991 = vpop.f32.mrf.mxu0
  %v1992 = vadd.f32 %v1943, %v1991
  %v1993 = vpop.f32.mrf.mxu0
  %v1994 = vadd.f32 %v1945, %v1993
  %1995 = vmatmul.bf16.gmra.mxu0 %v542
  %v1996 = vpop.f32.mrf.mxu0
  %v1997 = vadd.f32 %v1948, %v1996
  %v1998 = vpop.f32.mrf.mxu0
  %v1999 = vadd.f32 %v1950, %v1998
  %2000 = vmatmul.bf16.gmra.mxu0 %v551
  %v2001 = vpop.f32.mrf.mxu0
  %v2002 = vadd.f32 %v1953, %v2001
  %v2003 = vpop.f32.mrf.mxu0
  %v2004 = vadd.f32 %v1955, %v2003
  %2005 = vmatmul.bf16.gmra.mxu0 %v560
  %v2006 = vpop.f32.mrf.mxu0
  %v2007 = vadd.f32 %v1958, %v2006
  %v2008 = vpop.f32.mrf.mxu0
  %v2009 = vadd.f32 %v1960, %v2008
  %2010 = vmatmul.bf16.gmra.mxu0 %v569
  %v2011 = vpop.f32.mrf.mxu0
  %v2012 = vadd.f32 %v1963, %v2011
  %v2013 = vpop.f32.mrf.mxu0
  %v2014 = vadd.f32 %v1965, %v2013
  %2015 = vmatmul.bf16.gmra.mxu0 %v578
  %v2016 = vpop.f32.mrf.mxu0
  %v2017 = vadd.f32 %v1968, %v2016
  %v2018 = vpop.f32.mrf.mxu0
  %v2019 = vadd.f32 %v1970, %v2018
  %2020 = vmatmul.bf16.gmra.mxu0 %v587
  %v2021 = vpop.f32.mrf.mxu0
  %v2022 = vadd.f32 %v1973, %v2021
  %v2023 = vpop.f32.mrf.mxu0
  %v2024 = vadd.f32 %v1975, %v2023
  %2025 = vmatmul.bf16.gmra.mxu0 %v596
  %v2026 = vpop.f32.mrf.mxu0
  %v2027 = vadd.f32 %v1978, %v2026
  %v2028 = vpop.f32.mrf.mxu0
  %v2029 = vadd.f32 %v1980, %v2028
  %2030 = vdwg.mxu0
  %2031 = vmatpush.bf16.msra.mxu0 %v1185
  %2032 = vmatpush.bf16.msra.mxu0 %v1183
  %2033 = vmatpush.bf16.msra.mxu0 %v1181
  %2034 = vmatpush.bf16.msra.mxu0 %v1179
  %2035 = vmatpush.bf16.msra.mxu0 %v1177
  %2036 = vmatpush.bf16.msra.mxu0 %v1175
  %2037 = vmatpush.bf16.msra.mxu0 %v1173
  %2038 = vmatpush.bf16.msra.mxu0 %v1171
  %2039 = vmatmul.bf16.gmra.mxu0 %v534
  %v2040 = vpop.f32.mrf.mxu0
  %v2041 = vadd.f32 %v1992, %v2040
  %v2042 = vpop.f32.mrf.mxu0
  %v2043 = vadd.f32 %v1994, %v2042
  %2044 = vmatmul.bf16.gmra.mxu0 %v543
  %v2045 = vpop.f32.mrf.mxu0
  %v2046 = vadd.f32 %v1997, %v2045
  %v2047 = vpop.f32.mrf.mxu0
  %v2048 = vadd.f32 %v1999, %v2047
  %2049 = vmatmul.bf16.gmra.mxu0 %v552
  %v2050 = vpop.f32.mrf.mxu0
  %v2051 = vadd.f32 %v2002, %v2050
  %v2052 = vpop.f32.mrf.mxu0
  %v2053 = vadd.f32 %v2004, %v2052
  %2054 = vmatmul.bf16.gmra.mxu0 %v561
  %v2055 = vpop.f32.mrf.mxu0
  %v2056 = vadd.f32 %v2007, %v2055
  %v2057 = vpop.f32.mrf.mxu0
  %v2058 = vadd.f32 %v2009, %v2057
  %2059 = vmatmul.bf16.gmra.mxu0 %v570
  %v2060 = vpop.f32.mrf.mxu0
  %v2061 = vadd.f32 %v2012, %v2060
  %v2062 = vpop.f32.mrf.mxu0
  %v2063 = vadd.f32 %v2014, %v2062
  %2064 = vmatmul.bf16.gmra.mxu0 %v579
  %v2065 = vpop.f32.mrf.mxu0
  %v2066 = vadd.f32 %v2017, %v2065
  %v2067 = vpop.f32.mrf.mxu0
  %v2068 = vadd.f32 %v2019, %v2067
  %2069 = vmatmul.bf16.gmra.mxu0 %v588
  %v2070 = vpop.f32.mrf.mxu0
  %v2071 = vadd.f32 %v2022, %v2070
  %v2072 = vpop.f32.mrf.mxu0
  %v2073 = vadd.f32 %v2024, %v2072
  %2074 = vmatmul.bf16.gmra.mxu0 %v597
  %v2075 = vpop.f32.mrf.mxu0
  %v2076 = vadd.f32 %v2027, %v2075
  %v2077 = vpop.f32.mrf.mxu0
  %v2078 = vadd.f32 %v2029, %v2077
  %2079 = vdwg.mxu0
  %2080 = vmatpush.bf16.msra.mxu0 %v1201
  %2081 = vmatpush.bf16.msra.mxu0 %v1199
  %2082 = vmatpush.bf16.msra.mxu0 %v1197
  %2083 = vmatpush.bf16.msra.mxu0 %v1195
  %2084 = vmatpush.bf16.msra.mxu0 %v1193
  %2085 = vmatpush.bf16.msra.mxu0 %v1191
  %2086 = vmatpush.bf16.msra.mxu0 %v1189
  %2087 = vmatpush.bf16.msra.mxu0 %v1187
  %2088 = vmatmul.bf16.gmra.mxu0 %v535
  %v2089 = vpop.f32.mrf.mxu0
  %v2090 = vadd.f32 %v2041, %v2089
  %v2091 = vpop.f32.mrf.mxu0
  %v2092 = vadd.f32 %v2043, %v2091
  %2093 = vmatmul.bf16.gmra.mxu0 %v544
  %v2094 = vpop.f32.mrf.mxu0
  %v2095 = vadd.f32 %v2046, %v2094
  %v2096 = vpop.f32.mrf.mxu0
  %v2097 = vadd.f32 %v2048, %v2096
  %2098 = vmatmul.bf16.gmra.mxu0 %v553
  %v2099 = vpop.f32.mrf.mxu0
  %v2100 = vadd.f32 %v2051, %v2099
  %v2101 = vpop.f32.mrf.mxu0
  %v2102 = vadd.f32 %v2053, %v2101
  %2103 = vmatmul.bf16.gmra.mxu0 %v562
  %v2104 = vpop.f32.mrf.mxu0
  %v2105 = vadd.f32 %v2056, %v2104
  %v2106 = vpop.f32.mrf.mxu0
  %v2107 = vadd.f32 %v2058, %v2106
  %2108 = vmatmul.bf16.gmra.mxu0 %v571
  %v2109 = vpop.f32.mrf.mxu0
  %v2110 = vadd.f32 %v2061, %v2109
  %v2111 = vpop.f32.mrf.mxu0
  %v2112 = vadd.f32 %v2063, %v2111
  %2113 = vmatmul.bf16.gmra.mxu0 %v580
  %v2114 = vpop.f32.mrf.mxu0
  %v2115 = vadd.f32 %v2066, %v2114
  %v2116 = vpop.f32.mrf.mxu0
  %v2117 = vadd.f32 %v2068, %v2116
  %2118 = vmatmul.bf16.gmra.mxu0 %v589
  %v2119 = vpop.f32.mrf.mxu0
  %v2120 = vadd.f32 %v2071, %v2119
  %v2121 = vpop.f32.mrf.mxu0
  %v2122 = vadd.f32 %v2073, %v2121
  %2123 = vmatmul.bf16.gmra.mxu0 %v598
  %v2124 = vpop.f32.mrf.mxu0
  %v2125 = vadd.f32 %v2076, %v2124
  %v2126 = vpop.f32.mrf.mxu0
  %v2127 = vadd.f32 %v2078, %v2126
  %2128 = vdwg.mxu0
  %2129 = vmatpush.bf16.msra.mxu0 %v1217
  %2130 = vmatpush.bf16.msra.mxu0 %v1215
  %2131 = vmatpush.bf16.msra.mxu0 %v1213
  %2132 = vmatpush.bf16.msra.mxu0 %v1211
  %2133 = vmatpush.bf16.msra.mxu0 %v1209
  %2134 = vmatpush.bf16.msra.mxu0 %v1207
  %2135 = vmatpush.bf16.msra.mxu0 %v1205
  %2136 = vmatpush.bf16.msra.mxu0 %v1203
  %2137 = vmatmul.bf16.gmra.mxu0 %v536
  %v2138 = vpop.f32.mrf.mxu0
  %v2139 = vadd.f32 %v2090, %v2138
  %v2140 = vpop.f32.mrf.mxu0
  %v2141 = vadd.f32 %v2092, %v2140
  %2142 = vmatmul.bf16.gmra.mxu0 %v545
  %v2143 = vpop.f32.mrf.mxu0
  %v2144 = vadd.f32 %v2095, %v2143
  %v2145 = vpop.f32.mrf.mxu0
  %v2146 = vadd.f32 %v2097, %v2145
  %2147 = vmatmul.bf16.gmra.mxu0 %v554
  %v2148 = vpop.f32.mrf.mxu0
  %v2149 = vadd.f32 %v2100, %v2148
  %v2150 = vpop.f32.mrf.mxu0
  %v2151 = vadd.f32 %v2102, %v2150
  %2152 = vmatmul.bf16.gmra.mxu0 %v563
  %v2153 = vpop.f32.mrf.mxu0
  %v2154 = vadd.f32 %v2105, %v2153
  %v2155 = vpop.f32.mrf.mxu0
  %v2156 = vadd.f32 %v2107, %v2155
  %2157 = vmatmul.bf16.gmra.mxu0 %v572
  %v2158 = vpop.f32.mrf.mxu0
  %v2159 = vadd.f32 %v2110, %v2158
  %v2160 = vpop.f32.mrf.mxu0
  %v2161 = vadd.f32 %v2112, %v2160
  %2162 = vmatmul.bf16.gmra.mxu0 %v581
  %v2163 = vpop.f32.mrf.mxu0
  %v2164 = vadd.f32 %v2115, %v2163
  %v2165 = vpop.f32.mrf.mxu0
  %v2166 = vadd.f32 %v2117, %v2165
  %2167 = vmatmul.bf16.gmra.mxu0 %v590
  %v2168 = vpop.f32.mrf.mxu0
  %v2169 = vadd.f32 %v2120, %v2168
  %v2170 = vpop.f32.mrf.mxu0
  %v2171 = vadd.f32 %v2122, %v2170
  %2172 = vmatmul.bf16.gmra.mxu0 %v599
  %v2173 = vpop.f32.mrf.mxu0
  %v2174 = vadd.f32 %v2125, %v2173
  %v2175 = vpop.f32.mrf.mxu0
  %v2176 = vadd.f32 %v2127, %v2175
  %2177 = vdwg.mxu0
  %2178 = vmatpush.bf16.msra.mxu0 %v1233
  %2179 = vmatpush.bf16.msra.mxu0 %v1231
  %2180 = vmatpush.bf16.msra.mxu0 %v1229
  %2181 = vmatpush.bf16.msra.mxu0 %v1227
  %2182 = vmatpush.bf16.msra.mxu0 %v1225
  %2183 = vmatpush.bf16.msra.mxu0 %v1223
  %2184 = vmatpush.bf16.msra.mxu0 %v1221
  %2185 = vmatpush.bf16.msra.mxu0 %v1219
  %2186 = vmatmul.bf16.gmra.mxu0 %v537
  %v2187 = vpop.f32.mrf.mxu0
  %v2188 = vadd.f32 %v2139, %v2187
  %v2189 = vpop.f32.mrf.mxu0
  %v2190 = vadd.f32 %v2141, %v2189
  %2191 = vmatmul.bf16.gmra.mxu0 %v546
  %v2192 = vpop.f32.mrf.mxu0
  %v2193 = vadd.f32 %v2144, %v2192
  %v2194 = vpop.f32.mrf.mxu0
  %v2195 = vadd.f32 %v2146, %v2194
  %2196 = vmatmul.bf16.gmra.mxu0 %v555
  %v2197 = vpop.f32.mrf.mxu0
  %v2198 = vadd.f32 %v2149, %v2197
  %v2199 = vpop.f32.mrf.mxu0
  %v2200 = vadd.f32 %v2151, %v2199
  %2201 = vmatmul.bf16.gmra.mxu0 %v564
  %v2202 = vpop.f32.mrf.mxu0
  %v2203 = vadd.f32 %v2154, %v2202
  %v2204 = vpop.f32.mrf.mxu0
  %v2205 = vadd.f32 %v2156, %v2204
  %2206 = vmatmul.bf16.gmra.mxu0 %v573
  %v2207 = vpop.f32.mrf.mxu0
  %v2208 = vadd.f32 %v2159, %v2207
  %v2209 = vpop.f32.mrf.mxu0
  %v2210 = vadd.f32 %v2161, %v2209
  %2211 = vmatmul.bf16.gmra.mxu0 %v582
  %v2212 = vpop.f32.mrf.mxu0
  %v2213 = vadd.f32 %v2164, %v2212
  %v2214 = vpop.f32.mrf.mxu0
  %v2215 = vadd.f32 %v2166, %v2214
  %2216 = vmatmul.bf16.gmra.mxu0 %v591
  %v2217 = vpop.f32.mrf.mxu0
  %v2218 = vadd.f32 %v2169, %v2217
  %v2219 = vpop.f32.mrf.mxu0
  %v2220 = vadd.f32 %v2171, %v2219
  %2221 = vmatmul.bf16.gmra.mxu0 %v600
  %v2222 = vpop.f32.mrf.mxu0
  %v2223 = vadd.f32 %v2174, %v2222
  %v2224 = vpop.f32.mrf.mxu0
  %v2225 = vadd.f32 %v2176, %v2224
  %2226 = vdwg.mxu0
  %2227 = vmatpush.bf16.msra.mxu0 %v1249
  %2228 = vmatpush.bf16.msra.mxu0 %v1247
  %2229 = vmatpush.bf16.msra.mxu0 %v1245
  %2230 = vmatpush.bf16.msra.mxu0 %v1243
  %2231 = vmatpush.bf16.msra.mxu0 %v1241
  %2232 = vmatpush.bf16.msra.mxu0 %v1239
  %2233 = vmatpush.bf16.msra.mxu0 %v1237
  %2234 = vmatpush.bf16.msra.mxu0 %v1235
  %2235 = vmatmul.bf16.gmra.mxu0 %v538
  %v2236 = vpop.f32.mrf.mxu0
  %v2237 = vadd.f32 %v2188, %v2236
  %v2238 = vpop.f32.mrf.mxu0
  %v2239 = vadd.f32 %v2190, %v2238
  %2240 = vmatmul.bf16.gmra.mxu0 %v547
  %v2241 = vpop.f32.mrf.mxu0
  %v2242 = vadd.f32 %v2193, %v2241
  %v2243 = vpop.f32.mrf.mxu0
  %v2244 = vadd.f32 %v2195, %v2243
  %2245 = vmatmul.bf16.gmra.mxu0 %v556
  %v2246 = vpop.f32.mrf.mxu0
  %v2247 = vadd.f32 %v2198, %v2246
  %v2248 = vpop.f32.mrf.mxu0
  %v2249 = vadd.f32 %v2200, %v2248
  %2250 = vmatmul.bf16.gmra.mxu0 %v565
  %v2251 = vpop.f32.mrf.mxu0
  %v2252 = vadd.f32 %v2203, %v2251
  %v2253 = vpop.f32.mrf.mxu0
  %v2254 = vadd.f32 %v2205, %v2253
  %2255 = vmatmul.bf16.gmra.mxu0 %v574
  %v2256 = vpop.f32.mrf.mxu0
  %v2257 = vadd.f32 %v2208, %v2256
  %v2258 = vpop.f32.mrf.mxu0
  %v2259 = vadd.f32 %v2210, %v2258
  %2260 = vmatmul.bf16.gmra.mxu0 %v583
  %v2261 = vpop.f32.mrf.mxu0
  %v2262 = vadd.f32 %v2213, %v2261
  %v2263 = vpop.f32.mrf.mxu0
  %v2264 = vadd.f32 %v2215, %v2263
  %2265 = vmatmul.bf16.gmra.mxu0 %v592
  %v2266 = vpop.f32.mrf.mxu0
  %v2267 = vadd.f32 %v2218, %v2266
  %v2268 = vpop.f32.mrf.mxu0
  %v2269 = vadd.f32 %v2220, %v2268
  %2270 = vmatmul.bf16.gmra.mxu0 %v601
  %v2271 = vpop.f32.mrf.mxu0
  %v2272 = vadd.f32 %v2223, %v2271
  %v2273 = vpop.f32.mrf.mxu0
  %v2274 = vadd.f32 %v2225, %v2273
  %2275 = vdwg.mxu0
  %v2276 = vadd.f32 %v50, %v1796
  %v2277 = vadd.f32 %v51, %v2237
  %v2278 = vadd.f32 %v52, %v1798
  %v2279 = vadd.f32 %v53, %v2239
  %v2280 = vadd.f32 %v54, %v1801
  %v2281 = vadd.f32 %v55, %v2242
  %v2282 = vadd.f32 %v56, %v1803
  %v2283 = vadd.f32 %v57, %v2244
  %v2284 = vadd.f32 %v58, %v1806
  %v2285 = vadd.f32 %v59, %v2247
  %v2286 = vadd.f32 %v60, %v1808
  %v2287 = vadd.f32 %v61, %v2249
  %v2288 = vadd.f32 %v62, %v1811
  %v2289 = vadd.f32 %v63, %v2252
  %v2290 = vadd.f32 %v64, %v1813
  %v2291 = vadd.f32 %v65, %v2254
  %v2292 = vadd.f32 %v66, %v1816
  %v2293 = vadd.f32 %v67, %v2257
  %v2294 = vadd.f32 %v68, %v1818
  %v2295 = vadd.f32 %v69, %v2259
  %v2296 = vadd.f32 %v70, %v1821
  %v2297 = vadd.f32 %v71, %v2262
  %v2298 = vadd.f32 %v72, %v1823
  %v2299 = vadd.f32 %v73, %v2264
  %v2300 = vadd.f32 %v74, %v1826
  %v2301 = vadd.f32 %v75, %v2267
  %v2302 = vadd.f32 %v76, %v1828
  %v2303 = vadd.f32 %v77, %v2269
  %v2304 = vadd.f32 %v78, %v1831
  %v2305 = vadd.f32 %v79, %v2272
  %v2306 = vadd.f32 %v80, %v1833
  %v2307 = vadd.f32 %v81, %v2274
  %2308 = vst [vmem:[#allocation2] sm:$0xff] %v2276
  %2309 = vst [vmem:[#allocation2 + $0x8] sm:$0xff] %v2277
  %2310 = vst [vmem:[#allocation2 + $0x10] sm:$0xff] %v2278
  %2311 = vst [vmem:[#allocation2 + $0x18] sm:$0xff] %v2279
  %2312 = vst [vmem:[#allocation2 + $0x20] sm:$0xff] %v2280
  %2313 = vst [vmem:[#allocation2 + $0x28] sm:$0xff] %v2281
  %2314 = vst [vmem:[#allocation2 + $0x30] sm:$0xff] %v2282
  %2315 = vst [vmem:[#allocation2 + $0x38] sm:$0xff] %v2283
  %2316 = vst [vmem:[#allocation2 + $0x40] sm:$0xff] %v2284
  %2317 = vst [vmem:[#allocation2 + $0x48] sm:$0xff] %v2285
  %2318 = vst [vmem:[#allocation2 + $0x50] sm:$0xff] %v2286
  %2319 = vst [vmem:[#allocation2 + $0x58] sm:$0xff] %v2287
  %2320 = vst [vmem:[#allocation2 + $0x60] sm:$0xff] %v2288
  %2321 = vst [vmem:[#allocation2 + $0x68] sm:$0xff] %v2289
  %2322 = vst [vmem:[#allocation2 + $0x70] sm:$0xff] %v2290
  %2323 = vst [vmem:[#allocation2 + $0x78] sm:$0xff] %v2291
  %2324 = vst [vmem:[#allocation2 + $0x80] sm:$0xff] %v2292
  %2325 = vst [vmem:[#allocation2 + $0x88] sm:$0xff] %v2293
  %2326 = vst [vmem:[#allocation2 + $0x90] sm:$0xff] %v2294
  %2327 = vst [vmem:[#allocation2 + $0x98] sm:$0xff] %v2295
  %2328 = vst [vmem:[#allocation2 + $0xa0] sm:$0xff] %v2296
  %2329 = vst [vmem:[#allocation2 + $0xa8] sm:$0xff] %v2297
  %2330 = vst [vmem:[#allocation2 + $0xb0] sm:$0xff] %v2298
  %2331 = vst [vmem:[#allocation2 + $0xb8] sm:$0xff] %v2299
  %2332 = vst [vmem:[#allocation2 + $0xc0] sm:$0xff] %v2300
  %2333 = vst [vmem:[#allocation2 + $0xc8] sm:$0xff] %v2301
  %2334 = vst [vmem:[#allocation2 + $0xd0] sm:$0xff] %v2302
  %2335 = vst [vmem:[#allocation2 + $0xd8] sm:$0xff] %v2303
  %2336 = vst [vmem:[#allocation2 + $0xe0] sm:$0xff] %v2304
  %2337 = vst [vmem:[#allocation2 + $0xe8] sm:$0xff] %v2305
  %2338 = vst [vmem:[#allocation2 + $0xf0] sm:$0xff] %v2306
  %2339 = vst [vmem:[#allocation2 + $0xf8] sm:$0xff] %v2307
  // Predicated region
  $region18: #{asff_forward.5} parent=0 // pred_check
    %p2340 = pneg %p14
  $region19: #{asff_forward.5} parent=0 // pred_check_branch
    %2342 = sbr.rel (%p2340) target = $region21
  $region20: #{asff_forward.5} parent=0 // pred_region
    %v2343 = vld [vmem:[#allocation2] sm:$0xff]
    %v2344 = vld [vmem:[#allocation2 + $0x8] sm:$0xff]
    %v2345 = vld [vmem:[#allocation2 + $0x10] sm:$0xff]
    %v2346 = vld [vmem:[#allocation2 + $0x18] sm:$0xff]
    %v2347 = vld [vmem:[#allocation2 + $0x20] sm:$0xff]
    %v2348 = vld [vmem:[#allocation2 + $0x28] sm:$0xff]
    %v2349 = vld [vmem:[#allocation2 + $0x30] sm:$0xff]
    %v2350 = vld [vmem:[#allocation2 + $0x38] sm:$0xff]
    %v2351 = vld [vmem:[#allocation2 + $0x40] sm:$0xff]
    %v2352 = vld [vmem:[#allocation2 + $0x48] sm:$0xff]
    %v2353 = vld [vmem:[#allocation2 + $0x50] sm:$0xff]
    %v2354 = vld [vmem:[#allocation2 + $0x58] sm:$0xff]
    %v2355 = vld [vmem:[#allocation2 + $0x60] sm:$0xff]
    %v2356 = vld [vmem:[#allocation2 + $0x68] sm:$0xff]
    %v2357 = vld [vmem:[#allocation2 + $0x70] sm:$0xff]
    %v2358 = vld [vmem:[#allocation2 + $0x78] sm:$0xff]
    %v2359 = vld [vmem:[#allocation2 + $0x80] sm:$0xff]
    %v2360 = vld [vmem:[#allocation2 + $0x88] sm:$0xff]
    %v2361 = vld [vmem:[#allocation2 + $0x90] sm:$0xff]
    %v2362 = vld [vmem:[#allocation2 + $0x98] sm:$0xff]
    %v2363 = vld [vmem:[#allocation2 + $0xa0] sm:$0xff]
    %v2364 = vld [vmem:[#allocation2 + $0xa8] sm:$0xff]
    %v2365 = vld [vmem:[#allocation2 + $0xb0] sm:$0xff]
    %v2366 = vld [vmem:[#allocation2 + $0xb8] sm:$0xff]
    %v2367 = vld [vmem:[#allocation2 + $0xc0] sm:$0xff]
    %v2368 = vld [vmem:[#allocation2 + $0xc8] sm:$0xff]
    %v2369 = vld [vmem:[#allocation2 + $0xd0] sm:$0xff]
    %v2370 = vld [vmem:[#allocation2 + $0xd8] sm:$0xff]
    %v2371 = vld [vmem:[#allocation2 + $0xe0] sm:$0xff]
    %v2372 = vld [vmem:[#allocation2 + $0xe8] sm:$0xff]
    %v2373 = vld [vmem:[#allocation2 + $0xf0] sm:$0xff]
    %v2374 = vld [vmem:[#allocation2 + $0xf8] sm:$0xff]
    %v2375 = vld [vmem:[%s2] ss:$2 sm:$0x3]
    %v2377 = vperm.slane %v2375, 0
    %v2378 = vperm.slane %v2375, 1
    %v2381 = vmul.f32 %v2343, %v2377
    %v2382 = vmul.f32 %v2344, %v2378
    %v2383 = vmul.f32 %v2345, %v2377
    %v2384 = vmul.f32 %v2346, %v2378
    %v2385 = vmul.f32 %v2347, %v2377
    %v2386 = vmul.f32 %v2348, %v2378
    %v2387 = vmul.f32 %v2349, %v2377
    %v2388 = vmul.f32 %v2350, %v2378
    %v2389 = vmul.f32 %v2351, %v2377
    %v2390 = vmul.f32 %v2352, %v2378
    %v2391 = vmul.f32 %v2353, %v2377
    %v2392 = vmul.f32 %v2354, %v2378
    %v2393 = vmul.f32 %v2355, %v2377
    %v2394 = vmul.f32 %v2356, %v2378
    %v2395 = vmul.f32 %v2357, %v2377
    %v2396 = vmul.f32 %v2358, %v2378
    %v2397 = vmul.f32 %v2359, %v2377
    %v2398 = vmul.f32 %v2360, %v2378
    %v2399 = vmul.f32 %v2361, %v2377
    %v2400 = vmul.f32 %v2362, %v2378
    %v2401 = vmul.f32 %v2363, %v2377
    %v2402 = vmul.f32 %v2364, %v2378
    %v2403 = vmul.f32 %v2365, %v2377
    %v2404 = vmul.f32 %v2366, %v2378
    %v2405 = vmul.f32 %v2367, %v2377
    %v2406 = vmul.f32 %v2368, %v2378
    %v2407 = vmul.f32 %v2369, %v2377
    %v2408 = vmul.f32 %v2370, %v2378
    %v2409 = vmul.f32 %v2371, %v2377
    %v2410 = vmul.f32 %v2372, %v2378
    %v2411 = vmul.f32 %v2373, %v2377
    %v2412 = vmul.f32 %v2374, %v2378
    %s2413 = scalar_lea.vmem %s2, 1
    %v2414 = vld [vmem:[%s2413] ss:$2 sm:$0x3]
    %v2416 = vperm.slane %v2414, 0
    %v2417 = vperm.slane %v2414, 1
    %v2420 = vadd.f32 %v2381, %v2416
    %v2421 = vadd.f32 %v2382, %v2417
    %v2422 = vadd.f32 %v2383, %v2416
    %v2423 = vadd.f32 %v2384, %v2417
    %v2424 = vadd.f32 %v2385, %v2416
    %v2425 = vadd.f32 %v2386, %v2417
    %v2426 = vadd.f32 %v2387, %v2416
    %v2427 = vadd.f32 %v2388, %v2417
    %v2428 = vadd.f32 %v2389, %v2416
    %v2429 = vadd.f32 %v2390, %v2417
    %v2430 = vadd.f32 %v2391, %v2416
    %v2431 = vadd.f32 %v2392, %v2417
    %v2432 = vadd.f32 %v2393, %v2416
    %v2433 = vadd.f32 %v2394, %v2417
    %v2434 = vadd.f32 %v2395, %v2416
    %v2435 = vadd.f32 %v2396, %v2417
    %v2436 = vadd.f32 %v2397, %v2416
    %v2437 = vadd.f32 %v2398, %v2417
    %v2438 = vadd.f32 %v2399, %v2416
    %v2439 = vadd.f32 %v2400, %v2417
    %v2440 = vadd.f32 %v2401, %v2416
    %v2441 = vadd.f32 %v2402, %v2417
    %v2442 = vadd.f32 %v2403, %v2416
    %v2443 = vadd.f32 %v2404, %v2417
    %v2444 = vadd.f32 %v2405, %v2416
    %v2445 = vadd.f32 %v2406, %v2417
    %v2446 = vadd.f32 %v2407, %v2416
    %v2447 = vadd.f32 %v2408, %v2417
    %v2448 = vadd.f32 %v2409, %v2416
    %v2449 = vadd.f32 %v2410, %v2417
    %v2450 = vadd.f32 %v2411, %v2416
    %v2451 = vadd.f32 %v2412, %v2417
    %v2452 = vmax.f32 %v2420, 0.0
    %v2453 = vmax.f32 %v2421, 0.0
    %v2454 = vmax.f32 %v2422, 0.0
    %v2455 = vmax.f32 %v2423, 0.0
    %v2456 = vmax.f32 %v2424, 0.0
    %v2457 = vmax.f32 %v2425, 0.0
    %v2458 = vmax.f32 %v2426, 0.0
    %v2459 = vmax.f32 %v2427, 0.0
    %v2460 = vmax.f32 %v2428, 0.0
    %v2461 = vmax.f32 %v2429, 0.0
    %v2462 = vmax.f32 %v2430, 0.0
    %v2463 = vmax.f32 %v2431, 0.0
    %v2464 = vmax.f32 %v2432, 0.0
    %v2465 = vmax.f32 %v2433, 0.0
    %v2466 = vmax.f32 %v2434, 0.0
    %v2467 = vmax.f32 %v2435, 0.0
    %v2468 = vmax.f32 %v2436, 0.0
    %v2469 = vmax.f32 %v2437, 0.0
    %v2470 = vmax.f32 %v2438, 0.0
    %v2471 = vmax.f32 %v2439, 0.0
    %v2472 = vmax.f32 %v2440, 0.0
    %v2473 = vmax.f32 %v2441, 0.0
    %v2474 = vmax.f32 %v2442, 0.0
    %v2475 = vmax.f32 %v2443, 0.0
    %v2476 = vmax.f32 %v2444, 0.0
    %v2477 = vmax.f32 %v2445, 0.0
    %v2478 = vmax.f32 %v2446, 0.0
    %v2479 = vmax.f32 %v2447, 0.0
    %v2480 = vmax.f32 %v2448, 0.0
    %v2481 = vmax.f32 %v2449, 0.0
    %v2482 = vmax.f32 %v2450, 0.0
    %v2483 = vmax.f32 %v2451, 0.0
    %v2484 = vmin.f32 %v2452, 6.0
    %v2485 = vmin.f32 %v2453, 6.0
    %v2486 = vmin.f32 %v2454, 6.0
    %v2487 = vmin.f32 %v2455, 6.0
    %v2488 = vmin.f32 %v2456, 6.0
    %v2489 = vmin.f32 %v2457, 6.0
    %v2490 = vmin.f32 %v2458, 6.0
    %v2491 = vmin.f32 %v2459, 6.0
    %v2492 = vmin.f32 %v2460, 6.0
    %v2493 = vmin.f32 %v2461, 6.0
    %v2494 = vmin.f32 %v2462, 6.0
    %v2495 = vmin.f32 %v2463, 6.0
    %v2496 = vmin.f32 %v2464, 6.0
    %v2497 = vmin.f32 %v2465, 6.0
    %v2498 = vmin.f32 %v2466, 6.0
    %v2499 = vmin.f32 %v2467, 6.0
    %v2500 = vmin.f32 %v2468, 6.0
    %v2501 = vmin.f32 %v2469, 6.0
    %v2502 = vmin.f32 %v2470, 6.0
    %v2503 = vmin.f32 %v2471, 6.0
    %v2504 = vmin.f32 %v2472, 6.0
    %v2505 = vmin.f32 %v2473, 6.0
    %v2506 = vmin.f32 %v2474, 6.0
    %v2507 = vmin.f32 %v2475, 6.0
    %v2508 = vmin.f32 %v2476, 6.0
    %v2509 = vmin.f32 %v2477, 6.0
    %v2510 = vmin.f32 %v2478, 6.0
    %v2511 = vmin.f32 %v2479, 6.0
    %v2512 = vmin.f32 %v2480, 6.0
    %v2513 = vmin.f32 %v2481, 6.0
    %v2514 = vmin.f32 %v2482, 6.0
    %v2515 = vmin.f32 %v2483, 6.0
    %v2516 = vpack.c.bf16 %v2485, %v2484
    %v2517 = vpack.c.bf16 %v2487, %v2486
    %v2518 = vpack.c.bf16 %v2489, %v2488
    %v2519 = vpack.c.bf16 %v2491, %v2490
    %v2520 = vpack.c.bf16 %v2493, %v2492
    %v2521 = vpack.c.bf16 %v2495, %v2494
    %v2522 = vpack.c.bf16 %v2497, %v2496
    %v2523 = vpack.c.bf16 %v2499, %v2498
    %v2524 = vpack.c.bf16 %v2501, %v2500
    %v2525 = vpack.c.bf16 %v2503, %v2502
    %v2526 = vpack.c.bf16 %v2505, %v2504
    %v2527 = vpack.c.bf16 %v2507, %v2506
    %v2528 = vpack.c.bf16 %v2509, %v2508
    %v2529 = vpack.c.bf16 %v2511, %v2510
    %v2530 = vpack.c.bf16 %v2513, %v2512
    %v2531 = vpack.c.bf16 %v2515, %v2514
    %2532 = vst [vmem:[%s3] sm:$0xff] %v2516
    %2533 = vst [vmem:[%s3 + $0x8] sm:$0xff] %v2517
    %2534 = vst [vmem:[%s3 + $0x10] sm:$0xff] %v2518
    %2535 = vst [vmem:[%s3 + $0x18] sm:$0xff] %v2519
    %2536 = vst [vmem:[%s3 + $0x20] sm:$0xff] %v2520
    %2537 = vst [vmem:[%s3 + $0x28] sm:$0xff] %v2521
    %2538 = vst [vmem:[%s3 + $0x30] sm:$0xff] %v2522
    %2539 = vst [vmem:[%s3 + $0x38] sm:$0xff] %v2523
    %2540 = vst [vmem:[%s3 + $0x40] sm:$0xff] %v2524
    %2541 = vst [vmem:[%s3 + $0x48] sm:$0xff] %v2525
    %2542 = vst [vmem:[%s3 + $0x50] sm:$0xff] %v2526
    %2543 = vst [vmem:[%s3 + $0x58] sm:$0xff] %v2527
    %2544 = vst [vmem:[%s3 + $0x60] sm:$0xff] %v2528
    %2545 = vst [vmem:[%s3 + $0x68] sm:$0xff] %v2529
    %2546 = vst [vmem:[%s3 + $0x70] sm:$0xff] %v2530
    %2547 = vst [vmem:[%s3 + $0x78] sm:$0xff] %v2531
  $region21: #{asff_forward.5} parent=0 // pred_fallthru
    _
  // Predicated region
  $region22: #{asff_forward.5} parent=0 // pred_check
    _
  $region23: #{asff_forward.5} parent=0 // pred_check_branch
    %2549 = sbr.rel (0) target = $region25
  $region24: #{asff_forward.5} parent=0 // pred_region
    _
  $region25: #{asff_forward.5} parent=0 // pred_fallthru
    _
  // Predicated region
  $region26: #{asff_forward.5} parent=0 // pred_check
    _
  $region27: #{asff_forward.5} parent=0 // pred_check_branch
    %2551 = sbr.rel (0) target = $region29
  $region28: #{asff_forward.5} parent=0 // pred_region
    _
  $region29: #{asff_forward.5} parent=0 // pred_fallthru
    _

// kernel: asff_forward.6
$region0: #{asff_forward.6}
  #allocation0 [shape = 'u32[]', space=smem, size = 0x4, offset = 0x4, fixed_abs, tag = 'smem constant byte address 0x4 - core index']
  #allocation1 [shape = 'u32[72,128]{1,0:T(1,128)}', space=vmem, size = 0x9000, scoped, tag = 'internal scratch']
  %s0 = inlined_call_operand.vmem [shape: bf16[128,256], index: 0, kind: input, shape index: {}]
  %s1 = inlined_call_operand.vmem [shape: bf16[128,256], index: 1, kind: input, shape index: {}]
  %s2 = inlined_call_operand.vmem [shape: bf16[128,256], index: 2, kind: input, shape index: {}]
  %s3 = inlined_call_operand.vmem [shape: bf16[3,256,16], index: 3, kind: input, shape index: {}]
  %s4 = inlined_call_operand.vmem [shape: f32[3,16], index: 4, kind: input, shape index: {}]
  %s5 = inlined_call_operand.vmem [shape: f32[3,16], index: 5, kind: input, shape index: {}]
  %s6 = inlined_call_operand.vmem [shape: f32[3,16,3], index: 6, kind: input, shape index: {}]
  %s7 = inlined_call_operand.vmem [shape: f32[1,3], index: 7, kind: input, shape index: {}]
  %s8 = inlined_call_operand.vmem [shape: bf16[128,256], index: 8, kind: output, shape index: {}]
  %s9 = sld [smem:[#allocation0]]
  $region42: #{asff_forward.6} parent=0
    _
  %s11 = ssub.s32 1, %s9
  %s12 = scalar_select 0, %s11, %s9
  // Predicated region
  $region2: #{asff_forward.6} parent=0 // pred_check
    _
  $region3: #{asff_forward.6} parent=0 // pred_check_branch
    %14 = sbr.rel (0) target = $region5
  $region4: #{asff_forward.6} parent=0 // pred_region
    _
  $region5: #{asff_forward.6} parent=0 // pred_fallthru
    _
  // Predicated region
  $region6: #{asff_forward.6} parent=0 // pred_check
    _
  $region7: #{asff_forward.6} parent=0 // pred_check_branch
    %16 = sbr.rel (0) target = $region9
  $region8: #{asff_forward.6} parent=0 // pred_region
    _
  $region9: #{asff_forward.6} parent=0 // pred_fallthru
    _
  // Predicated region
  $region10: #{asff_forward.6} parent=0 // pred_check
    _
  $region11: #{asff_forward.6} parent=0 // pred_check_branch
    %18 = sbr.rel (0) target = $region13
  $region12: #{asff_forward.6} parent=0 // pred_region
    _
  $region13: #{asff_forward.6} parent=0 // pred_fallthru
    _
  // Predicated region
  $region14: #{asff_forward.6} parent=0 // pred_check
    _
  $region15: #{asff_forward.6} parent=0 // pred_check_branch
    %20 = sbr.rel (0) target = $region17
  $region16: #{asff_forward.6} parent=0 // pred_region
    _
  $region17: #{asff_forward.6} parent=0 // pred_fallthru
    _
  // Predicated region
  $region18: #{asff_forward.6} parent=0 // pred_check
    _
  $region19: #{asff_forward.6} parent=0 // pred_check_branch
    %22 = sbr.rel (0) target = $region21
  $region20: #{asff_forward.6} parent=0 // pred_region
    _
  $region21: #{asff_forward.6} parent=0 // pred_fallthru
    _
  // Predicated region
  $region22: #{asff_forward.6} parent=0 // pred_check
    _
  $region23: #{asff_forward.6} parent=0 // pred_check_branch
    %24 = sbr.rel (0) target = $region25
  $region24: #{asff_forward.6} parent=0 // pred_region
    _
  $region25: #{asff_forward.6} parent=0 // pred_fallthru
    _
  // Predicated region
  $region26: #{asff_forward.6} parent=0 // pred_check
    _
  $region27: #{asff_forward.6} parent=0 // pred_check_branch
    %26 = sbr.rel (0) target = $region29
  $region28: #{asff_forward.6} parent=0 // pred_region
    _
  $region29: #{asff_forward.6} parent=0 // pred_fallthru
    _
  // Predicated region
  $region30: #{asff_forward.6} parent=0 // pred_check
    _
  $region31: #{asff_forward.6} parent=0 // pred_check_branch
    %28 = sbr.rel (0) target = $region33
  $region32: #{asff_forward.6} parent=0 // pred_region
    _
  $region33: #{asff_forward.6} parent=0 // pred_fallthru
    _
  %v29 = vld [vmem:[%s0] sm:$0xff]
  %v30 = vld [vmem:[%s0 + $0x8] sm:$0xff]
  %v31 = vld [vmem:[%s0 + $0x10] sm:$0xff]
  %v32 = vld [vmem:[%s0 + $0x18] sm:$0xff]
  %v33 = vld [vmem:[%s0 + $0x20] sm:$0xff]
  %v34 = vld [vmem:[%s0 + $0x28] sm:$0xff]
  %v35 = vld [vmem:[%s0 + $0x30] sm:$0xff]
  %v36 = vld [vmem:[%s0 + $0x38] sm:$0xff]
  %v37 = vld [vmem:[%s0 + $0x40] sm:$0xff]
  %v38 = vld [vmem:[%s0 + $0x48] sm:$0xff]
  %v39 = vld [vmem:[%s0 + $0x50] sm:$0xff]
  %v40 = vld [vmem:[%s0 + $0x58] sm:$0xff]
  %v41 = vld [vmem:[%s0 + $0x60] sm:$0xff]
  %v42 = vld [vmem:[%s0 + $0x68] sm:$0xff]
  %v43 = vld [vmem:[%s0 + $0x70] sm:$0xff]
  %v44 = vld [vmem:[%s0 + $0x78] sm:$0xff]
  %v45 = vld [vmem:[%s1] sm:$0xff]
  %v46 = vld [vmem:[%s1 + $0x8] sm:$0xff]
  %v47 = vld [vmem:[%s1 + $0x10] sm:$0xff]
  %v48 = vld [vmem:[%s1 + $0x18] sm:$0xff]
  %v49 = vld [vmem:[%s1 + $0x20] sm:$0xff]
  %v50 = vld [vmem:[%s1 + $0x28] sm:$0xff]
  %v51 = vld [vmem:[%s1 + $0x30] sm:$0xff]
  %v52 = vld [vmem:[%s1 + $0x38] sm:$0xff]
  %v53 = vld [vmem:[%s1 + $0x40] sm:$0xff]
  %v54 = vld [vmem:[%s1 + $0x48] sm:$0xff]
  %v55 = vld [vmem:[%s1 + $0x50] sm:$0xff]
  %v56 = vld [vmem:[%s1 + $0x58] sm:$0xff]
  %v57 = vld [vmem:[%s1 + $0x60] sm:$0xff]
  %v58 = vld [vmem:[%s1 + $0x68] sm:$0xff]
  %v59 = vld [vmem:[%s1 + $0x70] sm:$0xff]
  %v60 = vld [vmem:[%s1 + $0x78] sm:$0xff]
  %v61 = vld [vmem:[%s2] sm:$0xff]
  %v62 = vld [vmem:[%s2 + $0x8] sm:$0xff]
  %v63 = vld [vmem:[%s2 + $0x10] sm:$0xff]
  %v64 = vld [vmem:[%s2 + $0x18] sm:$0xff]
  %v65 = vld [vmem:[%s2 + $0x20] sm:$0xff]
  %v66 = vld [vmem:[%s2 + $0x28] sm:$0xff]
  %v67 = vld [vmem:[%s2 + $0x30] sm:$0xff]
  %v68 = vld [vmem:[%s2 + $0x38] sm:$0xff]
  %v69 = vld [vmem:[%s2 + $0x40] sm:$0xff]
  %v70 = vld [vmem:[%s2 + $0x48] sm:$0xff]
  %v71 = vld [vmem:[%s2 + $0x50] sm:$0xff]
  %v72 = vld [vmem:[%s2 + $0x58] sm:$0xff]
  %v73 = vld [vmem:[%s2 + $0x60] sm:$0xff]
  %v74 = vld [vmem:[%s2 + $0x68] sm:$0xff]
  %v75 = vld [vmem:[%s2 + $0x70] sm:$0xff]
  %v76 = vld [vmem:[%s2 + $0x78] sm:$0xff]
  %v77 = vld [vmem:[%s7] sm:$0x1]
  %v78 = vld [vmem:[%s3] sm:$0xf]
  %v79 = vld [vmem:[%s3 + $0x4] sm:$0xf]
  %v80 = vld [vmem:[%s3 + $0x8] sm:$0xf]
  %v81 = vld [vmem:[%s3 + $0xc] sm:$0xf]
  %v82 = vld [vmem:[%s3 + $0x10] sm:$0xf]
  %v83 = vld [vmem:[%s3 + $0x14] sm:$0xf]
  %v84 = vld [vmem:[%s3 + $0x18] sm:$0xf]
  %v85 = vld [vmem:[%s3 + $0x1c] sm:$0xf]
  %v86 = vld [vmem:[%s3 + $0x20] sm:$0xf]
  %v87 = vld [vmem:[%s3 + $0x24] sm:$0xf]
  %v88 = vld [vmem:[%s3 + $0x28] sm:$0xf]
  %v89 = vld [vmem:[%s3 + $0x2c] sm:$0xf]
  %v90 = vld [vmem:[%s3 + $0x30] sm:$0xf]
  %v91 = vld [vmem:[%s3 + $0x34] sm:$0xf]
  %v92 = vld [vmem:[%s3 + $0x38] sm:$0xf]
  %v93 = vld [vmem:[%s3 + $0x3c] sm:$0xf]
  %v94 = vld [vmem:[%s3 + $0x40] sm:$0xf]
  %v95 = vld [vmem:[%s3 + $0x44] sm:$0xf]
  %v96 = vld [vmem:[%s3 + $0x48] sm:$0xf]
  %v97 = vld [vmem:[%s3 + $0x4c] sm:$0xf]
  %v98 = vld [vmem:[%s3 + $0x50] sm:$0xf]
  %v99 = vld [vmem:[%s3 + $0x54] sm:$0xf]
  %v100 = vld [vmem:[%s3 + $0x58] sm:$0xf]
  %v101 = vld [vmem:[%s3 + $0x5c] sm:$0xf]
  %v102 = vld [vmem:[%s3 + $0x60] sm:$0xf]
  %v103 = vld [vmem:[%s3 + $0x64] sm:$0xf]
  %v104 = vld [vmem:[%s3 + $0x68] sm:$0xf]
  %v105 = vld [vmem:[%s3 + $0x6c] sm:$0xf]
  %v106 = vld [vmem:[%s3 + $0x70] sm:$0xf]
  %v107 = vld [vmem:[%s3 + $0x74] sm:$0xf]
  %v108 = vld [vmem:[%s3 + $0x78] sm:$0xf]
  %v109 = vld [vmem:[%s3 + $0x7c] sm:$0xf]
  %v126 = vunpack.c.l.b16 %v29
  %v127 = vunpack.c.h.b16 %v29
  %v128 = vunpack.c.l.b16 %v30
  %v129 = vunpack.c.h.b16 %v30
  %v130 = vunpack.c.l.b16 %v31
  %v131 = vunpack.c.h.b16 %v31
  %v132 = vunpack.c.l.b16 %v32
  %v133 = vunpack.c.h.b16 %v32
  %v134 = vunpack.c.l.b16 %v33
  %v135 = vunpack.c.h.b16 %v33
  %v136 = vunpack.c.l.b16 %v34
  %v137 = vunpack.c.h.b16 %v34
  %v138 = vunpack.c.l.b16 %v35
  %v139 = vunpack.c.h.b16 %v35
  %v140 = vunpack.c.l.b16 %v36
  %v141 = vunpack.c.h.b16 %v36
  %v142 = vunpack.c.l.b16 %v37
  %v143 = vunpack.c.h.b16 %v37
  %v144 = vunpack.c.l.b16 %v38
  %v145 = vunpack.c.h.b16 %v38
  %v146 = vunpack.c.l.b16 %v39
  %v147 = vunpack.c.h.b16 %v39
  %v148 = vunpack.c.l.b16 %v40
  %v149 = vunpack.c.h.b16 %v40
  %v150 = vunpack.c.l.b16 %v41
  %v151 = vunpack.c.h.b16 %v41
  %v152 = vunpack.c.l.b16 %v42
  %v153 = vunpack.c.h.b16 %v42
  %v154 = vunpack.c.l.b16 %v43
  %v155 = vunpack.c.h.b16 %v43
  %v156 = vunpack.c.l.b16 %v44
  %v157 = vunpack.c.h.b16 %v44
  %v158 = vpack.c.b16 %v128, %v126
  %v159 = vpack.c.b16 %v129, %v127
  %v160 = vpack.c.b16 %v132, %v130
  %v161 = vpack.c.b16 %v133, %v131
  %v162 = vpack.c.b16 %v136, %v134
  %v163 = vpack.c.b16 %v137, %v135
  %v164 = vpack.c.b16 %v140, %v138
  %v165 = vpack.c.b16 %v141, %v139
  %v166 = vpack.c.b16 %v144, %v142
  %v167 = vpack.c.b16 %v145, %v143
  %v168 = vpack.c.b16 %v148, %v146
  %v169 = vpack.c.b16 %v149, %v147
  %v170 = vpack.c.b16 %v152, %v150
  %v171 = vpack.c.b16 %v153, %v151
  %v172 = vpack.c.b16 %v156, %v154
  %v173 = vpack.c.b16 %v157, %v155
  %v222 = vunpack.c.l.b16 %v78
  %v223 = vunpack.c.l.b16 %v79
  %v224 = vunpack.c.l.b16 %v80
  %v225 = vunpack.c.l.b16 %v81
  %v226 = vunpack.c.l.b16 %v82
  %v227 = vunpack.c.l.b16 %v83
  %v228 = vunpack.c.l.b16 %v84
  %v229 = vunpack.c.l.b16 %v85
  %v230 = vunpack.c.l.b16 %v86
  %v231 = vunpack.c.l.b16 %v87
  %v232 = vunpack.c.l.b16 %v88
  %v233 = vunpack.c.l.b16 %v89
  %v234 = vunpack.c.l.b16 %v90
  %v235 = vunpack.c.l.b16 %v91
  %v236 = vunpack.c.l.b16 %v92
  %v237 = vunpack.c.l.b16 %v93
  %v238 = vunpack.c.l.b16 %v94
  %v239 = vunpack.c.l.b16 %v95
  %v240 = vunpack.c.l.b16 %v96
  %v241 = vunpack.c.l.b16 %v97
  %v242 = vunpack.c.l.b16 %v98
  %v243 = vunpack.c.l.b16 %v99
  %v244 = vunpack.c.l.b16 %v100
  %v245 = vunpack.c.l.b16 %v101
  %v246 = vunpack.c.l.b16 %v102
  %v247 = vunpack.c.l.b16 %v103
  %v248 = vunpack.c.l.b16 %v104
  %v249 = vunpack.c.l.b16 %v105
  %v250 = vunpack.c.l.b16 %v106
  %v251 = vunpack.c.l.b16 %v107
  %v252 = vunpack.c.l.b16 %v108
  %v253 = vunpack.c.l.b16 %v109
  %v254 = vpack.c.b16 %v223, %v222
  %v255 = vpack.c.b16 %v225, %v224
  %v256 = vpack.c.b16 %v227, %v226
  %v257 = vpack.c.b16 %v229, %v228
  %v258 = vpack.c.b16 %v231, %v230
  %v259 = vpack.c.b16 %v233, %v232
  %v260 = vpack.c.b16 %v235, %v234
  %v261 = vpack.c.b16 %v237, %v236
  %v262 = vpack.c.b16 %v239, %v238
  %v263 = vpack.c.b16 %v241, %v240
  %v264 = vpack.c.b16 %v243, %v242
  %v265 = vpack.c.b16 %v245, %v244
  %v266 = vpack.c.b16 %v247, %v246
  %v267 = vpack.c.b16 %v249, %v248
  %v268 = vpack.c.b16 %v251, %v250
  %v269 = vpack.c.b16 %v253, %v252
  %286 = vmatpush.bf16.msra.mxu0 %v261
  %287 = vmatpush.bf16.msra.mxu0 %v260
  %288 = vmatpush.bf16.msra.mxu0 %v259
  %289 = vmatpush.bf16.msra.mxu0 %v258
  %290 = vmatpush.bf16.msra.mxu0 %v257
  %291 = vmatpush.bf16.msra.mxu0 %v256
  %292 = vmatpush.bf16.msra.mxu0 %v255
  %293 = vmatpush.bf16.msra.mxu0 %v254
  %294 = vmatmul.bf16.gmra.mxu0 %v158
  %v295 = vpop.f32.mrf.mxu0
  %v296 = vadd.f32 0.0, %v295
  %v297 = vpop.f32.mrf.mxu0
  %v298 = vadd.f32 0.0, %v297
  %299 = vmatmul.bf16.gmra.mxu0 %v160
  %v300 = vpop.f32.mrf.mxu0
  %v301 = vadd.f32 0.0, %v300
  %v302 = vpop.f32.mrf.mxu0
  %v303 = vadd.f32 0.0, %v302
  %304 = vmatmul.bf16.gmra.mxu0 %v162
  %v305 = vpop.f32.mrf.mxu0
  %v306 = vadd.f32 0.0, %v305
  %v307 = vpop.f32.mrf.mxu0
  %v308 = vadd.f32 0.0, %v307
  %309 = vmatmul.bf16.gmra.mxu0 %v164
  %v310 = vpop.f32.mrf.mxu0
  %v311 = vadd.f32 0.0, %v310
  %v312 = vpop.f32.mrf.mxu0
  %v313 = vadd.f32 0.0, %v312
  %314 = vmatmul.bf16.gmra.mxu0 %v166
  %v315 = vpop.f32.mrf.mxu0
  %v316 = vadd.f32 0.0, %v315
  %v317 = vpop.f32.mrf.mxu0
  %v318 = vadd.f32 0.0, %v317
  %319 = vmatmul.bf16.gmra.mxu0 %v168
  %v320 = vpop.f32.mrf.mxu0
  %v321 = vadd.f32 0.0, %v320
  %v322 = vpop.f32.mrf.mxu0
  %v323 = vadd.f32 0.0, %v322
  %324 = vmatmul.bf16.gmra.mxu0 %v170
  %v325 = vpop.f32.mrf.mxu0
  %v326 = vadd.f32 0.0, %v325
  %v327 = vpop.f32.mrf.mxu0
  %v328 = vadd.f32 0.0, %v327
  %329 = vmatmul.bf16.gmra.mxu0 %v172
  %v330 = vpop.f32.mrf.mxu0
  %v331 = vadd.f32 0.0, %v330
  %v332 = vpop.f32.mrf.mxu0
  %v333 = vadd.f32 0.0, %v332
  %334 = vdwg.mxu0
  %335 = vmatpush.bf16.msra.mxu0 %v269
  %336 = vmatpush.bf16.msra.mxu0 %v268
  %337 = vmatpush.bf16.msra.mxu0 %v267
  %338 = vmatpush.bf16.msra.mxu0 %v266
  %339 = vmatpush.bf16.msra.mxu0 %v265
  %340 = vmatpush.bf16.msra.mxu0 %v264
  %341 = vmatpush.bf16.msra.mxu0 %v263
  %342 = vmatpush.bf16.msra.mxu0 %v262
  %343 = vmatmul.bf16.gmra.mxu0 %v159
  %v344 = vpop.f32.mrf.mxu0
  %v345 = vadd.f32 %v296, %v344
  %v346 = vpop.f32.mrf.mxu0
  %v347 = vadd.f32 %v298, %v346
  %348 = vmatmul.bf16.gmra.mxu0 %v161
  %v349 = vpop.f32.mrf.mxu0
  %v350 = vadd.f32 %v301, %v349
  %v351 = vpop.f32.mrf.mxu0
  %v352 = vadd.f32 %v303, %v351
  %353 = vmatmul.bf16.gmra.mxu0 %v163
  %v354 = vpop.f32.mrf.mxu0
  %v355 = vadd.f32 %v306, %v354
  %v356 = vpop.f32.mrf.mxu0
  %v357 = vadd.f32 %v308, %v356
  %358 = vmatmul.bf16.gmra.mxu0 %v165
  %v359 = vpop.f32.mrf.mxu0
  %v360 = vadd.f32 %v311, %v359
  %v361 = vpop.f32.mrf.mxu0
  %v362 = vadd.f32 %v313, %v361
  %363 = vmatmul.bf16.gmra.mxu0 %v167
  %v364 = vpop.f32.mrf.mxu0
  %v365 = vadd.f32 %v316, %v364
  %v366 = vpop.f32.mrf.mxu0
  %v367 = vadd.f32 %v318, %v366
  %368 = vmatmul.bf16.gmra.mxu0 %v169
  %v369 = vpop.f32.mrf.mxu0
  %v370 = vadd.f32 %v321, %v369
  %v371 = vpop.f32.mrf.mxu0
  %v372 = vadd.f32 %v323, %v371
  %373 = vmatmul.bf16.gmra.mxu0 %v171
  %v374 = vpop.f32.mrf.mxu0
  %v375 = vadd.f32 %v326, %v374
  %v376 = vpop.f32.mrf.mxu0
  %v377 = vadd.f32 %v328, %v376
  %378 = vmatmul.bf16.gmra.mxu0 %v173
  %v379 = vpop.f32.mrf.mxu0
  %v380 = vadd.f32 %v331, %v379
  %v381 = vpop.f32.mrf.mxu0
  %v382 = vadd.f32 %v333, %v381
  %383 = vdwg.mxu0
  %v384 = vld [vmem:[%s4] sm:$0x1]
  %v385 = vperm.slane %v384, 0
  %v386 = vmul.f32 %v345, %v385
  %v387 = vmul.f32 %v347, %v385
  %v388 = vmul.f32 %v350, %v385
  %v389 = vmul.f32 %v352, %v385
  %v390 = vmul.f32 %v355, %v385
  %v391 = vmul.f32 %v357, %v385
  %v392 = vmul.f32 %v360, %v385
  %v393 = vmul.f32 %v362, %v385
  %v394 = vmul.f32 %v365, %v385
  %v395 = vmul.f32 %v367, %v385
  %v396 = vmul.f32 %v370, %v385
  %v397 = vmul.f32 %v372, %v385
  %v398 = vmul.f32 %v375, %v385
  %v399 = vmul.f32 %v377, %v385
  %v400 = vmul.f32 %v380, %v385
  %v401 = vmul.f32 %v382, %v385
  %v402 = vld [vmem:[%s5] sm:$0x1]
  %v403 = vperm.slane %v402, 0
  %v404 = vadd.f32 %v386, %v403
  %v405 = vadd.f32 %v387, %v403
  %v406 = vadd.f32 %v388, %v403
  %v407 = vadd.f32 %v389, %v403
  %v408 = vadd.f32 %v390, %v403
  %v409 = vadd.f32 %v391, %v403
  %v410 = vadd.f32 %v392, %v403
  %v411 = vadd.f32 %v393, %v403
  %v412 = vadd.f32 %v394, %v403
  %v413 = vadd.f32 %v395, %v403
  %v414 = vadd.f32 %v396, %v403
  %v415 = vadd.f32 %v397, %v403
  %v416 = vadd.f32 %v398, %v403
  %v417 = vadd.f32 %v399, %v403
  %v418 = vadd.f32 %v400, %v403
  %v419 = vadd.f32 %v401, %v403
  %v420 = vmax.f32 %v404, 0.0
  %v421 = vmax.f32 %v405, 0.0
  %v422 = vmax.f32 %v406, 0.0
  %v423 = vmax.f32 %v407, 0.0
  %v424 = vmax.f32 %v408, 0.0
  %v425 = vmax.f32 %v409, 0.0
  %v426 = vmax.f32 %v410, 0.0
  %v427 = vmax.f32 %v411, 0.0
  %v428 = vmax.f32 %v412, 0.0
  %v429 = vmax.f32 %v413, 0.0
  %v430 = vmax.f32 %v414, 0.0
  %v431 = vmax.f32 %v415, 0.0
  %v432 = vmax.f32 %v416, 0.0
  %v433 = vmax.f32 %v417, 0.0
  %v434 = vmax.f32 %v418, 0.0
  %v435 = vmax.f32 %v419, 0.0
  %v436 = vmin.f32 %v420, 6.0
  %v437 = vmin.f32 %v421, 6.0
  %v438 = vmin.f32 %v422, 6.0
  %v439 = vmin.f32 %v423, 6.0
  %v440 = vmin.f32 %v424, 6.0
  %v441 = vmin.f32 %v425, 6.0
  %v442 = vmin.f32 %v426, 6.0
  %v443 = vmin.f32 %v427, 6.0
  %v444 = vmin.f32 %v428, 6.0
  %v445 = vmin.f32 %v429, 6.0
  %v446 = vmin.f32 %v430, 6.0
  %v447 = vmin.f32 %v431, 6.0
  %v448 = vmin.f32 %v432, 6.0
  %v449 = vmin.f32 %v433, 6.0
  %v450 = vmin.f32 %v434, 6.0
  %v451 = vmin.f32 %v435, 6.0
  %v452 = vld [vmem:[%s6] sm:$0xff]
  %v453 = vld [vmem:[%s6 + $0x8] sm:$0xff]
  %vm454 = vcmask 130048
  %v456 = vsel %vm454, %v436, 0
  %v459 = vsel %vm454, %v437, 0
  %v462 = vsel %vm454, %v438, 0
  %v465 = vsel %vm454, %v439, 0
  %v468 = vsel %vm454, %v440, 0
  %v471 = vsel %vm454, %v441, 0
  %v474 = vsel %vm454, %v442, 0
  %v477 = vsel %vm454, %v443, 0
  %v480 = vsel %vm454, %v444, 0
  %v483 = vsel %vm454, %v445, 0
  %v486 = vsel %vm454, %v446, 0
  %v489 = vsel %vm454, %v447, 0
  %v492 = vsel %vm454, %v448, 0
  %v495 = vsel %vm454, %v449, 0
  %v498 = vsel %vm454, %v450, 0
  %v501 = vsel %vm454, %v451, 0
  %503 = vmatpush.msra.mxu0 0.0
  %504 = vmatpush.msra.mxu0 0.0
  %505 = vmatpush.msra.mxu0 0.0
  %506 = vmatpush.msra.mxu0 0.0
  %507 = vmatpush.msra.mxu0 0.0
  %508 = vmatpush.msra.mxu0 0.0
  %509 = vmatpush.msra.mxu0 0.0
  %510 = vmatpush.msra.mxu0 0.0
  %511 = vmatpush.msra.mxu0 0.0
  %512 = vmatpush.msra.mxu0 0.0
  %513 = vmatpush.msra.mxu0 0.0
  %514 = vmatpush.msra.mxu0 0.0
  %515 = vmatpush.msra.mxu0 0.0
  %516 = vmatpush.msra.mxu0 0.0
  %517 = vmatpush.msra.mxu0 %v453
  %518 = vmatpush.msra.mxu0 %v452
  %519 = vmatmul.f32.gmra.mxu0 %v456
  %v520 = vpop.f32.mrf.mxu0
  %v521 = vadd.f32 0.0, %v520
  %522 = vmatmul.f32.gmra.mxu0 %v459
  %v523 = vpop.f32.mrf.mxu0
  %v524 = vadd.f32 0.0, %v523
  %525 = vmatmul.f32.gmra.mxu0 %v462
  %v526 = vpop.f32.mrf.mxu0
  %v527 = vadd.f32 0.0, %v526
  %528 = vmatmul.f32.gmra.mxu0 %v465
  %v529 = vpop.f32.mrf.mxu0
  %v530 = vadd.f32 0.0, %v529
  %531 = vmatmul.f32.gmra.mxu0 %v468
  %v532 = vpop.f32.mrf.mxu0
  %v533 = vadd.f32 0.0, %v532
  %534 = vmatmul.f32.gmra.mxu0 %v471
  %v535 = vpop.f32.mrf.mxu0
  %v536 = vadd.f32 0.0, %v535
  %537 = vmatmul.f32.gmra.mxu0 %v474
  %v538 = vpop.f32.mrf.mxu0
  %v539 = vadd.f32 0.0, %v538
  %540 = vmatmul.f32.gmra.mxu0 %v477
  %v541 = vpop.f32.mrf.mxu0
  %v542 = vadd.f32 0.0, %v541
  %543 = vmatmul.f32.gmra.mxu0 %v480
  %v544 = vpop.f32.mrf.mxu0
  %v545 = vadd.f32 0.0, %v544
  %546 = vmatmul.f32.gmra.mxu0 %v483
  %v547 = vpop.f32.mrf.mxu0
  %v548 = vadd.f32 0.0, %v547
  %549 = vmatmul.f32.gmra.mxu0 %v486
  %v550 = vpop.f32.mrf.mxu0
  %v551 = vadd.f32 0.0, %v550
  %552 = vmatmul.f32.gmra.mxu0 %v489
  %v553 = vpop.f32.mrf.mxu0
  %v554 = vadd.f32 0.0, %v553
  %555 = vmatmul.f32.gmra.mxu0 %v492
  %v556 = vpop.f32.mrf.mxu0
  %v557 = vadd.f32 0.0, %v556
  %558 = vmatmul.f32.gmra.mxu0 %v495
  %v559 = vpop.f32.mrf.mxu0
  %v560 = vadd.f32 0.0, %v559
  %561 = vmatmul.f32.gmra.mxu0 %v498
  %v562 = vpop.f32.mrf.mxu0
  %v563 = vadd.f32 0.0, %v562
  %564 = vmatmul.f32.gmra.mxu0 %v501
  %v565 = vpop.f32.mrf.mxu0
  %v566 = vadd.f32 0.0, %v565
  %567 = vdwg.mxu0
  %v569 = vperm.slane %v77, 0
  %v571 = vadd.f32 %v569, %v521
  %v572 = vadd.f32 %v569, %v524
  %v573 = vadd.f32 %v569, %v527
  %v574 = vadd.f32 %v569, %v530
  %v575 = vadd.f32 %v569, %v533
  %v576 = vadd.f32 %v569, %v536
  %v577 = vadd.f32 %v569, %v539
  %v578 = vadd.f32 %v569, %v542
  %v579 = vadd.f32 %v569, %v545
  %v580 = vadd.f32 %v569, %v548
  %v581 = vadd.f32 %v569, %v551
  %v582 = vadd.f32 %v569, %v554
  %v583 = vadd.f32 %v569, %v557
  %v584 = vadd.f32 %v569, %v560
  %v585 = vadd.f32 %v569, %v563
  %v586 = vadd.f32 %v569, %v566
  %s587 = scalar_lea.vmem %s3, 128
  %v588 = vld [vmem:[%s587] sm:$0xf]
  %v589 = vld [vmem:[%s587 + $0x4] sm:$0xf]
  %v590 = vld [vmem:[%s587 + $0x8] sm:$0xf]
  %v591 = vld [vmem:[%s587 + $0xc] sm:$0xf]
  %v592 = vld [vmem:[%s587 + $0x10] sm:$0xf]
  %v593 = vld [vmem:[%s587 + $0x14] sm:$0xf]
  %v594 = vld [vmem:[%s587 + $0x18] sm:$0xf]
  %v595 = vld [vmem:[%s587 + $0x1c] sm:$0xf]
  %v596 = vld [vmem:[%s587 + $0x20] sm:$0xf]
  %v597 = vld [vmem:[%s587 + $0x24] sm:$0xf]
  %v598 = vld [vmem:[%s587 + $0x28] sm:$0xf]
  %v599 = vld [vmem:[%s587 + $0x2c] sm:$0xf]
  %v600 = vld [vmem:[%s587 + $0x30] sm:$0xf]
  %v601 = vld [vmem:[%s587 + $0x34] sm:$0xf]
  %v602 = vld [vmem:[%s587 + $0x38] sm:$0xf]
  %v603 = vld [vmem:[%s587 + $0x3c] sm:$0xf]
  %v604 = vld [vmem:[%s587 + $0x40] sm:$0xf]
  %v605 = vld [vmem:[%s587 + $0x44] sm:$0xf]
  %v606 = vld [vmem:[%s587 + $0x48] sm:$0xf]
  %v607 = vld [vmem:[%s587 + $0x4c] sm:$0xf]
  %v608 = vld [vmem:[%s587 + $0x50] sm:$0xf]
  %v609 = vld [vmem:[%s587 + $0x54] sm:$0xf]
  %v610 = vld [vmem:[%s587 + $0x58] sm:$0xf]
  %v611 = vld [vmem:[%s587 + $0x5c] sm:$0xf]
  %v612 = vld [vmem:[%s587 + $0x60] sm:$0xf]
  %v613 = vld [vmem:[%s587 + $0x64] sm:$0xf]
  %v614 = vld [vmem:[%s587 + $0x68] sm:$0xf]
  %v615 = vld [vmem:[%s587 + $0x6c] sm:$0xf]
  %v616 = vld [vmem:[%s587 + $0x70] sm:$0xf]
  %v617 = vld [vmem:[%s587 + $0x74] sm:$0xf]
  %v618 = vld [vmem:[%s587 + $0x78] sm:$0xf]
  %v619 = vld [vmem:[%s587 + $0x7c] sm:$0xf]
  %v636 = vunpack.c.l.b16 %v45
  %v637 = vunpack.c.h.b16 %v45
  %v638 = vunpack.c.l.b16 %v46
  %v639 = vunpack.c.h.b16 %v46
  %v640 = vunpack.c.l.b16 %v47
  %v641 = vunpack.c.h.b16 %v47
  %v642 = vunpack.c.l.b16 %v48
  %v643 = vunpack.c.h.b16 %v48
  %v644 = vunpack.c.l.b16 %v49
  %v645 = vunpack.c.h.b16 %v49
  %v646 = vunpack.c.l.b16 %v50
  %v647 = vunpack.c.h.b16 %v50
  %v648 = vunpack.c.l.b16 %v51
  %v649 = vunpack.c.h.b16 %v51
  %v650 = vunpack.c.l.b16 %v52
  %v651 = vunpack.c.h.b16 %v52
  %v652 = vunpack.c.l.b16 %v53
  %v653 = vunpack.c.h.b16 %v53
  %v654 = vunpack.c.l.b16 %v54
  %v655 = vunpack.c.h.b16 %v54
  %v656 = vunpack.c.l.b16 %v55
  %v657 = vunpack.c.h.b16 %v55
  %v658 = vunpack.c.l.b16 %v56
  %v659 = vunpack.c.h.b16 %v56
  %v660 = vunpack.c.l.b16 %v57
  %v661 = vunpack.c.h.b16 %v57
  %v662 = vunpack.c.l.b16 %v58
  %v663 = vunpack.c.h.b16 %v58
  %v664 = vunpack.c.l.b16 %v59
  %v665 = vunpack.c.h.b16 %v59
  %v666 = vunpack.c.l.b16 %v60
  %v667 = vunpack.c.h.b16 %v60
  %v668 = vpack.c.b16 %v638, %v636
  %v669 = vpack.c.b16 %v639, %v637
  %v670 = vpack.c.b16 %v642, %v640
  %v671 = vpack.c.b16 %v643, %v641
  %v672 = vpack.c.b16 %v646, %v644
  %v673 = vpack.c.b16 %v647, %v645
  %v674 = vpack.c.b16 %v650, %v648
  %v675 = vpack.c.b16 %v651, %v649
  %v676 = vpack.c.b16 %v654, %v652
  %v677 = vpack.c.b16 %v655, %v653
  %v678 = vpack.c.b16 %v658, %v656
  %v679 = vpack.c.b16 %v659, %v657
  %v680 = vpack.c.b16 %v662, %v660
  %v681 = vpack.c.b16 %v663, %v661
  %v682 = vpack.c.b16 %v666, %v664
  %v683 = vpack.c.b16 %v667, %v665
  %v732 = vunpack.c.l.b16 %v588
  %v733 = vunpack.c.l.b16 %v589
  %v734 = vunpack.c.l.b16 %v590
  %v735 = vunpack.c.l.b16 %v591
  %v736 = vunpack.c.l.b16 %v592
  %v737 = vunpack.c.l.b16 %v593
  %v738 = vunpack.c.l.b16 %v594
  %v739 = vunpack.c.l.b16 %v595
  %v740 = vunpack.c.l.b16 %v596
  %v741 = vunpack.c.l.b16 %v597
  %v742 = vunpack.c.l.b16 %v598
  %v743 = vunpack.c.l.b16 %v599
  %v744 = vunpack.c.l.b16 %v600
  %v745 = vunpack.c.l.b16 %v601
  %v746 = vunpack.c.l.b16 %v602
  %v747 = vunpack.c.l.b16 %v603
  %v748 = vunpack.c.l.b16 %v604
  %v749 = vunpack.c.l.b16 %v605
  %v750 = vunpack.c.l.b16 %v606
  %v751 = vunpack.c.l.b16 %v607
  %v752 = vunpack.c.l.b16 %v608
  %v753 = vunpack.c.l.b16 %v609
  %v754 = vunpack.c.l.b16 %v610
  %v755 = vunpack.c.l.b16 %v611
  %v756 = vunpack.c.l.b16 %v612
  %v757 = vunpack.c.l.b16 %v613
  %v758 = vunpack.c.l.b16 %v614
  %v759 = vunpack.c.l.b16 %v615
  %v760 = vunpack.c.l.b16 %v616
  %v761 = vunpack.c.l.b16 %v617
  %v762 = vunpack.c.l.b16 %v618
  %v763 = vunpack.c.l.b16 %v619
  %v764 = vpack.c.b16 %v733, %v732
  %v765 = vpack.c.b16 %v735, %v734
  %v766 = vpack.c.b16 %v737, %v736
  %v767 = vpack.c.b16 %v739, %v738
  %v768 = vpack.c.b16 %v741, %v740
  %v769 = vpack.c.b16 %v743, %v742
  %v770 = vpack.c.b16 %v745, %v744
  %v771 = vpack.c.b16 %v747, %v746
  %v772 = vpack.c.b16 %v749, %v748
  %v773 = vpack.c.b16 %v751, %v750
  %v774 = vpack.c.b16 %v753, %v752
  %v775 = vpack.c.b16 %v755, %v754
  %v776 = vpack.c.b16 %v757, %v756
  %v777 = vpack.c.b16 %v759, %v758
  %v778 = vpack.c.b16 %v761, %v760
  %v779 = vpack.c.b16 %v763, %v762
  %796 = vmatpush.bf16.msra.mxu0 %v771
  %797 = vmatpush.bf16.msra.mxu0 %v770
  %798 = vmatpush.bf16.msra.mxu0 %v769
  %799 = vmatpush.bf16.msra.mxu0 %v768
  %800 = vmatpush.bf16.msra.mxu0 %v767
  %801 = vmatpush.bf16.msra.mxu0 %v766
  %802 = vmatpush.bf16.msra.mxu0 %v765
  %803 = vmatpush.bf16.msra.mxu0 %v764
  %804 = vmatmul.bf16.gmra.mxu0 %v668
  %v805 = vpop.f32.mrf.mxu0
  %v806 = vadd.f32 0.0, %v805
  %v807 = vpop.f32.mrf.mxu0
  %v808 = vadd.f32 0.0, %v807
  %809 = vmatmul.bf16.gmra.mxu0 %v670
  %v810 = vpop.f32.mrf.mxu0
  %v811 = vadd.f32 0.0, %v810
  %v812 = vpop.f32.mrf.mxu0
  %v813 = vadd.f32 0.0, %v812
  %814 = vmatmul.bf16.gmra.mxu0 %v672
  %v815 = vpop.f32.mrf.mxu0
  %v816 = vadd.f32 0.0, %v815
  %v817 = vpop.f32.mrf.mxu0
  %v818 = vadd.f32 0.0, %v817
  %819 = vmatmul.bf16.gmra.mxu0 %v674
  %v820 = vpop.f32.mrf.mxu0
  %v821 = vadd.f32 0.0, %v820
  %v822 = vpop.f32.mrf.mxu0
  %v823 = vadd.f32 0.0, %v822
  %824 = vmatmul.bf16.gmra.mxu0 %v676
  %v825 = vpop.f32.mrf.mxu0
  %v826 = vadd.f32 0.0, %v825
  %v827 = vpop.f32.mrf.mxu0
  %v828 = vadd.f32 0.0, %v827
  %829 = vmatmul.bf16.gmra.mxu0 %v678
  %v830 = vpop.f32.mrf.mxu0
  %v831 = vadd.f32 0.0, %v830
  %v832 = vpop.f32.mrf.mxu0
  %v833 = vadd.f32 0.0, %v832
  %834 = vmatmul.bf16.gmra.mxu0 %v680
  %v835 = vpop.f32.mrf.mxu0
  %v836 = vadd.f32 0.0, %v835
  %v837 = vpop.f32.mrf.mxu0
  %v838 = vadd.f32 0.0, %v837
  %839 = vmatmul.bf16.gmra.mxu0 %v682
  %v840 = vpop.f32.mrf.mxu0
  %v841 = vadd.f32 0.0, %v840
  %v842 = vpop.f32.mrf.mxu0
  %v843 = vadd.f32 0.0, %v842
  %844 = vdwg.mxu0
  %845 = vmatpush.bf16.msra.mxu0 %v779
  %846 = vmatpush.bf16.msra.mxu0 %v778
  %847 = vmatpush.bf16.msra.mxu0 %v777
  %848 = vmatpush.bf16.msra.mxu0 %v776
  %849 = vmatpush.bf16.msra.mxu0 %v775
  %850 = vmatpush.bf16.msra.mxu0 %v774
  %851 = vmatpush.bf16.msra.mxu0 %v773
  %852 = vmatpush.bf16.msra.mxu0 %v772
  %853 = vmatmul.bf16.gmra.mxu0 %v669
  %v854 = vpop.f32.mrf.mxu0
  %v855 = vadd.f32 %v806, %v854
  %v856 = vpop.f32.mrf.mxu0
  %v857 = vadd.f32 %v808, %v856
  %858 = vmatmul.bf16.gmra.mxu0 %v671
  %v859 = vpop.f32.mrf.mxu0
  %v860 = vadd.f32 %v811, %v859
  %v861 = vpop.f32.mrf.mxu0
  %v862 = vadd.f32 %v813, %v861
  %863 = vmatmul.bf16.gmra.mxu0 %v673
  %v864 = vpop.f32.mrf.mxu0
  %v865 = vadd.f32 %v816, %v864
  %v866 = vpop.f32.mrf.mxu0
  %v867 = vadd.f32 %v818, %v866
  %868 = vmatmul.bf16.gmra.mxu0 %v675
  %v869 = vpop.f32.mrf.mxu0
  %v870 = vadd.f32 %v821, %v869
  %v871 = vpop.f32.mrf.mxu0
  %v872 = vadd.f32 %v823, %v871
  %873 = vmatmul.bf16.gmra.mxu0 %v677
  %v874 = vpop.f32.mrf.mxu0
  %v875 = vadd.f32 %v826, %v874
  %v876 = vpop.f32.mrf.mxu0
  %v877 = vadd.f32 %v828, %v876
  %878 = vmatmul.bf16.gmra.mxu0 %v679
  %v879 = vpop.f32.mrf.mxu0
  %v880 = vadd.f32 %v831, %v879
  %v881 = vpop.f32.mrf.mxu0
  %v882 = vadd.f32 %v833, %v881
  %883 = vmatmul.bf16.gmra.mxu0 %v681
  %v884 = vpop.f32.mrf.mxu0
  %v885 = vadd.f32 %v836, %v884
  %v886 = vpop.f32.mrf.mxu0
  %v887 = vadd.f32 %v838, %v886
  %888 = vmatmul.bf16.gmra.mxu0 %v683
  %v889 = vpop.f32.mrf.mxu0
  %v890 = vadd.f32 %v841, %v889
  %v891 = vpop.f32.mrf.mxu0
  %v892 = vadd.f32 %v843, %v891
  %893 = vdwg.mxu0
  %v894 = vld [vmem:[%s4 + $0x1] sm:$0x1]
  %v895 = vperm.slane %v894, 0
  %v896 = vmul.f32 %v855, %v895
  %v897 = vmul.f32 %v857, %v895
  %v898 = vmul.f32 %v860, %v895
  %v899 = vmul.f32 %v862, %v895
  %v900 = vmul.f32 %v865, %v895
  %v901 = vmul.f32 %v867, %v895
  %v902 = vmul.f32 %v870, %v895
  %v903 = vmul.f32 %v872, %v895
  %v904 = vmul.f32 %v875, %v895
  %v905 = vmul.f32 %v877, %v895
  %v906 = vmul.f32 %v880, %v895
  %v907 = vmul.f32 %v882, %v895
  %v908 = vmul.f32 %v885, %v895
  %v909 = vmul.f32 %v887, %v895
  %v910 = vmul.f32 %v890, %v895
  %v911 = vmul.f32 %v892, %v895
  %v912 = vld [vmem:[%s5 + $0x1] sm:$0x1]
  %v913 = vperm.slane %v912, 0
  %v914 = vadd.f32 %v896, %v913
  %v915 = vadd.f32 %v897, %v913
  %v916 = vadd.f32 %v898, %v913
  %v917 = vadd.f32 %v899, %v913
  %v918 = vadd.f32 %v900, %v913
  %v919 = vadd.f32 %v901, %v913
  %v920 = vadd.f32 %v902, %v913
  %v921 = vadd.f32 %v903, %v913
  %v922 = vadd.f32 %v904, %v913
  %v923 = vadd.f32 %v905, %v913
  %v924 = vadd.f32 %v906, %v913
  %v925 = vadd.f32 %v907, %v913
  %v926 = vadd.f32 %v908, %v913
  %v927 = vadd.f32 %v909, %v913
  %v928 = vadd.f32 %v910, %v913
  %v929 = vadd.f32 %v911, %v913
  %v930 = vmax.f32 %v914, 0.0
  %v931 = vmax.f32 %v915, 0.0
  %v932 = vmax.f32 %v916, 0.0
  %v933 = vmax.f32 %v917, 0.0
  %v934 = vmax.f32 %v918, 0.0
  %v935 = vmax.f32 %v919, 0.0
  %v936 = vmax.f32 %v920, 0.0
  %v937 = vmax.f32 %v921, 0.0
  %v938 = vmax.f32 %v922, 0.0
  %v939 = vmax.f32 %v923, 0.0
  %v940 = vmax.f32 %v924, 0.0
  %v941 = vmax.f32 %v925, 0.0
  %v942 = vmax.f32 %v926, 0.0
  %v943 = vmax.f32 %v927, 0.0
  %v944 = vmax.f32 %v928, 0.0
  %v945 = vmax.f32 %v929, 0.0
  %v946 = vmin.f32 %v930, 6.0
  %v947 = vmin.f32 %v931, 6.0
  %v948 = vmin.f32 %v932, 6.0
  %v949 = vmin.f32 %v933, 6.0
  %v950 = vmin.f32 %v934, 6.0
  %v951 = vmin.f32 %v935, 6.0
  %v952 = vmin.f32 %v936, 6.0
  %v953 = vmin.f32 %v937, 6.0
  %v954 = vmin.f32 %v938, 6.0
  %v955 = vmin.f32 %v939, 6.0
  %v956 = vmin.f32 %v940, 6.0
  %v957 = vmin.f32 %v941, 6.0
  %v958 = vmin.f32 %v942, 6.0
  %v959 = vmin.f32 %v943, 6.0
  %v960 = vmin.f32 %v944, 6.0
  %v961 = vmin.f32 %v945, 6.0
  %s962 = scalar_lea.vmem %s6, 16
  %v963 = vld [vmem:[%s962] sm:$0xff]
  %v964 = vld [vmem:[%s962 + $0x8] sm:$0xff]
  %v966 = vsel %vm454, %v946, 0
  %v969 = vsel %vm454, %v947, 0
  %v972 = vsel %vm454, %v948, 0
  %v975 = vsel %vm454, %v949, 0
  %v978 = vsel %vm454, %v950, 0
  %v981 = vsel %vm454, %v951, 0
  %v984 = vsel %vm454, %v952, 0
  %v987 = vsel %vm454, %v953, 0
  %v990 = vsel %vm454, %v954, 0
  %v993 = vsel %vm454, %v955, 0
  %v996 = vsel %vm454, %v956, 0
  %v999 = vsel %vm454, %v957, 0
  %v1002 = vsel %vm454, %v958, 0
  %v1005 = vsel %vm454, %v959, 0
  %v1008 = vsel %vm454, %v960, 0
  %v1011 = vsel %vm454, %v961, 0
  %1013 = vmatpush.msra.mxu0 0.0
  %1014 = vmatpush.msra.mxu0 0.0
  %1015 = vmatpush.msra.mxu0 0.0
  %1016 = vmatpush.msra.mxu0 0.0
  %1017 = vmatpush.msra.mxu0 0.0
  %1018 = vmatpush.msra.mxu0 0.0
  %1019 = vmatpush.msra.mxu0 0.0
  %1020 = vmatpush.msra.mxu0 0.0
  %1021 = vmatpush.msra.mxu0 0.0
  %1022 = vmatpush.msra.mxu0 0.0
  %1023 = vmatpush.msra.mxu0 0.0
  %1024 = vmatpush.msra.mxu0 0.0
  %1025 = vmatpush.msra.mxu0 0.0
  %1026 = vmatpush.msra.mxu0 0.0
  %1027 = vmatpush.msra.mxu0 %v964
  %1028 = vmatpush.msra.mxu0 %v963
  %1029 = vmatmul.f32.gmra.mxu0 %v966
  %v1030 = vpop.f32.mrf.mxu0
  %v1031 = vadd.f32 0.0, %v1030
  %1032 = vmatmul.f32.gmra.mxu0 %v969
  %v1033 = vpop.f32.mrf.mxu0
  %v1034 = vadd.f32 0.0, %v1033
  %1035 = vmatmul.f32.gmra.mxu0 %v972
  %v1036 = vpop.f32.mrf.mxu0
  %v1037 = vadd.f32 0.0, %v1036
  %1038 = vmatmul.f32.gmra.mxu0 %v975
  %v1039 = vpop.f32.mrf.mxu0
  %v1040 = vadd.f32 0.0, %v1039
  %1041 = vmatmul.f32.gmra.mxu0 %v978
  %v1042 = vpop.f32.mrf.mxu0
  %v1043 = vadd.f32 0.0, %v1042
  %1044 = vmatmul.f32.gmra.mxu0 %v981
  %v1045 = vpop.f32.mrf.mxu0
  %v1046 = vadd.f32 0.0, %v1045
  %1047 = vmatmul.f32.gmra.mxu0 %v984
  %v1048 = vpop.f32.mrf.mxu0
  %v1049 = vadd.f32 0.0, %v1048
  %1050 = vmatmul.f32.gmra.mxu0 %v987
  %v1051 = vpop.f32.mrf.mxu0
  %v1052 = vadd.f32 0.0, %v1051
  %1053 = vmatmul.f32.gmra.mxu0 %v990
  %v1054 = vpop.f32.mrf.mxu0
  %v1055 = vadd.f32 0.0, %v1054
  %1056 = vmatmul.f32.gmra.mxu0 %v993
  %v1057 = vpop.f32.mrf.mxu0
  %v1058 = vadd.f32 0.0, %v1057
  %1059 = vmatmul.f32.gmra.mxu0 %v996
  %v1060 = vpop.f32.mrf.mxu0
  %v1061 = vadd.f32 0.0, %v1060
  %1062 = vmatmul.f32.gmra.mxu0 %v999
  %v1063 = vpop.f32.mrf.mxu0
  %v1064 = vadd.f32 0.0, %v1063
  %1065 = vmatmul.f32.gmra.mxu0 %v1002
  %v1066 = vpop.f32.mrf.mxu0
  %v1067 = vadd.f32 0.0, %v1066
  %1068 = vmatmul.f32.gmra.mxu0 %v1005
  %v1069 = vpop.f32.mrf.mxu0
  %v1070 = vadd.f32 0.0, %v1069
  %1071 = vmatmul.f32.gmra.mxu0 %v1008
  %v1072 = vpop.f32.mrf.mxu0
  %v1073 = vadd.f32 0.0, %v1072
  %1074 = vmatmul.f32.gmra.mxu0 %v1011
  %v1075 = vpop.f32.mrf.mxu0
  %v1076 = vadd.f32 0.0, %v1075
  %1077 = vdwg.mxu0
  %v1078 = vadd.f32 %v571, %v1031
  %v1079 = vadd.f32 %v572, %v1034
  %v1080 = vadd.f32 %v573, %v1037
  %v1081 = vadd.f32 %v574, %v1040
  %v1082 = vadd.f32 %v575, %v1043
  %v1083 = vadd.f32 %v576, %v1046
  %v1084 = vadd.f32 %v577, %v1049
  %v1085 = vadd.f32 %v578, %v1052
  %v1086 = vadd.f32 %v579, %v1055
  %v1087 = vadd.f32 %v580, %v1058
  %v1088 = vadd.f32 %v581, %v1061
  %v1089 = vadd.f32 %v582, %v1064
  %v1090 = vadd.f32 %v583, %v1067
  %v1091 = vadd.f32 %v584, %v1070
  %v1092 = vadd.f32 %v585, %v1073
  %v1093 = vadd.f32 %v586, %v1076
  %s1094 = scalar_lea.vmem %s3, 256
  %v1095 = vld [vmem:[%s1094] sm:$0xf]
  %v1096 = vld [vmem:[%s1094 + $0x4] sm:$0xf]
  %v1097 = vld [vmem:[%s1094 + $0x8] sm:$0xf]
  %v1098 = vld [vmem:[%s1094 + $0xc] sm:$0xf]
  %v1099 = vld [vmem:[%s1094 + $0x10] sm:$0xf]
  %v1100 = vld [vmem:[%s1094 + $0x14] sm:$0xf]
  %v1101 = vld [vmem:[%s1094 + $0x18] sm:$0xf]
  %v1102 = vld [vmem:[%s1094 + $0x1c] sm:$0xf]
  %v1103 = vld [vmem:[%s1094 + $0x20] sm:$0xf]
  %v1104 = vld [vmem:[%s1094 + $0x24] sm:$0xf]
  %v1105 = vld [vmem:[%s1094 + $0x28] sm:$0xf]
  %v1106 = vld [vmem:[%s1094 + $0x2c] sm:$0xf]
  %v1107 = vld [vmem:[%s1094 + $0x30] sm:$0xf]
  %v1108 = vld [vmem:[%s1094 + $0x34] sm:$0xf]
  %v1109 = vld [vmem:[%s1094 + $0x38] sm:$0xf]
  %v1110 = vld [vmem:[%s1094 + $0x3c] sm:$0xf]
  %v1111 = vld [vmem:[%s1094 + $0x40] sm:$0xf]
  %v1112 = vld [vmem:[%s1094 + $0x44] sm:$0xf]
  %v1113 = vld [vmem:[%s1094 + $0x48] sm:$0xf]
  %v1114 = vld [vmem:[%s1094 + $0x4c] sm:$0xf]
  %v1115 = vld [vmem:[%s1094 + $0x50] sm:$0xf]
  %v1116 = vld [vmem:[%s1094 + $0x54] sm:$0xf]
  %v1117 = vld [vmem:[%s1094 + $0x58] sm:$0xf]
  %v1118 = vld [vmem:[%s1094 + $0x5c] sm:$0xf]
  %v1119 = vld [vmem:[%s1094 + $0x60] sm:$0xf]
  %v1120 = vld [vmem:[%s1094 + $0x64] sm:$0xf]
  %v1121 = vld [vmem:[%s1094 + $0x68] sm:$0xf]
  %v1122 = vld [vmem:[%s1094 + $0x6c] sm:$0xf]
  %v1123 = vld [vmem:[%s1094 + $0x70] sm:$0xf]
  %v1124 = vld [vmem:[%s1094 + $0x74] sm:$0xf]
  %v1125 = vld [vmem:[%s1094 + $0x78] sm:$0xf]
  %v1126 = vld [vmem:[%s1094 + $0x7c] sm:$0xf]
  %v1143 = vunpack.c.l.b16 %v61
  %v1144 = vunpack.c.h.b16 %v61
  %v1145 = vunpack.c.l.b16 %v62
  %v1146 = vunpack.c.h.b16 %v62
  %v1147 = vunpack.c.l.b16 %v63
  %v1148 = vunpack.c.h.b16 %v63
  %v1149 = vunpack.c.l.b16 %v64
  %v1150 = vunpack.c.h.b16 %v64
  %v1151 = vunpack.c.l.b16 %v65
  %v1152 = vunpack.c.h.b16 %v65
  %v1153 = vunpack.c.l.b16 %v66
  %v1154 = vunpack.c.h.b16 %v66
  %v1155 = vunpack.c.l.b16 %v67
  %v1156 = vunpack.c.h.b16 %v67
  %v1157 = vunpack.c.l.b16 %v68
  %v1158 = vunpack.c.h.b16 %v68
  %v1159 = vunpack.c.l.b16 %v69
  %v1160 = vunpack.c.h.b16 %v69
  %v1161 = vunpack.c.l.b16 %v70
  %v1162 = vunpack.c.h.b16 %v70
  %v1163 = vunpack.c.l.b16 %v71
  %v1164 = vunpack.c.h.b16 %v71
  %v1165 = vunpack.c.l.b16 %v72
  %v1166 = vunpack.c.h.b16 %v72
  %v1167 = vunpack.c.l.b16 %v73
  %v1168 = vunpack.c.h.b16 %v73
  %v1169 = vunpack.c.l.b16 %v74
  %v1170 = vunpack.c.h.b16 %v74
  %v1171 = vunpack.c.l.b16 %v75
  %v1172 = vunpack.c.h.b16 %v75
  %v1173 = vunpack.c.l.b16 %v76
  %v1174 = vunpack.c.h.b16 %v76
  %v1175 = vpack.c.b16 %v1145, %v1143
  %v1176 = vpack.c.b16 %v1146, %v1144
  %v1177 = vpack.c.b16 %v1149, %v1147
  %v1178 = vpack.c.b16 %v1150, %v1148
  %v1179 = vpack.c.b16 %v1153, %v1151
  %v1180 = vpack.c.b16 %v1154, %v1152
  %v1181 = vpack.c.b16 %v1157, %v1155
  %v1182 = vpack.c.b16 %v1158, %v1156
  %v1183 = vpack.c.b16 %v1161, %v1159
  %v1184 = vpack.c.b16 %v1162, %v1160
  %v1185 = vpack.c.b16 %v1165, %v1163
  %v1186 = vpack.c.b16 %v1166, %v1164
  %v1187 = vpack.c.b16 %v1169, %v1167
  %v1188 = vpack.c.b16 %v1170, %v1168
  %v1189 = vpack.c.b16 %v1173, %v1171
  %v1190 = vpack.c.b16 %v1174, %v1172
  %v1239 = vunpack.c.l.b16 %v1095
  %v1240 = vunpack.c.l.b16 %v1096
  %v1241 = vunpack.c.l.b16 %v1097
  %v1242 = vunpack.c.l.b16 %v1098
  %v1243 = vunpack.c.l.b16 %v1099
  %v1244 = vunpack.c.l.b16 %v1100
  %v1245 = vunpack.c.l.b16 %v1101
  %v1246 = vunpack.c.l.b16 %v1102
  %v1247 = vunpack.c.l.b16 %v1103
  %v1248 = vunpack.c.l.b16 %v1104
  %v1249 = vunpack.c.l.b16 %v1105
  %v1250 = vunpack.c.l.b16 %v1106
  %v1251 = vunpack.c.l.b16 %v1107
  %v1252 = vunpack.c.l.b16 %v1108
  %v1253 = vunpack.c.l.b16 %v1109
  %v1254 = vunpack.c.l.b16 %v1110
  %v1255 = vunpack.c.l.b16 %v1111
  %v1256 = vunpack.c.l.b16 %v1112
  %v1257 = vunpack.c.l.b16 %v1113
  %v1258 = vunpack.c.l.b16 %v1114
  %v1259 = vunpack.c.l.b16 %v1115
  %v1260 = vunpack.c.l.b16 %v1116
  %v1261 = vunpack.c.l.b16 %v1117
  %v1262 = vunpack.c.l.b16 %v1118
  %v1263 = vunpack.c.l.b16 %v1119
  %v1264 = vunpack.c.l.b16 %v1120
  %v1265 = vunpack.c.l.b16 %v1121
  %v1266 = vunpack.c.l.b16 %v1122
  %v1267 = vunpack.c.l.b16 %v1123
  %v1268 = vunpack.c.l.b16 %v1124
  %v1269 = vunpack.c.l.b16 %v1125
  %v1270 = vunpack.c.l.b16 %v1126
  %v1271 = vpack.c.b16 %v1240, %v1239
  %v1272 = vpack.c.b16 %v1242, %v1241
  %v1273 = vpack.c.b16 %v1244, %v1243
  %v1274 = vpack.c.b16 %v1246, %v1245
  %v1275 = vpack.c.b16 %v1248, %v1247
  %v1276 = vpack.c.b16 %v1250, %v1249
  %v1277 = vpack.c.b16 %v1252, %v1251
  %v1278 = vpack.c.b16 %v1254, %v1253
  %v1279 = vpack.c.b16 %v1256, %v1255
  %v1280 = vpack.c.b16 %v1258, %v1257
  %v1281 = vpack.c.b16 %v1260, %v1259
  %v1282 = vpack.c.b16 %v1262, %v1261
  %v1283 = vpack.c.b16 %v1264, %v1263
  %v1284 = vpack.c.b16 %v1266, %v1265
  %v1285 = vpack.c.b16 %v1268, %v1267
  %v1286 = vpack.c.b16 %v1270, %v1269
  %1303 = vmatpush.bf16.msra.mxu0 %v1278
  %1304 = vmatpush.bf16.msra.mxu0 %v1277
  %1305 = vmatpush.bf16.msra.mxu0 %v1276
  %1306 = vmatpush.bf16.msra.mxu0 %v1275
  %1307 = vmatpush.bf16.msra.mxu0 %v1274
  %1308 = vmatpush.bf16.msra.mxu0 %v1273
  %1309 = vmatpush.bf16.msra.mxu0 %v1272
  %1310 = vmatpush.bf16.msra.mxu0 %v1271
  %1311 = vmatmul.bf16.gmra.mxu0 %v1175
  %v1312 = vpop.f32.mrf.mxu0
  %v1313 = vadd.f32 0.0, %v1312
  %v1314 = vpop.f32.mrf.mxu0
  %v1315 = vadd.f32 0.0, %v1314
  %1316 = vmatmul.bf16.gmra.mxu0 %v1177
  %v1317 = vpop.f32.mrf.mxu0
  %v1318 = vadd.f32 0.0, %v1317
  %v1319 = vpop.f32.mrf.mxu0
  %v1320 = vadd.f32 0.0, %v1319
  %1321 = vmatmul.bf16.gmra.mxu0 %v1179
  %v1322 = vpop.f32.mrf.mxu0
  %v1323 = vadd.f32 0.0, %v1322
  %v1324 = vpop.f32.mrf.mxu0
  %v1325 = vadd.f32 0.0, %v1324
  %1326 = vmatmul.bf16.gmra.mxu0 %v1181
  %v1327 = vpop.f32.mrf.mxu0
  %v1328 = vadd.f32 0.0, %v1327
  %v1329 = vpop.f32.mrf.mxu0
  %v1330 = vadd.f32 0.0, %v1329
  %1331 = vmatmul.bf16.gmra.mxu0 %v1183
  %v1332 = vpop.f32.mrf.mxu0
  %v1333 = vadd.f32 0.0, %v1332
  %v1334 = vpop.f32.mrf.mxu0
  %v1335 = vadd.f32 0.0, %v1334
  %1336 = vmatmul.bf16.gmra.mxu0 %v1185
  %v1337 = vpop.f32.mrf.mxu0
  %v1338 = vadd.f32 0.0, %v1337
  %v1339 = vpop.f32.mrf.mxu0
  %v1340 = vadd.f32 0.0, %v1339
  %1341 = vmatmul.bf16.gmra.mxu0 %v1187
  %v1342 = vpop.f32.mrf.mxu0
  %v1343 = vadd.f32 0.0, %v1342
  %v1344 = vpop.f32.mrf.mxu0
  %v1345 = vadd.f32 0.0, %v1344
  %1346 = vmatmul.bf16.gmra.mxu0 %v1189
  %v1347 = vpop.f32.mrf.mxu0
  %v1348 = vadd.f32 0.0, %v1347
  %v1349 = vpop.f32.mrf.mxu0
  %v1350 = vadd.f32 0.0, %v1349
  %1351 = vdwg.mxu0
  %1352 = vmatpush.bf16.msra.mxu0 %v1286
  %1353 = vmatpush.bf16.msra.mxu0 %v1285
  %1354 = vmatpush.bf16.msra.mxu0 %v1284
  %1355 = vmatpush.bf16.msra.mxu0 %v1283
  %1356 = vmatpush.bf16.msra.mxu0 %v1282
  %1357 = vmatpush.bf16.msra.mxu0 %v1281
  %1358 = vmatpush.bf16.msra.mxu0 %v1280
  %1359 = vmatpush.bf16.msra.mxu0 %v1279
  %1360 = vmatmul.bf16.gmra.mxu0 %v1176
  %v1361 = vpop.f32.mrf.mxu0
  %v1362 = vadd.f32 %v1313, %v1361
  %v1363 = vpop.f32.mrf.mxu0
  %v1364 = vadd.f32 %v1315, %v1363
  %1365 = vmatmul.bf16.gmra.mxu0 %v1178
  %v1366 = vpop.f32.mrf.mxu0
  %v1367 = vadd.f32 %v1318, %v1366
  %v1368 = vpop.f32.mrf.mxu0
  %v1369 = vadd.f32 %v1320, %v1368
  %1370 = vmatmul.bf16.gmra.mxu0 %v1180
  %v1371 = vpop.f32.mrf.mxu0
  %v1372 = vadd.f32 %v1323, %v1371
  %v1373 = vpop.f32.mrf.mxu0
  %v1374 = vadd.f32 %v1325, %v1373
  %1375 = vmatmul.bf16.gmra.mxu0 %v1182
  %v1376 = vpop.f32.mrf.mxu0
  %v1377 = vadd.f32 %v1328, %v1376
  %v1378 = vpop.f32.mrf.mxu0
  %v1379 = vadd.f32 %v1330, %v1378
  %1380 = vmatmul.bf16.gmra.mxu0 %v1184
  %v1381 = vpop.f32.mrf.mxu0
  %v1382 = vadd.f32 %v1333, %v1381
  %v1383 = vpop.f32.mrf.mxu0
  %v1384 = vadd.f32 %v1335, %v1383
  %1385 = vmatmul.bf16.gmra.mxu0 %v1186
  %v1386 = vpop.f32.mrf.mxu0
  %v1387 = vadd.f32 %v1338, %v1386
  %v1388 = vpop.f32.mrf.mxu0
  %v1389 = vadd.f32 %v1340, %v1388
  %1390 = vmatmul.bf16.gmra.mxu0 %v1188
  %v1391 = vpop.f32.mrf.mxu0
  %v1392 = vadd.f32 %v1343, %v1391
  %v1393 = vpop.f32.mrf.mxu0
  %v1394 = vadd.f32 %v1345, %v1393
  %1395 = vmatmul.bf16.gmra.mxu0 %v1190
  %v1396 = vpop.f32.mrf.mxu0
  %v1397 = vadd.f32 %v1348, %v1396
  %v1398 = vpop.f32.mrf.mxu0
  %v1399 = vadd.f32 %v1350, %v1398
  %1400 = vdwg.mxu0
  %v1401 = vld [vmem:[%s4 + $0x2] sm:$0x1]
  %v1402 = vperm.slane %v1401, 0
  %v1403 = vmul.f32 %v1362, %v1402
  %v1404 = vmul.f32 %v1364, %v1402
  %v1405 = vmul.f32 %v1367, %v1402
  %v1406 = vmul.f32 %v1369, %v1402
  %v1407 = vmul.f32 %v1372, %v1402
  %v1408 = vmul.f32 %v1374, %v1402
  %v1409 = vmul.f32 %v1377, %v1402
  %v1410 = vmul.f32 %v1379, %v1402
  %v1411 = vmul.f32 %v1382, %v1402
  %v1412 = vmul.f32 %v1384, %v1402
  %v1413 = vmul.f32 %v1387, %v1402
  %v1414 = vmul.f32 %v1389, %v1402
  %v1415 = vmul.f32 %v1392, %v1402
  %v1416 = vmul.f32 %v1394, %v1402
  %v1417 = vmul.f32 %v1397, %v1402
  %v1418 = vmul.f32 %v1399, %v1402
  %v1419 = vld [vmem:[%s5 + $0x2] sm:$0x1]
  %v1420 = vperm.slane %v1419, 0
  %v1421 = vadd.f32 %v1403, %v1420
  %v1422 = vadd.f32 %v1404, %v1420
  %v1423 = vadd.f32 %v1405, %v1420
  %v1424 = vadd.f32 %v1406, %v1420
  %v1425 = vadd.f32 %v1407, %v1420
  %v1426 = vadd.f32 %v1408, %v1420
  %v1427 = vadd.f32 %v1409, %v1420
  %v1428 = vadd.f32 %v1410, %v1420
  %v1429 = vadd.f32 %v1411, %v1420
  %v1430 = vadd.f32 %v1412, %v1420
  %v1431 = vadd.f32 %v1413, %v1420
  %v1432 = vadd.f32 %v1414, %v1420
  %v1433 = vadd.f32 %v1415, %v1420
  %v1434 = vadd.f32 %v1416, %v1420
  %v1435 = vadd.f32 %v1417, %v1420
  %v1436 = vadd.f32 %v1418, %v1420
  %v1437 = vmax.f32 %v1421, 0.0
  %v1438 = vmax.f32 %v1422, 0.0
  %v1439 = vmax.f32 %v1423, 0.0
  %v1440 = vmax.f32 %v1424, 0.0
  %v1441 = vmax.f32 %v1425, 0.0
  %v1442 = vmax.f32 %v1426, 0.0
  %v1443 = vmax.f32 %v1427, 0.0
  %v1444 = vmax.f32 %v1428, 0.0
  %v1445 = vmax.f32 %v1429, 0.0
  %v1446 = vmax.f32 %v1430, 0.0
  %v1447 = vmax.f32 %v1431, 0.0
  %v1448 = vmax.f32 %v1432, 0.0
  %v1449 = vmax.f32 %v1433, 0.0
  %v1450 = vmax.f32 %v1434, 0.0
  %v1451 = vmax.f32 %v1435, 0.0
  %v1452 = vmax.f32 %v1436, 0.0
  %v1453 = vmin.f32 %v1437, 6.0
  %v1454 = vmin.f32 %v1438, 6.0
  %v1455 = vmin.f32 %v1439, 6.0
  %v1456 = vmin.f32 %v1440, 6.0
  %v1457 = vmin.f32 %v1441, 6.0
  %v1458 = vmin.f32 %v1442, 6.0
  %v1459 = vmin.f32 %v1443, 6.0
  %v1460 = vmin.f32 %v1444, 6.0
  %v1461 = vmin.f32 %v1445, 6.0
  %v1462 = vmin.f32 %v1446, 6.0
  %v1463 = vmin.f32 %v1447, 6.0
  %v1464 = vmin.f32 %v1448, 6.0
  %v1465 = vmin.f32 %v1449, 6.0
  %v1466 = vmin.f32 %v1450, 6.0
  %v1467 = vmin.f32 %v1451, 6.0
  %v1468 = vmin.f32 %v1452, 6.0
  %s1469 = scalar_lea.vmem %s6, 32
  %v1470 = vld [vmem:[%s1469] sm:$0xff]
  %v1471 = vld [vmem:[%s1469 + $0x8] sm:$0xff]
  %v1473 = vsel %vm454, %v1453, 0
  %v1476 = vsel %vm454, %v1454, 0
  %v1479 = vsel %vm454, %v1455, 0
  %v1482 = vsel %vm454, %v1456, 0
  %v1485 = vsel %vm454, %v1457, 0
  %v1488 = vsel %vm454, %v1458, 0
  %v1491 = vsel %vm454, %v1459, 0
  %v1494 = vsel %vm454, %v1460, 0
  %v1497 = vsel %vm454, %v1461, 0
  %v1500 = vsel %vm454, %v1462, 0
  %v1503 = vsel %vm454, %v1463, 0
  %v1506 = vsel %vm454, %v1464, 0
  %v1509 = vsel %vm454, %v1465, 0
  %v1512 = vsel %vm454, %v1466, 0
  %v1515 = vsel %vm454, %v1467, 0
  %v1518 = vsel %vm454, %v1468, 0
  %1520 = vmatpush.msra.mxu0 0.0
  %1521 = vmatpush.msra.mxu0 0.0
  %1522 = vmatpush.msra.mxu0 0.0
  %1523 = vmatpush.msra.mxu0 0.0
  %1524 = vmatpush.msra.mxu0 0.0
  %1525 = vmatpush.msra.mxu0 0.0
  %1526 = vmatpush.msra.mxu0 0.0
  %1527 = vmatpush.msra.mxu0 0.0
  %1528 = vmatpush.msra.mxu0 0.0
  %1529 = vmatpush.msra.mxu0 0.0
  %1530 = vmatpush.msra.mxu0 0.0
  %1531 = vmatpush.msra.mxu0 0.0
  %1532 = vmatpush.msra.mxu0 0.0
  %1533 = vmatpush.msra.mxu0 0.0
  %1534 = vmatpush.msra.mxu0 %v1471
  %1535 = vmatpush.msra.mxu0 %v1470
  %1536 = vmatmul.f32.gmra.mxu0 %v1473
  %v1537 = vpop.f32.mrf.mxu0
  %v1538 = vadd.f32 0.0, %v1537
  %1539 = vmatmul.f32.gmra.mxu0 %v1476
  %v1540 = vpop.f32.mrf.mxu0
  %v1541 = vadd.f32 0.0, %v1540
  %1542 = vmatmul.f32.gmra.mxu0 %v1479
  %v1543 = vpop.f32.mrf.mxu0
  %v1544 = vadd.f32 0.0, %v1543
  %1545 = vmatmul.f32.gmra.mxu0 %v1482
  %v1546 = vpop.f32.mrf.mxu0
  %v1547 = vadd.f32 0.0, %v1546
  %1548 = vmatmul.f32.gmra.mxu0 %v1485
  %v1549 = vpop.f32.mrf.mxu0
  %v1550 = vadd.f32 0.0, %v1549
  %1551 = vmatmul.f32.gmra.mxu0 %v1488
  %v1552 = vpop.f32.mrf.mxu0
  %v1553 = vadd.f32 0.0, %v1552
  %1554 = vmatmul.f32.gmra.mxu0 %v1491
  %v1555 = vpop.f32.mrf.mxu0
  %v1556 = vadd.f32 0.0, %v1555
  %1557 = vmatmul.f32.gmra.mxu0 %v1494
  %v1558 = vpop.f32.mrf.mxu0
  %v1559 = vadd.f32 0.0, %v1558
  %1560 = vmatmul.f32.gmra.mxu0 %v1497
  %v1561 = vpop.f32.mrf.mxu0
  %v1562 = vadd.f32 0.0, %v1561
  %1563 = vmatmul.f32.gmra.mxu0 %v1500
  %v1564 = vpop.f32.mrf.mxu0
  %v1565 = vadd.f32 0.0, %v1564
  %1566 = vmatmul.f32.gmra.mxu0 %v1503
  %v1567 = vpop.f32.mrf.mxu0
  %v1568 = vadd.f32 0.0, %v1567
  %1569 = vmatmul.f32.gmra.mxu0 %v1506
  %v1570 = vpop.f32.mrf.mxu0
  %v1571 = vadd.f32 0.0, %v1570
  %1572 = vmatmul.f32.gmra.mxu0 %v1509
  %v1573 = vpop.f32.mrf.mxu0
  %v1574 = vadd.f32 0.0, %v1573
  %1575 = vmatmul.f32.gmra.mxu0 %v1512
  %v1576 = vpop.f32.mrf.mxu0
  %v1577 = vadd.f32 0.0, %v1576
  %1578 = vmatmul.f32.gmra.mxu0 %v1515
  %v1579 = vpop.f32.mrf.mxu0
  %v1580 = vadd.f32 0.0, %v1579
  %1581 = vmatmul.f32.gmra.mxu0 %v1518
  %v1582 = vpop.f32.mrf.mxu0
  %v1583 = vadd.f32 0.0, %v1582
  %1584 = vdwg.mxu0
  %v1585 = vadd.f32 %v1078, %v1538
  %v1586 = vadd.f32 %v1079, %v1541
  %v1587 = vadd.f32 %v1080, %v1544
  %v1588 = vadd.f32 %v1081, %v1547
  %v1589 = vadd.f32 %v1082, %v1550
  %v1590 = vadd.f32 %v1083, %v1553
  %v1591 = vadd.f32 %v1084, %v1556
  %v1592 = vadd.f32 %v1085, %v1559
  %v1593 = vadd.f32 %v1086, %v1562
  %v1594 = vadd.f32 %v1087, %v1565
  %v1595 = vadd.f32 %v1088, %v1568
  %v1596 = vadd.f32 %v1089, %v1571
  %v1597 = vadd.f32 %v1090, %v1574
  %v1598 = vadd.f32 %v1091, %v1577
  %v1599 = vadd.f32 %v1092, %v1580
  %v1600 = vadd.f32 %v1093, %v1583
  %vm1601 = vcmask 23552
  %v1602 = vsel %vm1601, %v1585, -inf
  %1603 = vmax.xlane.f32.xlu0 %v1602
  %v1604 = vpop.xlane.xlu0 %1603
  %v1605 = vsel %vm1601, %v1586, -inf
  %1606 = vmax.xlane.f32.xlu0 %v1605
  %v1607 = vpop.xlane.xlu0 %1606
  %v1608 = vsel %vm1601, %v1587, -inf
  %1609 = vmax.xlane.f32.xlu0 %v1608
  %v1610 = vpop.xlane.xlu0 %1609
  %v1611 = vsel %vm1601, %v1588, -inf
  %1612 = vmax.xlane.f32.xlu0 %v1611
  %v1613 = vpop.xlane.xlu0 %1612
  %v1614 = vsel %vm1601, %v1589, -inf
  %1615 = vmax.xlane.f32.xlu0 %v1614
  %v1616 = vpop.xlane.xlu0 %1615
  %v1617 = vsel %vm1601, %v1590, -inf
  %1618 = vmax.xlane.f32.xlu0 %v1617
  %v1619 = vpop.xlane.xlu0 %1618
  %v1620 = vsel %vm1601, %v1591, -inf
  %1621 = vmax.xlane.f32.xlu0 %v1620
  %v1622 = vpop.xlane.xlu0 %1621
  %v1623 = vsel %vm1601, %v1592, -inf
  %1624 = vmax.xlane.f32.xlu0 %v1623
  %v1625 = vpop.xlane.xlu0 %1624
  %v1626 = vsel %vm1601, %v1593, -inf
  %1627 = vmax.xlane.f32.xlu0 %v1626
  %v1628 = vpop.xlane.xlu0 %1627
  %v1629 = vsel %vm1601, %v1594, -inf
  %1630 = vmax.xlane.f32.xlu0 %v1629
  %v1631 = vpop.xlane.xlu0 %1630
  %v1632 = vsel %vm1601, %v1595, -inf
  %1633 = vmax.xlane.f32.xlu0 %v1632
  %v1634 = vpop.xlane.xlu0 %1633
  %v1635 = vsel %vm1601, %v1596, -inf
  %1636 = vmax.xlane.f32.xlu0 %v1635
  %v1637 = vpop.xlane.xlu0 %1636
  %v1638 = vsel %vm1601, %v1597, -inf
  %1639 = vmax.xlane.f32.xlu0 %v1638
  %v1640 = vpop.xlane.xlu0 %1639
  %v1641 = vsel %vm1601, %v1598, -inf
  %1642 = vmax.xlane.f32.xlu0 %v1641
  %v1643 = vpop.xlane.xlu0 %1642
  %v1644 = vsel %vm1601, %v1599, -inf
  %1645 = vmax.xlane.f32.xlu0 %v1644
  %v1646 = vpop.xlane.xlu0 %1645
  %v1647 = vsel %vm1601, %v1600, -inf
  %1648 = vmax.xlane.f32.xlu0 %v1647
  %v1649 = vpop.xlane.xlu0 %1648
  %v1650 = vsub.f32 %v1585, %v1604
  %v1651 = vsub.f32 %v1586, %v1607
  %v1652 = vsub.f32 %v1587, %v1610
  %v1653 = vsub.f32 %v1588, %v1613
  %v1654 = vsub.f32 %v1589, %v1616
  %v1655 = vsub.f32 %v1590, %v1619
  %v1656 = vsub.f32 %v1591, %v1622
  %v1657 = vsub.f32 %v1592, %v1625
  %v1658 = vsub.f32 %v1593, %v1628
  %v1659 = vsub.f32 %v1594, %v1631
  %v1660 = vsub.f32 %v1595, %v1634
  %v1661 = vsub.f32 %v1596, %v1637
  %v1662 = vsub.f32 %v1597, %v1640
  %v1663 = vsub.f32 %v1598, %v1643
  %v1664 = vsub.f32 %v1599, %v1646
  %v1665 = vsub.f32 %v1600, %v1649
  %v1666 = vmul.f32 %v1650, 1.442695
  %v1667 = vpow.pop %v1666
  %v1668 = vmul.f32 %v1651, 1.442695
  %v1669 = vpow.pop %v1668
  %v1670 = vmul.f32 %v1652, 1.442695
  %v1671 = vpow.pop %v1670
  %v1672 = vmul.f32 %v1653, 1.442695
  %v1673 = vpow.pop %v1672
  %v1674 = vmul.f32 %v1654, 1.442695
  %v1675 = vpow.pop %v1674
  %v1676 = vmul.f32 %v1655, 1.442695
  %v1677 = vpow.pop %v1676
  %v1678 = vmul.f32 %v1656, 1.442695
  %v1679 = vpow.pop %v1678
  %v1680 = vmul.f32 %v1657, 1.442695
  %v1681 = vpow.pop %v1680
  %v1682 = vmul.f32 %v1658, 1.442695
  %v1683 = vpow.pop %v1682
  %v1684 = vmul.f32 %v1659, 1.442695
  %v1685 = vpow.pop %v1684
  %v1686 = vmul.f32 %v1660, 1.442695
  %v1687 = vpow.pop %v1686
  %v1688 = vmul.f32 %v1661, 1.442695
  %v1689 = vpow.pop %v1688
  %v1690 = vmul.f32 %v1662, 1.442695
  %v1691 = vpow.pop %v1690
  %v1692 = vmul.f32 %v1663, 1.442695
  %v1693 = vpow.pop %v1692
  %v1694 = vmul.f32 %v1664, 1.442695
  %v1695 = vpow.pop %v1694
  %v1696 = vmul.f32 %v1665, 1.442695
  %v1697 = vpow.pop %v1696
  %v1698 = vsel %vm1601, %v1667, 0.0
  %1699 = vadd.xlane.f32.xlu0 %v1698
  %v1700 = vpop.xlane.xlu0 %1699
  %v1701 = vsel %vm1601, %v1669, 0.0
  %1702 = vadd.xlane.f32.xlu0 %v1701
  %v1703 = vpop.xlane.xlu0 %1702
  %v1704 = vsel %vm1601, %v1671, 0.0
  %1705 = vadd.xlane.f32.xlu0 %v1704
  %v1706 = vpop.xlane.xlu0 %1705
  %v1707 = vsel %vm1601, %v1673, 0.0
  %1708 = vadd.xlane.f32.xlu0 %v1707
  %v1709 = vpop.xlane.xlu0 %1708
  %v1710 = vsel %vm1601, %v1675, 0.0
  %1711 = vadd.xlane.f32.xlu0 %v1710
  %v1712 = vpop.xlane.xlu0 %1711
  %v1713 = vsel %vm1601, %v1677, 0.0
  %1714 = vadd.xlane.f32.xlu0 %v1713
  %v1715 = vpop.xlane.xlu0 %1714
  %v1716 = vsel %vm1601, %v1679, 0.0
  %1717 = vadd.xlane.f32.xlu0 %v1716
  %v1718 = vpop.xlane.xlu0 %1717
  %v1719 = vsel %vm1601, %v1681, 0.0
  %1720 = vadd.xlane.f32.xlu0 %v1719
  %v1721 = vpop.xlane.xlu0 %1720
  %v1722 = vsel %vm1601, %v1683, 0.0
  %1723 = vadd.xlane.f32.xlu0 %v1722
  %v1724 = vpop.xlane.xlu0 %1723
  %v1725 = vsel %vm1601, %v1685, 0.0
  %1726 = vadd.xlane.f32.xlu0 %v1725
  %v1727 = vpop.xlane.xlu0 %1726
  %v1728 = vsel %vm1601, %v1687, 0.0
  %1729 = vadd.xlane.f32.xlu0 %v1728
  %v1730 = vpop.xlane.xlu0 %1729
  %v1731 = vsel %vm1601, %v1689, 0.0
  %1732 = vadd.xlane.f32.xlu0 %v1731
  %v1733 = vpop.xlane.xlu0 %1732
  %v1734 = vsel %vm1601, %v1691, 0.0
  %1735 = vadd.xlane.f32.xlu0 %v1734
  %v1736 = vpop.xlane.xlu0 %1735
  %v1737 = vsel %vm1601, %v1693, 0.0
  %1738 = vadd.xlane.f32.xlu0 %v1737
  %v1739 = vpop.xlane.xlu0 %1738
  %v1740 = vsel %vm1601, %v1695, 0.0
  %1741 = vadd.xlane.f32.xlu0 %v1740
  %v1742 = vpop.xlane.xlu0 %1741
  %v1743 = vsel %vm1601, %v1697, 0.0
  %1744 = vadd.xlane.f32.xlu0 %v1743
  %v1745 = vpop.xlane.xlu0 %1744
  %v1746 = vrcp.pop %v1700
  %v1747 = vrcp.pop %v1703
  %v1748 = vrcp.pop %v1706
  %v1749 = vrcp.pop %v1709
  %v1750 = vrcp.pop %v1712
  %v1751 = vrcp.pop %v1715
  %v1752 = vrcp.pop %v1718
  %v1753 = vrcp.pop %v1721
  %v1754 = vrcp.pop %v1724
  %v1755 = vrcp.pop %v1727
  %v1756 = vrcp.pop %v1730
  %v1757 = vrcp.pop %v1733
  %v1758 = vrcp.pop %v1736
  %v1759 = vrcp.pop %v1739
  %v1760 = vrcp.pop %v1742
  %v1761 = vrcp.pop %v1745
  %v1762 = vmul.f32 %v1667, %v1746
  %v1763 = vmul.f32 %v1669, %v1747
  %v1764 = vmul.f32 %v1671, %v1748
  %v1765 = vmul.f32 %v1673, %v1749
  %v1766 = vmul.f32 %v1675, %v1750
  %v1767 = vmul.f32 %v1677, %v1751
  %v1768 = vmul.f32 %v1679, %v1752
  %v1769 = vmul.f32 %v1681, %v1753
  %v1770 = vmul.f32 %v1683, %v1754
  %v1771 = vmul.f32 %v1685, %v1755
  %v1772 = vmul.f32 %v1687, %v1756
  %v1773 = vmul.f32 %v1689, %v1757
  %v1774 = vmul.f32 %v1691, %v1758
  %v1775 = vmul.f32 %v1693, %v1759
  %v1776 = vmul.f32 %v1695, %v1760
  %v1777 = vmul.f32 %v1697, %v1761
  %v1778 = vunpack.c.l.bf16 %v29
  %v1779 = vunpack.c.h.bf16 %v29
  %v1780 = vunpack.c.l.bf16 %v30
  %v1781 = vunpack.c.h.bf16 %v30
  %v1782 = vunpack.c.l.bf16 %v31
  %v1783 = vunpack.c.h.bf16 %v31
  %v1784 = vunpack.c.l.bf16 %v32
  %v1785 = vunpack.c.h.bf16 %v32
  %v1786 = vunpack.c.l.bf16 %v33
  %v1787 = vunpack.c.h.bf16 %v33
  %v1788 = vunpack.c.l.bf16 %v34
  %v1789 = vunpack.c.h.bf16 %v34
  %v1790 = vunpack.c.l.bf16 %v35
  %v1791 = vunpack.c.h.bf16 %v35
  %v1792 = vunpack.c.l.bf16 %v36
  %v1793 = vunpack.c.h.bf16 %v36
  %v1794 = vunpack.c.l.bf16 %v37
  %v1795 = vunpack.c.h.bf16 %v37
  %v1796 = vunpack.c.l.bf16 %v38
  %v1797 = vunpack.c.h.bf16 %v38
  %v1798 = vunpack.c.l.bf16 %v39
  %v1799 = vunpack.c.h.bf16 %v39
  %v1800 = vunpack.c.l.bf16 %v40
  %v1801 = vunpack.c.h.bf16 %v40
  %v1802 = vunpack.c.l.bf16 %v41
  %v1803 = vunpack.c.h.bf16 %v41
  %v1804 = vunpack.c.l.bf16 %v42
  %v1805 = vunpack.c.h.bf16 %v42
  %v1806 = vunpack.c.l.bf16 %v43
  %v1807 = vunpack.c.h.bf16 %v43
  %v1808 = vunpack.c.l.bf16 %v44
  %v1809 = vunpack.c.h.bf16 %v44
  %1811 = vset.pattern.permute.xlu0 0
  %1812 = vperm.xlu0 %1811, %v1762
  %v1813 = vpop.permute.xlu0 %1812
  %1816 = vset.pattern.permute.xlu0 0
  %1817 = vperm.xlu0 %1816, %v1763
  %v1818 = vpop.permute.xlu0 %1817
  %1821 = vset.pattern.permute.xlu0 0
  %1822 = vperm.xlu0 %1821, %v1764
  %v1823 = vpop.permute.xlu0 %1822
  %1826 = vset.pattern.permute.xlu0 0
  %1827 = vperm.xlu0 %1826, %v1765
  %v1828 = vpop.permute.xlu0 %1827
  %1831 = vset.pattern.permute.xlu0 0
  %1832 = vperm.xlu0 %1831, %v1766
  %v1833 = vpop.permute.xlu0 %1832
  %1836 = vset.pattern.permute.xlu0 0
  %1837 = vperm.xlu0 %1836, %v1767
  %v1838 = vpop.permute.xlu0 %1837
  %1841 = vset.pattern.permute.xlu0 0
  %1842 = vperm.xlu0 %1841, %v1768
  %v1843 = vpop.permute.xlu0 %1842
  %1846 = vset.pattern.permute.xlu0 0
  %1847 = vperm.xlu0 %1846, %v1769
  %v1848 = vpop.permute.xlu0 %1847
  %1851 = vset.pattern.permute.xlu0 0
  %1852 = vperm.xlu0 %1851, %v1770
  %v1853 = vpop.permute.xlu0 %1852
  %1856 = vset.pattern.permute.xlu0 0
  %1857 = vperm.xlu0 %1856, %v1771
  %v1858 = vpop.permute.xlu0 %1857
  %1861 = vset.pattern.permute.xlu0 0
  %1862 = vperm.xlu0 %1861, %v1772
  %v1863 = vpop.permute.xlu0 %1862
  %1866 = vset.pattern.permute.xlu0 0
  %1867 = vperm.xlu0 %1866, %v1773
  %v1868 = vpop.permute.xlu0 %1867
  %1871 = vset.pattern.permute.xlu0 0
  %1872 = vperm.xlu0 %1871, %v1774
  %v1873 = vpop.permute.xlu0 %1872
  %1876 = vset.pattern.permute.xlu0 0
  %1877 = vperm.xlu0 %1876, %v1775
  %v1878 = vpop.permute.xlu0 %1877
  %1881 = vset.pattern.permute.xlu0 0
  %1882 = vperm.xlu0 %1881, %v1776
  %v1883 = vpop.permute.xlu0 %1882
  %1886 = vset.pattern.permute.xlu0 0
  %1887 = vperm.xlu0 %1886, %v1777
  %v1888 = vpop.permute.xlu0 %1887
  %v1890 = vmul.f32 %v1778, %v1813
  %v1891 = vmul.f32 %v1779, %v1813
  %v1892 = vmul.f32 %v1780, %v1818
  %v1893 = vmul.f32 %v1781, %v1818
  %v1894 = vmul.f32 %v1782, %v1823
  %v1895 = vmul.f32 %v1783, %v1823
  %v1896 = vmul.f32 %v1784, %v1828
  %v1897 = vmul.f32 %v1785, %v1828
  %v1898 = vmul.f32 %v1786, %v1833
  %v1899 = vmul.f32 %v1787, %v1833
  %v1900 = vmul.f32 %v1788, %v1838
  %v1901 = vmul.f32 %v1789, %v1838
  %v1902 = vmul.f32 %v1790, %v1843
  %v1903 = vmul.f32 %v1791, %v1843
  %v1904 = vmul.f32 %v1792, %v1848
  %v1905 = vmul.f32 %v1793, %v1848
  %v1906 = vmul.f32 %v1794, %v1853
  %v1907 = vmul.f32 %v1795, %v1853
  %v1908 = vmul.f32 %v1796, %v1858
  %v1909 = vmul.f32 %v1797, %v1858
  %v1910 = vmul.f32 %v1798, %v1863
  %v1911 = vmul.f32 %v1799, %v1863
  %v1912 = vmul.f32 %v1800, %v1868
  %v1913 = vmul.f32 %v1801, %v1868
  %v1914 = vmul.f32 %v1802, %v1873
  %v1915 = vmul.f32 %v1803, %v1873
  %v1916 = vmul.f32 %v1804, %v1878
  %v1917 = vmul.f32 %v1805, %v1878
  %v1918 = vmul.f32 %v1806, %v1883
  %v1919 = vmul.f32 %v1807, %v1883
  %v1920 = vmul.f32 %v1808, %v1888
  %v1921 = vmul.f32 %v1809, %v1888
  %v1922 = vunpack.c.l.bf16 %v45
  %v1923 = vunpack.c.h.bf16 %v45
  %v1924 = vunpack.c.l.bf16 %v46
  %v1925 = vunpack.c.h.bf16 %v46
  %v1926 = vunpack.c.l.bf16 %v47
  %v1927 = vunpack.c.h.bf16 %v47
  %v1928 = vunpack.c.l.bf16 %v48
  %v1929 = vunpack.c.h.bf16 %v48
  %v1930 = vunpack.c.l.bf16 %v49
  %v1931 = vunpack.c.h.bf16 %v49
  %v1932 = vunpack.c.l.bf16 %v50
  %v1933 = vunpack.c.h.bf16 %v50
  %v1934 = vunpack.c.l.bf16 %v51
  %v1935 = vunpack.c.h.bf16 %v51
  %v1936 = vunpack.c.l.bf16 %v52
  %v1937 = vunpack.c.h.bf16 %v52
  %v1938 = vunpack.c.l.bf16 %v53
  %v1939 = vunpack.c.h.bf16 %v53
  %v1940 = vunpack.c.l.bf16 %v54
  %v1941 = vunpack.c.h.bf16 %v54
  %v1942 = vunpack.c.l.bf16 %v55
  %v1943 = vunpack.c.h.bf16 %v55
  %v1944 = vunpack.c.l.bf16 %v56
  %v1945 = vunpack.c.h.bf16 %v56
  %v1946 = vunpack.c.l.bf16 %v57
  %v1947 = vunpack.c.h.bf16 %v57
  %v1948 = vunpack.c.l.bf16 %v58
  %v1949 = vunpack.c.h.bf16 %v58
  %v1950 = vunpack.c.l.bf16 %v59
  %v1951 = vunpack.c.h.bf16 %v59
  %v1952 = vunpack.c.l.bf16 %v60
  %v1953 = vunpack.c.h.bf16 %v60
  %1954 = vset.pattern.permute.xlu0 1
  %1955 = vperm.xlu0 %1954, %v1762
  %v1956 = vpop.permute.xlu0 %1955
  %1958 = vset.pattern.permute.xlu0 1
  %1959 = vperm.xlu0 %1958, %v1763
  %v1960 = vpop.permute.xlu0 %1959
  %1962 = vset.pattern.permute.xlu0 1
  %1963 = vperm.xlu0 %1962, %v1764
  %v1964 = vpop.permute.xlu0 %1963
  %1966 = vset.pattern.permute.xlu0 1
  %1967 = vperm.xlu0 %1966, %v1765
  %v1968 = vpop.permute.xlu0 %1967
  %1970 = vset.pattern.permute.xlu0 1
  %1971 = vperm.xlu0 %1970, %v1766
  %v1972 = vpop.permute.xlu0 %1971
  %1974 = vset.pattern.permute.xlu0 1
  %1975 = vperm.xlu0 %1974, %v1767
  %v1976 = vpop.permute.xlu0 %1975
  %1978 = vset.pattern.permute.xlu0 1
  %1979 = vperm.xlu0 %1978, %v1768
  %v1980 = vpop.permute.xlu0 %1979
  %1982 = vset.pattern.permute.xlu0 1
  %1983 = vperm.xlu0 %1982, %v1769
  %v1984 = vpop.permute.xlu0 %1983
  %1986 = vset.pattern.permute.xlu0 1
  %1987 = vperm.xlu0 %1986, %v1770
  %v1988 = vpop.permute.xlu0 %1987
  %1990 = vset.pattern.permute.xlu0 1
  %1991 = vperm.xlu0 %1990, %v1771
  %v1992 = vpop.permute.xlu0 %1991
  %1994 = vset.pattern.permute.xlu0 1
  %1995 = vperm.xlu0 %1994, %v1772
  %v1996 = vpop.permute.xlu0 %1995
  %1998 = vset.pattern.permute.xlu0 1
  %1999 = vperm.xlu0 %1998, %v1773
  %v2000 = vpop.permute.xlu0 %1999
  %2002 = vset.pattern.permute.xlu0 1
  %2003 = vperm.xlu0 %2002, %v1774
  %v2004 = vpop.permute.xlu0 %2003
  %2006 = vset.pattern.permute.xlu0 1
  %2007 = vperm.xlu0 %2006, %v1775
  %v2008 = vpop.permute.xlu0 %2007
  %2010 = vset.pattern.permute.xlu0 1
  %2011 = vperm.xlu0 %2010, %v1776
  %v2012 = vpop.permute.xlu0 %2011
  %2014 = vset.pattern.permute.xlu0 1
  %2015 = vperm.xlu0 %2014, %v1777
  %v2016 = vpop.permute.xlu0 %2015
  %v2018 = vmul.f32 %v1922, %v1956
  %v2019 = vmul.f32 %v1923, %v1956
  %v2020 = vmul.f32 %v1924, %v1960
  %v2021 = vmul.f32 %v1925, %v1960
  %v2022 = vmul.f32 %v1926, %v1964
  %v2023 = vmul.f32 %v1927, %v1964
  %v2024 = vmul.f32 %v1928, %v1968
  %v2025 = vmul.f32 %v1929, %v1968
  %v2026 = vmul.f32 %v1930, %v1972
  %v2027 = vmul.f32 %v1931, %v1972
  %v2028 = vmul.f32 %v1932, %v1976
  %v2029 = vmul.f32 %v1933, %v1976
  %v2030 = vmul.f32 %v1934, %v1980
  %v2031 = vmul.f32 %v1935, %v1980
  %v2032 = vmul.f32 %v1936, %v1984
  %v2033 = vmul.f32 %v1937, %v1984
  %v2034 = vmul.f32 %v1938, %v1988
  %v2035 = vmul.f32 %v1939, %v1988
  %v2036 = vmul.f32 %v1940, %v1992
  %v2037 = vmul.f32 %v1941, %v1992
  %v2038 = vmul.f32 %v1942, %v1996
  %v2039 = vmul.f32 %v1943, %v1996
  %v2040 = vmul.f32 %v1944, %v2000
  %v2041 = vmul.f32 %v1945, %v2000
  %v2042 = vmul.f32 %v1946, %v2004
  %v2043 = vmul.f32 %v1947, %v2004
  %v2044 = vmul.f32 %v1948, %v2008
  %v2045 = vmul.f32 %v1949, %v2008
  %v2046 = vmul.f32 %v1950, %v2012
  %v2047 = vmul.f32 %v1951, %v2012
  %v2048 = vmul.f32 %v1952, %v2016
  %v2049 = vmul.f32 %v1953, %v2016
  %v2050 = vadd.f32 %v1890, %v2018
  %v2051 = vadd.f32 %v1891, %v2019
  %v2052 = vadd.f32 %v1892, %v2020
  %v2053 = vadd.f32 %v1893, %v2021
  %v2054 = vadd.f32 %v1894, %v2022
  %v2055 = vadd.f32 %v1895, %v2023
  %v2056 = vadd.f32 %v1896, %v2024
  %v2057 = vadd.f32 %v1897, %v2025
  %v2058 = vadd.f32 %v1898, %v2026
  %v2059 = vadd.f32 %v1899, %v2027
  %v2060 = vadd.f32 %v1900, %v2028
  %v2061 = vadd.f32 %v1901, %v2029
  %v2062 = vadd.f32 %v1902, %v2030
  %v2063 = vadd.f32 %v1903, %v2031
  %v2064 = vadd.f32 %v1904, %v2032
  %v2065 = vadd.f32 %v1905, %v2033
  %v2066 = vadd.f32 %v1906, %v2034
  %v2067 = vadd.f32 %v1907, %v2035
  %v2068 = vadd.f32 %v1908, %v2036
  %v2069 = vadd.f32 %v1909, %v2037
  %v2070 = vadd.f32 %v1910, %v2038
  %v2071 = vadd.f32 %v1911, %v2039
  %v2072 = vadd.f32 %v1912, %v2040
  %v2073 = vadd.f32 %v1913, %v2041
  %v2074 = vadd.f32 %v1914, %v2042
  %v2075 = vadd.f32 %v1915, %v2043
  %v2076 = vadd.f32 %v1916, %v2044
  %v2077 = vadd.f32 %v1917, %v2045
  %v2078 = vadd.f32 %v1918, %v2046
  %v2079 = vadd.f32 %v1919, %v2047
  %v2080 = vadd.f32 %v1920, %v2048
  %v2081 = vadd.f32 %v1921, %v2049
  %v2082 = vunpack.c.l.bf16 %v61
  %v2083 = vunpack.c.h.bf16 %v61
  %v2084 = vunpack.c.l.bf16 %v62
  %v2085 = vunpack.c.h.bf16 %v62
  %v2086 = vunpack.c.l.bf16 %v63
  %v2087 = vunpack.c.h.bf16 %v63
  %v2088 = vunpack.c.l.bf16 %v64
  %v2089 = vunpack.c.h.bf16 %v64
  %v2090 = vunpack.c.l.bf16 %v65
  %v2091 = vunpack.c.h.bf16 %v65
  %v2092 = vunpack.c.l.bf16 %v66
  %v2093 = vunpack.c.h.bf16 %v66
  %v2094 = vunpack.c.l.bf16 %v67
  %v2095 = vunpack.c.h.bf16 %v67
  %v2096 = vunpack.c.l.bf16 %v68
  %v2097 = vunpack.c.h.bf16 %v68
  %v2098 = vunpack.c.l.bf16 %v69
  %v2099 = vunpack.c.h.bf16 %v69
  %v2100 = vunpack.c.l.bf16 %v70
  %v2101 = vunpack.c.h.bf16 %v70
  %v2102 = vunpack.c.l.bf16 %v71
  %v2103 = vunpack.c.h.bf16 %v71
  %v2104 = vunpack.c.l.bf16 %v72
  %v2105 = vunpack.c.h.bf16 %v72
  %v2106 = vunpack.c.l.bf16 %v73
  %v2107 = vunpack.c.h.bf16 %v73
  %v2108 = vunpack.c.l.bf16 %v74
  %v2109 = vunpack.c.h.bf16 %v74
  %v2110 = vunpack.c.l.bf16 %v75
  %v2111 = vunpack.c.h.bf16 %v75
  %v2112 = vunpack.c.l.bf16 %v76
  %v2113 = vunpack.c.h.bf16 %v76
  %2114 = vset.pattern.permute.xlu0 2
  %2115 = vperm.xlu0 %2114, %v1762
  %v2116 = vpop.permute.xlu0 %2115
  %2118 = vset.pattern.permute.xlu0 2
  %2119 = vperm.xlu0 %2118, %v1763
  %v2120 = vpop.permute.xlu0 %2119
  %2122 = vset.pattern.permute.xlu0 2
  %2123 = vperm.xlu0 %2122, %v1764
  %v2124 = vpop.permute.xlu0 %2123
  %2126 = vset.pattern.permute.xlu0 2
  %2127 = vperm.xlu0 %2126, %v1765
  %v2128 = vpop.permute.xlu0 %2127
  %2130 = vset.pattern.permute.xlu0 2
  %2131 = vperm.xlu0 %2130, %v1766
  %v2132 = vpop.permute.xlu0 %2131
  %2134 = vset.pattern.permute.xlu0 2
  %2135 = vperm.xlu0 %2134, %v1767
  %v2136 = vpop.permute.xlu0 %2135
  %2138 = vset.pattern.permute.xlu0 2
  %2139 = vperm.xlu0 %2138, %v1768
  %v2140 = vpop.permute.xlu0 %2139
  %2142 = vset.pattern.permute.xlu0 2
  %2143 = vperm.xlu0 %2142, %v1769
  %v2144 = vpop.permute.xlu0 %2143
  %2146 = vset.pattern.permute.xlu0 2
  %2147 = vperm.xlu0 %2146, %v1770
  %v2148 = vpop.permute.xlu0 %2147
  %2150 = vset.pattern.permute.xlu0 2
  %2151 = vperm.xlu0 %2150, %v1771
  %v2152 = vpop.permute.xlu0 %2151
  %2154 = vset.pattern.permute.xlu0 2
  %2155 = vperm.xlu0 %2154, %v1772
  %v2156 = vpop.permute.xlu0 %2155
  %2158 = vset.pattern.permute.xlu0 2
  %2159 = vperm.xlu0 %2158, %v1773
  %v2160 = vpop.permute.xlu0 %2159
  %2162 = vset.pattern.permute.xlu0 2
  %2163 = vperm.xlu0 %2162, %v1774
  %v2164 = vpop.permute.xlu0 %2163
  %2166 = vset.pattern.permute.xlu0 2
  %2167 = vperm.xlu0 %2166, %v1775
  %v2168 = vpop.permute.xlu0 %2167
  %2170 = vset.pattern.permute.xlu0 2
  %2171 = vperm.xlu0 %2170, %v1776
  %v2172 = vpop.permute.xlu0 %2171
  %2174 = vset.pattern.permute.xlu0 2
  %2175 = vperm.xlu0 %2174, %v1777
  %v2176 = vpop.permute.xlu0 %2175
  %v2178 = vmul.f32 %v2082, %v2116
  %v2179 = vmul.f32 %v2083, %v2116
  %v2180 = vmul.f32 %v2084, %v2120
  %v2181 = vmul.f32 %v2085, %v2120
  %v2182 = vmul.f32 %v2086, %v2124
  %v2183 = vmul.f32 %v2087, %v2124
  %v2184 = vmul.f32 %v2088, %v2128
  %v2185 = vmul.f32 %v2089, %v2128
  %v2186 = vmul.f32 %v2090, %v2132
  %v2187 = vmul.f32 %v2091, %v2132
  %v2188 = vmul.f32 %v2092, %v2136
  %v2189 = vmul.f32 %v2093, %v2136
  %v2190 = vmul.f32 %v2094, %v2140
  %v2191 = vmul.f32 %v2095, %v2140
  %v2192 = vmul.f32 %v2096, %v2144
  %v2193 = vmul.f32 %v2097, %v2144
  %v2194 = vmul.f32 %v2098, %v2148
  %v2195 = vmul.f32 %v2099, %v2148
  %v2196 = vmul.f32 %v2100, %v2152
  %v2197 = vmul.f32 %v2101, %v2152
  %v2198 = vmul.f32 %v2102, %v2156
  %v2199 = vmul.f32 %v2103, %v2156
  %v2200 = vmul.f32 %v2104, %v2160
  %v2201 = vmul.f32 %v2105, %v2160
  %v2202 = vmul.f32 %v2106, %v2164
  %v2203 = vmul.f32 %v2107, %v2164
  %v2204 = vmul.f32 %v2108, %v2168
  %v2205 = vmul.f32 %v2109, %v2168
  %v2206 = vmul.f32 %v2110, %v2172
  %v2207 = vmul.f32 %v2111, %v2172
  %v2208 = vmul.f32 %v2112, %v2176
  %v2209 = vmul.f32 %v2113, %v2176
  %v2210 = vadd.f32 %v2050, %v2178
  %v2211 = vadd.f32 %v2051, %v2179
  %v2212 = vadd.f32 %v2052, %v2180
  %v2213 = vadd.f32 %v2053, %v2181
  %v2214 = vadd.f32 %v2054, %v2182
  %v2215 = vadd.f32 %v2055, %v2183
  %v2216 = vadd.f32 %v2056, %v2184
  %v2217 = vadd.f32 %v2057, %v2185
  %v2218 = vadd.f32 %v2058, %v2186
  %v2219 = vadd.f32 %v2059, %v2187
  %v2220 = vadd.f32 %v2060, %v2188
  %v2221 = vadd.f32 %v2061, %v2189
  %v2222 = vadd.f32 %v2062, %v2190
  %v2223 = vadd.f32 %v2063, %v2191
  %v2224 = vadd.f32 %v2064, %v2192
  %v2225 = vadd.f32 %v2065, %v2193
  %v2226 = vadd.f32 %v2066, %v2194
  %v2227 = vadd.f32 %v2067, %v2195
  %v2228 = vadd.f32 %v2068, %v2196
  %v2229 = vadd.f32 %v2069, %v2197
  %v2230 = vadd.f32 %v2070, %v2198
  %v2231 = vadd.f32 %v2071, %v2199
  %v2232 = vadd.f32 %v2072, %v2200
  %v2233 = vadd.f32 %v2073, %v2201
  %v2234 = vadd.f32 %v2074, %v2202
  %v2235 = vadd.f32 %v2075, %v2203
  %v2236 = vadd.f32 %v2076, %v2204
  %v2237 = vadd.f32 %v2077, %v2205
  %v2238 = vadd.f32 %v2078, %v2206
  %v2239 = vadd.f32 %v2079, %v2207
  %v2240 = vadd.f32 %v2080, %v2208
  %v2241 = vadd.f32 %v2081, %v2209
  %v2242 = vpack.c.bf16 %v2211, %v2210
  %v2243 = vpack.c.bf16 %v2213, %v2212
  %v2244 = vpack.c.bf16 %v2215, %v2214
  %v2245 = vpack.c.bf16 %v2217, %v2216
  %v2246 = vpack.c.bf16 %v2219, %v2218
  %v2247 = vpack.c.bf16 %v2221, %v2220
  %v2248 = vpack.c.bf16 %v2223, %v2222
  %v2249 = vpack.c.bf16 %v2225, %v2224
  %v2250 = vpack.c.bf16 %v2227, %v2226
  %v2251 = vpack.c.bf16 %v2229, %v2228
  %v2252 = vpack.c.bf16 %v2231, %v2230
  %v2253 = vpack.c.bf16 %v2233, %v2232
  %v2254 = vpack.c.bf16 %v2235, %v2234
  %v2255 = vpack.c.bf16 %v2237, %v2236
  %v2256 = vpack.c.bf16 %v2239, %v2238
  %v2257 = vpack.c.bf16 %v2241, %v2240
  %2258 = vst [vmem:[%s8] sm:$0xff] %v2242
  %2259 = vst [vmem:[%s8 + $0x8] sm:$0xff] %v2243
  %2260 = vst [vmem:[%s8 + $0x10] sm:$0xff] %v2244
  %2261 = vst [vmem:[%s8 + $0x18] sm:$0xff] %v2245
  %2262 = vst [vmem:[%s8 + $0x20] sm:$0xff] %v2246
  %2263 = vst [vmem:[%s8 + $0x28] sm:$0xff] %v2247
  %2264 = vst [vmem:[%s8 + $0x30] sm:$0xff] %v2248
  %2265 = vst [vmem:[%s8 + $0x38] sm:$0xff] %v2249
  %2266 = vst [vmem:[%s8 + $0x40] sm:$0xff] %v2250
  %2267 = vst [vmem:[%s8 + $0x48] sm:$0xff] %v2251
  %2268 = vst [vmem:[%s8 + $0x50] sm:$0xff] %v2252
  %2269 = vst [vmem:[%s8 + $0x58] sm:$0xff] %v2253
  %2270 = vst [vmem:[%s8 + $0x60] sm:$0xff] %v2254
  %2271 = vst [vmem:[%s8 + $0x68] sm:$0xff] %v2255
  %2272 = vst [vmem:[%s8 + $0x70] sm:$0xff] %v2256
  %2273 = vst [vmem:[%s8 + $0x78] sm:$0xff] %v2257
  // Predicated region
  $region34: #{asff_forward.6} parent=0 // pred_check
    _
  $region35: #{asff_forward.6} parent=0 // pred_check_branch
    %2275 = sbr.rel (0) target = $region37
  $region36: #{asff_forward.6} parent=0 // pred_region
    _
  $region37: #{asff_forward.6} parent=0 // pred_fallthru
    _
  // Predicated region
  $region38: #{asff_forward.6} parent=0 // pred_check
    _
  $region39: #{asff_forward.6} parent=0 // pred_check_branch
    %2277 = sbr.rel (0) target = $region41
  $region40: #{asff_forward.6} parent=0 // pred_region
    _
  $region41: #{asff_forward.6} parent=0 // pred_fallthru
    _

// kernel: asff_forward.7
$region0: #{asff_forward.7}
  #allocation0 [shape = 'u32[]', space=smem, size = 0x4, offset = 0x4, fixed_abs, tag = 'smem constant byte address 0x4 - core index']
  #allocation1 [shape = 'u32[72,128]{1,0:T(1,128)}', space=vmem, size = 0x9000, scoped, tag = 'internal scratch']
  #allocation2 [shape = 'f32[128,256]{1,0:T(8,128)}', space=vmem, size = 0x20000, scoped, tag = 'scratch operand']
  %s0 = inlined_call_operand.vmem [shape: bf16[128,2304], index: 0, kind: input, shape index: {}]
  %s1 = inlined_call_operand.vmem [shape: bf16[2304,256], index: 1, kind: input, shape index: {}]
  %s2 = inlined_call_operand.vmem [shape: f32[2,256], index: 2, kind: input, shape index: {}]
  %s3 = inlined_call_operand.hbm [shape: f32[128,256], index: 3, kind: output, shape index: {}]
  %s4 = sld [smem:[#allocation0]]
  $region79: #{asff_forward.7} parent=0
    _
  %s6 = ssub.s32 1, %s4
  %s7 = scalar_select 0, %s6, %s4
  $region1: #{asff_forward.7} parent=0
    #allocation3 [shape = 'u8[589824]{0}', space=vmem, size = 0x90000, scoped, tag = 'input window, operand 0']
    #allocation4 [shape = 'u8[131072]{0}', space=vmem, size = 0x20000, scoped, tag = 'output window, operand 0, single buffered']
    #allocation5 [shape = 's32[2]{0}', space=sflag, size = 0x8, scoped, tag = 'scoped memory for asff_forward.7']
    %8 = vsyncpa [#allocation5], 0
    loop: start=0, step=1, limit=4
    $region2: #{asff_forward.7} parent=1 // loop_pre_header
      _
    $region3: #{asff_forward.7} parent=1 // loop_header
      %s10 = sphi 0, %s14
      %p11 = scmp.ge.s32.totalorder %s10, 4
      %s17 = sphi 0, %s29
      %s18 = sphi 0, %s25
      %s19 = sphi 0, %s17
      %s20 = sphi 0, %s18
      %s21 = sphi 0, %s19
      %s22 = sphi 0, %s20
      %s34 = sphi 0, %s36
      %s37 = sphi 0, %s34
      %s38 = sphi 0, %s37
      %s54 = sphi 0, %s38
      %s60 = sphi 0, %s62
      %s63 = sphi 0, %s60
      %s64 = sphi 0, %s63
      %s80 = sphi 0, %s64
      %s84 = sphi 0, %s84
      %s86 = sphi 0, %s84
      %s87 = sphi 0, %s86
      %s101 = sphi 0, %s87
      %s107 = sphi 0, %s109
      %s110 = sphi 0, %s107
      %s111 = sphi 0, %s110
      %s127 = sphi 0, %s111
    $region4: #{asff_forward.7} parent=1 // loop_header_branch
      %13 = sbr.rel (%p11) target = $region8
    $region5: #{asff_forward.7} parent=1 // loop_body
      %s15 = ssub.s32 %s10, 1
      %s16 = ssub.s32 %s10, 2
      %s23 = sadd.s32 1, %s18
      %p24 = scmp.ge.s32.totalorder %s23, 2
      %s25 = scalar_select %p24, 0, %s23
      %s26 = sadd.s32 1, %s17
      %s27 = scalar_select %p24, %s26, %s17
      %p28 = scmp.ge.s32.totalorder %s27, 1
      %s29 = scalar_select %p28, 0, %s27
      %s30 = ssub.s32 %s17, %s29
      %s31 = ssub.s32 %s18, %s25
      %s32 = sor.u32 %s30, %s31
      %p33 = scmp.eq.s32.totalorder %s32, 0
      %s35 = sadd.s32 %s34, 1
      %s36 = scalar_select %p33, %s34, %s35
      %p39 = pneg %p33
      %p40 = scmp.eq.s32.totalorder %s10, 1
      %p41 = por %p39, %p40
      %p42 = scmp.ne.s32.totalorder %s34, %s37
      %p43 = scmp.eq.s32.totalorder %s10, 0
      %p44 = por %p42, %p43
      %p45 = scmp.ne.s32.totalorder %s34, %s37
      %p46 = scmp.eq.s32.totalorder %s15, 1
      %p47 = por %p45, %p46
      %p48 = scmp.ne.s32.totalorder %s37, %s38
      %p49 = scmp.eq.s32.totalorder %s15, 0
      %p50 = por %p48, %p49
      %p51 = scmp.ne.s32.totalorder %s37, %s38
      %p52 = scmp.eq.s32.totalorder %s16, 1
      %p53 = por %p51, %p52
      %p55 = scmp.ne.s32.totalorder %s38, %s54
      %p56 = scmp.eq.s32.totalorder %s16, 0
      %p57 = por %p55, %p56
      %s58 = ssub.s32 %s18, %s25
      %p59 = scmp.eq.s32.totalorder %s58, 0
      %s61 = sadd.s32 %s60, 1
      %s62 = scalar_select %p59, %s60, %s61
      %p65 = pneg %p59
      %p66 = scmp.eq.s32.totalorder %s10, 1
      %p67 = por %p65, %p66
      %p68 = scmp.ne.s32.totalorder %s60, %s63
      %p69 = scmp.eq.s32.totalorder %s10, 0
      %p70 = por %p68, %p69
      %p71 = scmp.ne.s32.totalorder %s60, %s63
      %p72 = scmp.eq.s32.totalorder %s15, 1
      %p73 = por %p71, %p72
      %p74 = scmp.ne.s32.totalorder %s63, %s64
      %p75 = scmp.eq.s32.totalorder %s15, 0
      %p76 = por %p74, %p75
      %p77 = scmp.ne.s32.totalorder %s63, %s64
      %p78 = scmp.eq.s32.totalorder %s16, 1
      %p79 = por %p77, %p78
      %p81 = scmp.ne.s32.totalorder %s64, %s80
      %p82 = scmp.eq.s32.totalorder %s16, 0
      %p83 = por %p81, %p82
      %s85 = sadd.s32 %s84, 1
      %p88 = scmp.eq.s32.totalorder %s10, 1
      %p89 = scmp.ne.s32.totalorder %s84, %s86
      %p90 = scmp.eq.s32.totalorder %s10, 0
      %p91 = por %p89, %p90
      %p92 = scmp.ne.s32.totalorder %s84, %s86
      %p93 = scmp.eq.s32.totalorder %s15, 1
      %p94 = por %p92, %p93
      %p95 = scmp.ne.s32.totalorder %s86, %s87
      %p96 = scmp.eq.s32.totalorder %s15, 0
      %p97 = por %p95, %p96
      %p98 = scmp.ne.s32.totalorder %s86, %s87
      %p99 = scmp.eq.s32.totalorder %s16, 1
      %p100 = por %p98, %p99
      %p102 = scmp.ne.s32.totalorder %s87, %s101
      %p103 = scmp.eq.s32.totalorder %s16, 0
      %p104 = por %p102, %p103
      %s105 = ssub.s32 %s17, %s29
      %p106 = scmp.eq.s32.totalorder %s105, 0
      %s108 = sadd.s32 %s107, 1
      %s109 = scalar_select %p106, %s107, %s108
      %p112 = pneg %p106
      %p113 = scmp.eq.s32.totalorder %s10, 1
      %p114 = por %p112, %p113
      %p115 = scmp.ne.s32.totalorder %s107, %s110
      %p116 = scmp.eq.s32.totalorder %s10, 0
      %p117 = por %p115, %p116
      %p118 = scmp.ne.s32.totalorder %s107, %s110
      %p119 = scmp.eq.s32.totalorder %s15, 1
      %p120 = por %p118, %p119
      %p121 = scmp.ne.s32.totalorder %s110, %s111
      %p122 = scmp.eq.s32.totalorder %s15, 0
      %p123 = por %p121, %p122
      %p124 = scmp.ne.s32.totalorder %s110, %s111
      %p125 = scmp.eq.s32.totalorder %s16, 1
      %p126 = por %p124, %p125
      %p128 = scmp.ne.s32.totalorder %s111, %s127
      %p129 = scmp.eq.s32.totalorder %s16, 0
      %p130 = por %p128, %p129
      %p131 = scmp.le.s32.totalorder 1, %s10
      %p132 = scmp.lt.s32.totalorder %s10, 3
      %p133 = pnand %p131, %p132
      %p134 = pneg %p133
      // Predicated region
      $region9: #{asff_forward.7} parent=5 // pred_check
        _
      $region10: #{asff_forward.7} parent=5 // pred_check_branch
        %136 = sbr.rel (%p133) target = $region12
      $region11: #{asff_forward.7} parent=5 // pred_region
        %s137 = ssub.s32 %s10, 1
        // Predicated region
        $region13: #{asff_forward.7} parent=11 // pred_check
          %p138 = pneg %p97
        $region14: #{asff_forward.7} parent=11 // pred_check_branch
          %140 = sbr.rel (%p138) target = $region16
        $region15: #{asff_forward.7} parent=11 // pred_region
          _
        $region16: #{asff_forward.7} parent=11 // pred_fallthru
          _
      $region12: #{asff_forward.7} parent=5 // pred_fallthru
        _
      %p141 = scmp.lt.s32.totalorder %s10, 2
      // Predicated region
      $region17: #{asff_forward.7} parent=5 // pred_check
        %p142 = pneg %p141
      $region18: #{asff_forward.7} parent=5 // pred_check_branch
        %144 = sbr.rel (%p142) target = $region20
      $region19: #{asff_forward.7} parent=5 // pred_region
        // Predicated region
        $region21: #{asff_forward.7} parent=19 // pred_check
          %p145 = pneg %p44
        $region22: #{asff_forward.7} parent=19 // pred_check_branch
          %147 = sbr.rel (%p145) target = $region24
        $region23: #{asff_forward.7} parent=19 // pred_region
          %s148 = sand.u32 %s34, 1
          %s149 = sand.u32 %s34, 1
          %s150 = smul.addr %s149, 576
          %s151 = scalar_lea.vmem [#allocation3], %s150
          %s152 = smul.u32 16, %s17
          %s153 = smul.u32 9, %s18
          %s154 = smul.addr %s152, 18
          %s155 = sadd.s32 %s153, %s154
          %s156 = smul.addr %s155, 4
          %s157 = scalar_lea.vmem %s0, %s156
          // Predicated region
          $region25: #{asff_forward.7} parent=23 // pred_check
            _
          $region26: #{asff_forward.7} parent=23 // pred_check_branch
            %159 = sbr.rel (0) target = $region28
          $region27: #{asff_forward.7} parent=23 // pred_region
            // Predicated region
            $region29: #{asff_forward.7} parent=27 // pred_check
              _
            $region30: #{asff_forward.7} parent=27 // pred_check_branch
              %161 = sbr.rel (0) target = $region32
            $region31: #{asff_forward.7} parent=27 // pred_region
              %s162 = scalar_lea.vmem %s157, 32
              %s163 = scalar_lea.vmem %s151, 32 [#allocation3]
              loop: start=0, step=1, limit=1
              $region33: #{asff_forward.7} parent=31 // loop_pre_header
                _
              $region34: #{asff_forward.7} parent=31 // loop_header
                %s165 = sphi 0, %s169
                %p166 = scmp.ge.s32.totalorder %s165, 1
                %s170 = sphi %s157, %s157
                %s171 = sphi %s151, %s151
              $region35: #{asff_forward.7} parent=31 // loop_header_branch
                %168 = sbr.rel (%p166) target = $region39
              $region36: #{asff_forward.7} parent=31 // loop_body
                %v172 = vld [vmem:[%s170] sm:$0xff]
                %173 = vst [vmem:[%s171] sm:$0xff] %v172
                %v174 = vld [vmem:[%s170 + $0x8] sm:$0xff]
                %175 = vst [vmem:[%s171 + $0x8] sm:$0xff] %v174
                %v176 = vld [vmem:[%s170 + $0x10] sm:$0xff]
                %177 = vst [vmem:[%s171 + $0x10] sm:$0xff] %v176
                %v178 = vld [vmem:[%s170 + $0x18] sm:$0xff]
                %179 = vst [vmem:[%s171 + $0x18] sm:$0xff] %v178
                %v180 = vld [vmem:[%s170 + $0x48] sm:$0xff]
                %181 = vst [vmem:[%s171 + $0x24] sm:$0xff] %v180
                %v182 = vld [vmem:[%s170 + $0x50] sm:$0xff]
                %183 = vst [vmem:[%s171 + $0x2c] sm:$0xff] %v182
                %v184 = vld [vmem:[%s170 + $0x58] sm:$0xff]
                %185 = vst [vmem:[%s171 + $0x34] sm:$0xff] %v184
                %v186 = vld [vmem:[%s170 + $0x60] sm:$0xff]
                %187 = vst [vmem:[%s171 + $0x3c] sm:$0xff] %v186
                %v188 = vld [vmem:[%s170 + $0x90] sm:$0xff]
                %189 = vst [vmem:[%s171 + $0x48] sm:$0xff] %v188
                %v190 = vld [vmem:[%s170 + $0x98] sm:$0xff]
                %191 = vst [vmem:[%s171 + $0x50] sm:$0xff] %v190
                %v192 = vld [vmem:[%s170 + $0xa0] sm:$0xff]
                %193 = vst [vmem:[%s171 + $0x58] sm:$0xff] %v192
                %v194 = vld [vmem:[%s170 + $0xa8] sm:$0xff]
                %195 = vst [vmem:[%s171 + $0x60] sm:$0xff] %v194
                %v196 = vld [vmem:[%s170 + $0xd8] sm:$0xff]
                %197 = vst [vmem:[%s171 + $0x6c] sm:$0xff] %v196
                %v198 = vld [vmem:[%s170 + $0xe0] sm:$0xff]
                %199 = vst [vmem:[%s171 + $0x74] sm:$0xff] %v198
                %v200 = vld [vmem:[%s170 + $0xe8] sm:$0xff]
                %201 = vst [vmem:[%s171 + $0x7c] sm:$0xff] %v200
                %v202 = vld [vmem:[%s170 + $0xf0] sm:$0xff]
                %203 = vst [vmem:[%s171 + $0x84] sm:$0xff] %v202
                %v204 = vld [vmem:[%s170 + $0x120] sm:$0xff]
                %205 = vst [vmem:[%s171 + $0x90] sm:$0xff] %v204
                %v206 = vld [vmem:[%s170 + $0x128] sm:$0xff]
                %207 = vst [vmem:[%s171 + $0x98] sm:$0xff] %v206
                %v208 = vld [vmem:[%s170 + $0x130] sm:$0xff]
                %209 = vst [vmem:[%s171 + $0xa0] sm:$0xff] %v208
                %v210 = vld [vmem:[%s170 + $0x138] sm:$0xff]
                %211 = vst [vmem:[%s171 + $0xa8] sm:$0xff] %v210
                %v212 = vld [vmem:[%s170 + $0x168] sm:$0xff]
                %213 = vst [vmem:[%s171 + $0xb4] sm:$0xff] %v212
                %v214 = vld [vmem:[%s170 + $0x170] sm:$0xff]
                %215 = vst [vmem:[%s171 + $0xbc] sm:$0xff] %v214
                %v216 = vld [vmem:[%s170 + $0x178] sm:$0xff]
                %217 = vst [vmem:[%s171 + $0xc4] sm:$0xff] %v216
                %v218 = vld [vmem:[%s170 + $0x180] sm:$0xff]
                %219 = vst [vmem:[%s171 + $0xcc] sm:$0xff] %v218
                %v220 = vld [vmem:[%s170 + $0x1b0] sm:$0xff]
                %221 = vst [vmem:[%s171 + $0xd8] sm:$0xff] %v220
                %v222 = vld [vmem:[%s170 + $0x1b8] sm:$0xff]
                %223 = vst [vmem:[%s171 + $0xe0] sm:$0xff] %v222
                %v224 = vld [vmem:[%s170 + $0x1c0] sm:$0xff]
                %225 = vst [vmem:[%s171 + $0xe8] sm:$0xff] %v224
                %v226 = vld [vmem:[%s170 + $0x1c8] sm:$0xff]
                %227 = vst [vmem:[%s171 + $0xf0] sm:$0xff] %v226
                %v228 = vld [vmem:[%s170 + $0x1f8] sm:$0xff]
                %229 = vst [vmem:[%s171 + $0xfc] sm:$0xff] %v228
                %v230 = vld [vmem:[%s170 + $0x200] sm:$0xff]
                %231 = vst [vmem:[%s171 + $0x104] sm:$0xff] %v230
                %v232 = vld [vmem:[%s170 + $0x208] sm:$0xff]
                %233 = vst [vmem:[%s171 + $0x10c] sm:$0xff] %v232
                %v234 = vld [vmem:[%s170 + $0x210] sm:$0xff]
                %235 = vst [vmem:[%s171 + $0x114] sm:$0xff] %v234
                %v236 = vld [vmem:[%s170 + $0x240] sm:$0xff]
                %237 = vst [vmem:[%s171 + $0x120] sm:$0xff] %v236
                %v238 = vld [vmem:[%s170 + $0x248] sm:$0xff]
                %239 = vst [vmem:[%s171 + $0x128] sm:$0xff] %v238
                %v240 = vld [vmem:[%s170 + $0x250] sm:$0xff]
                %241 = vst [vmem:[%s171 + $0x130] sm:$0xff] %v240
                %v242 = vld [vmem:[%s170 + $0x258] sm:$0xff]
                %243 = vst [vmem:[%s171 + $0x138] sm:$0xff] %v242
                %v244 = vld [vmem:[%s170 + $0x288] sm:$0xff]
                %245 = vst [vmem:[%s171 + $0x144] sm:$0xff] %v244
                %v246 = vld [vmem:[%s170 + $0x290] sm:$0xff]
                %247 = vst [vmem:[%s171 + $0x14c] sm:$0xff] %v246
                %v248 = vld [vmem:[%s170 + $0x298] sm:$0xff]
                %249 = vst [vmem:[%s171 + $0x154] sm:$0xff] %v248
                %v250 = vld [vmem:[%s170 + $0x2a0] sm:$0xff]
                %251 = vst [vmem:[%s171 + $0x15c] sm:$0xff] %v250
                %v252 = vld [vmem:[%s170 + $0x2d0] sm:$0xff]
                %253 = vst [vmem:[%s171 + $0x168] sm:$0xff] %v252
                %v254 = vld [vmem:[%s170 + $0x2d8] sm:$0xff]
                %255 = vst [vmem:[%s171 + $0x170] sm:$0xff] %v254
                %v256 = vld [vmem:[%s170 + $0x2e0] sm:$0xff]
                %257 = vst [vmem:[%s171 + $0x178] sm:$0xff] %v256
                %v258 = vld [vmem:[%s170 + $0x2e8] sm:$0xff]
                %259 = vst [vmem:[%s171 + $0x180] sm:$0xff] %v258
                %v260 = vld [vmem:[%s170 + $0x318] sm:$0xff]
                %261 = vst [vmem:[%s171 + $0x18c] sm:$0xff] %v260
                %v262 = vld [vmem:[%s170 + $0x320] sm:$0xff]
                %263 = vst [vmem:[%s171 + $0x194] sm:$0xff] %v262
                %v264 = vld [vmem:[%s170 + $0x328] sm:$0xff]
                %265 = vst [vmem:[%s171 + $0x19c] sm:$0xff] %v264
                %v266 = vld [vmem:[%s170 + $0x330] sm:$0xff]
                %267 = vst [vmem:[%s171 + $0x1a4] sm:$0xff] %v266
                %v268 = vld [vmem:[%s170 + $0x360] sm:$0xff]
                %269 = vst [vmem:[%s171 + $0x1b0] sm:$0xff] %v268
                %v270 = vld [vmem:[%s170 + $0x368] sm:$0xff]
                %271 = vst [vmem:[%s171 + $0x1b8] sm:$0xff] %v270
                %v272 = vld [vmem:[%s170 + $0x370] sm:$0xff]
                %273 = vst [vmem:[%s171 + $0x1c0] sm:$0xff] %v272
                %v274 = vld [vmem:[%s170 + $0x378] sm:$0xff]
                %275 = vst [vmem:[%s171 + $0x1c8] sm:$0xff] %v274
                %v276 = vld [vmem:[%s170 + $0x3a8] sm:$0xff]
                %277 = vst [vmem:[%s171 + $0x1d4] sm:$0xff] %v276
                %v278 = vld [vmem:[%s170 + $0x3b0] sm:$0xff]
                %279 = vst [vmem:[%s171 + $0x1dc] sm:$0xff] %v278
                %v280 = vld [vmem:[%s170 + $0x3b8] sm:$0xff]
                %281 = vst [vmem:[%s171 + $0x1e4] sm:$0xff] %v280
                %v282 = vld [vmem:[%s170 + $0x3c0] sm:$0xff]
                %283 = vst [vmem:[%s171 + $0x1ec] sm:$0xff] %v282
                %v284 = vld [vmem:[%s170 + $0x3f0] sm:$0xff]
                %285 = vst [vmem:[%s171 + $0x1f8] sm:$0xff] %v284
                %v286 = vld [vmem:[%s170 + $0x3f8] sm:$0xff]
                %287 = vst [vmem:[%s171 + $0x200] sm:$0xff] %v286
                %v288 = vld [vmem:[%s170 + $0x400] sm:$0xff]
                %289 = vst [vmem:[%s171 + $0x208] sm:$0xff] %v288
                %v290 = vld [vmem:[%s170 + $0x408] sm:$0xff]
                %291 = vst [vmem:[%s171 + $0x210] sm:$0xff] %v290
                %v292 = vld [vmem:[%s170 + $0x438] sm:$0xff]
                %293 = vst [vmem:[%s171 + $0x21c] sm:$0xff] %v292
                %v294 = vld [vmem:[%s170 + $0x440] sm:$0xff]
                %295 = vst [vmem:[%s171 + $0x224] sm:$0xff] %v294
                %v296 = vld [vmem:[%s170 + $0x448] sm:$0xff]
                %297 = vst [vmem:[%s171 + $0x22c] sm:$0xff] %v296
                %v298 = vld [vmem:[%s170 + $0x450] sm:$0xff]
                %299 = vst [vmem:[%s171 + $0x234] sm:$0xff] %v298
              $region37: #{asff_forward.7} parent=31 // loop_footer
                %s169 = sadd.s32 1, %s165
              $region38: #{asff_forward.7} parent=31 // loop_footer_branch
                %164 = sbr.rel target = $region34
              $region39: #{asff_forward.7} parent=31 // loop_exit
                _
              %s301 = ssub.s32 16, 1
              loop: start=0, step=1, limit=1
              $region40: #{asff_forward.7} parent=31 // loop_pre_header
                _
              $region41: #{asff_forward.7} parent=31 // loop_header
                %s303 = sphi 0, %s307
                %p304 = scmp.ge.s32.totalorder %s303, 1
                %s308 = sphi %s162, %s162
                %s309 = sphi %s163, %s163
              $region42: #{asff_forward.7} parent=31 // loop_header_branch
                %306 = sbr.rel (%p304) target = $region46
              $region43: #{asff_forward.7} parent=31 // loop_body
                %v310 = vld [vmem:[%s308] sm:%s301]
                %311 = vst [vmem:[%s309] sm:%s301] %v310
                %v312 = vld [vmem:[%s308 + $0x48] sm:%s301]
                %313 = vst [vmem:[%s309 + $0x24] sm:%s301] %v312
                %v314 = vld [vmem:[%s308 + $0x90] sm:%s301]
                %315 = vst [vmem:[%s309 + $0x48] sm:%s301] %v314
                %v316 = vld [vmem:[%s308 + $0xd8] sm:%s301]
                %317 = vst [vmem:[%s309 + $0x6c] sm:%s301] %v316
                %v318 = vld [vmem:[%s308 + $0x120] sm:%s301]
                %319 = vst [vmem:[%s309 + $0x90] sm:%s301] %v318
                %v320 = vld [vmem:[%s308 + $0x168] sm:%s301]
                %321 = vst [vmem:[%s309 + $0xb4] sm:%s301] %v320
                %v322 = vld [vmem:[%s308 + $0x1b0] sm:%s301]
                %323 = vst [vmem:[%s309 + $0xd8] sm:%s301] %v322
                %v324 = vld [vmem:[%s308 + $0x1f8] sm:%s301]
                %325 = vst [vmem:[%s309 + $0xfc] sm:%s301] %v324
                %v326 = vld [vmem:[%s308 + $0x240] sm:%s301]
                %327 = vst [vmem:[%s309 + $0x120] sm:%s301] %v326
                %v328 = vld [vmem:[%s308 + $0x288] sm:%s301]
                %329 = vst [vmem:[%s309 + $0x144] sm:%s301] %v328
                %v330 = vld [vmem:[%s308 + $0x2d0] sm:%s301]
                %331 = vst [vmem:[%s309 + $0x168] sm:%s301] %v330
                %v332 = vld [vmem:[%s308 + $0x318] sm:%s301]
                %333 = vst [vmem:[%s309 + $0x18c] sm:%s301] %v332
                %v334 = vld [vmem:[%s308 + $0x360] sm:%s301]
                %335 = vst [vmem:[%s309 + $0x1b0] sm:%s301] %v334
                %v336 = vld [vmem:[%s308 + $0x3a8] sm:%s301]
                %337 = vst [vmem:[%s309 + $0x1d4] sm:%s301] %v336
                %v338 = vld [vmem:[%s308 + $0x3f0] sm:%s301]
                %339 = vst [vmem:[%s309 + $0x1f8] sm:%s301] %v338
                %v340 = vld [vmem:[%s308 + $0x438] sm:%s301]
                %341 = vst [vmem:[%s309 + $0x21c] sm:%s301] %v340
              $region44: #{asff_forward.7} parent=31 // loop_footer
                %s307 = sadd.s32 1, %s303
              $region45: #{asff_forward.7} parent=31 // loop_footer_branch
                %302 = sbr.rel target = $region41
              $region46: #{asff_forward.7} parent=31 // loop_exit
                _
            $region32: #{asff_forward.7} parent=27 // pred_fallthru
              _
          $region28: #{asff_forward.7} parent=23 // pred_fallthru
            _
          %342 = vnop
        $region24: #{asff_forward.7} parent=19 // pred_fallthru
          _
        // Predicated region
        $region47: #{asff_forward.7} parent=19 // pred_check
          %p343 = pneg %p70
        $region48: #{asff_forward.7} parent=19 // pred_check_branch
          %345 = sbr.rel (%p343) target = $region50
        $region49: #{asff_forward.7} parent=19 // pred_region
          %s346 = smul.u32 144, %s18
          %p347 = scmp.lt.s32.totalorder %s346, 287
          %s348 = scalar_select %p347, %s346, 287
          %s349 = smul.addr %s348, 2
          %s350 = smul.addr %s349, 4
          %s351 = scalar_lea.vmem %s1, %s350
          %s352 = smul.u32 144, %s18
        $region50: #{asff_forward.7} parent=19 // pred_fallthru
          _
      $region20: #{asff_forward.7} parent=5 // pred_fallthru
        _
      %p353 = scmp.le.s32.totalorder 1, %s10
      %p354 = scmp.lt.s32.totalorder %s10, 3
      %p355 = pnand %p353, %p354
      %p356 = pneg %p355
      // Predicated region
      $region51: #{asff_forward.7} parent=5 // pred_check
        _
      $region52: #{asff_forward.7} parent=5 // pred_check_branch
        %358 = sbr.rel (%p355) target = $region54
      $region53: #{asff_forward.7} parent=5 // pred_region
        %s359 = ssub.s32 %s10, 1
        %s360 = sand.u32 %s37, 1
        %s361 = sand.u32 %s37, 1
        %s362 = smul.addr %s361, 576
        %s363 = scalar_lea.vmem [#allocation3], %s362
        // Predicated region
        $region55: #{asff_forward.7} parent=53 // pred_check
          %p364 = pneg %p50
        $region56: #{asff_forward.7} parent=53 // pred_check_branch
          %366 = sbr.rel (%p364) target = $region58
        $region57: #{asff_forward.7} parent=53 // pred_region
          _
        $region58: #{asff_forward.7} parent=53 // pred_fallthru
          _
        %s367 = sand.u32 %s37, 1
        %s368 = sand.u32 %s37, 1
        %s369 = smul.addr %s368, 576
        %s370 = scalar_lea.vmem [#allocation3], %s369
        %p371 = pneg %p50
        %p372 = pneg %p47
        %s373 = smul.u32 144, %s20
        %p374 = scmp.lt.s32.totalorder %s373, 287
        %s375 = scalar_select %p374, %s373, 287
        %s376 = smul.addr %s375, 2
        %s377 = smul.addr %s376, 4
        %s378 = scalar_lea.vmem %s1, %s377
        %p379 = pneg %p76
        %p380 = pneg %p73
        %p381 = pneg %p97
        %p382 = pneg %p94
        %p383 = pneg %p123
        %p384 = pneg %p120
        %s385 = smul.u32 16, %s19
        %s386 = smul.u32 9, %s20
        %s387 = smul.u32 144, %s20
        %p388 = scmp.lt.s32.totalorder %s387, 287
        %s389 = scalar_select %p388, %s387, 287
        %s390 = smul.addr %s389, 2
        %s391 = smul.addr %s390, 4
        %s392 = scalar_lea.vmem %s1, %s391
        %s393 = smul.u32 144, %s20
        %s394 = smul.u32 16, %s19
        %p395 = scmp.eq.s32.totalorder %s20, 0
        // Predicated region
        $region59: #{asff_forward.7} parent=53 // pred_check
          %p396 = pneg %p395
        $region60: #{asff_forward.7} parent=53 // pred_check_branch
          %398 = sbr.rel (%p396) target = $region62
        $region61: #{asff_forward.7} parent=53 // pred_region
          %399 = vst [vmem:[#allocation2] sm:$0xff] 0.0
          %400 = vst [vmem:[#allocation2 + $0x8] sm:$0xff] 0.0
          %401 = vst [vmem:[#allocation2 + $0x10] sm:$0xff] 0.0
          %402 = vst [vmem:[#allocation2 + $0x18] sm:$0xff] 0.0
          %403 = vst [vmem:[#allocation2 + $0x20] sm:$0xff] 0.0
          %404 = vst [vmem:[#allocation2 + $0x28] sm:$0xff] 0.0
          %405 = vst [vmem:[#allocation2 + $0x30] sm:$0xff] 0.0
          %406 = vst [vmem:[#allocation2 + $0x38] sm:$0xff] 0.0
          %407 = vst [vmem:[#allocation2 + $0x40] sm:$0xff] 0.0
          %408 = vst [vmem:[#allocation2 + $0x48] sm:$0xff] 0.0
          %409 = vst [vmem:[#allocation2 + $0x50] sm:$0xff] 0.0
          %410 = vst [vmem:[#allocation2 + $0x58] sm:$0xff] 0.0
          %411 = vst [vmem:[#allocation2 + $0x60] sm:$0xff] 0.0
          %412 = vst [vmem:[#allocation2 + $0x68] sm:$0xff] 0.0
          %413 = vst [vmem:[#allocation2 + $0x70] sm:$0xff] 0.0
          %414 = vst [vmem:[#allocation2 + $0x78] sm:$0xff] 0.0
          %415 = vst [vmem:[#allocation2 + $0x80] sm:$0xff] 0.0
          %416 = vst [vmem:[#allocation2 + $0x88] sm:$0xff] 0.0
          %417 = vst [vmem:[#allocation2 + $0x90] sm:$0xff] 0.0
          %418 = vst [vmem:[#allocation2 + $0x98] sm:$0xff] 0.0
          %419 = vst [vmem:[#allocation2 + $0xa0] sm:$0xff] 0.0
          %420 = vst [vmem:[#allocation2 + $0xa8] sm:$0xff] 0.0
          %421 = vst [vmem:[#allocation2 + $0xb0] sm:$0xff] 0.0
          %422 = vst [vmem:[#allocation2 + $0xb8] sm:$0xff] 0.0
          %423 = vst [vmem:[#allocation2 + $0xc0] sm:$0xff] 0.0
          %424 = vst [vmem:[#allocation2 + $0xc8] sm:$0xff] 0.0
          %425 = vst [vmem:[#allocation2 + $0xd0] sm:$0xff] 0.0
          %426 = vst [vmem:[#allocation2 + $0xd8] sm:$0xff] 0.0
          %427 = vst [vmem:[#allocation2 + $0xe0] sm:$0xff] 0.0
          %428 = vst [vmem:[#allocation2 + $0xe8] sm:$0xff] 0.0
          %429 = vst [vmem:[#allocation2 + $0xf0] sm:$0xff] 0.0
          %430 = vst [vmem:[#allocation2 + $0xf8] sm:$0xff] 0.0
        $region62: #{asff_forward.7} parent=53 // pred_fallthru
          _
        %v431 = vld [vmem:[#allocation2] sm:$0xff]
        %v432 = vld [vmem:[#allocation2 + $0x8] sm:$0xff]
        %v433 = vld [vmem:[#allocation2 + $0x10] sm:$0xff]
        %v434 = vld [vmem:[#allocation2 + $0x18] sm:$0xff]
        %v435 = vld [vmem:[#allocation2 + $0x20] sm:$0xff]
        %v436 = vld [vmem:[#allocation2 + $0x28] sm:$0xff]
        %v437 = vld [vmem:[#allocation2 + $0x30] sm:$0xff]
        %v438 = vld [vmem:[#allocation2 + $0x38] sm:$0xff]
        %v439 = vld [vmem:[#allocation2 + $0x40] sm:$0xff]
        %v440 = vld [vmem:[#allocation2 + $0x48] sm:$0xff]
        %v441 = vld [vmem:[#allocation2 + $0x50] sm:$0xff]
        %v442 = vld [vmem:[#allocation2 + $0x58] sm:$0xff]
        %v443 = vld [vmem:[#allocation2 + $0x60] sm:$0xff]
        %v444 = vld [vmem:[#allocation2 + $0x68] sm:$0xff]
        %v445 = vld [vmem:[#allocation2 + $0x70] sm:$0xff]
        %v446 = vld [vmem:[#allocation2 + $0x78] sm:$0xff]
        %v447 = vld [vmem:[#allocation2 + $0x80] sm:$0xff]
        %v448 = vld [vmem:[#allocation2 + $0x88] sm:$0xff]
        %v449 = vld [vmem:[#allocation2 + $0x90] sm:$0xff]
        %v450 = vld [vmem:[#allocation2 + $0x98] sm:$0xff]
        %v451 = vld [vmem:[#allocation2 + $0xa0] sm:$0xff]
        %v452 = vld [vmem:[#allocation2 + $0xa8] sm:$0xff]
        %v453 = vld [vmem:[#allocation2 + $0xb0] sm:$0xff]
        %v454 = vld [vmem:[#allocation2 + $0xb8] sm:$0xff]
        %v455 = vld [vmem:[#allocation2 + $0xc0] sm:$0xff]
        %v456 = vld [vmem:[#allocation2 + $0xc8] sm:$0xff]
        %v457 = vld [vmem:[#allocation2 + $0xd0] sm:$0xff]
        %v458 = vld [vmem:[#allocation2 + $0xd8] sm:$0xff]
        %v459 = vld [vmem:[#allocation2 + $0xe0] sm:$0xff]
        %v460 = vld [vmem:[#allocation2 + $0xe8] sm:$0xff]
        %v461 = vld [vmem:[#allocation2 + $0xf0] sm:$0xff]
        %v462 = vld [vmem:[#allocation2 + $0xf8] sm:$0xff]
        %v463 = vld [vmem:[%s363] sm:$0xff]
        %v464 = vld [vmem:[%s363 + $0x8] sm:$0xff]
        %v465 = vld [vmem:[%s363 + $0x10] sm:$0xff]
        %v466 = vld [vmem:[%s363 + $0x18] sm:$0xff]
        %v467 = vld [vmem:[%s363 + $0x20] sm:$0xf]
        %v468 = vld [vmem:[%s363 + $0x24] sm:$0xff]
        %v469 = vld [vmem:[%s363 + $0x2c] sm:$0xff]
        %v470 = vld [vmem:[%s363 + $0x34] sm:$0xff]
        %v471 = vld [vmem:[%s363 + $0x3c] sm:$0xff]
        %v472 = vld [vmem:[%s363 + $0x44] sm:$0xf]
        %v473 = vld [vmem:[%s363 + $0x48] sm:$0xff]
        %v474 = vld [vmem:[%s363 + $0x50] sm:$0xff]
        %v475 = vld [vmem:[%s363 + $0x58] sm:$0xff]
        %v476 = vld [vmem:[%s363 + $0x60] sm:$0xff]
        %v477 = vld [vmem:[%s363 + $0x68] sm:$0xf]
        %v478 = vld [vmem:[%s363 + $0x6c] sm:$0xff]
        %v479 = vld [vmem:[%s363 + $0x74] sm:$0xff]
        %v480 = vld [vmem:[%s363 + $0x7c] sm:$0xff]
        %v481 = vld [vmem:[%s363 + $0x84] sm:$0xff]
        %v482 = vld [vmem:[%s363 + $0x8c] sm:$0xf]
        %v483 = vld [vmem:[%s363 + $0x90] sm:$0xff]
        %v484 = vld [vmem:[%s363 + $0x98] sm:$0xff]
        %v485 = vld [vmem:[%s363 + $0xa0] sm:$0xff]
        %v486 = vld [vmem:[%s363 + $0xa8] sm:$0xff]
        %v487 = vld [vmem:[%s363 + $0xb0] sm:$0xf]
        %v488 = vld [vmem:[%s363 + $0xb4] sm:$0xff]
        %v489 = vld [vmem:[%s363 + $0xbc] sm:$0xff]
        %v490 = vld [vmem:[%s363 + $0xc4] sm:$0xff]
        %v491 = vld [vmem:[%s363 + $0xcc] sm:$0xff]
        %v492 = vld [vmem:[%s363 + $0xd4] sm:$0xf]
        %v493 = vld [vmem:[%s363 + $0xd8] sm:$0xff]
        %v494 = vld [vmem:[%s363 + $0xe0] sm:$0xff]
        %v495 = vld [vmem:[%s363 + $0xe8] sm:$0xff]
        %v496 = vld [vmem:[%s363 + $0xf0] sm:$0xff]
        %v497 = vld [vmem:[%s363 + $0xf8] sm:$0xf]
        %v498 = vld [vmem:[%s363 + $0xfc] sm:$0xff]
        %v499 = vld [vmem:[%s363 + $0x104] sm:$0xff]
        %v500 = vld [vmem:[%s363 + $0x10c] sm:$0xff]
        %v501 = vld [vmem:[%s363 + $0x114] sm:$0xff]
        %v502 = vld [vmem:[%s363 + $0x11c] sm:$0xf]
        %v503 = vld [vmem:[%s363 + $0x120] sm:$0xff]
        %v504 = vld [vmem:[%s363 + $0x128] sm:$0xff]
        %v505 = vld [vmem:[%s363 + $0x130] sm:$0xff]
        %v506 = vld [vmem:[%s363 + $0x138] sm:$0xff]
        %v507 = vld [vmem:[%s363 + $0x140] sm:$0xf]
        %v508 = vld [vmem:[%s363 + $0x144] sm:$0xff]
        %v509 = vld [vmem:[%s363 + $0x14c] sm:$0xff]
        %v510 = vld [vmem:[%s363 + $0x154] sm:$0xff]
        %v511 = vld [vmem:[%s363 + $0x15c] sm:$0xff]
        %v512 = vld [vmem:[%s363 + $0x164] sm:$0xf]
        %v513 = vld [vmem:[%s363 + $0x168] sm:$0xff]
        %v514 = vld [vmem:[%s363 + $0x170] sm:$0xff]
        %v515 = vld [vmem:[%s363 + $0x178] sm:$0xff]
        %v516 = vld [vmem:[%s363 + $0x180] sm:$0xff]
        %v517 = vld [vmem:[%s363 + $0x188] sm:$0xf]
        %v518 = vld [vmem:[%s363 + $0x18c] sm:$0xff]
        %v519 = vld [vmem:[%s363 + $0x194] sm:$0xff]
        %v520 = vld [vmem:[%s363 + $0x19c] sm:$0xff]
        %v521 = vld [vmem:[%s363 + $0x1a4] sm:$0xff]
        %v522 = vld [vmem:[%s363 + $0x1ac] sm:$0xf]
        %v523 = vld [vmem:[%s363 + $0x1b0] sm:$0xff]
        %v524 = vld [vmem:[%s363 + $0x1b8] sm:$0xff]
        %v525 = vld [vmem:[%s363 + $0x1c0] sm:$0xff]
        %v526 = vld [vmem:[%s363 + $0x1c8] sm:$0xff]
        %v527 = vld [vmem:[%s363 + $0x1d0] sm:$0xf]
        %v528 = vld [vmem:[%s363 + $0x1d4] sm:$0xff]
        %v529 = vld [vmem:[%s363 + $0x1dc] sm:$0xff]
        %v530 = vld [vmem:[%s363 + $0x1e4] sm:$0xff]
        %v531 = vld [vmem:[%s363 + $0x1ec] sm:$0xff]
        %v532 = vld [vmem:[%s363 + $0x1f4] sm:$0xf]
        %v533 = vld [vmem:[%s363 + $0x1f8] sm:$0xff]
        %v534 = vld [vmem:[%s363 + $0x200] sm:$0xff]
        %v535 = vld [vmem:[%s363 + $0x208] sm:$0xff]
        %v536 = vld [vmem:[%s363 + $0x210] sm:$0xff]
        %v537 = vld [vmem:[%s363 + $0x218] sm:$0xf]
        %v538 = vld [vmem:[%s363 + $0x21c] sm:$0xff]
        %v539 = vld [vmem:[%s363 + $0x224] sm:$0xff]
        %v540 = vld [vmem:[%s363 + $0x22c] sm:$0xff]
        %v541 = vld [vmem:[%s363 + $0x234] sm:$0xff]
        %v542 = vld [vmem:[%s363 + $0x23c] sm:$0xf]
        %v543 = vld [vmem:[%s392] sm:$0xff]
        %v544 = vld [vmem:[%s392 + $0x8] sm:$0xff]
        %v545 = vld [vmem:[%s392 + $0x10] sm:$0xff]
        %v546 = vld [vmem:[%s392 + $0x18] sm:$0xff]
        %v547 = vld [vmem:[%s392 + $0x20] sm:$0xff]
        %v548 = vld [vmem:[%s392 + $0x28] sm:$0xff]
        %v549 = vld [vmem:[%s392 + $0x30] sm:$0xff]
        %v550 = vld [vmem:[%s392 + $0x38] sm:$0xff]
        %v551 = vld [vmem:[%s392 + $0x40] sm:$0xff]
        %v552 = vld [vmem:[%s392 + $0x48] sm:$0xff]
        %v553 = vld [vmem:[%s392 + $0x50] sm:$0xff]
        %v554 = vld [vmem:[%s392 + $0x58] sm:$0xff]
        %v555 = vld [vmem:[%s392 + $0x60] sm:$0xff]
        %v556 = vld [vmem:[%s392 + $0x68] sm:$0xff]
        %v557 = vld [vmem:[%s392 + $0x70] sm:$0xff]
        %v558 = vld [vmem:[%s392 + $0x78] sm:$0xff]
        %v559 = vld [vmem:[%s392 + $0x80] sm:$0xff]
        %v560 = vld [vmem:[%s392 + $0x88] sm:$0xff]
        %v561 = vld [vmem:[%s392 + $0x90] sm:$0xff]
        %v562 = vld [vmem:[%s392 + $0x98] sm:$0xff]
        %v563 = vld [vmem:[%s392 + $0xa0] sm:$0xff]
        %v564 = vld [vmem:[%s392 + $0xa8] sm:$0xff]
        %v565 = vld [vmem:[%s392 + $0xb0] sm:$0xff]
        %v566 = vld [vmem:[%s392 + $0xb8] sm:$0xff]
        %v567 = vld [vmem:[%s392 + $0xc0] sm:$0xff]
        %v568 = vld [vmem:[%s392 + $0xc8] sm:$0xff]
        %v569 = vld [vmem:[%s392 + $0xd0] sm:$0xff]
        %v570 = vld [vmem:[%s392 + $0xd8] sm:$0xff]
        %v571 = vld [vmem:[%s392 + $0xe0] sm:$0xff]
        %v572 = vld [vmem:[%s392 + $0xe8] sm:$0xff]
        %v573 = vld [vmem:[%s392 + $0xf0] sm:$0xff]
        %v574 = vld [vmem:[%s392 + $0xf8] sm:$0xff]
        %v575 = vld [vmem:[%s392 + $0x100] sm:$0xff]
        %v576 = vld [vmem:[%s392 + $0x108] sm:$0xff]
        %v577 = vld [vmem:[%s392 + $0x110] sm:$0xff]
        %v578 = vld [vmem:[%s392 + $0x118] sm:$0xff]
        %v579 = vld [vmem:[%s392 + $0x120] sm:$0xff]
        %v580 = vld [vmem:[%s392 + $0x128] sm:$0xff]
        %v581 = vld [vmem:[%s392 + $0x130] sm:$0xff]
        %v582 = vld [vmem:[%s392 + $0x138] sm:$0xff]
        %v583 = vld [vmem:[%s392 + $0x140] sm:$0xff]
        %v584 = vld [vmem:[%s392 + $0x148] sm:$0xff]
        %v585 = vld [vmem:[%s392 + $0x150] sm:$0xff]
        %v586 = vld [vmem:[%s392 + $0x158] sm:$0xff]
        %v587 = vld [vmem:[%s392 + $0x160] sm:$0xff]
        %v588 = vld [vmem:[%s392 + $0x168] sm:$0xff]
        %v589 = vld [vmem:[%s392 + $0x170] sm:$0xff]
        %v590 = vld [vmem:[%s392 + $0x178] sm:$0xff]
        %v591 = vld [vmem:[%s392 + $0x180] sm:$0xff]
        %v592 = vld [vmem:[%s392 + $0x188] sm:$0xff]
        %v593 = vld [vmem:[%s392 + $0x190] sm:$0xff]
        %v594 = vld [vmem:[%s392 + $0x198] sm:$0xff]
        %v595 = vld [vmem:[%s392 + $0x1a0] sm:$0xff]
        %v596 = vld [vmem:[%s392 + $0x1a8] sm:$0xff]
        %v597 = vld [vmem:[%s392 + $0x1b0] sm:$0xff]
        %v598 = vld [vmem:[%s392 + $0x1b8] sm:$0xff]
        %v599 = vld [vmem:[%s392 + $0x1c0] sm:$0xff]
        %v600 = vld [vmem:[%s392 + $0x1c8] sm:$0xff]
        %v601 = vld [vmem:[%s392 + $0x1d0] sm:$0xff]
        %v602 = vld [vmem:[%s392 + $0x1d8] sm:$0xff]
        %v603 = vld [vmem:[%s392 + $0x1e0] sm:$0xff]
        %v604 = vld [vmem:[%s392 + $0x1e8] sm:$0xff]
        %v605 = vld [vmem:[%s392 + $0x1f0] sm:$0xff]
        %v606 = vld [vmem:[%s392 + $0x1f8] sm:$0xff]
        %v607 = vld [vmem:[%s392 + $0x200] sm:$0xff]
        %v608 = vld [vmem:[%s392 + $0x208] sm:$0xff]
        %v609 = vld [vmem:[%s392 + $0x210] sm:$0xff]
        %v610 = vld [vmem:[%s392 + $0x218] sm:$0xff]
        %v611 = vld [vmem:[%s392 + $0x220] sm:$0xff]
        %v612 = vld [vmem:[%s392 + $0x228] sm:$0xff]
        %v613 = vld [vmem:[%s392 + $0x230] sm:$0xff]
        %v614 = vld [vmem:[%s392 + $0x238] sm:$0xff]
        %v615 = vld [vmem:[%s392 + $0x240] sm:$0xff]
        %v616 = vld [vmem:[%s392 + $0x248] sm:$0xff]
        %v617 = vld [vmem:[%s392 + $0x250] sm:$0xff]
        %v618 = vld [vmem:[%s392 + $0x258] sm:$0xff]
        %v619 = vld [vmem:[%s392 + $0x260] sm:$0xff]
        %v620 = vld [vmem:[%s392 + $0x268] sm:$0xff]
        %v621 = vld [vmem:[%s392 + $0x270] sm:$0xff]
        %v622 = vld [vmem:[%s392 + $0x278] sm:$0xff]
        %v623 = vld [vmem:[%s392 + $0x280] sm:$0xff]
        %v624 = vld [vmem:[%s392 + $0x288] sm:$0xff]
        %v625 = vld [vmem:[%s392 + $0x290] sm:$0xff]
        %v626 = vld [vmem:[%s392 + $0x298] sm:$0xff]
        %v627 = vld [vmem:[%s392 + $0x2a0] sm:$0xff]
        %v628 = vld [vmem:[%s392 + $0x2a8] sm:$0xff]
        %v629 = vld [vmem:[%s392 + $0x2b0] sm:$0xff]
        %v630 = vld [vmem:[%s392 + $0x2b8] sm:$0xff]
        %v631 = vld [vmem:[%s392 + $0x2c0] sm:$0xff]
        %v632 = vld [vmem:[%s392 + $0x2c8] sm:$0xff]
        %v633 = vld [vmem:[%s392 + $0x2d0] sm:$0xff]
        %v634 = vld [vmem:[%s392 + $0x2d8] sm:$0xff]
        %v635 = vld [vmem:[%s392 + $0x2e0] sm:$0xff]
        %v636 = vld [vmem:[%s392 + $0x2e8] sm:$0xff]
        %v637 = vld [vmem:[%s392 + $0x2f0] sm:$0xff]
        %v638 = vld [vmem:[%s392 + $0x2f8] sm:$0xff]
        %v639 = vld [vmem:[%s392 + $0x300] sm:$0xff]
        %v640 = vld [vmem:[%s392 + $0x308] sm:$0xff]
        %v641 = vld [vmem:[%s392 + $0x310] sm:$0xff]
        %v642 = vld [vmem:[%s392 + $0x318] sm:$0xff]
        %v643 = vld [vmem:[%s392 + $0x320] sm:$0xff]
        %v644 = vld [vmem:[%s392 + $0x328] sm:$0xff]
        %v645 = vld [vmem:[%s392 + $0x330] sm:$0xff]
        %v646 = vld [vmem:[%s392 + $0x338] sm:$0xff]
        %v647 = vld [vmem:[%s392 + $0x340] sm:$0xff]
        %v648 = vld [vmem:[%s392 + $0x348] sm:$0xff]
        %v649 = vld [vmem:[%s392 + $0x350] sm:$0xff]
        %v650 = vld [vmem:[%s392 + $0x358] sm:$0xff]
        %v651 = vld [vmem:[%s392 + $0x360] sm:$0xff]
        %v652 = vld [vmem:[%s392 + $0x368] sm:$0xff]
        %v653 = vld [vmem:[%s392 + $0x370] sm:$0xff]
        %v654 = vld [vmem:[%s392 + $0x378] sm:$0xff]
        %v655 = vld [vmem:[%s392 + $0x380] sm:$0xff]
        %v656 = vld [vmem:[%s392 + $0x388] sm:$0xff]
        %v657 = vld [vmem:[%s392 + $0x390] sm:$0xff]
        %v658 = vld [vmem:[%s392 + $0x398] sm:$0xff]
        %v659 = vld [vmem:[%s392 + $0x3a0] sm:$0xff]
        %v660 = vld [vmem:[%s392 + $0x3a8] sm:$0xff]
        %v661 = vld [vmem:[%s392 + $0x3b0] sm:$0xff]
        %v662 = vld [vmem:[%s392 + $0x3b8] sm:$0xff]
        %v663 = vld [vmem:[%s392 + $0x3c0] sm:$0xff]
        %v664 = vld [vmem:[%s392 + $0x3c8] sm:$0xff]
        %v665 = vld [vmem:[%s392 + $0x3d0] sm:$0xff]
        %v666 = vld [vmem:[%s392 + $0x3d8] sm:$0xff]
        %v667 = vld [vmem:[%s392 + $0x3e0] sm:$0xff]
        %v668 = vld [vmem:[%s392 + $0x3e8] sm:$0xff]
        %v669 = vld [vmem:[%s392 + $0x3f0] sm:$0xff]
        %v670 = vld [vmem:[%s392 + $0x3f8] sm:$0xff]
        %v671 = vld [vmem:[%s392 + $0x400] sm:$0xff]
        %v672 = vld [vmem:[%s392 + $0x408] sm:$0xff]
        %v673 = vld [vmem:[%s392 + $0x410] sm:$0xff]
        %v674 = vld [vmem:[%s392 + $0x418] sm:$0xff]
        %v675 = vld [vmem:[%s392 + $0x420] sm:$0xff]
        %v676 = vld [vmem:[%s392 + $0x428] sm:$0xff]
        %v677 = vld [vmem:[%s392 + $0x430] sm:$0xff]
        %v678 = vld [vmem:[%s392 + $0x438] sm:$0xff]
        %v679 = vld [vmem:[%s392 + $0x440] sm:$0xff]
        %v680 = vld [vmem:[%s392 + $0x448] sm:$0xff]
        %v681 = vld [vmem:[%s392 + $0x450] sm:$0xff]
        %v682 = vld [vmem:[%s392 + $0x458] sm:$0xff]
        %v683 = vld [vmem:[%s392 + $0x460] sm:$0xff]
        %v684 = vld [vmem:[%s392 + $0x468] sm:$0xff]
        %v685 = vld [vmem:[%s392 + $0x470] sm:$0xff]
        %v686 = vld [vmem:[%s392 + $0x478] sm:$0xff]
        %v767 = vunpack.c.l.b16 %v463
        %v768 = vunpack.c.h.b16 %v463
        %v769 = vunpack.c.l.b16 %v464
        %v770 = vunpack.c.h.b16 %v464
        %v771 = vunpack.c.l.b16 %v465
        %v772 = vunpack.c.h.b16 %v465
        %v773 = vunpack.c.l.b16 %v466
        %v774 = vunpack.c.h.b16 %v466
        %v775 = vunpack.c.l.b16 %v467
        %v776 = vunpack.c.l.b16 %v468
        %v777 = vunpack.c.h.b16 %v468
        %v778 = vunpack.c.l.b16 %v469
        %v779 = vunpack.c.h.b16 %v469
        %v780 = vunpack.c.l.b16 %v470
        %v781 = vunpack.c.h.b16 %v470
        %v782 = vunpack.c.l.b16 %v471
        %v783 = vunpack.c.h.b16 %v471
        %v784 = vunpack.c.l.b16 %v472
        %v785 = vunpack.c.l.b16 %v473
        %v786 = vunpack.c.h.b16 %v473
        %v787 = vunpack.c.l.b16 %v474
        %v788 = vunpack.c.h.b16 %v474
        %v789 = vunpack.c.l.b16 %v475
        %v790 = vunpack.c.h.b16 %v475
        %v791 = vunpack.c.l.b16 %v476
        %v792 = vunpack.c.h.b16 %v476
        %v793 = vunpack.c.l.b16 %v477
        %v794 = vunpack.c.l.b16 %v478
        %v795 = vunpack.c.h.b16 %v478
        %v796 = vunpack.c.l.b16 %v479
        %v797 = vunpack.c.h.b16 %v479
        %v798 = vunpack.c.l.b16 %v480
        %v799 = vunpack.c.h.b16 %v480
        %v800 = vunpack.c.l.b16 %v481
        %v801 = vunpack.c.h.b16 %v481
        %v802 = vunpack.c.l.b16 %v482
        %v803 = vunpack.c.l.b16 %v483
        %v804 = vunpack.c.h.b16 %v483
        %v805 = vunpack.c.l.b16 %v484
        %v806 = vunpack.c.h.b16 %v484
        %v807 = vunpack.c.l.b16 %v485
        %v808 = vunpack.c.h.b16 %v485
        %v809 = vunpack.c.l.b16 %v486
        %v810 = vunpack.c.h.b16 %v486
        %v811 = vunpack.c.l.b16 %v487
        %v812 = vunpack.c.l.b16 %v488
        %v813 = vunpack.c.h.b16 %v488
        %v814 = vunpack.c.l.b16 %v489
        %v815 = vunpack.c.h.b16 %v489
        %v816 = vunpack.c.l.b16 %v490
        %v817 = vunpack.c.h.b16 %v490
        %v818 = vunpack.c.l.b16 %v491
        %v819 = vunpack.c.h.b16 %v491
        %v820 = vunpack.c.l.b16 %v492
        %v821 = vunpack.c.l.b16 %v493
        %v822 = vunpack.c.h.b16 %v493
        %v823 = vunpack.c.l.b16 %v494
        %v824 = vunpack.c.h.b16 %v494
        %v825 = vunpack.c.l.b16 %v495
        %v826 = vunpack.c.h.b16 %v495
        %v827 = vunpack.c.l.b16 %v496
        %v828 = vunpack.c.h.b16 %v496
        %v829 = vunpack.c.l.b16 %v497
        %v830 = vunpack.c.l.b16 %v498
        %v831 = vunpack.c.h.b16 %v498
        %v832 = vunpack.c.l.b16 %v499
        %v833 = vunpack.c.h.b16 %v499
        %v834 = vunpack.c.l.b16 %v500
        %v835 = vunpack.c.h.b16 %v500
        %v836 = vunpack.c.l.b16 %v501
        %v837 = vunpack.c.h.b16 %v501
        %v838 = vunpack.c.l.b16 %v502
        %v839 = vunpack.c.l.b16 %v503
        %v840 = vunpack.c.h.b16 %v503
        %v841 = vunpack.c.l.b16 %v504
        %v842 = vunpack.c.h.b16 %v504
        %v843 = vunpack.c.l.b16 %v505
        %v844 = vunpack.c.h.b16 %v505
        %v845 = vunpack.c.l.b16 %v506
        %v846 = vunpack.c.h.b16 %v506
        %v847 = vunpack.c.l.b16 %v507
        %v848 = vunpack.c.l.b16 %v508
        %v849 = vunpack.c.h.b16 %v508
        %v850 = vunpack.c.l.b16 %v509
        %v851 = vunpack.c.h.b16 %v509
        %v852 = vunpack.c.l.b16 %v510
        %v853 = vunpack.c.h.b16 %v510
        %v854 = vunpack.c.l.b16 %v511
        %v855 = vunpack.c.h.b16 %v511
        %v856 = vunpack.c.l.b16 %v512
        %v857 = vunpack.c.l.b16 %v513
        %v858 = vunpack.c.h.b16 %v513
        %v859 = vunpack.c.l.b16 %v514
        %v860 = vunpack.c.h.b16 %v514
        %v861 = vunpack.c.l.b16 %v515
        %v862 = vunpack.c.h.b16 %v515
        %v863 = vunpack.c.l.b16 %v516
        %v864 = vunpack.c.h.b16 %v516
        %v865 = vunpack.c.l.b16 %v517
        %v866 = vunpack.c.l.b16 %v518
        %v867 = vunpack.c.h.b16 %v518
        %v868 = vunpack.c.l.b16 %v519
        %v869 = vunpack.c.h.b16 %v519
        %v870 = vunpack.c.l.b16 %v520
        %v871 = vunpack.c.h.b16 %v520
        %v872 = vunpack.c.l.b16 %v521
        %v873 = vunpack.c.h.b16 %v521
        %v874 = vunpack.c.l.b16 %v522
        %v875 = vunpack.c.l.b16 %v523
        %v876 = vunpack.c.h.b16 %v523
        %v877 = vunpack.c.l.b16 %v524
        %v878 = vunpack.c.h.b16 %v524
        %v879 = vunpack.c.l.b16 %v525
        %v880 = vunpack.c.h.b16 %v525
        %v881 = vunpack.c.l.b16 %v526
        %v882 = vunpack.c.h.b16 %v526
        %v883 = vunpack.c.l.b16 %v527
        %v884 = vunpack.c.l.b16 %v528
        %v885 = vunpack.c.h.b16 %v528
        %v886 = vunpack.c.l.b16 %v529
        %v887 = vunpack.c.h.b16 %v529
        %v888 = vunpack.c.l.b16 %v530
        %v889 = vunpack.c.h.b16 %v530
        %v890 = vunpack.c.l.b16 %v531
        %v891 = vunpack.c.h.b16 %v531
        %v892 = vunpack.c.l.b16 %v532
        %v893 = vunpack.c.l.b16 %v533
        %v894 = vunpack.c.h.b16 %v533
        %v895 = vunpack.c.l.b16 %v534
        %v896 = vunpack.c.h.b16 %v534
        %v897 = vunpack.c.l.b16 %v535
        %v898 = vunpack.c.h.b16 %v535
        %v899 = vunpack.c.l.b16 %v536
        %v900 = vunpack.c.h.b16 %v536
        %v901 = vunpack.c.l.b16 %v537
        %v902 = vunpack.c.l.b16 %v538
        %v903 = vunpack.c.h.b16 %v538
        %v904 = vunpack.c.l.b16 %v539
        %v905 = vunpack.c.h.b16 %v539
        %v906 = vunpack.c.l.b16 %v540
        %v907 = vunpack.c.h.b16 %v540
        %v908 = vunpack.c.l.b16 %v541
        %v909 = vunpack.c.h.b16 %v541
        %v910 = vunpack.c.l.b16 %v542
        %v911 = vpack.c.b16 %v776, %v767
        %v912 = vpack.c.b16 %v777, %v768
        %v913 = vpack.c.b16 %v778, %v769
        %v914 = vpack.c.b16 %v779, %v770
        %v915 = vpack.c.b16 %v780, %v771
        %v916 = vpack.c.b16 %v781, %v772
        %v917 = vpack.c.b16 %v782, %v773
        %v918 = vpack.c.b16 %v783, %v774
        %v919 = vpack.c.b16 %v784, %v775
        %v920 = vpack.c.b16 %v794, %v785
        %v921 = vpack.c.b16 %v795, %v786
        %v922 = vpack.c.b16 %v796, %v787
        %v923 = vpack.c.b16 %v797, %v788
        %v924 = vpack.c.b16 %v798, %v789
        %v925 = vpack.c.b16 %v799, %v790
        %v926 = vpack.c.b16 %v800, %v791
        %v927 = vpack.c.b16 %v801, %v792
        %v928 = vpack.c.b16 %v802, %v793
        %v929 = vpack.c.b16 %v812, %v803
        %v930 = vpack.c.b16 %v813, %v804
        %v931 = vpack.c.b16 %v814, %v805
        %v932 = vpack.c.b16 %v815, %v806
        %v933 = vpack.c.b16 %v816, %v807
        %v934 = vpack.c.b16 %v817, %v808
        %v935 = vpack.c.b16 %v818, %v809
        %v936 = vpack.c.b16 %v819, %v810
        %v937 = vpack.c.b16 %v820, %v811
        %v938 = vpack.c.b16 %v830, %v821
        %v939 = vpack.c.b16 %v831, %v822
        %v940 = vpack.c.b16 %v832, %v823
        %v941 = vpack.c.b16 %v833, %v824
        %v942 = vpack.c.b16 %v834, %v825
        %v943 = vpack.c.b16 %v835, %v826
        %v944 = vpack.c.b16 %v836, %v827
        %v945 = vpack.c.b16 %v837, %v828
        %v946 = vpack.c.b16 %v838, %v829
        %v947 = vpack.c.b16 %v848, %v839
        %v948 = vpack.c.b16 %v849, %v840
        %v949 = vpack.c.b16 %v850, %v841
        %v950 = vpack.c.b16 %v851, %v842
        %v951 = vpack.c.b16 %v852, %v843
        %v952 = vpack.c.b16 %v853, %v844
        %v953 = vpack.c.b16 %v854, %v845
        %v954 = vpack.c.b16 %v855, %v846
        %v955 = vpack.c.b16 %v856, %v847
        %v956 = vpack.c.b16 %v866, %v857
        %v957 = vpack.c.b16 %v867, %v858
        %v958 = vpack.c.b16 %v868, %v859
        %v959 = vpack.c.b16 %v869, %v860
        %v960 = vpack.c.b16 %v870, %v861
        %v961 = vpack.c.b16 %v871, %v862
        %v962 = vpack.c.b16 %v872, %v863
        %v963 = vpack.c.b16 %v873, %v864
        %v964 = vpack.c.b16 %v874, %v865
        %v965 = vpack.c.b16 %v884, %v875
        %v966 = vpack.c.b16 %v885, %v876
        %v967 = vpack.c.b16 %v886, %v877
        %v968 = vpack.c.b16 %v887, %v878
        %v969 = vpack.c.b16 %v888, %v879
        %v970 = vpack.c.b16 %v889, %v880
        %v971 = vpack.c.b16 %v890, %v881
        %v972 = vpack.c.b16 %v891, %v882
        %v973 = vpack.c.b16 %v892, %v883
        %v974 = vpack.c.b16 %v902, %v893
        %v975 = vpack.c.b16 %v903, %v894
        %v976 = vpack.c.b16 %v904, %v895
        %v977 = vpack.c.b16 %v905, %v896
        %v978 = vpack.c.b16 %v906, %v897
        %v979 = vpack.c.b16 %v907, %v898
        %v980 = vpack.c.b16 %v908, %v899
        %v981 = vpack.c.b16 %v909, %v900
        %v982 = vpack.c.b16 %v910, %v901
        %v1199 = vunpack.c.l.b16 %v543
        %v1200 = vunpack.c.h.b16 %v543
        %v1201 = vunpack.c.l.b16 %v544
        %v1202 = vunpack.c.h.b16 %v544
        %v1203 = vunpack.c.l.b16 %v545
        %v1204 = vunpack.c.h.b16 %v545
        %v1205 = vunpack.c.l.b16 %v546
        %v1206 = vunpack.c.h.b16 %v546
        %v1207 = vunpack.c.l.b16 %v547
        %v1208 = vunpack.c.h.b16 %v547
        %v1209 = vunpack.c.l.b16 %v548
        %v1210 = vunpack.c.h.b16 %v548
        %v1211 = vunpack.c.l.b16 %v549
        %v1212 = vunpack.c.h.b16 %v549
        %v1213 = vunpack.c.l.b16 %v550
        %v1214 = vunpack.c.h.b16 %v550
        %v1215 = vunpack.c.l.b16 %v551
        %v1216 = vunpack.c.h.b16 %v551
        %v1217 = vunpack.c.l.b16 %v552
        %v1218 = vunpack.c.h.b16 %v552
        %v1219 = vunpack.c.l.b16 %v553
        %v1220 = vunpack.c.h.b16 %v553
        %v1221 = vunpack.c.l.b16 %v554
        %v1222 = vunpack.c.h.b16 %v554
        %v1223 = vunpack.c.l.b16 %v555
        %v1224 = vunpack.c.h.b16 %v555
        %v1225 = vunpack.c.l.b16 %v556
        %v1226 = vunpack.c.h.b16 %v556
        %v1227 = vunpack.c.l.b16 %v557
        %v1228 = vunpack.c.h.b16 %v557
        %v1229 = vunpack.c.l.b16 %v558
        %v1230 = vunpack.c.h.b16 %v558
        %v1231 = vunpack.c.l.b16 %v559
        %v1232 = vunpack.c.h.b16 %v559
        %v1233 = vunpack.c.l.b16 %v560
        %v1234 = vunpack.c.h.b16 %v560
        %v1235 = vunpack.c.l.b16 %v561
        %v1236 = vunpack.c.h.b16 %v561
        %v1237 = vunpack.c.l.b16 %v562
        %v1238 = vunpack.c.h.b16 %v562
        %v1239 = vunpack.c.l.b16 %v563
        %v1240 = vunpack.c.h.b16 %v563
        %v1241 = vunpack.c.l.b16 %v564
        %v1242 = vunpack.c.h.b16 %v564
        %v1243 = vunpack.c.l.b16 %v565
        %v1244 = vunpack.c.h.b16 %v565
        %v1245 = vunpack.c.l.b16 %v566
        %v1246 = vunpack.c.h.b16 %v566
        %v1247 = vunpack.c.l.b16 %v567
        %v1248 = vunpack.c.h.b16 %v567
        %v1249 = vunpack.c.l.b16 %v568
        %v1250 = vunpack.c.h.b16 %v568
        %v1251 = vunpack.c.l.b16 %v569
        %v1252 = vunpack.c.h.b16 %v569
        %v1253 = vunpack.c.l.b16 %v570
        %v1254 = vunpack.c.h.b16 %v570
        %v1255 = vunpack.c.l.b16 %v571
        %v1256 = vunpack.c.h.b16 %v571
        %v1257 = vunpack.c.l.b16 %v572
        %v1258 = vunpack.c.h.b16 %v572
        %v1259 = vunpack.c.l.b16 %v573
        %v1260 = vunpack.c.h.b16 %v573
        %v1261 = vunpack.c.l.b16 %v574
        %v1262 = vunpack.c.h.b16 %v574
        %v1263 = vunpack.c.l.b16 %v575
        %v1264 = vunpack.c.h.b16 %v575
        %v1265 = vunpack.c.l.b16 %v576
        %v1266 = vunpack.c.h.b16 %v576
        %v1267 = vunpack.c.l.b16 %v577
        %v1268 = vunpack.c.h.b16 %v577
        %v1269 = vunpack.c.l.b16 %v578
        %v1270 = vunpack.c.h.b16 %v578
        %v1271 = vunpack.c.l.b16 %v579
        %v1272 = vunpack.c.h.b16 %v579
        %v1273 = vunpack.c.l.b16 %v580
        %v1274 = vunpack.c.h.b16 %v580
        %v1275 = vunpack.c.l.b16 %v581
        %v1276 = vunpack.c.h.b16 %v581
        %v1277 = vunpack.c.l.b16 %v582
        %v1278 = vunpack.c.h.b16 %v582
        %v1279 = vunpack.c.l.b16 %v583
        %v1280 = vunpack.c.h.b16 %v583
        %v1281 = vunpack.c.l.b16 %v584
        %v1282 = vunpack.c.h.b16 %v584
        %v1283 = vunpack.c.l.b16 %v585
        %v1284 = vunpack.c.h.b16 %v585
        %v1285 = vunpack.c.l.b16 %v586
        %v1286 = vunpack.c.h.b16 %v586
        %v1287 = vunpack.c.l.b16 %v587
        %v1288 = vunpack.c.h.b16 %v587
        %v1289 = vunpack.c.l.b16 %v588
        %v1290 = vunpack.c.h.b16 %v588
        %v1291 = vunpack.c.l.b16 %v589
        %v1292 = vunpack.c.h.b16 %v589
        %v1293 = vunpack.c.l.b16 %v590
        %v1294 = vunpack.c.h.b16 %v590
        %v1295 = vunpack.c.l.b16 %v591
        %v1296 = vunpack.c.h.b16 %v591
        %v1297 = vunpack.c.l.b16 %v592
        %v1298 = vunpack.c.h.b16 %v592
        %v1299 = vunpack.c.l.b16 %v593
        %v1300 = vunpack.c.h.b16 %v593
        %v1301 = vunpack.c.l.b16 %v594
        %v1302 = vunpack.c.h.b16 %v594
        %v1303 = vunpack.c.l.b16 %v595
        %v1304 = vunpack.c.h.b16 %v595
        %v1305 = vunpack.c.l.b16 %v596
        %v1306 = vunpack.c.h.b16 %v596
        %v1307 = vunpack.c.l.b16 %v597
        %v1308 = vunpack.c.h.b16 %v597
        %v1309 = vunpack.c.l.b16 %v598
        %v1310 = vunpack.c.h.b16 %v598
        %v1311 = vunpack.c.l.b16 %v599
        %v1312 = vunpack.c.h.b16 %v599
        %v1313 = vunpack.c.l.b16 %v600
        %v1314 = vunpack.c.h.b16 %v600
        %v1315 = vunpack.c.l.b16 %v601
        %v1316 = vunpack.c.h.b16 %v601
        %v1317 = vunpack.c.l.b16 %v602
        %v1318 = vunpack.c.h.b16 %v602
        %v1319 = vunpack.c.l.b16 %v603
        %v1320 = vunpack.c.h.b16 %v603
        %v1321 = vunpack.c.l.b16 %v604
        %v1322 = vunpack.c.h.b16 %v604
        %v1323 = vunpack.c.l.b16 %v605
        %v1324 = vunpack.c.h.b16 %v605
        %v1325 = vunpack.c.l.b16 %v606
        %v1326 = vunpack.c.h.b16 %v606
        %v1327 = vunpack.c.l.b16 %v607
        %v1328 = vunpack.c.h.b16 %v607
        %v1329 = vunpack.c.l.b16 %v608
        %v1330 = vunpack.c.h.b16 %v608
        %v1331 = vunpack.c.l.b16 %v609
        %v1332 = vunpack.c.h.b16 %v609
        %v1333 = vunpack.c.l.b16 %v610
        %v1334 = vunpack.c.h.b16 %v610
        %v1335 = vunpack.c.l.b16 %v611
        %v1336 = vunpack.c.h.b16 %v611
        %v1337 = vunpack.c.l.b16 %v612
        %v1338 = vunpack.c.h.b16 %v612
        %v1339 = vunpack.c.l.b16 %v613
        %v1340 = vunpack.c.h.b16 %v613
        %v1341 = vunpack.c.l.b16 %v614
        %v1342 = vunpack.c.h.b16 %v614
        %v1343 = vunpack.c.l.b16 %v615
        %v1344 = vunpack.c.h.b16 %v615
        %v1345 = vunpack.c.l.b16 %v616
        %v1346 = vunpack.c.h.b16 %v616
        %v1347 = vunpack.c.l.b16 %v617
        %v1348 = vunpack.c.h.b16 %v617
        %v1349 = vunpack.c.l.b16 %v618
        %v1350 = vunpack.c.h.b16 %v618
        %v1351 = vunpack.c.l.b16 %v619
        %v1352 = vunpack.c.h.b16 %v619
        %v1353 = vunpack.c.l.b16 %v620
        %v1354 = vunpack.c.h.b16 %v620
        %v1355 = vunpack.c.l.b16 %v621
        %v1356 = vunpack.c.h.b16 %v621
        %v1357 = vunpack.c.l.b16 %v622
        %v1358 = vunpack.c.h.b16 %v622
        %v1359 = vunpack.c.l.b16 %v623
        %v1360 = vunpack.c.h.b16 %v623
        %v1361 = vunpack.c.l.b16 %v624
        %v1362 = vunpack.c.h.b16 %v624
        %v1363 = vunpack.c.l.b16 %v625
        %v1364 = vunpack.c.h.b16 %v625
        %v1365 = vunpack.c.l.b16 %v626
        %v1366 = vunpack.c.h.b16 %v626
        %v1367 = vunpack.c.l.b16 %v627
        %v1368 = vunpack.c.h.b16 %v627
        %v1369 = vunpack.c.l.b16 %v628
        %v1370 = vunpack.c.h.b16 %v628
        %v1371 = vunpack.c.l.b16 %v629
        %v1372 = vunpack.c.h.b16 %v629
        %v1373 = vunpack.c.l.b16 %v630
        %v1374 = vunpack.c.h.b16 %v630
        %v1375 = vunpack.c.l.b16 %v631
        %v1376 = vunpack.c.h.b16 %v631
        %v1377 = vunpack.c.l.b16 %v632
        %v1378 = vunpack.c.h.b16 %v632
        %v1379 = vunpack.c.l.b16 %v633
        %v1380 = vunpack.c.h.b16 %v633
        %v1381 = vunpack.c.l.b16 %v634
        %v1382 = vunpack.c.h.b16 %v634
        %v1383 = vunpack.c.l.b16 %v635
        %v1384 = vunpack.c.h.b16 %v635
        %v1385 = vunpack.c.l.b16 %v636
        %v1386 = vunpack.c.h.b16 %v636
        %v1387 = vunpack.c.l.b16 %v637
        %v1388 = vunpack.c.h.b16 %v637
        %v1389 = vunpack.c.l.b16 %v638
        %v1390 = vunpack.c.h.b16 %v638
        %v1391 = vunpack.c.l.b16 %v639
        %v1392 = vunpack.c.h.b16 %v639
        %v1393 = vunpack.c.l.b16 %v640
        %v1394 = vunpack.c.h.b16 %v640
        %v1395 = vunpack.c.l.b16 %v641
        %v1396 = vunpack.c.h.b16 %v641
        %v1397 = vunpack.c.l.b16 %v642
        %v1398 = vunpack.c.h.b16 %v642
        %v1399 = vunpack.c.l.b16 %v643
        %v1400 = vunpack.c.h.b16 %v643
        %v1401 = vunpack.c.l.b16 %v644
        %v1402 = vunpack.c.h.b16 %v644
        %v1403 = vunpack.c.l.b16 %v645
        %v1404 = vunpack.c.h.b16 %v645
        %v1405 = vunpack.c.l.b16 %v646
        %v1406 = vunpack.c.h.b16 %v646
        %v1407 = vunpack.c.l.b16 %v647
        %v1408 = vunpack.c.h.b16 %v647
        %v1409 = vunpack.c.l.b16 %v648
        %v1410 = vunpack.c.h.b16 %v648
        %v1411 = vunpack.c.l.b16 %v649
        %v1412 = vunpack.c.h.b16 %v649
        %v1413 = vunpack.c.l.b16 %v650
        %v1414 = vunpack.c.h.b16 %v650
        %v1415 = vunpack.c.l.b16 %v651
        %v1416 = vunpack.c.h.b16 %v651
        %v1417 = vunpack.c.l.b16 %v652
        %v1418 = vunpack.c.h.b16 %v652
        %v1419 = vunpack.c.l.b16 %v653
        %v1420 = vunpack.c.h.b16 %v653
        %v1421 = vunpack.c.l.b16 %v654
        %v1422 = vunpack.c.h.b16 %v654
        %v1423 = vunpack.c.l.b16 %v655
        %v1424 = vunpack.c.h.b16 %v655
        %v1425 = vunpack.c.l.b16 %v656
        %v1426 = vunpack.c.h.b16 %v656
        %v1427 = vunpack.c.l.b16 %v657
        %v1428 = vunpack.c.h.b16 %v657
        %v1429 = vunpack.c.l.b16 %v658
        %v1430 = vunpack.c.h.b16 %v658
        %v1431 = vunpack.c.l.b16 %v659
        %v1432 = vunpack.c.h.b16 %v659
        %v1433 = vunpack.c.l.b16 %v660
        %v1434 = vunpack.c.h.b16 %v660
        %v1435 = vunpack.c.l.b16 %v661
        %v1436 = vunpack.c.h.b16 %v661
        %v1437 = vunpack.c.l.b16 %v662
        %v1438 = vunpack.c.h.b16 %v662
        %v1439 = vunpack.c.l.b16 %v663
        %v1440 = vunpack.c.h.b16 %v663
        %v1441 = vunpack.c.l.b16 %v664
        %v1442 = vunpack.c.h.b16 %v664
        %v1443 = vunpack.c.l.b16 %v665
        %v1444 = vunpack.c.h.b16 %v665
        %v1445 = vunpack.c.l.b16 %v666
        %v1446 = vunpack.c.h.b16 %v666
        %v1447 = vunpack.c.l.b16 %v667
        %v1448 = vunpack.c.h.b16 %v667
        %v1449 = vunpack.c.l.b16 %v668
        %v1450 = vunpack.c.h.b16 %v668
        %v1451 = vunpack.c.l.b16 %v669
        %v1452 = vunpack.c.h.b16 %v669
        %v1453 = vunpack.c.l.b16 %v670
        %v1454 = vunpack.c.h.b16 %v670
        %v1455 = vunpack.c.l.b16 %v671
        %v1456 = vunpack.c.h.b16 %v671
        %v1457 = vunpack.c.l.b16 %v672
        %v1458 = vunpack.c.h.b16 %v672
        %v1459 = vunpack.c.l.b16 %v673
        %v1460 = vunpack.c.h.b16 %v673
        %v1461 = vunpack.c.l.b16 %v674
        %v1462 = vunpack.c.h.b16 %v674
        %v1463 = vunpack.c.l.b16 %v675
        %v1464 = vunpack.c.h.b16 %v675
        %v1465 = vunpack.c.l.b16 %v676
        %v1466 = vunpack.c.h.b16 %v676
        %v1467 = vunpack.c.l.b16 %v677
        %v1468 = vunpack.c.h.b16 %v677
        %v1469 = vunpack.c.l.b16 %v678
        %v1470 = vunpack.c.h.b16 %v678
        %v1471 = vunpack.c.l.b16 %v679
        %v1472 = vunpack.c.h.b16 %v679
        %v1473 = vunpack.c.l.b16 %v680
        %v1474 = vunpack.c.h.b16 %v680
        %v1475 = vunpack.c.l.b16 %v681
        %v1476 = vunpack.c.h.b16 %v681
        %v1477 = vunpack.c.l.b16 %v682
        %v1478 = vunpack.c.h.b16 %v682
        %v1479 = vunpack.c.l.b16 %v683
        %v1480 = vunpack.c.h.b16 %v683
        %v1481 = vunpack.c.l.b16 %v684
        %v1482 = vunpack.c.h.b16 %v684
        %v1483 = vunpack.c.l.b16 %v685
        %v1484 = vunpack.c.h.b16 %v685
        %v1485 = vunpack.c.l.b16 %v686
        %v1486 = vunpack.c.h.b16 %v686
        %v1487 = vpack.c.b16 %v1201, %v1199
        %v1488 = vpack.c.b16 %v1202, %v1200
        %v1489 = vpack.c.b16 %v1205, %v1203
        %v1490 = vpack.c.b16 %v1206, %v1204
        %v1491 = vpack.c.b16 %v1209, %v1207
        %v1492 = vpack.c.b16 %v1210, %v1208
        %v1493 = vpack.c.b16 %v1213, %v1211
        %v1494 = vpack.c.b16 %v1214, %v1212
        %v1495 = vpack.c.b16 %v1217, %v1215
        %v1496 = vpack.c.b16 %v1218, %v1216
        %v1497 = vpack.c.b16 %v1221, %v1219
        %v1498 = vpack.c.b16 %v1222, %v1220
        %v1499 = vpack.c.b16 %v1225, %v1223
        %v1500 = vpack.c.b16 %v1226, %v1224
        %v1501 = vpack.c.b16 %v1229, %v1227
        %v1502 = vpack.c.b16 %v1230, %v1228
        %v1503 = vpack.c.b16 %v1233, %v1231
        %v1504 = vpack.c.b16 %v1234, %v1232
        %v1505 = vpack.c.b16 %v1237, %v1235
        %v1506 = vpack.c.b16 %v1238, %v1236
        %v1507 = vpack.c.b16 %v1241, %v1239
        %v1508 = vpack.c.b16 %v1242, %v1240
        %v1509 = vpack.c.b16 %v1245, %v1243
        %v1510 = vpack.c.b16 %v1246, %v1244
        %v1511 = vpack.c.b16 %v1249, %v1247
        %v1512 = vpack.c.b16 %v1250, %v1248
        %v1513 = vpack.c.b16 %v1253, %v1251
        %v1514 = vpack.c.b16 %v1254, %v1252
        %v1515 = vpack.c.b16 %v1257, %v1255
        %v1516 = vpack.c.b16 %v1258, %v1256
        %v1517 = vpack.c.b16 %v1261, %v1259
        %v1518 = vpack.c.b16 %v1262, %v1260
        %v1519 = vpack.c.b16 %v1265, %v1263
        %v1520 = vpack.c.b16 %v1266, %v1264
        %v1521 = vpack.c.b16 %v1269, %v1267
        %v1522 = vpack.c.b16 %v1270, %v1268
        %v1523 = vpack.c.b16 %v1273, %v1271
        %v1524 = vpack.c.b16 %v1274, %v1272
        %v1525 = vpack.c.b16 %v1277, %v1275
        %v1526 = vpack.c.b16 %v1278, %v1276
        %v1527 = vpack.c.b16 %v1281, %v1279
        %v1528 = vpack.c.b16 %v1282, %v1280
        %v1529 = vpack.c.b16 %v1285, %v1283
        %v1530 = vpack.c.b16 %v1286, %v1284
        %v1531 = vpack.c.b16 %v1289, %v1287
        %v1532 = vpack.c.b16 %v1290, %v1288
        %v1533 = vpack.c.b16 %v1293, %v1291
        %v1534 = vpack.c.b16 %v1294, %v1292
        %v1535 = vpack.c.b16 %v1297, %v1295
        %v1536 = vpack.c.b16 %v1298, %v1296
        %v1537 = vpack.c.b16 %v1301, %v1299
        %v1538 = vpack.c.b16 %v1302, %v1300
        %v1539 = vpack.c.b16 %v1305, %v1303
        %v1540 = vpack.c.b16 %v1306, %v1304
        %v1541 = vpack.c.b16 %v1309, %v1307
        %v1542 = vpack.c.b16 %v1310, %v1308
        %v1543 = vpack.c.b16 %v1313, %v1311
        %v1544 = vpack.c.b16 %v1314, %v1312
        %v1545 = vpack.c.b16 %v1317, %v1315
        %v1546 = vpack.c.b16 %v1318, %v1316
        %v1547 = vpack.c.b16 %v1321, %v1319
        %v1548 = vpack.c.b16 %v1322, %v1320
        %v1549 = vpack.c.b16 %v1325, %v1323
        %v1550 = vpack.c.b16 %v1326, %v1324
        %v1551 = vpack.c.b16 %v1329, %v1327
        %v1552 = vpack.c.b16 %v1330, %v1328
        %v1553 = vpack.c.b16 %v1333, %v1331
        %v1554 = vpack.c.b16 %v1334, %v1332
        %v1555 = vpack.c.b16 %v1337, %v1335
        %v1556 = vpack.c.b16 %v1338, %v1336
        %v1557 = vpack.c.b16 %v1341, %v1339
        %v1558 = vpack.c.b16 %v1342, %v1340
        %v1559 = vpack.c.b16 %v1345, %v1343
        %v1560 = vpack.c.b16 %v1346, %v1344
        %v1561 = vpack.c.b16 %v1349, %v1347
        %v1562 = vpack.c.b16 %v1350, %v1348
        %v1563 = vpack.c.b16 %v1353, %v1351
        %v1564 = vpack.c.b16 %v1354, %v1352
        %v1565 = vpack.c.b16 %v1357, %v1355
        %v1566 = vpack.c.b16 %v1358, %v1356
        %v1567 = vpack.c.b16 %v1361, %v1359
        %v1568 = vpack.c.b16 %v1362, %v1360
        %v1569 = vpack.c.b16 %v1365, %v1363
        %v1570 = vpack.c.b16 %v1366, %v1364
        %v1571 = vpack.c.b16 %v1369, %v1367
        %v1572 = vpack.c.b16 %v1370, %v1368
        %v1573 = vpack.c.b16 %v1373, %v1371
        %v1574 = vpack.c.b16 %v1374, %v1372
        %v1575 = vpack.c.b16 %v1377, %v1375
        %v1576 = vpack.c.b16 %v1378, %v1376
        %v1577 = vpack.c.b16 %v1381, %v1379
        %v1578 = vpack.c.b16 %v1382, %v1380
        %v1579 = vpack.c.b16 %v1385, %v1383
        %v1580 = vpack.c.b16 %v1386, %v1384
        %v1581 = vpack.c.b16 %v1389, %v1387
        %v1582 = vpack.c.b16 %v1390, %v1388
        %v1583 = vpack.c.b16 %v1393, %v1391
        %v1584 = vpack.c.b16 %v1394, %v1392
        %v1585 = vpack.c.b16 %v1397, %v1395
        %v1586 = vpack.c.b16 %v1398, %v1396
        %v1587 = vpack.c.b16 %v1401, %v1399
        %v1588 = vpack.c.b16 %v1402, %v1400
        %v1589 = vpack.c.b16 %v1405, %v1403
        %v1590 = vpack.c.b16 %v1406, %v1404
        %v1591 = vpack.c.b16 %v1409, %v1407
        %v1592 = vpack.c.b16 %v1410, %v1408
        %v1593 = vpack.c.b16 %v1413, %v1411
        %v1594 = vpack.c.b16 %v1414, %v1412
        %v1595 = vpack.c.b16 %v1417, %v1415
        %v1596 = vpack.c.b16 %v1418, %v1416
        %v1597 = vpack.c.b16 %v1421, %v1419
        %v1598 = vpack.c.b16 %v1422, %v1420
        %v1599 = vpack.c.b16 %v1425, %v1423
        %v1600 = vpack.c.b16 %v1426, %v1424
        %v1601 = vpack.c.b16 %v1429, %v1427
        %v1602 = vpack.c.b16 %v1430, %v1428
        %v1603 = vpack.c.b16 %v1433, %v1431
        %v1604 = vpack.c.b16 %v1434, %v1432
        %v1605 = vpack.c.b16 %v1437, %v1435
        %v1606 = vpack.c.b16 %v1438, %v1436
        %v1607 = vpack.c.b16 %v1441, %v1439
        %v1608 = vpack.c.b16 %v1442, %v1440
        %v1609 = vpack.c.b16 %v1445, %v1443
        %v1610 = vpack.c.b16 %v1446, %v1444
        %v1611 = vpack.c.b16 %v1449, %v1447
        %v1612 = vpack.c.b16 %v1450, %v1448
        %v1613 = vpack.c.b16 %v1453, %v1451
        %v1614 = vpack.c.b16 %v1454, %v1452
        %v1615 = vpack.c.b16 %v1457, %v1455
        %v1616 = vpack.c.b16 %v1458, %v1456
        %v1617 = vpack.c.b16 %v1461, %v1459
        %v1618 = vpack.c.b16 %v1462, %v1460
        %v1619 = vpack.c.b16 %v1465, %v1463
        %v1620 = vpack.c.b16 %v1466, %v1464
        %v1621 = vpack.c.b16 %v1469, %v1467
        %v1622 = vpack.c.b16 %v1470, %v1468
        %v1623 = vpack.c.b16 %v1473, %v1471
        %v1624 = vpack.c.b16 %v1474, %v1472
        %v1625 = vpack.c.b16 %v1477, %v1475
        %v1626 = vpack.c.b16 %v1478, %v1476
        %v1627 = vpack.c.b16 %v1481, %v1479
        %v1628 = vpack.c.b16 %v1482, %v1480
        %v1629 = vpack.c.b16 %v1485, %v1483
        %v1630 = vpack.c.b16 %v1486, %v1484
        %1775 = vmatpush.bf16.msra.mxu0 %v1501
        %1776 = vmatpush.bf16.msra.mxu0 %v1499
        %1777 = vmatpush.bf16.msra.mxu0 %v1497
        %1778 = vmatpush.bf16.msra.mxu0 %v1495
        %1779 = vmatpush.bf16.msra.mxu0 %v1493
        %1780 = vmatpush.bf16.msra.mxu0 %v1491
        %1781 = vmatpush.bf16.msra.mxu0 %v1489
        %1782 = vmatpush.bf16.msra.mxu0 %v1487
        %1783 = vmatmul.bf16.gmra.mxu0 %v911
        %v1784 = vpop.f32.mrf.mxu0
        %v1785 = vadd.f32 0.0, %v1784
        %v1786 = vpop.f32.mrf.mxu0
        %v1787 = vadd.f32 0.0, %v1786
        %1788 = vmatmul.bf16.gmra.mxu0 %v920
        %v1789 = vpop.f32.mrf.mxu0
        %v1790 = vadd.f32 0.0, %v1789
        %v1791 = vpop.f32.mrf.mxu0
        %v1792 = vadd.f32 0.0, %v1791
        %1793 = vmatmul.bf16.gmra.mxu0 %v929
        %v1794 = vpop.f32.mrf.mxu0
        %v1795 = vadd.f32 0.0, %v1794
        %v1796 = vpop.f32.mrf.mxu0
        %v1797 = vadd.f32 0.0, %v1796
        %1798 = vmatmul.bf16.gmra.mxu0 %v938
        %v1799 = vpop.f32.mrf.mxu0
        %v1800 = vadd.f32 0.0, %v1799
        %v1801 = vpop.f32.mrf.mxu0
        %v1802 = vadd.f32 0.0, %v1801
        %1803 = vmatmul.bf16.gmra.mxu0 %v947
        %v1804 = vpop.f32.mrf.mxu0
        %v1805 = vadd.f32 0.0, %v1804
        %v1806 = vpop.f32.mrf.mxu0
        %v1807 = vadd.f32 0.0, %v1806
        %1808 = vmatmul.bf16.gmra.mxu0 %v956
        %v1809 = vpop.f32.mrf.mxu0
        %v1810 = vadd.f32 0.0, %v1809
        %v1811 = vpop.f32.mrf.mxu0
        %v1812 = vadd.f32 0.0, %v1811
        %1813 = vmatmul.bf16.gmra.mxu0 %v965
        %v1814 = vpop.f32.mrf.mxu0
        %v1815 = vadd.f32 0.0, %v1814
        %v1816 = vpop.f32.mrf.mxu0
        %v1817 = vadd.f32 0.0, %v1816
        %1818 = vmatmul.bf16.gmra.mxu0 %v974
        %v1819 = vpop.f32.mrf.mxu0
        %v1820 = vadd.f32 0.0, %v1819
        %v1821 = vpop.f32.mrf.mxu0
        %v1822 = vadd.f32 0.0, %v1821
        %1823 = vdwg.mxu0
        %1824 = vmatpush.bf16.msra.mxu0 %v1517
        %1825 = vmatpush.bf16.msra.mxu0 %v1515
        %1826 = vmatpush.bf16.msra.mxu0 %v1513
        %1827 = vmatpush.bf16.msra.mxu0 %v1511
        %1828 = vmatpush.bf16.msra.mxu0 %v1509
        %1829 = vmatpush.bf16.msra.mxu0 %v1507
        %1830 = vmatpush.bf16.msra.mxu0 %v1505
        %1831 = vmatpush.bf16.msra.mxu0 %v1503
        %1832 = vmatmul.bf16.gmra.mxu0 %v912
        %v1833 = vpop.f32.mrf.mxu0
        %v1834 = vadd.f32 %v1785, %v1833
        %v1835 = vpop.f32.mrf.mxu0
        %v1836 = vadd.f32 %v1787, %v1835
        %1837 = vmatmul.bf16.gmra.mxu0 %v921
        %v1838 = vpop.f32.mrf.mxu0
        %v1839 = vadd.f32 %v1790, %v1838
        %v1840 = vpop.f32.mrf.mxu0
        %v1841 = vadd.f32 %v1792, %v1840
        %1842 = vmatmul.bf16.gmra.mxu0 %v930
        %v1843 = vpop.f32.mrf.mxu0
        %v1844 = vadd.f32 %v1795, %v1843
        %v1845 = vpop.f32.mrf.mxu0
        %v1846 = vadd.f32 %v1797, %v1845
        %1847 = vmatmul.bf16.gmra.mxu0 %v939
        %v1848 = vpop.f32.mrf.mxu0
        %v1849 = vadd.f32 %v1800, %v1848
        %v1850 = vpop.f32.mrf.mxu0
        %v1851 = vadd.f32 %v1802, %v1850
        %1852 = vmatmul.bf16.gmra.mxu0 %v948
        %v1853 = vpop.f32.mrf.mxu0
        %v1854 = vadd.f32 %v1805, %v1853
        %v1855 = vpop.f32.mrf.mxu0
        %v1856 = vadd.f32 %v1807, %v1855
        %1857 = vmatmul.bf16.gmra.mxu0 %v957
        %v1858 = vpop.f32.mrf.mxu0
        %v1859 = vadd.f32 %v1810, %v1858
        %v1860 = vpop.f32.mrf.mxu0
        %v1861 = vadd.f32 %v1812, %v1860
        %1862 = vmatmul.bf16.gmra.mxu0 %v966
        %v1863 = vpop.f32.mrf.mxu0
        %v1864 = vadd.f32 %v1815, %v1863
        %v1865 = vpop.f32.mrf.mxu0
        %v1866 = vadd.f32 %v1817, %v1865
        %1867 = vmatmul.bf16.gmra.mxu0 %v975
        %v1868 = vpop.f32.mrf.mxu0
        %v1869 = vadd.f32 %v1820, %v1868
        %v1870 = vpop.f32.mrf.mxu0
        %v1871 = vadd.f32 %v1822, %v1870
        %1872 = vdwg.mxu0
        %1873 = vmatpush.bf16.msra.mxu0 %v1533
        %1874 = vmatpush.bf16.msra.mxu0 %v1531
        %1875 = vmatpush.bf16.msra.mxu0 %v1529
        %1876 = vmatpush.bf16.msra.mxu0 %v1527
        %1877 = vmatpush.bf16.msra.mxu0 %v1525
        %1878 = vmatpush.bf16.msra.mxu0 %v1523
        %1879 = vmatpush.bf16.msra.mxu0 %v1521
        %1880 = vmatpush.bf16.msra.mxu0 %v1519
        %1881 = vmatmul.bf16.gmra.mxu0 %v913
        %v1882 = vpop.f32.mrf.mxu0
        %v1883 = vadd.f32 %v1834, %v1882
        %v1884 = vpop.f32.mrf.mxu0
        %v1885 = vadd.f32 %v1836, %v1884
        %1886 = vmatmul.bf16.gmra.mxu0 %v922
        %v1887 = vpop.f32.mrf.mxu0
        %v1888 = vadd.f32 %v1839, %v1887
        %v1889 = vpop.f32.mrf.mxu0
        %v1890 = vadd.f32 %v1841, %v1889
        %1891 = vmatmul.bf16.gmra.mxu0 %v931
        %v1892 = vpop.f32.mrf.mxu0
        %v1893 = vadd.f32 %v1844, %v1892
        %v1894 = vpop.f32.mrf.mxu0
        %v1895 = vadd.f32 %v1846, %v1894
        %1896 = vmatmul.bf16.gmra.mxu0 %v940
        %v1897 = vpop.f32.mrf.mxu0
        %v1898 = vadd.f32 %v1849, %v1897
        %v1899 = vpop.f32.mrf.mxu0
        %v1900 = vadd.f32 %v1851, %v1899
        %1901 = vmatmul.bf16.gmra.mxu0 %v949
        %v1902 = vpop.f32.mrf.mxu0
        %v1903 = vadd.f32 %v1854, %v1902
        %v1904 = vpop.f32.mrf.mxu0
        %v1905 = vadd.f32 %v1856, %v1904
        %1906 = vmatmul.bf16.gmra.mxu0 %v958
        %v1907 = vpop.f32.mrf.mxu0
        %v1908 = vadd.f32 %v1859, %v1907
        %v1909 = vpop.f32.mrf.mxu0
        %v1910 = vadd.f32 %v1861, %v1909
        %1911 = vmatmul.bf16.gmra.mxu0 %v967
        %v1912 = vpop.f32.mrf.mxu0
        %v1913 = vadd.f32 %v1864, %v1912
        %v1914 = vpop.f32.mrf.mxu0
        %v1915 = vadd.f32 %v1866, %v1914
        %1916 = vmatmul.bf16.gmra.mxu0 %v976
        %v1917 = vpop.f32.mrf.mxu0
        %v1918 = vadd.f32 %v1869, %v1917
        %v1919 = vpop.f32.mrf.mxu0
        %v1920 = vadd.f32 %v1871, %v1919
        %1921 = vdwg.mxu0
        %1922 = vmatpush.bf16.msra.mxu0 %v1549
        %1923 = vmatpush.bf16.msra.mxu0 %v1547
        %1924 = vmatpush.bf16.msra.mxu0 %v1545
        %1925 = vmatpush.bf16.msra.mxu0 %v1543
        %1926 = vmatpush.bf16.msra.mxu0 %v1541
        %1927 = vmatpush.bf16.msra.mxu0 %v1539
        %1928 = vmatpush.bf16.msra.mxu0 %v1537
        %1929 = vmatpush.bf16.msra.mxu0 %v1535
        %1930 = vmatmul.bf16.gmra.mxu0 %v914
        %v1931 = vpop.f32.mrf.mxu0
        %v1932 = vadd.f32 %v1883, %v1931
        %v1933 = vpop.f32.mrf.mxu0
        %v1934 = vadd.f32 %v1885, %v1933
        %1935 = vmatmul.bf16.gmra.mxu0 %v923
        %v1936 = vpop.f32.mrf.mxu0
        %v1937 = vadd.f32 %v1888, %v1936
        %v1938 = vpop.f32.mrf.mxu0
        %v1939 = vadd.f32 %v1890, %v1938
        %1940 = vmatmul.bf16.gmra.mxu0 %v932
        %v1941 = vpop.f32.mrf.mxu0
        %v1942 = vadd.f32 %v1893, %v1941
        %v1943 = vpop.f32.mrf.mxu0
        %v1944 = vadd.f32 %v1895, %v1943
        %1945 = vmatmul.bf16.gmra.mxu0 %v941
        %v1946 = vpop.f32.mrf.mxu0
        %v1947 = vadd.f32 %v1898, %v1946
        %v1948 = vpop.f32.mrf.mxu0
        %v1949 = vadd.f32 %v1900, %v1948
        %1950 = vmatmul.bf16.gmra.mxu0 %v950
        %v1951 = vpop.f32.mrf.mxu0
        %v1952 = vadd.f32 %v1903, %v1951
        %v1953 = vpop.f32.mrf.mxu0
        %v1954 = vadd.f32 %v1905, %v1953
        %1955 = vmatmul.bf16.gmra.mxu0 %v959
        %v1956 = vpop.f32.mrf.mxu0
        %v1957 = vadd.f32 %v1908, %v1956
        %v1958 = vpop.f32.mrf.mxu0
        %v1959 = vadd.f32 %v1910, %v1958
        %1960 = vmatmul.bf16.gmra.mxu0 %v968
        %v1961 = vpop.f32.mrf.mxu0
        %v1962 = vadd.f32 %v1913, %v1961
        %v1963 = vpop.f32.mrf.mxu0
        %v1964 = vadd.f32 %v1915, %v1963
        %1965 = vmatmul.bf16.gmra.mxu0 %v977
        %v1966 = vpop.f32.mrf.mxu0
        %v1967 = vadd.f32 %v1918, %v1966
        %v1968 = vpop.f32.mrf.mxu0
        %v1969 = vadd.f32 %v1920, %v1968
        %1970 = vdwg.mxu0
        %1971 = vmatpush.bf16.msra.mxu0 %v1565
        %1972 = vmatpush.bf16.msra.mxu0 %v1563
        %1973 = vmatpush.bf16.msra.mxu0 %v1561
        %1974 = vmatpush.bf16.msra.mxu0 %v1559
        %1975 = vmatpush.bf16.msra.mxu0 %v1557
        %1976 = vmatpush.bf16.msra.mxu0 %v1555
        %1977 = vmatpush.bf16.msra.mxu0 %v1553
        %1978 = vmatpush.bf16.msra.mxu0 %v1551
        %1979 = vmatmul.bf16.gmra.mxu0 %v915
        %v1980 = vpop.f32.mrf.mxu0
        %v1981 = vadd.f32 %v1932, %v1980
        %v1982 = vpop.f32.mrf.mxu0
        %v1983 = vadd.f32 %v1934, %v1982
        %1984 = vmatmul.bf16.gmra.mxu0 %v924
        %v1985 = vpop.f32.mrf.mxu0
        %v1986 = vadd.f32 %v1937, %v1985
        %v1987 = vpop.f32.mrf.mxu0
        %v1988 = vadd.f32 %v1939, %v1987
        %1989 = vmatmul.bf16.gmra.mxu0 %v933
        %v1990 = vpop.f32.mrf.mxu0
        %v1991 = vadd.f32 %v1942, %v1990
        %v1992 = vpop.f32.mrf.mxu0
        %v1993 = vadd.f32 %v1944, %v1992
        %1994 = vmatmul.bf16.gmra.mxu0 %v942
        %v1995 = vpop.f32.mrf.mxu0
        %v1996 = vadd.f32 %v1947, %v1995
        %v1997 = vpop.f32.mrf.mxu0
        %v1998 = vadd.f32 %v1949, %v1997
        %1999 = vmatmul.bf16.gmra.mxu0 %v951
        %v2000 = vpop.f32.mrf.mxu0
        %v2001 = vadd.f32 %v1952, %v2000
        %v2002 = vpop.f32.mrf.mxu0
        %v2003 = vadd.f32 %v1954, %v2002
        %2004 = vmatmul.bf16.gmra.mxu0 %v960
        %v2005 = vpop.f32.mrf.mxu0
        %v2006 = vadd.f32 %v1957, %v2005
        %v2007 = vpop.f32.mrf.mxu0
        %v2008 = vadd.f32 %v1959, %v2007
        %2009 = vmatmul.bf16.gmra.mxu0 %v969
        %v2010 = vpop.f32.mrf.mxu0
        %v2011 = vadd.f32 %v1962, %v2010
        %v2012 = vpop.f32.mrf.mxu0
        %v2013 = vadd.f32 %v1964, %v2012
        %2014 = vmatmul.bf16.gmra.mxu0 %v978
        %v2015 = vpop.f32.mrf.mxu0
        %v2016 = vadd.f32 %v1967, %v2015
        %v2017 = vpop.f32.mrf.mxu0
        %v2018 = vadd.f32 %v1969, %v2017
        %2019 = vdwg.mxu0
        %2020 = vmatpush.bf16.msra.mxu0 %v1581
        %2021 = vmatpush.bf16.msra.mxu0 %v1579
        %2022 = vmatpush.bf16.msra.mxu0 %v1577
        %2023 = vmatpush.bf16.msra.mxu0 %v1575
        %2024 = vmatpush.bf16.msra.mxu0 %v1573
        %2025 = vmatpush.bf16.msra.mxu0 %v1571
        %2026 = vmatpush.bf16.msra.mxu0 %v1569
        %2027 = vmatpush.bf16.msra.mxu0 %v1567
        %2028 = vmatmul.bf16.gmra.mxu0 %v916
        %v2029 = vpop.f32.mrf.mxu0
        %v2030 = vadd.f32 %v1981, %v2029
        %v2031 = vpop.f32.mrf.mxu0
        %v2032 = vadd.f32 %v1983, %v2031
        %2033 = vmatmul.bf16.gmra.mxu0 %v925
        %v2034 = vpop.f32.mrf.mxu0
        %v2035 = vadd.f32 %v1986, %v2034
        %v2036 = vpop.f32.mrf.mxu0
        %v2037 = vadd.f32 %v1988, %v2036
        %2038 = vmatmul.bf16.gmra.mxu0 %v934
        %v2039 = vpop.f32.mrf.mxu0
        %v2040 = vadd.f32 %v1991, %v2039
        %v2041 = vpop.f32.mrf.mxu0
        %v2042 = vadd.f32 %v1993, %v2041
        %2043 = vmatmul.bf16.gmra.mxu0 %v943
        %v2044 = vpop.f32.mrf.mxu0
        %v2045 = vadd.f32 %v1996, %v2044
        %v2046 = vpop.f32.mrf.mxu0
        %v2047 = vadd.f32 %v1998, %v2046
        %2048 = vmatmul.bf16.gmra.mxu0 %v952
        %v2049 = vpop.f32.mrf.mxu0
        %v2050 = vadd.f32 %v2001, %v2049
        %v2051 = vpop.f32.mrf.mxu0
        %v2052 = vadd.f32 %v2003, %v2051
        %2053 = vmatmul.bf16.gmra.mxu0 %v961
        %v2054 = vpop.f32.mrf.mxu0
        %v2055 = vadd.f32 %v2006, %v2054
        %v2056 = vpop.f32.mrf.mxu0
        %v2057 = vadd.f32 %v2008, %v2056
        %2058 = vmatmul.bf16.gmra.mxu0 %v970
        %v2059 = vpop.f32.mrf.mxu0
        %v2060 = vadd.f32 %v2011, %v2059
        %v2061 = vpop.f32.mrf.mxu0
        %v2062 = vadd.f32 %v2013, %v2061
        %2063 = vmatmul.bf16.gmra.mxu0 %v979
        %v2064 = vpop.f32.mrf.mxu0
        %v2065 = vadd.f32 %v2016, %v2064
        %v2066 = vpop.f32.mrf.mxu0
        %v2067 = vadd.f32 %v2018, %v2066
        %2068 = vdwg.mxu0
        %2069 = vmatpush.bf16.msra.mxu0 %v1597
        %2070 = vmatpush.bf16.msra.mxu0 %v1595
        %2071 = vmatpush.bf16.msra.mxu0 %v1593
        %2072 = vmatpush.bf16.msra.mxu0 %v1591
        %2073 = vmatpush.bf16.msra.mxu0 %v1589
        %2074 = vmatpush.bf16.msra.mxu0 %v1587
        %2075 = vmatpush.bf16.msra.mxu0 %v1585
        %2076 = vmatpush.bf16.msra.mxu0 %v1583
        %2077 = vmatmul.bf16.gmra.mxu0 %v917
        %v2078 = vpop.f32.mrf.mxu0
        %v2079 = vadd.f32 %v2030, %v2078
        %v2080 = vpop.f32.mrf.mxu0
        %v2081 = vadd.f32 %v2032, %v2080
        %2082 = vmatmul.bf16.gmra.mxu0 %v926
        %v2083 = vpop.f32.mrf.mxu0
        %v2084 = vadd.f32 %v2035, %v2083
        %v2085 = vpop.f32.mrf.mxu0
        %v2086 = vadd.f32 %v2037, %v2085
        %2087 = vmatmul.bf16.gmra.mxu0 %v935
        %v2088 = vpop.f32.mrf.mxu0
        %v2089 = vadd.f32 %v2040, %v2088
        %v2090 = vpop.f32.mrf.mxu0
        %v2091 = vadd.f32 %v2042, %v2090
        %2092 = vmatmul.bf16.gmra.mxu0 %v944
        %v2093 = vpop.f32.mrf.mxu0
        %v2094 = vadd.f32 %v2045, %v2093
        %v2095 = vpop.f32.mrf.mxu0
        %v2096 = vadd.f32 %v2047, %v2095
        %2097 = vmatmul.bf16.gmra.mxu0 %v953
        %v2098 = vpop.f32.mrf.mxu0
        %v2099 = vadd.f32 %v2050, %v2098
        %v2100 = vpop.f32.mrf.mxu0
        %v2101 = vadd.f32 %v2052, %v2100
        %2102 = vmatmul.bf16.gmra.mxu0 %v962
        %v2103 = vpop.f32.mrf.mxu0
        %v2104 = vadd.f32 %v2055, %v2103
        %v2105 = vpop.f32.mrf.mxu0
        %v2106 = vadd.f32 %v2057, %v2105
        %2107 = vmatmul.bf16.gmra.mxu0 %v971
        %v2108 = vpop.f32.mrf.mxu0
        %v2109 = vadd.f32 %v2060, %v2108
        %v2110 = vpop.f32.mrf.mxu0
        %v2111 = vadd.f32 %v2062, %v2110
        %2112 = vmatmul.bf16.gmra.mxu0 %v980
        %v2113 = vpop.f32.mrf.mxu0
        %v2114 = vadd.f32 %v2065, %v2113
        %v2115 = vpop.f32.mrf.mxu0
        %v2116 = vadd.f32 %v2067, %v2115
        %2117 = vdwg.mxu0
        %2118 = vmatpush.bf16.msra.mxu0 %v1613
        %2119 = vmatpush.bf16.msra.mxu0 %v1611
        %2120 = vmatpush.bf16.msra.mxu0 %v1609
        %2121 = vmatpush.bf16.msra.mxu0 %v1607
        %2122 = vmatpush.bf16.msra.mxu0 %v1605
        %2123 = vmatpush.bf16.msra.mxu0 %v1603
        %2124 = vmatpush.bf16.msra.mxu0 %v1601
        %2125 = vmatpush.bf16.msra.mxu0 %v1599
        %2126 = vmatmul.bf16.gmra.mxu0 %v918
        %v2127 = vpop.f32.mrf.mxu0
        %v2128 = vadd.f32 %v2079, %v2127
        %v2129 = vpop.f32.mrf.mxu0
        %v2130 = vadd.f32 %v2081, %v2129
        %2131 = vmatmul.bf16.gmra.mxu0 %v927
        %v2132 = vpop.f32.mrf.mxu0
        %v2133 = vadd.f32 %v2084, %v2132
        %v2134 = vpop.f32.mrf.mxu0
        %v2135 = vadd.f32 %v2086, %v2134
        %2136 = vmatmul.bf16.gmra.mxu0 %v936
        %v2137 = vpop.f32.mrf.mxu0
        %v2138 = vadd.f32 %v2089, %v2137
        %v2139 = vpop.f32.mrf.mxu0
        %v2140 = vadd.f32 %v2091, %v2139
        %2141 = vmatmul.bf16.gmra.mxu0 %v945
        %v2142 = vpop.f32.mrf.mxu0
        %v2143 = vadd.f32 %v2094, %v2142
        %v2144 = vpop.f32.mrf.mxu0
        %v2145 = vadd.f32 %v2096, %v2144
        %2146 = vmatmul.bf16.gmra.mxu0 %v954
        %v2147 = vpop.f32.mrf.mxu0
        %v2148 = vadd.f32 %v2099, %v2147
        %v2149 = vpop.f32.mrf.mxu0
        %v2150 = vadd.f32 %v2101, %v2149
        %2151 = vmatmul.bf16.gmra.mxu0 %v963
        %v2152 = vpop.f32.mrf.mxu0
        %v2153 = vadd.f32 %v2104, %v2152
        %v2154 = vpop.f32.mrf.mxu0
        %v2155 = vadd.f32 %v2106, %v2154
        %2156 = vmatmul.bf16.gmra.mxu0 %v972
        %v2157 = vpop.f32.mrf.mxu0
        %v2158 = vadd.f32 %v2109, %v2157
        %v2159 = vpop.f32.mrf.mxu0
        %v2160 = vadd.f32 %v2111, %v2159
        %2161 = vmatmul.bf16.gmra.mxu0 %v981
        %v2162 = vpop.f32.mrf.mxu0
        %v2163 = vadd.f32 %v2114, %v2162
        %v2164 = vpop.f32.mrf.mxu0
        %v2165 = vadd.f32 %v2116, %v2164
        %2166 = vdwg.mxu0
        %2167 = vmatpush.bf16.msra.mxu0 %v1629
        %2168 = vmatpush.bf16.msra.mxu0 %v1627
        %2169 = vmatpush.bf16.msra.mxu0 %v1625
        %2170 = vmatpush.bf16.msra.mxu0 %v1623
        %2171 = vmatpush.bf16.msra.mxu0 %v1621
        %2172 = vmatpush.bf16.msra.mxu0 %v1619
        %2173 = vmatpush.bf16.msra.mxu0 %v1617
        %2174 = vmatpush.bf16.msra.mxu0 %v1615
        %2175 = vmatmul.bf16.gmra.mxu0 %v919
        %v2176 = vpop.f32.mrf.mxu0
        %v2177 = vadd.f32 %v2128, %v2176
        %v2178 = vpop.f32.mrf.mxu0
        %v2179 = vadd.f32 %v2130, %v2178
        %2180 = vmatmul.bf16.gmra.mxu0 %v928
        %v2181 = vpop.f32.mrf.mxu0
        %v2182 = vadd.f32 %v2133, %v2181
        %v2183 = vpop.f32.mrf.mxu0
        %v2184 = vadd.f32 %v2135, %v2183
        %2185 = vmatmul.bf16.gmra.mxu0 %v937
        %v2186 = vpop.f32.mrf.mxu0
        %v2187 = vadd.f32 %v2138, %v2186
        %v2188 = vpop.f32.mrf.mxu0
        %v2189 = vadd.f32 %v2140, %v2188
        %2190 = vmatmul.bf16.gmra.mxu0 %v946
        %v2191 = vpop.f32.mrf.mxu0
        %v2192 = vadd.f32 %v2143, %v2191
        %v2193 = vpop.f32.mrf.mxu0
        %v2194 = vadd.f32 %v2145, %v2193
        %2195 = vmatmul.bf16.gmra.mxu0 %v955
        %v2196 = vpop.f32.mrf.mxu0
        %v2197 = vadd.f32 %v2148, %v2196
        %v2198 = vpop.f32.mrf.mxu0
        %v2199 = vadd.f32 %v2150, %v2198
        %2200 = vmatmul.bf16.gmra.mxu0 %v964
        %v2201 = vpop.f32.mrf.mxu0
        %v2202 = vadd.f32 %v2153, %v2201
        %v2203 = vpop.f32.mrf.mxu0
        %v2204 = vadd.f32 %v2155, %v2203
        %2205 = vmatmul.bf16.gmra.mxu0 %v973
        %v2206 = vpop.f32.mrf.mxu0
        %v2207 = vadd.f32 %v2158, %v2206
        %v2208 = vpop.f32.mrf.mxu0
        %v2209 = vadd.f32 %v2160, %v2208
        %2210 = vmatmul.bf16.gmra.mxu0 %v982
        %v2211 = vpop.f32.mrf.mxu0
        %v2212 = vadd.f32 %v2163, %v2211
        %v2213 = vpop.f32.mrf.mxu0
        %v2214 = vadd.f32 %v2165, %v2213
        %2215 = vdwg.mxu0
        %2216 = vmatpush.bf16.msra.mxu0 %v1502
        %2217 = vmatpush.bf16.msra.mxu0 %v1500
        %2218 = vmatpush.bf16.msra.mxu0 %v1498
        %2219 = vmatpush.bf16.msra.mxu0 %v1496
        %2220 = vmatpush.bf16.msra.mxu0 %v1494
        %2221 = vmatpush.bf16.msra.mxu0 %v1492
        %2222 = vmatpush.bf16.msra.mxu0 %v1490
        %2223 = vmatpush.bf16.msra.mxu0 %v1488
        %2224 = vmatmul.bf16.gmra.mxu0 %v911
        %v2225 = vpop.f32.mrf.mxu0
        %v2226 = vadd.f32 0.0, %v2225
        %v2227 = vpop.f32.mrf.mxu0
        %v2228 = vadd.f32 0.0, %v2227
        %2229 = vmatmul.bf16.gmra.mxu0 %v920
        %v2230 = vpop.f32.mrf.mxu0
        %v2231 = vadd.f32 0.0, %v2230
        %v2232 = vpop.f32.mrf.mxu0
        %v2233 = vadd.f32 0.0, %v2232
        %2234 = vmatmul.bf16.gmra.mxu0 %v929
        %v2235 = vpop.f32.mrf.mxu0
        %v2236 = vadd.f32 0.0, %v2235
        %v2237 = vpop.f32.mrf.mxu0
        %v2238 = vadd.f32 0.0, %v2237
        %2239 = vmatmul.bf16.gmra.mxu0 %v938
        %v2240 = vpop.f32.mrf.mxu0
        %v2241 = vadd.f32 0.0, %v2240
        %v2242 = vpop.f32.mrf.mxu0
        %v2243 = vadd.f32 0.0, %v2242
        %2244 = vmatmul.bf16.gmra.mxu0 %v947
        %v2245 = vpop.f32.mrf.mxu0
        %v2246 = vadd.f32 0.0, %v2245
        %v2247 = vpop.f32.mrf.mxu0
        %v2248 = vadd.f32 0.0, %v2247
        %2249 = vmatmul.bf16.gmra.mxu0 %v956
        %v2250 = vpop.f32.mrf.mxu0
        %v2251 = vadd.f32 0.0, %v2250
        %v2252 = vpop.f32.mrf.mxu0
        %v2253 = vadd.f32 0.0, %v2252
        %2254 = vmatmul.bf16.gmra.mxu0 %v965
        %v2255 = vpop.f32.mrf.mxu0
        %v2256 = vadd.f32 0.0, %v2255
        %v2257 = vpop.f32.mrf.mxu0
        %v2258 = vadd.f32 0.0, %v2257
        %2259 = vmatmul.bf16.gmra.mxu0 %v974
        %v2260 = vpop.f32.mrf.mxu0
        %v2261 = vadd.f32 0.0, %v2260
        %v2262 = vpop.f32.mrf.mxu0
        %v2263 = vadd.f32 0.0, %v2262
        %2264 = vdwg.mxu0
        %2265 = vmatpush.bf16.msra.mxu0 %v1518
        %2266 = vmatpush.bf16.msra.mxu0 %v1516
        %2267 = vmatpush.bf16.msra.mxu0 %v1514
        %2268 = vmatpush.bf16.msra.mxu0 %v1512
        %2269 = vmatpush.bf16.msra.mxu0 %v1510
        %2270 = vmatpush.bf16.msra.mxu0 %v1508
        %2271 = vmatpush.bf16.msra.mxu0 %v1506
        %2272 = vmatpush.bf16.msra.mxu0 %v1504
        %2273 = vmatmul.bf16.gmra.mxu0 %v912
        %v2274 = vpop.f32.mrf.mxu0
        %v2275 = vadd.f32 %v2226, %v2274
        %v2276 = vpop.f32.mrf.mxu0
        %v2277 = vadd.f32 %v2228, %v2276
        %2278 = vmatmul.bf16.gmra.mxu0 %v921
        %v2279 = vpop.f32.mrf.mxu0
        %v2280 = vadd.f32 %v2231, %v2279
        %v2281 = vpop.f32.mrf.mxu0
        %v2282 = vadd.f32 %v2233, %v2281
        %2283 = vmatmul.bf16.gmra.mxu0 %v930
        %v2284 = vpop.f32.mrf.mxu0
        %v2285 = vadd.f32 %v2236, %v2284
        %v2286 = vpop.f32.mrf.mxu0
        %v2287 = vadd.f32 %v2238, %v2286
        %2288 = vmatmul.bf16.gmra.mxu0 %v939
        %v2289 = vpop.f32.mrf.mxu0
        %v2290 = vadd.f32 %v2241, %v2289
        %v2291 = vpop.f32.mrf.mxu0
        %v2292 = vadd.f32 %v2243, %v2291
        %2293 = vmatmul.bf16.gmra.mxu0 %v948
        %v2294 = vpop.f32.mrf.mxu0
        %v2295 = vadd.f32 %v2246, %v2294
        %v2296 = vpop.f32.mrf.mxu0
        %v2297 = vadd.f32 %v2248, %v2296
        %2298 = vmatmul.bf16.gmra.mxu0 %v957
        %v2299 = vpop.f32.mrf.mxu0
        %v2300 = vadd.f32 %v2251, %v2299
        %v2301 = vpop.f32.mrf.mxu0
        %v2302 = vadd.f32 %v2253, %v2301
        %2303 = vmatmul.bf16.gmra.mxu0 %v966
        %v2304 = vpop.f32.mrf.mxu0
        %v2305 = vadd.f32 %v2256, %v2304
        %v2306 = vpop.f32.mrf.mxu0
        %v2307 = vadd.f32 %v2258, %v2306
        %2308 = vmatmul.bf16.gmra.mxu0 %v975
        %v2309 = vpop.f32.mrf.mxu0
        %v2310 = vadd.f32 %v2261, %v2309
        %v2311 = vpop.f32.mrf.mxu0
        %v2312 = vadd.f32 %v2263, %v2311
        %2313 = vdwg.mxu0
        %2314 = vmatpush.bf16.msra.mxu0 %v1534
        %2315 = vmatpush.bf16.msra.mxu0 %v1532
        %2316 = vmatpush.bf16.msra.mxu0 %v1530
        %2317 = vmatpush.bf16.msra.mxu0 %v1528
        %2318 = vmatpush.bf16.msra.mxu0 %v1526
        %2319 = vmatpush.bf16.msra.mxu0 %v1524
        %2320 = vmatpush.bf16.msra.mxu0 %v1522
        %2321 = vmatpush.bf16.msra.mxu0 %v1520
        %2322 = vmatmul.bf16.gmra.mxu0 %v913
        %v2323 = vpop.f32.mrf.mxu0
        %v2324 = vadd.f32 %v2275, %v2323
        %v2325 = vpop.f32.mrf.mxu0
        %v2326 = vadd.f32 %v2277, %v2325
        %2327 = vmatmul.bf16.gmra.mxu0 %v922
        %v2328 = vpop.f32.mrf.mxu0
        %v2329 = vadd.f32 %v2280, %v2328
        %v2330 = vpop.f32.mrf.mxu0
        %v2331 = vadd.f32 %v2282, %v2330
        %2332 = vmatmul.bf16.gmra.mxu0 %v931
        %v2333 = vpop.f32.mrf.mxu0
        %v2334 = vadd.f32 %v2285, %v2333
        %v2335 = vpop.f32.mrf.mxu0
        %v2336 = vadd.f32 %v2287, %v2335
        %2337 = vmatmul.bf16.gmra.mxu0 %v940
        %v2338 = vpop.f32.mrf.mxu0
        %v2339 = vadd.f32 %v2290, %v2338
        %v2340 = vpop.f32.mrf.mxu0
        %v2341 = vadd.f32 %v2292, %v2340
        %2342 = vmatmul.bf16.gmra.mxu0 %v949
        %v2343 = vpop.f32.mrf.mxu0
        %v2344 = vadd.f32 %v2295, %v2343
        %v2345 = vpop.f32.mrf.mxu0
        %v2346 = vadd.f32 %v2297, %v2345
        %2347 = vmatmul.bf16.gmra.mxu0 %v958
        %v2348 = vpop.f32.mrf.mxu0
        %v2349 = vadd.f32 %v2300, %v2348
        %v2350 = vpop.f32.mrf.mxu0
        %v2351 = vadd.f32 %v2302, %v2350
        %2352 = vmatmul.bf16.gmra.mxu0 %v967
        %v2353 = vpop.f32.mrf.mxu0
        %v2354 = vadd.f32 %v2305, %v2353
        %v2355 = vpop.f32.mrf.mxu0
        %v2356 = vadd.f32 %v2307, %v2355
        %2357 = vmatmul.bf16.gmra.mxu0 %v976
        %v2358 = vpop.f32.mrf.mxu0
        %v2359 = vadd.f32 %v2310, %v2358
        %v2360 = vpop.f32.mrf.mxu0
        %v2361 = vadd.f32 %v2312, %v2360
        %2362 = vdwg.mxu0
        %2363 = vmatpush.bf16.msra.mxu0 %v1550
        %2364 = vmatpush.bf16.msra.mxu0 %v1548
        %2365 = vmatpush.bf16.msra.mxu0 %v1546
        %2366 = vmatpush.bf16.msra.mxu0 %v1544
        %2367 = vmatpush.bf16.msra.mxu0 %v1542
        %2368 = vmatpush.bf16.msra.mxu0 %v1540
        %2369 = vmatpush.bf16.msra.mxu0 %v1538
        %2370 = vmatpush.bf16.msra.mxu0 %v1536
        %2371 = vmatmul.bf16.gmra.mxu0 %v914
        %v2372 = vpop.f32.mrf.mxu0
        %v2373 = vadd.f32 %v2324, %v2372
        %v2374 = vpop.f32.mrf.mxu0
        %v2375 = vadd.f32 %v2326, %v2374
        %2376 = vmatmul.bf16.gmra.mxu0 %v923
        %v2377 = vpop.f32.mrf.mxu0
        %v2378 = vadd.f32 %v2329, %v2377
        %v2379 = vpop.f32.mrf.mxu0
        %v2380 = vadd.f32 %v2331, %v2379
        %2381 = vmatmul.bf16.gmra.mxu0 %v932
        %v2382 = vpop.f32.mrf.mxu0
        %v2383 = vadd.f32 %v2334, %v2382
        %v2384 = vpop.f32.mrf.mxu0
        %v2385 = vadd.f32 %v2336, %v2384
        %2386 = vmatmul.bf16.gmra.mxu0 %v941
        %v2387 = vpop.f32.mrf.mxu0
        %v2388 = vadd.f32 %v2339, %v2387
        %v2389 = vpop.f32.mrf.mxu0
        %v2390 = vadd.f32 %v2341, %v2389
        %2391 = vmatmul.bf16.gmra.mxu0 %v950
        %v2392 = vpop.f32.mrf.mxu0
        %v2393 = vadd.f32 %v2344, %v2392
        %v2394 = vpop.f32.mrf.mxu0
        %v2395 = vadd.f32 %v2346, %v2394
        %2396 = vmatmul.bf16.gmra.mxu0 %v959
        %v2397 = vpop.f32.mrf.mxu0
        %v2398 = vadd.f32 %v2349, %v2397
        %v2399 = vpop.f32.mrf.mxu0
        %v2400 = vadd.f32 %v2351, %v2399
        %2401 = vmatmul.bf16.gmra.mxu0 %v968
        %v2402 = vpop.f32.mrf.mxu0
        %v2403 = vadd.f32 %v2354, %v2402
        %v2404 = vpop.f32.mrf.mxu0
        %v2405 = vadd.f32 %v2356, %v2404
        %2406 = vmatmul.bf16.gmra.mxu0 %v977
        %v2407 = vpop.f32.mrf.mxu0
        %v2408 = vadd.f32 %v2359, %v2407
        %v2409 = vpop.f32.mrf.mxu0
        %v2410 = vadd.f32 %v2361, %v2409
        %2411 = vdwg.mxu0
        %2412 = vmatpush.bf16.msra.mxu0 %v1566
        %2413 = vmatpush.bf16.msra.mxu0 %v1564
        %2414 = vmatpush.bf16.msra.mxu0 %v1562
        %2415 = vmatpush.bf16.msra.mxu0 %v1560
        %2416 = vmatpush.bf16.msra.mxu0 %v1558
        %2417 = vmatpush.bf16.msra.mxu0 %v1556
        %2418 = vmatpush.bf16.msra.mxu0 %v1554
        %2419 = vmatpush.bf16.msra.mxu0 %v1552
        %2420 = vmatmul.bf16.gmra.mxu0 %v915
        %v2421 = vpop.f32.mrf.mxu0
        %v2422 = vadd.f32 %v2373, %v2421
        %v2423 = vpop.f32.mrf.mxu0
        %v2424 = vadd.f32 %v2375, %v2423
        %2425 = vmatmul.bf16.gmra.mxu0 %v924
        %v2426 = vpop.f32.mrf.mxu0
        %v2427 = vadd.f32 %v2378, %v2426
        %v2428 = vpop.f32.mrf.mxu0
        %v2429 = vadd.f32 %v2380, %v2428
        %2430 = vmatmul.bf16.gmra.mxu0 %v933
        %v2431 = vpop.f32.mrf.mxu0
        %v2432 = vadd.f32 %v2383, %v2431
        %v2433 = vpop.f32.mrf.mxu0
        %v2434 = vadd.f32 %v2385, %v2433
        %2435 = vmatmul.bf16.gmra.mxu0 %v942
        %v2436 = vpop.f32.mrf.mxu0
        %v2437 = vadd.f32 %v2388, %v2436
        %v2438 = vpop.f32.mrf.mxu0
        %v2439 = vadd.f32 %v2390, %v2438
        %2440 = vmatmul.bf16.gmra.mxu0 %v951
        %v2441 = vpop.f32.mrf.mxu0
        %v2442 = vadd.f32 %v2393, %v2441
        %v2443 = vpop.f32.mrf.mxu0
        %v2444 = vadd.f32 %v2395, %v2443
        %2445 = vmatmul.bf16.gmra.mxu0 %v960
        %v2446 = vpop.f32.mrf.mxu0
        %v2447 = vadd.f32 %v2398, %v2446
        %v2448 = vpop.f32.mrf.mxu0
        %v2449 = vadd.f32 %v2400, %v2448
        %2450 = vmatmul.bf16.gmra.mxu0 %v969
        %v2451 = vpop.f32.mrf.mxu0
        %v2452 = vadd.f32 %v2403, %v2451
        %v2453 = vpop.f32.mrf.mxu0
        %v2454 = vadd.f32 %v2405, %v2453
        %2455 = vmatmul.bf16.gmra.mxu0 %v978
        %v2456 = vpop.f32.mrf.mxu0
        %v2457 = vadd.f32 %v2408, %v2456
        %v2458 = vpop.f32.mrf.mxu0
        %v2459 = vadd.f32 %v2410, %v2458
        %2460 = vdwg.mxu0
        %2461 = vmatpush.bf16.msra.mxu0 %v1582
        %2462 = vmatpush.bf16.msra.mxu0 %v1580
        %2463 = vmatpush.bf16.msra.mxu0 %v1578
        %2464 = vmatpush.bf16.msra.mxu0 %v1576
        %2465 = vmatpush.bf16.msra.mxu0 %v1574
        %2466 = vmatpush.bf16.msra.mxu0 %v1572
        %2467 = vmatpush.bf16.msra.mxu0 %v1570
        %2468 = vmatpush.bf16.msra.mxu0 %v1568
        %2469 = vmatmul.bf16.gmra.mxu0 %v916
        %v2470 = vpop.f32.mrf.mxu0
        %v2471 = vadd.f32 %v2422, %v2470
        %v2472 = vpop.f32.mrf.mxu0
        %v2473 = vadd.f32 %v2424, %v2472
        %2474 = vmatmul.bf16.gmra.mxu0 %v925
        %v2475 = vpop.f32.mrf.mxu0
        %v2476 = vadd.f32 %v2427, %v2475
        %v2477 = vpop.f32.mrf.mxu0
        %v2478 = vadd.f32 %v2429, %v2477
        %2479 = vmatmul.bf16.gmra.mxu0 %v934
        %v2480 = vpop.f32.mrf.mxu0
        %v2481 = vadd.f32 %v2432, %v2480
        %v2482 = vpop.f32.mrf.mxu0
        %v2483 = vadd.f32 %v2434, %v2482
        %2484 = vmatmul.bf16.gmra.mxu0 %v943
        %v2485 = vpop.f32.mrf.mxu0
        %v2486 = vadd.f32 %v2437, %v2485
        %v2487 = vpop.f32.mrf.mxu0
        %v2488 = vadd.f32 %v2439, %v2487
        %2489 = vmatmul.bf16.gmra.mxu0 %v952
        %v2490 = vpop.f32.mrf.mxu0
        %v2491 = vadd.f32 %v2442, %v2490
        %v2492 = vpop.f32.mrf.mxu0
        %v2493 = vadd.f32 %v2444, %v2492
        %2494 = vmatmul.bf16.gmra.mxu0 %v961
        %v2495 = vpop.f32.mrf.mxu0
        %v2496 = vadd.f32 %v2447, %v2495
        %v2497 = vpop.f32.mrf.mxu0
        %v2498 = vadd.f32 %v2449, %v2497
        %2499 = vmatmul.bf16.gmra.mxu0 %v970
        %v2500 = vpop.f32.mrf.mxu0
        %v2501 = vadd.f32 %v2452, %v2500
        %v2502 = vpop.f32.mrf.mxu0
        %v2503 = vadd.f32 %v2454, %v2502
        %2504 = vmatmul.bf16.gmra.mxu0 %v979
        %v2505 = vpop.f32.mrf.mxu0
        %v2506 = vadd.f32 %v2457, %v2505
        %v2507 = vpop.f32.mrf.mxu0
        %v2508 = vadd.f32 %v2459, %v2507
        %2509 = vdwg.mxu0
        %2510 = vmatpush.bf16.msra.mxu0 %v1598
        %2511 = vmatpush.bf16.msra.mxu0 %v1596
        %2512 = vmatpush.bf16.msra.mxu0 %v1594
        %2513 = vmatpush.bf16.msra.mxu0 %v1592
        %2514 = vmatpush.bf16.msra.mxu0 %v1590
        %2515 = vmatpush.bf16.msra.mxu0 %v1588
        %2516 = vmatpush.bf16.msra.mxu0 %v1586
        %2517 = vmatpush.bf16.msra.mxu0 %v1584
        %2518 = vmatmul.bf16.gmra.mxu0 %v917
        %v2519 = vpop.f32.mrf.mxu0
        %v2520 = vadd.f32 %v2471, %v2519
        %v2521 = vpop.f32.mrf.mxu0
        %v2522 = vadd.f32 %v2473, %v2521
        %2523 = vmatmul.bf16.gmra.mxu0 %v926
        %v2524 = vpop.f32.mrf.mxu0
        %v2525 = vadd.f32 %v2476, %v2524
        %v2526 = vpop.f32.mrf.mxu0
        %v2527 = vadd.f32 %v2478, %v2526
        %2528 = vmatmul.bf16.gmra.mxu0 %v935
        %v2529 = vpop.f32.mrf.mxu0
        %v2530 = vadd.f32 %v2481, %v2529
        %v2531 = vpop.f32.mrf.mxu0
        %v2532 = vadd.f32 %v2483, %v2531
        %2533 = vmatmul.bf16.gmra.mxu0 %v944
        %v2534 = vpop.f32.mrf.mxu0
        %v2535 = vadd.f32 %v2486, %v2534
        %v2536 = vpop.f32.mrf.mxu0
        %v2537 = vadd.f32 %v2488, %v2536
        %2538 = vmatmul.bf16.gmra.mxu0 %v953
        %v2539 = vpop.f32.mrf.mxu0
        %v2540 = vadd.f32 %v2491, %v2539
        %v2541 = vpop.f32.mrf.mxu0
        %v2542 = vadd.f32 %v2493, %v2541
        %2543 = vmatmul.bf16.gmra.mxu0 %v962
        %v2544 = vpop.f32.mrf.mxu0
        %v2545 = vadd.f32 %v2496, %v2544
        %v2546 = vpop.f32.mrf.mxu0
        %v2547 = vadd.f32 %v2498, %v2546
        %2548 = vmatmul.bf16.gmra.mxu0 %v971
        %v2549 = vpop.f32.mrf.mxu0
        %v2550 = vadd.f32 %v2501, %v2549
        %v2551 = vpop.f32.mrf.mxu0
        %v2552 = vadd.f32 %v2503, %v2551
        %2553 = vmatmul.bf16.gmra.mxu0 %v980
        %v2554 = vpop.f32.mrf.mxu0
        %v2555 = vadd.f32 %v2506, %v2554
        %v2556 = vpop.f32.mrf.mxu0
        %v2557 = vadd.f32 %v2508, %v2556
        %2558 = vdwg.mxu0
        %2559 = vmatpush.bf16.msra.mxu0 %v1614
        %2560 = vmatpush.bf16.msra.mxu0 %v1612
        %2561 = vmatpush.bf16.msra.mxu0 %v1610
        %2562 = vmatpush.bf16.msra.mxu0 %v1608
        %2563 = vmatpush.bf16.msra.mxu0 %v1606
        %2564 = vmatpush.bf16.msra.mxu0 %v1604
        %2565 = vmatpush.bf16.msra.mxu0 %v1602
        %2566 = vmatpush.bf16.msra.mxu0 %v1600
        %2567 = vmatmul.bf16.gmra.mxu0 %v918
        %v2568 = vpop.f32.mrf.mxu0
        %v2569 = vadd.f32 %v2520, %v2568
        %v2570 = vpop.f32.mrf.mxu0
        %v2571 = vadd.f32 %v2522, %v2570
        %2572 = vmatmul.bf16.gmra.mxu0 %v927
        %v2573 = vpop.f32.mrf.mxu0
        %v2574 = vadd.f32 %v2525, %v2573
        %v2575 = vpop.f32.mrf.mxu0
        %v2576 = vadd.f32 %v2527, %v2575
        %2577 = vmatmul.bf16.gmra.mxu0 %v936
        %v2578 = vpop.f32.mrf.mxu0
        %v2579 = vadd.f32 %v2530, %v2578
        %v2580 = vpop.f32.mrf.mxu0
        %v2581 = vadd.f32 %v2532, %v2580
        %2582 = vmatmul.bf16.gmra.mxu0 %v945
        %v2583 = vpop.f32.mrf.mxu0
        %v2584 = vadd.f32 %v2535, %v2583
        %v2585 = vpop.f32.mrf.mxu0
        %v2586 = vadd.f32 %v2537, %v2585
        %2587 = vmatmul.bf16.gmra.mxu0 %v954
        %v2588 = vpop.f32.mrf.mxu0
        %v2589 = vadd.f32 %v2540, %v2588
        %v2590 = vpop.f32.mrf.mxu0
        %v2591 = vadd.f32 %v2542, %v2590
        %2592 = vmatmul.bf16.gmra.mxu0 %v963
        %v2593 = vpop.f32.mrf.mxu0
        %v2594 = vadd.f32 %v2545, %v2593
        %v2595 = vpop.f32.mrf.mxu0
        %v2596 = vadd.f32 %v2547, %v2595
        %2597 = vmatmul.bf16.gmra.mxu0 %v972
        %v2598 = vpop.f32.mrf.mxu0
        %v2599 = vadd.f32 %v2550, %v2598
        %v2600 = vpop.f32.mrf.mxu0
        %v2601 = vadd.f32 %v2552, %v2600
        %2602 = vmatmul.bf16.gmra.mxu0 %v981
        %v2603 = vpop.f32.mrf.mxu0
        %v2604 = vadd.f32 %v2555, %v2603
        %v2605 = vpop.f32.mrf.mxu0
        %v2606 = vadd.f32 %v2557, %v2605
        %2607 = vdwg.mxu0
        %2608 = vmatpush.bf16.msra.mxu0 %v1630
        %2609 = vmatpush.bf16.msra.mxu0 %v1628
        %2610 = vmatpush.bf16.msra.mxu0 %v1626
        %2611 = vmatpush.bf16.msra.mxu0 %v1624
        %2612 = vmatpush.bf16.msra.mxu0 %v1622
        %2613 = vmatpush.bf16.msra.mxu0 %v1620
        %2614 = vmatpush.bf16.msra.mxu0 %v1618
        %2615 = vmatpush.bf16.msra.mxu0 %v1616
        %2616 = vmatmul.bf16.gmra.mxu0 %v919
        %v2617 = vpop.f32.mrf.mxu0
        %v2618 = vadd.f32 %v2569, %v2617
        %v2619 = vpop.f32.mrf.mxu0
        %v2620 = vadd.f32 %v2571, %v2619
        %2621 = vmatmul.bf16.gmra.mxu0 %v928
        %v2622 = vpop.f32.mrf.mxu0
        %v2623 = vadd.f32 %v2574, %v2622
        %v2624 = vpop.f32.mrf.mxu0
        %v2625 = vadd.f32 %v2576, %v2624
        %2626 = vmatmul.bf16.gmra.mxu0 %v937
        %v2627 = vpop.f32.mrf.mxu0
        %v2628 = vadd.f32 %v2579, %v2627
        %v2629 = vpop.f32.mrf.mxu0
        %v2630 = vadd.f32 %v2581, %v2629
        %2631 = vmatmul.bf16.gmra.mxu0 %v946
        %v2632 = vpop.f32.mrf.mxu0
        %v2633 = vadd.f32 %v2584, %v2632
        %v2634 = vpop.f32.mrf.mxu0
        %v2635 = vadd.f32 %v2586, %v2634
        %2636 = vmatmul.bf16.gmra.mxu0 %v955
        %v2637 = vpop.f32.mrf.mxu0
        %v2638 = vadd.f32 %v2589, %v2637
        %v2639 = vpop.f32.mrf.mxu0
        %v2640 = vadd.f32 %v2591, %v2639
        %2641 = vmatmul.bf16.gmra.mxu0 %v964
        %v2642 = vpop.f32.mrf.mxu0
        %v2643 = vadd.f32 %v2594, %v2642
        %v2644 = vpop.f32.mrf.mxu0
        %v2645 = vadd.f32 %v2596, %v2644
        %2646 = vmatmul.bf16.gmra.mxu0 %v973
        %v2647 = vpop.f32.mrf.mxu0
        %v2648 = vadd.f32 %v2599, %v2647
        %v2649 = vpop.f32.mrf.mxu0
        %v2650 = vadd.f32 %v2601, %v2649
        %2651 = vmatmul.bf16.gmra.mxu0 %v982
        %v2652 = vpop.f32.mrf.mxu0
        %v2653 = vadd.f32 %v2604, %v2652
        %v2654 = vpop.f32.mrf.mxu0
        %v2655 = vadd.f32 %v2606, %v2654
        %2656 = vdwg.mxu0
        %v2657 = vadd.f32 %v431, %v2177
        %v2658 = vadd.f32 %v432, %v2618
        %v2659 = vadd.f32 %v433, %v2179
        %v2660 = vadd.f32 %v434, %v2620
        %v2661 = vadd.f32 %v435, %v2182
        %v2662 = vadd.f32 %v436, %v2623
        %v2663 = vadd.f32 %v437, %v2184
        %v2664 = vadd.f32 %v438, %v2625
        %v2665 = vadd.f32 %v439, %v2187
        %v2666 = vadd.f32 %v440, %v2628
        %v2667 = vadd.f32 %v441, %v2189
        %v2668 = vadd.f32 %v442, %v2630
        %v2669 = vadd.f32 %v443, %v2192
        %v2670 = vadd.f32 %v444, %v2633
        %v2671 = vadd.f32 %v445, %v2194
        %v2672 = vadd.f32 %v446, %v2635
        %v2673 = vadd.f32 %v447, %v2197
        %v2674 = vadd.f32 %v448, %v2638
        %v2675 = vadd.f32 %v449, %v2199
        %v2676 = vadd.f32 %v450, %v2640
        %v2677 = vadd.f32 %v451, %v2202
        %v2678 = vadd.f32 %v452, %v2643
        %v2679 = vadd.f32 %v453, %v2204
        %v2680 = vadd.f32 %v454, %v2645
        %v2681 = vadd.f32 %v455, %v2207
        %v2682 = vadd.f32 %v456, %v2648
        %v2683 = vadd.f32 %v457, %v2209
        %v2684 = vadd.f32 %v458, %v2650
        %v2685 = vadd.f32 %v459, %v2212
        %v2686 = vadd.f32 %v460, %v2653
        %v2687 = vadd.f32 %v461, %v2214
        %v2688 = vadd.f32 %v462, %v2655
        %2689 = vst [vmem:[#allocation2] sm:$0xff] %v2657
        %2690 = vst [vmem:[#allocation2 + $0x8] sm:$0xff] %v2658
        %2691 = vst [vmem:[#allocation2 + $0x10] sm:$0xff] %v2659
        %2692 = vst [vmem:[#allocation2 + $0x18] sm:$0xff] %v2660
        %2693 = vst [vmem:[#allocation2 + $0x20] sm:$0xff] %v2661
        %2694 = vst [vmem:[#allocation2 + $0x28] sm:$0xff] %v2662
        %2695 = vst [vmem:[#allocation2 + $0x30] sm:$0xff] %v2663
        %2696 = vst [vmem:[#allocation2 + $0x38] sm:$0xff] %v2664
        %2697 = vst [vmem:[#allocation2 + $0x40] sm:$0xff] %v2665
        %2698 = vst [vmem:[#allocation2 + $0x48] sm:$0xff] %v2666
        %2699 = vst [vmem:[#allocation2 + $0x50] sm:$0xff] %v2667
        %2700 = vst [vmem:[#allocation2 + $0x58] sm:$0xff] %v2668
        %2701 = vst [vmem:[#allocation2 + $0x60] sm:$0xff] %v2669
        %2702 = vst [vmem:[#allocation2 + $0x68] sm:$0xff] %v2670
        %2703 = vst [vmem:[#allocation2 + $0x70] sm:$0xff] %v2671
        %2704 = vst [vmem:[#allocation2 + $0x78] sm:$0xff] %v2672
        %2705 = vst [vmem:[#allocation2 + $0x80] sm:$0xff] %v2673
        %2706 = vst [vmem:[#allocation2 + $0x88] sm:$0xff] %v2674
        %2707 = vst [vmem:[#allocation2 + $0x90] sm:$0xff] %v2675
        %2708 = vst [vmem:[#allocation2 + $0x98] sm:$0xff] %v2676
        %2709 = vst [vmem:[#allocation2 + $0xa0] sm:$0xff] %v2677
        %2710 = vst [vmem:[#allocation2 + $0xa8] sm:$0xff] %v2678
        %2711 = vst [vmem:[#allocation2 + $0xb0] sm:$0xff] %v2679
        %2712 = vst [vmem:[#allocation2 + $0xb8] sm:$0xff] %v2680
        %2713 = vst [vmem:[#allocation2 + $0xc0] sm:$0xff] %v2681
        %2714 = vst [vmem:[#allocation2 + $0xc8] sm:$0xff] %v2682
        %2715 = vst [vmem:[#allocation2 + $0xd0] sm:$0xff] %v2683
        %2716 = vst [vmem:[#allocation2 + $0xd8] sm:$0xff] %v2684
        %2717 = vst [vmem:[#allocation2 + $0xe0] sm:$0xff] %v2685
        %2718 = vst [vmem:[#allocation2 + $0xe8] sm:$0xff] %v2686
        %2719 = vst [vmem:[#allocation2 + $0xf0] sm:$0xff] %v2687
        %2720 = vst [vmem:[#allocation2 + $0xf8] sm:$0xff] %v2688
        %p2721 = scmp.eq.s32.totalorder %s20, 1
        // Predicated region
        $region63: #{asff_forward.7} parent=53 // pred_check
          %p2722 = pneg %p2721
        $region64: #{asff_forward.7} parent=53 // pred_check_branch
          %2724 = sbr.rel (%p2722) target = $region66
        $region65: #{asff_forward.7} parent=53 // pred_region
          %v2725 = vld [vmem:[#allocation2] sm:$0xff]
          %v2726 = vld [vmem:[#allocation2 + $0x8] sm:$0xff]
          %v2727 = vld [vmem:[#allocation2 + $0x10] sm:$0xff]
          %v2728 = vld [vmem:[#allocation2 + $0x18] sm:$0xff]
          %v2729 = vld [vmem:[#allocation2 + $0x20] sm:$0xff]
          %v2730 = vld [vmem:[#allocation2 + $0x28] sm:$0xff]
          %v2731 = vld [vmem:[#allocation2 + $0x30] sm:$0xff]
          %v2732 = vld [vmem:[#allocation2 + $0x38] sm:$0xff]
          %v2733 = vld [vmem:[#allocation2 + $0x40] sm:$0xff]
          %v2734 = vld [vmem:[#allocation2 + $0x48] sm:$0xff]
          %v2735 = vld [vmem:[#allocation2 + $0x50] sm:$0xff]
          %v2736 = vld [vmem:[#allocation2 + $0x58] sm:$0xff]
          %v2737 = vld [vmem:[#allocation2 + $0x60] sm:$0xff]
          %v2738 = vld [vmem:[#allocation2 + $0x68] sm:$0xff]
          %v2739 = vld [vmem:[#allocation2 + $0x70] sm:$0xff]
          %v2740 = vld [vmem:[#allocation2 + $0x78] sm:$0xff]
          %v2741 = vld [vmem:[#allocation2 + $0x80] sm:$0xff]
          %v2742 = vld [vmem:[#allocation2 + $0x88] sm:$0xff]
          %v2743 = vld [vmem:[#allocation2 + $0x90] sm:$0xff]
          %v2744 = vld [vmem:[#allocation2 + $0x98] sm:$0xff]
          %v2745 = vld [vmem:[#allocation2 + $0xa0] sm:$0xff]
          %v2746 = vld [vmem:[#allocation2 + $0xa8] sm:$0xff]
          %v2747 = vld [vmem:[#allocation2 + $0xb0] sm:$0xff]
          %v2748 = vld [vmem:[#allocation2 + $0xb8] sm:$0xff]
          %v2749 = vld [vmem:[#allocation2 + $0xc0] sm:$0xff]
          %v2750 = vld [vmem:[#allocation2 + $0xc8] sm:$0xff]
          %v2751 = vld [vmem:[#allocation2 + $0xd0] sm:$0xff]
          %v2752 = vld [vmem:[#allocation2 + $0xd8] sm:$0xff]
          %v2753 = vld [vmem:[#allocation2 + $0xe0] sm:$0xff]
          %v2754 = vld [vmem:[#allocation2 + $0xe8] sm:$0xff]
          %v2755 = vld [vmem:[#allocation2 + $0xf0] sm:$0xff]
          %v2756 = vld [vmem:[#allocation2 + $0xf8] sm:$0xff]
          %v2757 = vld [vmem:[%s2] ss:$2 sm:$0x3]
          %v2759 = vperm.slane %v2757, 0
          %v2760 = vperm.slane %v2757, 1
          %v2763 = vmul.f32 %v2725, %v2759
          %v2764 = vmul.f32 %v2726, %v2760
          %v2765 = vmul.f32 %v2727, %v2759
          %v2766 = vmul.f32 %v2728, %v2760
          %v2767 = vmul.f32 %v2729, %v2759
          %v2768 = vmul.f32 %v2730, %v2760
          %v2769 = vmul.f32 %v2731, %v2759
          %v2770 = vmul.f32 %v2732, %v2760
          %v2771 = vmul.f32 %v2733, %v2759
          %v2772 = vmul.f32 %v2734, %v2760
          %v2773 = vmul.f32 %v2735, %v2759
          %v2774 = vmul.f32 %v2736, %v2760
          %v2775 = vmul.f32 %v2737, %v2759
          %v2776 = vmul.f32 %v2738, %v2760
          %v2777 = vmul.f32 %v2739, %v2759
          %v2778 = vmul.f32 %v2740, %v2760
          %v2779 = vmul.f32 %v2741, %v2759
          %v2780 = vmul.f32 %v2742, %v2760
          %v2781 = vmul.f32 %v2743, %v2759
          %v2782 = vmul.f32 %v2744, %v2760
          %v2783 = vmul.f32 %v2745, %v2759
          %v2784 = vmul.f32 %v2746, %v2760
          %v2785 = vmul.f32 %v2747, %v2759
          %v2786 = vmul.f32 %v2748, %v2760
          %v2787 = vmul.f32 %v2749, %v2759
          %v2788 = vmul.f32 %v2750, %v2760
          %v2789 = vmul.f32 %v2751, %v2759
          %v2790 = vmul.f32 %v2752, %v2760
          %v2791 = vmul.f32 %v2753, %v2759
          %v2792 = vmul.f32 %v2754, %v2760
          %v2793 = vmul.f32 %v2755, %v2759
          %v2794 = vmul.f32 %v2756, %v2760
          %s2795 = scalar_lea.vmem %s2, 1
          %v2796 = vld [vmem:[%s2795] ss:$2 sm:$0x3]
          %v2798 = vperm.slane %v2796, 0
          %v2799 = vperm.slane %v2796, 1
          %v2802 = vadd.f32 %v2763, %v2798
          %v2803 = vadd.f32 %v2764, %v2799
          %v2804 = vadd.f32 %v2765, %v2798
          %v2805 = vadd.f32 %v2766, %v2799
          %v2806 = vadd.f32 %v2767, %v2798
          %v2807 = vadd.f32 %v2768, %v2799
          %v2808 = vadd.f32 %v2769, %v2798
          %v2809 = vadd.f32 %v2770, %v2799
          %v2810 = vadd.f32 %v2771, %v2798
          %v2811 = vadd.f32 %v2772, %v2799
          %v2812 = vadd.f32 %v2773, %v2798
          %v2813 = vadd.f32 %v2774, %v2799
          %v2814 = vadd.f32 %v2775, %v2798
          %v2815 = vadd.f32 %v2776, %v2799
          %v2816 = vadd.f32 %v2777, %v2798
          %v2817 = vadd.f32 %v2778, %v2799
          %v2818 = vadd.f32 %v2779, %v2798
          %v2819 = vadd.f32 %v2780, %v2799
          %v2820 = vadd.f32 %v2781, %v2798
          %v2821 = vadd.f32 %v2782, %v2799
          %v2822 = vadd.f32 %v2783, %v2798
          %v2823 = vadd.f32 %v2784, %v2799
          %v2824 = vadd.f32 %v2785, %v2798
          %v2825 = vadd.f32 %v2786, %v2799
          %v2826 = vadd.f32 %v2787, %v2798
          %v2827 = vadd.f32 %v2788, %v2799
          %v2828 = vadd.f32 %v2789, %v2798
          %v2829 = vadd.f32 %v2790, %v2799
          %v2830 = vadd.f32 %v2791, %v2798
          %v2831 = vadd.f32 %v2792, %v2799
          %v2832 = vadd.f32 %v2793, %v2798
          %v2833 = vadd.f32 %v2794, %v2799
          %v2834 = vmax.f32 %v2802, 0.0
          %v2835 = vmax.f32 %v2803, 0.0
          %v2836 = vmax.f32 %v2804, 0.0
          %v2837 = vmax.f32 %v2805, 0.0
          %v2838 = vmax.f32 %v2806, 0.0
          %v2839 = vmax.f32 %v2807, 0.0
          %v2840 = vmax.f32 %v2808, 0.0
          %v2841 = vmax.f32 %v2809, 0.0
          %v2842 = vmax.f32 %v2810, 0.0
          %v2843 = vmax.f32 %v2811, 0.0
          %v2844 = vmax.f32 %v2812, 0.0
          %v2845 = vmax.f32 %v2813, 0.0
          %v2846 = vmax.f32 %v2814, 0.0
          %v2847 = vmax.f32 %v2815, 0.0
          %v2848 = vmax.f32 %v2816, 0.0
          %v2849 = vmax.f32 %v2817, 0.0
          %v2850 = vmax.f32 %v2818, 0.0
          %v2851 = vmax.f32 %v2819, 0.0
          %v2852 = vmax.f32 %v2820, 0.0
          %v2853 = vmax.f32 %v2821, 0.0
          %v2854 = vmax.f32 %v2822, 0.0
          %v2855 = vmax.f32 %v2823, 0.0
          %v2856 = vmax.f32 %v2824, 0.0
          %v2857 = vmax.f32 %v2825, 0.0
          %v2858 = vmax.f32 %v2826, 0.0
          %v2859 = vmax.f32 %v2827, 0.0
          %v2860 = vmax.f32 %v2828, 0.0
          %v2861 = vmax.f32 %v2829, 0.0
          %v2862 = vmax.f32 %v2830, 0.0
          %v2863 = vmax.f32 %v2831, 0.0
          %v2864 = vmax.f32 %v2832, 0.0
          %v2865 = vmax.f32 %v2833, 0.0
          %v2866 = vmin.f32 %v2834, 6.0
          %v2867 = vmin.f32 %v2835, 6.0
          %v2868 = vmin.f32 %v2836, 6.0
          %v2869 = vmin.f32 %v2837, 6.0
          %v2870 = vmin.f32 %v2838, 6.0
          %v2871 = vmin.f32 %v2839, 6.0
          %v2872 = vmin.f32 %v2840, 6.0
          %v2873 = vmin.f32 %v2841, 6.0
          %v2874 = vmin.f32 %v2842, 6.0
          %v2875 = vmin.f32 %v2843, 6.0
          %v2876 = vmin.f32 %v2844, 6.0
          %v2877 = vmin.f32 %v2845, 6.0
          %v2878 = vmin.f32 %v2846, 6.0
          %v2879 = vmin.f32 %v2847, 6.0
          %v2880 = vmin.f32 %v2848, 6.0
          %v2881 = vmin.f32 %v2849, 6.0
          %v2882 = vmin.f32 %v2850, 6.0
          %v2883 = vmin.f32 %v2851, 6.0
          %v2884 = vmin.f32 %v2852, 6.0
          %v2885 = vmin.f32 %v2853, 6.0
          %v2886 = vmin.f32 %v2854, 6.0
          %v2887 = vmin.f32 %v2855, 6.0
          %v2888 = vmin.f32 %v2856, 6.0
          %v2889 = vmin.f32 %v2857, 6.0
          %v2890 = vmin.f32 %v2858, 6.0
          %v2891 = vmin.f32 %v2859, 6.0
          %v2892 = vmin.f32 %v2860, 6.0
          %v2893 = vmin.f32 %v2861, 6.0
          %v2894 = vmin.f32 %v2862, 6.0
          %v2895 = vmin.f32 %v2863, 6.0
          %v2896 = vmin.f32 %v2864, 6.0
          %v2897 = vmin.f32 %v2865, 6.0
          %2898 = vst [vmem:[#allocation4] sm:$0xff] %v2866
          %2899 = vst [vmem:[#allocation4 + $0x8] sm:$0xff] %v2867
          %2900 = vst [vmem:[#allocation4 + $0x10] sm:$0xff] %v2868
          %2901 = vst [vmem:[#allocation4 + $0x18] sm:$0xff] %v2869
          %2902 = vst [vmem:[#allocation4 + $0x20] sm:$0xff] %v2870
          %2903 = vst [vmem:[#allocation4 + $0x28] sm:$0xff] %v2871
          %2904 = vst [vmem:[#allocation4 + $0x30] sm:$0xff] %v2872
          %2905 = vst [vmem:[#allocation4 + $0x38] sm:$0xff] %v2873
          %2906 = vst [vmem:[#allocation4 + $0x40] sm:$0xff] %v2874
          %2907 = vst [vmem:[#allocation4 + $0x48] sm:$0xff] %v2875
          %2908 = vst [vmem:[#allocation4 + $0x50] sm:$0xff] %v2876
          %2909 = vst [vmem:[#allocation4 + $0x58] sm:$0xff] %v2877
          %2910 = vst [vmem:[#allocation4 + $0x60] sm:$0xff] %v2878
          %2911 = vst [vmem:[#allocation4 + $0x68] sm:$0xff] %v2879
          %2912 = vst [vmem:[#allocation4 + $0x70] sm:$0xff] %v2880
          %2913 = vst [vmem:[#allocation4 + $0x78] sm:$0xff] %v2881
          %2914 = vst [vmem:[#allocation4 + $0x80] sm:$0xff] %v2882
          %2915 = vst [vmem:[#allocation4 + $0x88] sm:$0xff] %v2883
          %2916 = vst [vmem:[#allocation4 + $0x90] sm:$0xff] %v2884
          %2917 = vst [vmem:[#allocation4 + $0x98] sm:$0xff] %v2885
          %2918 = vst [vmem:[#allocation4 + $0xa0] sm:$0xff] %v2886
          %2919 = vst [vmem:[#allocation4 + $0xa8] sm:$0xff] %v2887
          %2920 = vst [vmem:[#allocation4 + $0xb0] sm:$0xff] %v2888
          %2921 = vst [vmem:[#allocation4 + $0xb8] sm:$0xff] %v2889
          %2922 = vst [vmem:[#allocation4 + $0xc0] sm:$0xff] %v2890
          %2923 = vst [vmem:[#allocation4 + $0xc8] sm:$0xff] %v2891
          %2924 = vst [vmem:[#allocation4 + $0xd0] sm:$0xff] %v2892
          %2925 = vst [vmem:[#allocation4 + $0xd8] sm:$0xff] %v2893
          %2926 = vst [vmem:[#allocation4 + $0xe0] sm:$0xff] %v2894
          %2927 = vst [vmem:[#allocation4 + $0xe8] sm:$0xff] %v2895
          %2928 = vst [vmem:[#allocation4 + $0xf0] sm:$0xff] %v2896
          %2929 = vst [vmem:[#allocation4 + $0xf8] sm:$0xff] %v2897
        $region66: #{asff_forward.7} parent=53 // pred_fallthru
          _
        // Predicated region
        $region67: #{asff_forward.7} parent=53 // pred_check
          %p2930 = pneg %p120
        $region68: #{asff_forward.7} parent=53 // pred_check_branch
          %2932 = sbr.rel (%p2930) target = $region70
        $region69: #{asff_forward.7} parent=53 // pred_region
          %s2933 = smul.u32 16, %s19
          %2935 = vsyncadd [#allocation5], 0
          %s2936 = smul.addr %s2933, 2
          %s2937 = smul.addr %s2936, 8
          %s2938 = scalar_lea.hbm %s3, %s2937
          %s2939 = sshll.u32 [#allocation4], 4
          %s2940 = int_to_ptr.vmem [resolvable:$true] %s2939
          %s2941 = sshll.u32 %s2938, 4
          %s2942 = int_to_ptr.hbm [resolvable:$true] %s2941
          %2947 = dma.vmem_to_hbm [thread:$0]  %s2940, 4096, %s2942, [#allocation5], 256, 256, 16
        $region70: #{asff_forward.7} parent=53 // pred_fallthru
          _
        // Predicated region
        $region71: #{asff_forward.7} parent=53 // pred_check
          %p2948 = pneg %p120
        $region72: #{asff_forward.7} parent=53 // pred_check_branch
          %2950 = sbr.rel (%p2948) target = $region74
        $region73: #{asff_forward.7} parent=53 // pred_region
          %2952 = dma.done [#allocation5], 4096
        $region74: #{asff_forward.7} parent=53 // pred_fallthru
          _
      $region54: #{asff_forward.7} parent=5 // pred_fallthru
        _
      %p2953 = scmp.le.s32.totalorder 2, %s10
      // Predicated region
      $region75: #{asff_forward.7} parent=5 // pred_check
        %p2954 = pneg %p2953
      $region76: #{asff_forward.7} parent=5 // pred_check_branch
        %2956 = sbr.rel (%p2954) target = $region78
      $region77: #{asff_forward.7} parent=5 // pred_region
        %s2957 = ssub.s32 %s10, 2
      $region78: #{asff_forward.7} parent=5 // pred_fallthru
        _
    $region6: #{asff_forward.7} parent=1 // loop_footer
      %s14 = sadd.s32 1, %s10
    $region7: #{asff_forward.7} parent=1 // loop_footer_branch
      %9 = sbr.rel target = $region3
    $region8: #{asff_forward.7} parent=1 // loop_exit
      _
    %2958 = vsyncpa [#allocation5], 1
    %s2959 = scalar_lea.sflag [#allocation5], 1
    %2960 = vsyncpa %s2959, 1

</llo_original>
